<compile_context>
chip_gen: v5e
topology: v5e:2x2
jax: 0.10.0
libtpu: 0.0.40
codegen_flags: <defaults>
</compile_context>

<pallas_src>
import functools
import math

import jax
import jax.numpy as jnp
from jax.experimental import pallas as pl
from jax.experimental.pallas import tpu as pltpu

_VMEM_LIMIT = 48 * 1024 * 1024   # safe for v7x (64 MiB physical), fine on v5e/v6e
_LN_EPS = 1e-5


def _pick_tile(dim, cap):
    """Largest divisor of `dim` that is <= cap (dim itself if dim <= cap)."""
    if dim <= cap:
        return dim
    for t in range(cap, 0, -1):
        if dim % t == 0:
            return t
    return dim


def _pick_row_tile(m, cap):
    """Row tile; prefer >= 2 programs along the parallel M axis (v7x has 2 TCs)."""
    tm = _pick_tile(m, cap)
    if m // tm < 2 and m >= 16:
        tm = _pick_tile(m, max(8, m // 2))
    return tm


def _gelu(y):
    # tanh-approximate GELU (f32 math)
    # TODO(synk): timm uses exact erf-GELU; tanh approximation used here.
    c = math.sqrt(2.0 / math.pi)
    return 0.5 * y * (1.0 + jnp.tanh(c * (y + 0.044715 * y * y * y)))


# --------------------------------------------------------------------------
# Tiled matmul: y = act(x @ w + b) [+ LN over features] [+ residual]
# f32 MXU accumulation, bf16 operands, bf16 output.
# --------------------------------------------------------------------------
def _matmul_kernel(*refs, activation, has_residual, has_ln):
    x_ref, w_ref, b_ref = refs[0], refs[1], refs[2]
    pos = 3
    r_ref = g_ref = lb_ref = None
    if has_residual:
        r_ref = refs[pos]; pos += 1
    if has_ln:
        g_ref, lb_ref = refs[pos], refs[pos + 1]; pos += 2
    o_ref, acc_ref = refs[pos], refs[pos + 1]

    @pl.when(pl.program_id(2) == 0)
    def _init():
        acc_ref[...] = jnp.zeros_like(acc_ref)

    acc_ref[...] += jnp.dot(x_ref[...], w_ref[...],
                            preferred_element_type=jnp.float32)

    @pl.when(pl.program_id(2) == pl.num_programs(2) - 1)
    def _finalize():
        y = acc_ref[...] + b_ref[...]
        if activation == "gelu":
            y = _gelu(y)
        if has_ln:  # fused output LayerNorm (tile holds the full feature row)
            mu = jnp.mean(y, axis=-1, keepdims=True)
            yc = y - mu
            var = jnp.mean(yc * yc, axis=-1, keepdims=True)
            y = yc * jax.lax.rsqrt(var + _LN_EPS) * g_ref[...] + lb_ref[...]
        if has_residual:
            y = y + r_ref[...].astype(jnp.float32)
        o_ref[...] = y.astype(o_ref.dtype)


def pallas_linear(x, w, b=None, activation=None, residual=None,
                  out_layernorm=None, out_dtype=jnp.bfloat16):
    """y = act(x @ w + b) [LN] [+ residual].  x:(M,K)  w:(K,N)."""
    M, K = x.shape
    N = w.shape[1]
    x = x.astype(jnp.bfloat16)
    w = w.astype(jnp.bfloat16)
    if b is None:
        b = jnp.zeros((N,), jnp.float32)

    tm = _pick_row_tile(M, 256)
    tn = _pick_tile(N, 256)
    tk = _pick_tile(K, 512)
    if out_layernorm is not None:
        tn = N   # LN over output features needs the full feature row per tile
    grid = (M // tm, N // tn, K // tk)

    in_specs = [pl.BlockSpec((tm, tk), lambda i, j, k: (i, k)),
                pl.BlockSpec((tk, tn), lambda i, j, k: (k, j)),
                pl.BlockSpec((1, tn), lambda i, j, k: (0, j))]
    args = [x, w, b.reshape(1, N).astype(jnp.float32)]
    if residual is not None:
        in_specs.append(pl.BlockSpec((tm, tn), lambda i, j, k: (i, j)))
        args.append(residual.astype(jnp.bfloat16))
    if out_layernorm is not None:
        g, lb = out_layernorm
        in_specs.append(pl.BlockSpec((1, tn), lambda i, j, k: (0, j)))
        in_specs.append(pl.BlockSpec((1, tn), lambda i, j, k: (0, j)))
        args.append(g.reshape(1, N).astype(jnp.float32))
        args.append(lb.reshape(1, N).astype(jnp.float32))

    return pl.pallas_call(
        functools.partial(_matmul_kernel, activation=activation,
                          has_residual=residual is not None,
                          has_ln=out_layernorm is not None),
        out_shape=jax.ShapeDtypeStruct((M, N), out_dtype),
        grid=grid,
        in_specs=in_specs,
        out_specs=pl.BlockSpec((tm, tn), lambda i, j, k: (i, j)),
        scratch_shapes=[pltpu.VMEM((tm, tn), jnp.float32)],
        compiler_params=pltpu.CompilerParams(
            dimension_semantics=("parallel", "parallel", "arbitrary"),
            vmem_limit_bytes=_VMEM_LIMIT),
    )(*args)


# --------------------------------------------------------------------------
# Fused LayerNorm + matmul: LN computed once per row tile (j == 0) into a
# bf16 VMEM scratch and reused for every output tile along N.
# --------------------------------------------------------------------------
def _ln_linear_kernel(x_ref, g_ref, b_ref, w_ref, bias_ref, o_ref, xn_ref, *,
                      activation):
    @pl.when(pl.program_id(1) == 0)
    def _normalize():
        x = x_ref[...].astype(jnp.float32)          # (tm, K)
        mu = jnp.mean(x, axis=-1, keepdims=True)
        xc = x - mu
        var = jnp.mean(xc * xc, axis=-1, keepdims=True)
        xn = xc * jax.lax.rsqrt(var + _LN_EPS) * g_ref[...] + b_ref[...]
        xn_ref[...] = xn.astype(jnp.bfloat16)

    y = jnp.dot(xn_ref[...], w_ref[...],
                preferred_element_type=jnp.float32) + bias_ref[...]
    if activation == "gelu":
        y = _gelu(y)
    o_ref[...] = y.astype(o_ref.dtype)


def pallas_ln_linear(x, g, b, w, bias=None, activation=None,
                     out_dtype=jnp.bfloat16):
    """y = act(LN(x) @ w + bias).  x:(M,K) bf16, w:(K,N) bf16."""
    M, K = x.shape
    N = w.shape[1]
    if bias is None:
        bias = jnp.zeros((N,), jnp.float32)
    tm = _pick_row_tile(M, 256)
    tn = _pick_tile(N, 256)
    grid = (M // tm, N // tn)
    return pl.pallas_call(
        functools.partial(_ln_linear_kernel, activation=activation),
        out_shape=jax.ShapeDtypeStruct((M, N), out_dtype),
        grid=grid,
        in_specs=[pl.BlockSpec((tm, K), lambda i, j: (i, 0)),
                  pl.BlockSpec((1, K), lambda i, j: (0, 0)),
                  pl.BlockSpec((1, K), lambda i, j: (0, 0)),
                  pl.BlockSpec((K, tn), lambda i, j: (0, j)),
                  pl.BlockSpec((1, tn), lambda i, j: (0, j))],
        out_specs=pl.BlockSpec((tm, tn), lambda i, j: (i, j)),
        scratch_shapes=[pltpu.VMEM((tm, K), jnp.bfloat16)],
        compiler_params=pltpu.CompilerParams(
            # j must be "arbitrary": the xn scratch carries state across j.
            dimension_semantics=("parallel", "arbitrary"),
            vmem_limit_bytes=_VMEM_LIMIT),
    )(x.astype(jnp.bfloat16), g.reshape(1, K).astype(jnp.float32),
      b.reshape(1, K).astype(jnp.float32), w.astype(jnp.bfloat16),
      bias.reshape(1, N).astype(jnp.float32))


# --------------------------------------------------------------------------
# Fused window attention: heads sliced from the lane-dense (L, 3C) QKV block,
# one K transpose per grid step, batched softmax, single (L,C)@(C,C) output
# projection, residual add.  One batch element (window) per grid step.
# --------------------------------------------------------------------------
def _window_attn_kernel(qkv_ref, bias_ref, pw_ref, pb_ref, x_ref, o_ref, *,
                        nh, hd, scale):
    C = nh * hd
    qkv = qkv_ref[0]                              # (L, 3C) bf16, lane-dense
    L = qkv.shape[0]
    q = qkv[:, :C]
    k = qkv[:, C:2 * C]
    v = qkv[:, 2 * C:]
    # one transpose, amortized over all heads (f32 transpose for portability)
    kt = jnp.transpose(k.astype(jnp.float32)).astype(jnp.bfloat16)   # (C, L)
    bias = bias_ref[...]                          # (nh, L, L) f32

    # per-head scores, then one batched softmax over (nh*L, L)
    scores = []
    for h in range(nh):
        s = jnp.dot(q[:, h * hd:(h + 1) * hd], kt[h * hd:(h + 1) * hd, :],
                    preferred_element_type=jnp.float32)
        scores.append(s * scale + bias[h])
    s_all = jnp.concatenate(scores, axis=0)       # (nh*L, L) f32
    s_all = s_all - jnp.max(s_all, axis=-1, keepdims=True)
    p_all = jnp.exp(s_all)
    p_all = (p_all * pl.reciprocal(jnp.sum(p_all, axis=-1, keepdims=True),
                                   approx=True)).astype(jnp.bfloat16)

    # per-head P @ V, concatenated along lanes -> ONE full-K projection matmul
    heads = []
    for h in range(nh):
        heads.append(jnp.dot(p_all[h * L:(h + 1) * L, :],
                             v[:, h * hd:(h + 1) * hd],
                             preferred_element_type=jnp.float32))
    a = jnp.concatenate(heads, axis=-1).astype(jnp.bfloat16)          # (L, C)
    out = jnp.dot(a, pw_ref[...], preferred_element_type=jnp.float32)
    out = out + pb_ref[...] + x_ref[0].astype(jnp.float32)            # resid
    o_ref[0] = out.astype(o_ref.dtype)


def pallas_window_attention(qkv, bias, proj_w, proj_b, x, *, nh, scale):
    """qkv:(B,L,3C) bf16  bias:(nh,L,L)  proj_w:(C,C)  x:(B,L,C) bf16."""
    B, L, C3 = qkv.shape
    C = C3 // 3
    hd = C // nh
    return pl.pallas_call(
        functools.partial(_window_attn_kernel, nh=nh, hd=hd, scale=scale),
        out_shape=jax.ShapeDtypeStruct((B, L, C), jnp.bfloat16),
        grid=(B,),
        in_specs=[pl.BlockSpec((1, L, 3 * C), lambda b: (b, 0, 0)),
                  pl.BlockSpec((nh, L, L), lambda b: (0, 0, 0)),
                  pl.BlockSpec((C, C), lambda b: (0, 0)),
                  pl.BlockSpec((1, C), lambda b: (0, 0)),
                  pl.BlockSpec((1, L, C), lambda b: (b, 0, 0))],
        out_specs=pl.BlockSpec((1, L, C), lambda b: (b, 0, 0)),
        compiler_params=pltpu.CompilerParams(
            dimension_semantics=("parallel",),
            vmem_limit_bytes=_VMEM_LIMIT),
    )(qkv, bias, proj_w.astype(jnp.bfloat16),
      proj_b.reshape(1, C).astype(jnp.float32), x.astype(jnp.bfloat16))


# --------------------------------------------------------------------------
# Fused tail: final LayerNorm + global average pool + classifier head.
# Grid over B (pipelined per-image DMA); resident lane-padded output block.
# --------------------------------------------------------------------------
def _tail_kernel(x_ref, g_ref, b_ref, hw_ref, hb_ref, o_ref):
    bi = pl.program_id(0)
    x = x_ref[0].astype(jnp.float32)                  # (L, C)
    mu = jnp.mean(x, axis=-1, keepdims=True)
    xc = x - mu
    var = jnp.mean(xc * xc, axis=-1, keepdims=True)
    xn = xc * jax.lax.rsqrt(var + _LN_EPS) * g_ref[...] + b_ref[...]
    pooled = jnp.mean(xn, axis=0, keepdims=True)      # (1, C) global avg pool
    logits = jnp.dot(pooled.astype(jnp.bfloat16), hw_ref[...],
                     preferred_element_type=jnp.float32) + hb_ref[...]
    o_ref[pl.ds(bi, 1), :] = logits


def pallas_head(x, g, b, head_w_pad, head_b_pad):
    B, L, C = x.shape
    Np = head_w_pad.shape[1]
    return pl.pallas_call(
        _tail_kernel,
        out_shape=jax.ShapeDtypeStruct((B, Np), jnp.float32),
        grid=(B,),
        in_specs=[pl.BlockSpec((1, L, C), lambda i: (i, 0, 0)),
                  pl.BlockSpec((1, C), lambda i: (0, 0)),
                  pl.BlockSpec((1, C), lambda i: (0, 0)),
                  pl.BlockSpec((C, Np), lambda i: (0, 0)),
                  pl.BlockSpec((1, Np), lambda i: (0, 0))],
        # output block stays resident across the grid; each step writes its row
        out_specs=pl.BlockSpec((B, Np), lambda i: (0, 0)),
        compiler_params=pltpu.CompilerParams(
            dimension_semantics=("arbitrary",),
            vmem_limit_bytes=_VMEM_LIMIT),
    )(x.astype(jnp.bfloat16), g.reshape(1, C).astype(jnp.float32),
      b.reshape(1, C).astype(jnp.float32), head_w_pad.astype(jnp.bfloat16),
      head_b_pad.reshape(1, Np).astype(jnp.float32))


# --------------------------------------------------------------------------
# Parameter construction (deterministic synthetic init, kernel-ready layouts)
# --------------------------------------------------------------------------
def _normal(key, shape, std=0.02):
    return std * jax.random.normal(key, shape, dtype=jnp.float32)


def relative_position_index(ws):
    coords = jnp.stack(
        jnp.meshgrid(jnp.arange(ws), jnp.arange(ws), indexing="ij"), 0)
    cf = coords.reshape(2, -1)
    rel = (cf[:, :, None] - cf[:, None, :]).transpose(1, 2, 0)
    rel = rel + jnp.array([ws - 1, ws - 1])
    return rel[..., 0] * (2 * ws - 1) + rel[..., 1]          # (N, N) int


def init_params(key, *, in_chans=3, patch=4, embed_dim=32, depths=(2, 2),
                num_heads=(4, 8), mlp_ratio=4, window_sizes=(4, 2),
                out_features=10):
    keys = iter(jax.random.split(key, 256))
    bf16 = jnp.bfloat16
    p = {}
    # Patch embed: Conv2d(3, C, 4, stride=4) expressed as matmul (+ fused LN).
    p["patch_w"] = _normal(next(keys), (in_chans * patch * patch,
                                        embed_dim)).astype(bf16)
    p["patch_b"] = jnp.zeros((embed_dim,), jnp.float32)
    p["patch_ln_g"] = jnp.ones((embed_dim,), jnp.float32)
    p["patch_ln_b"] = jnp.zeros((embed_dim,), jnp.float32)

    stages = []
    dim = embed_dim
    for si, depth in enumerate(depths):
        ws, nh = window_sizes[si], num_heads[si]
        N = ws * ws
        idx = relative_position_index(ws)                    # (N, N)
        blocks = []
        for _ in range(depth):
            table = _normal(next(keys), ((2 * ws - 1) * (2 * ws - 1), nh))
            # relative-position bias gather hoisted out of the forward pass
            rel_bias = table[idx].transpose(2, 0, 1)          # (nh, N, N) f32
            blocks.append(dict(
                ln1_g=jnp.ones((dim,), jnp.float32),
                ln1_b=jnp.zeros((dim,), jnp.float32),
                qkv_w=_normal(next(keys), (dim, 3 * dim)).astype(bf16),
                qkv_b=jnp.zeros((3 * dim,), jnp.float32),
                proj_w=_normal(next(keys), (dim, dim)).astype(bf16),
                proj_b=jnp.zeros((dim,), jnp.float32),
                rel_bias=rel_bias,
                ln2_g=jnp.ones((dim,), jnp.float32),
                ln2_b=jnp.zeros((dim,), jnp.float32),
                fc1_w=_normal(next(keys), (dim, mlp_ratio * dim)).astype(bf16),
                fc1_b=jnp.zeros((mlp_ratio * dim,), jnp.float32),
                fc2_w=_normal(next(keys), (mlp_ratio * dim, dim)).astype(bf16),
                fc2_b=jnp.zeros((dim,), jnp.float32),
            ))
        stage = dict(blocks=blocks)
        if si < len(depths) - 1:
            stage["merge_ln_g"] = jnp.ones((4 * dim,), jnp.float32)
            stage["merge_ln_b"] = jnp.zeros((4 * dim,), jnp.float32)
            stage["merge_w"] = _normal(next(keys),
                                       (4 * dim, 2 * dim)).astype(bf16)
            dim = 2 * dim
        stages.append(stage)
    p["stages"] = stages
    p["norm_g"] = jnp.ones((dim,), jnp.float32)
    p["norm_b"] = jnp.zeros((dim,), jnp.float32)
    # head weight padded to a lane-friendly width (multiple of 128 lanes)
    Np = max(128, ((out_features + 127) // 128) * 128)
    head_w = _normal(next(keys), (dim, out_features))
    p["head_w"] = jnp.zeros((dim, Np), jnp.float32).at[
        :, :out_features].set(head_w).astype(bf16)
    p["head_b"] = jnp.zeros((Np,), jnp.float32)
    return p


# --------------------------------------------------------------------------
# Model forward (glue in JAX, hot paths in fused Pallas kernels)
# --------------------------------------------------------------------------
def swin_block(x, blk, nh):
    # Window covers the whole (small) feature map, so shift = 0 and there is a
    # single window per image (matches timm when window >= resolution).
    # TODO(synk): shifted-window attention masking for maps larger than window.
    B, L, C = x.shape
    hd = C // nh

    xf = x.reshape(B * L, C)
    # LN1 fused into the QKV projection; QKV kept lane-dense (B, L, 3C) bf16
    # and heads sliced with static lane offsets inside the attention kernel.
    qkv = pallas_ln_linear(xf, blk["ln1_g"], blk["ln1_b"],
                           blk["qkv_w"], blk["qkv_b"]).reshape(B, L, 3 * C)

    # attention + rel-pos bias + single full-K output projection + residual
    attn = pallas_window_attention(qkv, blk["rel_bias"], blk["proj_w"],
                                   blk["proj_b"], x, nh=nh, scale=hd ** -0.5)

    af = attn.reshape(B * L, C)
    # LN2 fused into FC1 (+GELU); residual fused into the FC2 output.
    h1 = pallas_ln_linear(af, blk["ln2_g"], blk["ln2_b"],
                          blk["fc1_w"], blk["fc1_b"], activation="gelu")
    out = pallas_linear(h1, blk["fc2_w"], blk["fc2_b"], residual=af)
    return out.reshape(B, L, C)


def patch_merging(x, stage, H, W):
    B, L, C = x.shape
    xg = x.reshape(B, H, W, C)
    # TODO(synk): express the 2x2 gather via strided-input BlockSpecs so the
    # concat never materializes in HBM; kept in XLA glue (bf16) for now.
    xm = jnp.concatenate(
        [xg[:, 0::2, 0::2], xg[:, 1::2, 0::2],
         xg[:, 0::2, 1::2], xg[:, 1::2, 1::2]], axis=-1)       # (B,H/2,W/2,4C)
    xm = xm.reshape(B * (H // 2) * (W // 2), 4 * C)
    # merge LayerNorm fused into the (bias-free) reduction linear
    xm = pallas_ln_linear(xm, stage["merge_ln_g"], stage["merge_ln_b"],
                          stage["merge_w"], None)
    return xm.reshape(B, (H // 2) * (W // 2), 2 * C), H // 2, W // 2


def image_backbone_forward(params, x, *, patch=4, num_heads=(4, 8),
                           out_features=10):
    # layout: x is NCHW (B, 3, H, W), matching the PyTorch conv input.
    B, Cin, H, W = x.shape
    Hp, Wp = H // patch, W // patch

    # Patch embedding: non-overlapping 4x4 patches flattened as (Cin, kh, kw),
    # same layout as PyTorch conv weight.reshape(Cout, Cin*kh*kw); the
    # embedding LayerNorm rides in the matmul finalize.
    xp = x.reshape(B, Cin, Hp, patch, Wp, patch)
    xp = xp.transpose(0, 2, 4, 1, 3, 5).reshape(B * Hp * Wp,
                                                Cin * patch * patch)
    tok = pallas_linear(xp, params["patch_w"], params["patch_b"],
                        out_layernorm=(params["patch_ln_g"],
                                       params["patch_ln_b"]))
    C = params["patch_ln_g"].shape[0]
    xt = tok.reshape(B, Hp * Wp, C)

    h, w = Hp, Wp
    for si, stage in enumerate(params["stages"]):
        for blk in stage["blocks"]:
            xt = swin_block(xt, blk, num_heads[si])
        if "merge_w" in stage:
            xt, h, w = patch_merging(xt, stage, h, w)

    # fused final LN + global average pool + classifier head (padded lanes)
    logits_pad = pallas_head(xt, params["norm_g"], params["norm_b"],
                             params["head_w"], params["head_b"])
    return logits_pad[:, :out_features]


# --------------------------------------------------------------------------
if __name__ == "__main__":
    key = jax.random.PRNGKey(0)
    pkey, xkey = jax.random.split(key)
    out_features = 10
    params = init_params(pkey, out_features=out_features)
    x = jax.random.normal(xkey, (2, 3, 16, 16), dtype=jnp.float32)  # NCHW

    fwd = jax.jit(functools.partial(image_backbone_forward,
                                    out_features=out_features))
    logits = fwd(params, x)
    jax.block_until_ready(logits)
    assert logits.shape == (2, out_features)
    assert bool(jnp.all(jnp.isfinite(logits)))
    print("KERNEL_OK")
</pallas_src>

<mosaic_0001>
module attributes {stable_mosaic.version = 11 : i64} {
  func.func @_matmul_kernel(%arg0: i32, %arg1: i32, %arg2: i32, %arg3: memref<16x48xbf16, #tpu.memory_space<vmem>>, %arg4: memref<48x32xbf16, #tpu.memory_space<vmem>>, %arg5: memref<1x32xf32, #tpu.memory_space<vmem>>, %arg6: memref<1x32xf32, #tpu.memory_space<vmem>>, %arg7: memref<1x32xf32, #tpu.memory_space<vmem>>, %arg8: memref<16x32xbf16, #tpu.memory_space<vmem>>, %arg9: memref<16x32xf32, #tpu.memory_space<vmem>>) attributes {dimension_semantics = [#tpu.dimension_semantics<parallel>, #tpu.dimension_semantics<parallel>, #tpu.dimension_semantics<arbitrary>], iteration_bounds = array<i64: 2, 1, 1>, scalar_prefetch = 0 : i64, scratch_operands = 1 : i64, tpu.core_type = #tpu.core_type<tc>, window_params = [{transform_indices = @transform_0, window_bounds = array<i64: 16, 48>}, {transform_indices = @transform_1, window_bounds = array<i64: 48, 32>}, {transform_indices = @transform_2, window_bounds = array<i64: 1, 32>}, {transform_indices = @transform_3, window_bounds = array<i64: 1, 32>}, {transform_indices = @transform_4, window_bounds = array<i64: 1, 32>}, {transform_indices = @transform_5, window_bounds = array<i64: 16, 32>}]} {
    %c0_i32 = arith.constant 0 : i32
    %0 = arith.cmpi eq, %arg2, %c0_i32 : i32
    %1 = arith.extui %0 : i1 to i32
    %c0_i32_0 = arith.constant 0 : i32
    %2 = arith.cmpi ne, %1, %c0_i32_0 : i32
    scf.if %2 {
      %cst_10 = arith.constant 0.000000e+00 : f32
      %12 = vector.broadcast %cst_10 : f32 to vector<16x32xf32>
      %c0_11 = arith.constant 0 : index
      %c0_12 = arith.constant 0 : index
      %13 = vector.load %arg9[%c0_11, %c0_12] : memref<16x32xf32, #tpu.memory_space<vmem>>, vector<16x32xf32>
      tpu.vector_store %arg9[%c0_11, %c0_12], %12 {strides = array<i32>} : memref<16x32xf32, #tpu.memory_space<vmem>>, vector<16x32xf32>,
    } else {
    }
    %c0 = arith.constant 0 : index
    %c0_1 = arith.constant 0 : index
    %3 = vector.load %arg9[%c0, %c0_1] : memref<16x32xf32, #tpu.memory_space<vmem>>, vector<16x32xf32>
    %c0_2 = arith.constant 0 : index
    %c0_3 = arith.constant 0 : index
    %4 = vector.load %arg3[%c0_2, %c0_3] : memref<16x48xbf16, #tpu.memory_space<vmem>>, vector<16x48xbf16>
    %c0_4 = arith.constant 0 : index
    %c0_5 = arith.constant 0 : index
    %5 = vector.load %arg4[%c0_4, %c0_5] : memref<48x32xbf16, #tpu.memory_space<vmem>>, vector<48x32xbf16>
    %cst = arith.constant dense<0.000000e+00> : vector<16x32xf32>
    %6 = tpu.matmul %4, %5, %cst {dimension_numbers = #tpu.dot_dimension_numbers<[1], [0], [0], [1], [0, 0, 1, 1], [], []>} : vector<16x48xbf16>, vector<48x32xbf16>, vector<16x32xf32> -> vector<16x32xf32>
    %7 = arith.addf %3, %6 : vector<16x32xf32>
    %c0_6 = arith.constant 0 : index
    %c0_7 = arith.constant 0 : index
    %8 = vector.load %arg9[%c0_6, %c0_7] : memref<16x32xf32, #tpu.memory_space<vmem>>, vector<16x32xf32>
    tpu.vector_store %arg9[%c0_6, %c0_7], %7 {strides = array<i32>} : memref<16x32xf32, #tpu.memory_space<vmem>>, vector<16x32xf32>,
    %c0_i32_8 = arith.constant 0 : i32
    %9 = arith.cmpi eq, %arg2, %c0_i32_8 : i32
    %10 = arith.extui %9 : i1 to i32
    %c0_i32_9 = arith.constant 0 : i32
    %11 = arith.cmpi ne, %10, %c0_i32_9 : i32
    scf.if %11 {
      %c0_10 = arith.constant 0 : index
      %c0_11 = arith.constant 0 : index
      %12 = vector.load %arg9[%c0_10, %c0_11] : memref<16x32xf32, #tpu.memory_space<vmem>>, vector<16x32xf32>
      %c0_12 = arith.constant 0 : index
      %c0_13 = arith.constant 0 : index
      %13 = vector.load %arg5[%c0_12, %c0_13] : memref<1x32xf32, #tpu.memory_space<vmem>>, vector<1x32xf32>
      %14 = vector.broadcast %13 : vector<1x32xf32> to vector<16x32xf32>
      %15 = arith.addf %12, %14 : vector<16x32xf32>
      %cst_14 = arith.constant dense<0.000000e+00> : vector<16xf32>
      %16 = vector.multi_reduction <add>, %15, %cst_14 [1] : vector<16x32xf32> to vector<16xf32>
      %17 = vector.shape_cast %16 : vector<16xf32> to vector<16x1xf32>
      %cst_15 = arith.constant 3.200000e+01 : f32
      %18 = vector.broadcast %cst_15 : f32 to vector<16x1xf32>
      %19 = arith.divf %17, %18 : vector<16x1xf32>
      %20 = vector.broadcast %19 : vector<16x1xf32> to vector<16x32xf32>
      %21 = arith.subf %15, %20 : vector<16x32xf32>
      %22 = arith.mulf %21, %21 : vector<16x32xf32>
      %cst_16 = arith.constant dense<0.000000e+00> : vector<16xf32>
      %23 = vector.multi_reduction <add>, %22, %cst_16 [1] : vector<16x32xf32> to vector<16xf32>
      %24 = vector.shape_cast %23 : vector<16xf32> to vector<16x1xf32>
      %cst_17 = arith.constant 3.200000e+01 : f32
      %25 = vector.broadcast %cst_17 : f32 to vector<16x1xf32>
      %26 = arith.divf %24, %25 : vector<16x1xf32>
      %cst_18 = arith.constant 9.99999974E-6 : f32
      %27 = vector.broadcast %cst_18 : f32 to vector<16x1xf32>
      %28 = arith.addf %26, %27 : vector<16x1xf32>
      %29 = math.rsqrt %28 : vector<16x1xf32>
      %30 = vector.broadcast %29 : vector<16x1xf32> to vector<16x32xf32>
      %31 = arith.mulf %21, %30 : vector<16x32xf32>
      %c0_19 = arith.constant 0 : index
      %c0_20 = arith.constant 0 : index
      %32 = vector.load %arg6[%c0_19, %c0_20] : memref<1x32xf32, #tpu.memory_space<vmem>>, vector<1x32xf32>
      %33 = vector.broadcast %32 : vector<1x32xf32> to vector<16x32xf32>
      %34 = arith.mulf %31, %33 : vector<16x32xf32>
      %c0_21 = arith.constant 0 : index
      %c0_22 = arith.constant 0 : index
      %35 = vector.load %arg7[%c0_21, %c0_22] : memref<1x32xf32, #tpu.memory_space<vmem>>, vector<1x32xf32>
      %36 = vector.broadcast %35 : vector<1x32xf32> to vector<16x32xf32>
      %37 = arith.addf %34, %36 : vector<16x32xf32>
      %38 = arith.truncf %37 : vector<16x32xf32> to vector<16x32xbf16>
      %c0_23 = arith.constant 0 : index
      %c0_24 = arith.constant 0 : index
      %39 = vector.load %arg8[%c0_23, %c0_24] : memref<16x32xbf16, #tpu.memory_space<vmem>>, vector<16x32xbf16>
      tpu.vector_store %arg8[%c0_23, %c0_24], %38 {strides = array<i32>} : memref<16x32xbf16, #tpu.memory_space<vmem>>, vector<16x32xbf16>,
    } else {
    }
    return
  }
  func.func @transform_0(%arg0: i32, %arg1: i32, %arg2: i32) -> (i32, i32) {
    %c0_i32 = arith.constant 0 : i32
    return %arg0, %arg2 : i32, i32
  }
  func.func @transform_1(%arg0: i32, %arg1: i32, %arg2: i32) -> (i32, i32) {
    %c0_i32 = arith.constant 0 : i32
    return %arg2, %arg1 : i32, i32
  }
  func.func @transform_2(%arg0: i32, %arg1: i32, %arg2: i32) -> (i32, i32) {
    %c0_i32 = arith.constant 0 : i32
    %c0_i32_0 = arith.constant 0 : i32
    return %c0_i32, %arg1 : i32, i32
  }
  func.func @transform_3(%arg0: i32, %arg1: i32, %arg2: i32) -> (i32, i32) {
    %c0_i32 = arith.constant 0 : i32
    %c0_i32_0 = arith.constant 0 : i32
    return %c0_i32, %arg1 : i32, i32
  }
  func.func @transform_4(%arg0: i32, %arg1: i32, %arg2: i32) -> (i32, i32) {
    %c0_i32 = arith.constant 0 : i32
    %c0_i32_0 = arith.constant 0 : i32
    return %c0_i32, %arg1 : i32, i32
  }
  func.func @transform_5(%arg0: i32, %arg1: i32, %arg2: i32) -> (i32, i32) {
    %c0_i32 = arith.constant 0 : i32
    return %arg0, %arg1 : i32, i32
  }
}

module attributes {stable_mosaic.version = 11 : i64} {
  func.func @_ln_linear_kernel(%arg0: i32, %arg1: i32, %arg2: memref<16x32xbf16, #tpu.memory_space<vmem>>, %arg3: memref<1x32xf32, #tpu.memory_space<vmem>>, %arg4: memref<1x32xf32, #tpu.memory_space<vmem>>, %arg5: memref<32x96xbf16, #tpu.memory_space<vmem>>, %arg6: memref<1x96xf32, #tpu.memory_space<vmem>>, %arg7: memref<16x96xbf16, #tpu.memory_space<vmem>>, %arg8: memref<16x32xbf16, #tpu.memory_space<vmem>>) attributes {dimension_semantics = [#tpu.dimension_semantics<parallel>, #tpu.dimension_semantics<arbitrary>], iteration_bounds = array<i64: 2, 1>, scalar_prefetch = 0 : i64, scratch_operands = 1 : i64, tpu.core_type = #tpu.core_type<tc>, window_params = [{transform_indices = @transform_0, window_bounds = array<i64: 16, 32>}, {pipeline_mode = #tpu.pipeline_mode<synchronous>, transform_indices = @transform_1, window_bounds = array<i64: 1, 32>}, {pipeline_mode = #tpu.pipeline_mode<synchronous>, transform_indices = @transform_2, window_bounds = array<i64: 1, 32>}, {transform_indices = @transform_3, window_bounds = array<i64: 32, 96>}, {transform_indices = @transform_4, window_bounds = array<i64: 1, 96>}, {transform_indices = @transform_5, window_bounds = array<i64: 16, 96>}]} {
    %c0_i32 = arith.constant 0 : i32
    %0 = arith.cmpi eq, %arg1, %c0_i32 : i32
    %1 = arith.extui %0 : i1 to i32
    %c0_i32_0 = arith.constant 0 : i32
    %2 = arith.cmpi ne, %1, %c0_i32_0 : i32
    scf.if %2 {
      %c0_8 = arith.constant 0 : index
      %c0_9 = arith.constant 0 : index
      %11 = vector.load %arg2[%c0_8, %c0_9] : memref<16x32xbf16, #tpu.memory_space<vmem>>, vector<16x32xbf16>
      %12 = arith.extf %11 : vector<16x32xbf16> to vector<16x32xf32>
      %cst_10 = arith.constant dense<0.000000e+00> : vector<16xf32>
      %13 = vector.multi_reduction <add>, %12, %cst_10 [1] : vector<16x32xf32> to vector<16xf32>
      %14 = vector.shape_cast %13 : vector<16xf32> to vector<16x1xf32>
      %cst_11 = arith.constant 3.200000e+01 : f32
      %15 = vector.broadcast %cst_11 : f32 to vector<16x1xf32>
      %16 = arith.divf %14, %15 : vector<16x1xf32>
      %17 = vector.broadcast %16 : vector<16x1xf32> to vector<16x32xf32>
      %18 = arith.subf %12, %17 : vector<16x32xf32>
      %19 = arith.mulf %18, %18 : vector<16x32xf32>
      %cst_12 = arith.constant dense<0.000000e+00> : vector<16xf32>
      %20 = vector.multi_reduction <add>, %19, %cst_12 [1] : vector<16x32xf32> to vector<16xf32>
      %21 = vector.shape_cast %20 : vector<16xf32> to vector<16x1xf32>
      %cst_13 = arith.constant 3.200000e+01 : f32
      %22 = vector.broadcast %cst_13 : f32 to vector<16x1xf32>
      %23 = arith.divf %21, %22 : vector<16x1xf32>
      %cst_14 = arith.constant 9.99999974E-6 : f32
      %24 = vector.broadcast %cst_14 : f32 to vector<16x1xf32>
      %25 = arith.addf %23, %24 : vector<16x1xf32>
      %26 = math.rsqrt %25 : vector<16x1xf32>
      %27 = vector.broadcast %26 : vector<16x1xf32> to vector<16x32xf32>
      %28 = arith.mulf %18, %27 : vector<16x32xf32>
      %c0_15 = arith.constant 0 : index
      %c0_16 = arith.constant 0 : index
      %29 = vector.load %arg3[%c0_15, %c0_16] : memref<1x32xf32, #tpu.memory_space<vmem>>, vector<1x32xf32>
      %30 = vector.broadcast %29 : vector<1x32xf32> to vector<16x32xf32>
      %31 = arith.mulf %28, %30 : vector<16x32xf32>
      %c0_17 = arith.constant 0 : index
      %c0_18 = arith.constant 0 : index
      %32 = vector.load %arg4[%c0_17, %c0_18] : memref<1x32xf32, #tpu.memory_space<vmem>>, vector<1x32xf32>
      %33 = vector.broadcast %32 : vector<1x32xf32> to vector<16x32xf32>
      %34 = arith.addf %31, %33 : vector<16x32xf32>
      %35 = arith.truncf %34 : vector<16x32xf32> to vector<16x32xbf16>
      %c0_19 = arith.constant 0 : index
      %c0_20 = arith.constant 0 : index
      %36 = vector.load %arg8[%c0_19, %c0_20] : memref<16x32xbf16, #tpu.memory_space<vmem>>, vector<16x32xbf16>
      tpu.vector_store %arg8[%c0_19, %c0_20], %35 {strides = array<i32>} : memref<16x32xbf16, #tpu.memory_space<vmem>>, vector<16x32xbf16>,
    } else {
    }
    %c0 = arith.constant 0 : index
    %c0_1 = arith.constant 0 : index
    %3 = vector.load %arg8[%c0, %c0_1] : memref<16x32xbf16, #tpu.memory_space<vmem>>, vector<16x32xbf16>
    %c0_2 = arith.constant 0 : index
    %c0_3 = arith.constant 0 : index
    %4 = vector.load %arg5[%c0_2, %c0_3] : memref<32x96xbf16, #tpu.memory_space<vmem>>, vector<32x96xbf16>
    %cst = arith.constant dense<0.000000e+00> : vector<16x96xf32>
    %5 = tpu.matmul %3, %4, %cst {dimension_numbers = #tpu.dot_dimension_numbers<[1], [0], [0], [1], [0, 0, 1, 1], [], []>} : vector<16x32xbf16>, vector<32x96xbf16>, vector<16x96xf32> -> vector<16x96xf32>
    %c0_4 = arith.constant 0 : index
    %c0_5 = arith.constant 0 : index
    %6 = vector.load %arg6[%c0_4, %c0_5] : memref<1x96xf32, #tpu.memory_space<vmem>>, vector<1x96xf32>
    %7 = vector.broadcast %6 : vector<1x96xf32> to vector<16x96xf32>
    %8 = arith.addf %5, %7 : vector<16x96xf32>
    %9 = arith.truncf %8 : vector<16x96xf32> to vector<16x96xbf16>
    %c0_6 = arith.constant 0 : index
    %c0_7 = arith.constant 0 : index
    %10 = vector.load %arg7[%c0_6, %c0_7] : memref<16x96xbf16, #tpu.memory_space<vmem>>, vector<16x96xbf16>
    tpu.vector_store %arg7[%c0_6, %c0_7], %9 {strides = array<i32>} : memref<16x96xbf16, #tpu.memory_space<vmem>>, vector<16x96xbf16>,
    return
  }
  func.func @transform_0(%arg0: i32, %arg1: i32) -> (i32, i32) {
    %c0_i32 = arith.constant 0 : i32
    %c0_i32_0 = arith.constant 0 : i32
    return %arg0, %c0_i32 : i32, i32
  }
  func.func @transform_1(%arg0: i32, %arg1: i32) -> (i32, i32) {
    %c0_i32 = arith.constant 0 : i32
    %c0_i32_0 = arith.constant 0 : i32
    %c0_i32_1 = arith.constant 0 : i32
    return %c0_i32, %c0_i32_0 : i32, i32
  }
  func.func @transform_2(%arg0: i32, %arg1: i32) -> (i32, i32) {
    %c0_i32 = arith.constant 0 : i32
    %c0_i32_0 = arith.constant 0 : i32
    %c0_i32_1 = arith.constant 0 : i32
    return %c0_i32, %c0_i32_0 : i32, i32
  }
  func.func @transform_3(%arg0: i32, %arg1: i32) -> (i32, i32) {
    %c0_i32 = arith.constant 0 : i32
    %c0_i32_0 = arith.constant 0 : i32
    return %c0_i32, %arg1 : i32, i32
  }
  func.func @transform_4(%arg0: i32, %arg1: i32) -> (i32, i32) {
    %c0_i32 = arith.constant 0 : i32
    %c0_i32_0 = arith.constant 0 : i32
    return %c0_i32, %arg1 : i32, i32
  }
  func.func @transform_5(%arg0: i32, %arg1: i32) -> (i32, i32) {
    %c0_i32 = arith.constant 0 : i32
    return %arg0, %arg1 : i32, i32
  }
}

module attributes {stable_mosaic.version = 11 : i64} {
  func.func @_ln_linear_kernel(%arg0: i32, %arg1: i32, %arg2: memref<16x32xbf16, #tpu.memory_space<vmem>>, %arg3: memref<1x32xf32, #tpu.memory_space<vmem>>, %arg4: memref<1x32xf32, #tpu.memory_space<vmem>>, %arg5: memref<32x128xbf16, #tpu.memory_space<vmem>>, %arg6: memref<1x128xf32, #tpu.memory_space<vmem>>, %arg7: memref<16x128xbf16, #tpu.memory_space<vmem>>, %arg8: memref<16x32xbf16, #tpu.memory_space<vmem>>) attributes {dimension_semantics = [#tpu.dimension_semantics<parallel>, #tpu.dimension_semantics<arbitrary>], iteration_bounds = array<i64: 2, 1>, scalar_prefetch = 0 : i64, scratch_operands = 1 : i64, tpu.core_type = #tpu.core_type<tc>, window_params = [{transform_indices = @transform_0, window_bounds = array<i64: 16, 32>}, {pipeline_mode = #tpu.pipeline_mode<synchronous>, transform_indices = @transform_1, window_bounds = array<i64: 1, 32>}, {pipeline_mode = #tpu.pipeline_mode<synchronous>, transform_indices = @transform_2, window_bounds = array<i64: 1, 32>}, {transform_indices = @transform_3, window_bounds = array<i64: 32, 128>}, {transform_indices = @transform_4, window_bounds = array<i64: 1, 128>}, {transform_indices = @transform_5, window_bounds = array<i64: 16, 128>}]} {
    %c0_i32 = arith.constant 0 : i32
    %0 = arith.cmpi eq, %arg1, %c0_i32 : i32
    %1 = arith.extui %0 : i1 to i32
    %c0_i32_0 = arith.constant 0 : i32
    %2 = arith.cmpi ne, %1, %c0_i32_0 : i32
    scf.if %2 {
      %c0_12 = arith.constant 0 : index
      %c0_13 = arith.constant 0 : index
      %24 = vector.load %arg2[%c0_12, %c0_13] : memref<16x32xbf16, #tpu.memory_space<vmem>>, vector<16x32xbf16>
      %25 = arith.extf %24 : vector<16x32xbf16> to vector<16x32xf32>
      %cst_14 = arith.constant dense<0.000000e+00> : vector<16xf32>
      %26 = vector.multi_reduction <add>, %25, %cst_14 [1] : vector<16x32xf32> to vector<16xf32>
      %27 = vector.shape_cast %26 : vector<16xf32> to vector<16x1xf32>
      %cst_15 = arith.constant 3.200000e+01 : f32
      %28 = vector.broadcast %cst_15 : f32 to vector<16x1xf32>
      %29 = arith.divf %27, %28 : vector<16x1xf32>
      %30 = vector.broadcast %29 : vector<16x1xf32> to vector<16x32xf32>
      %31 = arith.subf %25, %30 : vector<16x32xf32>
      %32 = arith.mulf %31, %31 : vector<16x32xf32>
      %cst_16 = arith.constant dense<0.000000e+00> : vector<16xf32>
      %33 = vector.multi_reduction <add>, %32, %cst_16 [1] : vector<16x32xf32> to vector<16xf32>
      %34 = vector.shape_cast %33 : vector<16xf32> to vector<16x1xf32>
      %cst_17 = arith.constant 3.200000e+01 : f32
      %35 = vector.broadcast %cst_17 : f32 to vector<16x1xf32>
      %36 = arith.divf %34, %35 : vector<16x1xf32>
      %cst_18 = arith.constant 9.99999974E-6 : f32
      %37 = vector.broadcast %cst_18 : f32 to vector<16x1xf32>
      %38 = arith.addf %36, %37 : vector<16x1xf32>
      %39 = math.rsqrt %38 : vector<16x1xf32>
      %40 = vector.broadcast %39 : vector<16x1xf32> to vector<16x32xf32>
      %41 = arith.mulf %31, %40 : vector<16x32xf32>
      %c0_19 = arith.constant 0 : index
      %c0_20 = arith.constant 0 : index
      %42 = vector.load %arg3[%c0_19, %c0_20] : memref<1x32xf32, #tpu.memory_space<vmem>>, vector<1x32xf32>
      %43 = vector.broadcast %42 : vector<1x32xf32> to vector<16x32xf32>
      %44 = arith.mulf %41, %43 : vector<16x32xf32>
      %c0_21 = arith.constant 0 : index
      %c0_22 = arith.constant 0 : index
      %45 = vector.load %arg4[%c0_21, %c0_22] : memref<1x32xf32, #tpu.memory_space<vmem>>, vector<1x32xf32>
      %46 = vector.broadcast %45 : vector<1x32xf32> to vector<16x32xf32>
      %47 = arith.addf %44, %46 : vector<16x32xf32>
      %48 = arith.truncf %47 : vector<16x32xf32> to vector<16x32xbf16>
      %c0_23 = arith.constant 0 : index
      %c0_24 = arith.constant 0 : index
      %49 = vector.load %arg8[%c0_23, %c0_24] : memref<16x32xbf16, #tpu.memory_space<vmem>>, vector<16x32xbf16>
      tpu.vector_store %arg8[%c0_23, %c0_24], %48 {strides = array<i32>} : memref<16x32xbf16, #tpu.memory_space<vmem>>, vector<16x32xbf16>,
    } else {
    }
    %c0 = arith.constant 0 : index
    %c0_1 = arith.constant 0 : index
    %3 = vector.load %arg8[%c0, %c0_1] : memref<16x32xbf16, #tpu.memory_space<vmem>>, vector<16x32xbf16>
    %c0_2 = arith.constant 0 : index
    %c0_3 = arith.constant 0 : index
    %4 = vector.load %arg5[%c0_2, %c0_3] : memref<32x128xbf16, #tpu.memory_space<vmem>>, vector<32x128xbf16>
    %cst = arith.constant dense<0.000000e+00> : vector<16x128xf32>
    %5 = tpu.matmul %3, %4, %cst {dimension_numbers = #tpu.dot_dimension_numbers<[1], [0], [0], [1], [0, 0, 1, 1], [], []>} : vector<16x32xbf16>, vector<32x128xbf16>, vector<16x128xf32> -> vector<16x128xf32>
    %c0_4 = arith.constant 0 : index
    %c0_5 = arith.constant 0 : index
    %6 = vector.load %arg6[%c0_4, %c0_5] : memref<1x128xf32, #tpu.memory_space<vmem>>, vector<1x128xf32>
    %7 = vector.broadcast %6 : vector<1x128xf32> to vector<16x128xf32>
    %8 = arith.addf %5, %7 : vector<16x128xf32>
    %cst_6 = arith.constant 5.000000e-01 : f32
    %9 = vector.broadcast %cst_6 : f32 to vector<16x128xf32>
    %10 = arith.mulf %9, %8 : vector<16x128xf32>
    %cst_7 = arith.constant 4.471500e-02 : f32
    %11 = vector.broadcast %cst_7 : f32 to vector<16x128xf32>
    %12 = arith.mulf %11, %8 : vector<16x128xf32>
    %13 = arith.mulf %12, %8 : vector<16x128xf32>
    %14 = arith.mulf %13, %8 : vector<16x128xf32>
    %15 = arith.addf %8, %14 : vector<16x128xf32>
    %cst_8 = arith.constant 0.797884583 : f32
    %16 = vector.broadcast %cst_8 : f32 to vector<16x128xf32>
    %17 = arith.mulf %16, %15 : vector<16x128xf32>
    %18 = math.tanh %17 : vector<16x128xf32>
    %cst_9 = arith.constant 1.000000e+00 : f32
    %19 = vector.broadcast %cst_9 : f32 to vector<16x128xf32>
    %20 = arith.addf %19, %18 : vector<16x128xf32>
    %21 = arith.mulf %10, %20 : vector<16x128xf32>
    %22 = arith.truncf %21 : vector<16x128xf32> to vector<16x128xbf16>
    %c0_10 = arith.constant 0 : index
    %c0_11 = arith.constant 0 : index
    %23 = vector.load %arg7[%c0_10, %c0_11] : memref<16x128xbf16, #tpu.memory_space<vmem>>, vector<16x128xbf16>
    tpu.vector_store %arg7[%c0_10, %c0_11], %22 {strides = array<i32>} : memref<16x128xbf16, #tpu.memory_space<vmem>>, vector<16x128xbf16>,
    return
  }
  func.func @transform_0(%arg0: i32, %arg1: i32) -> (i32, i32) {
    %c0_i32 = arith.constant 0 : i32
    %c0_i32_0 = arith.constant 0 : i32
    return %arg0, %c0_i32 : i32, i32
  }
  func.func @transform_1(%arg0: i32, %arg1: i32) -> (i32, i32) {
    %c0_i32 = arith.constant 0 : i32
    %c0_i32_0 = arith.constant 0 : i32
    %c0_i32_1 = arith.constant 0 : i32
    return %c0_i32, %c0_i32_0 : i32, i32
  }
  func.func @transform_2(%arg0: i32, %arg1: i32) -> (i32, i32) {
    %c0_i32 = arith.constant 0 : i32
    %c0_i32_0 = arith.constant 0 : i32
    %c0_i32_1 = arith.constant 0 : i32
    return %c0_i32, %c0_i32_0 : i32, i32
  }
  func.func @transform_3(%arg0: i32, %arg1: i32) -> (i32, i32) {
    %c0_i32 = arith.constant 0 : i32
    %c0_i32_0 = arith.constant 0 : i32
    return %c0_i32, %arg1 : i32, i32
  }
  func.func @transform_4(%arg0: i32, %arg1: i32) -> (i32, i32) {
    %c0_i32 = arith.constant 0 : i32
    %c0_i32_0 = arith.constant 0 : i32
    return %c0_i32, %arg1 : i32, i32
  }
  func.func @transform_5(%arg0: i32, %arg1: i32) -> (i32, i32) {
    %c0_i32 = arith.constant 0 : i32
    return %arg0, %arg1 : i32, i32
  }
}

module attributes {stable_mosaic.version = 11 : i64} {
  func.func @_window_attn_kernel(%arg0: i32, %arg1: memref<1x16x96xbf16, #tpu.memory_space<vmem>>, %arg2: memref<4x16x16xf32, #tpu.memory_space<vmem>>, %arg3: memref<32x32xbf16, #tpu.memory_space<vmem>>, %arg4: memref<1x32xf32, #tpu.memory_space<vmem>>, %arg5: memref<1x16x32xbf16, #tpu.memory_space<vmem>>, %arg6: memref<1x16x32xbf16, #tpu.memory_space<vmem>>) attributes {dimension_semantics = [#tpu.dimension_semantics<parallel>], iteration_bounds = array<i64: 2>, scalar_prefetch = 0 : i64, scratch_operands = 0 : i64, tpu.core_type = #tpu.core_type<tc>, window_params = [{transform_indices = @transform_0, window_bounds = array<i64: 1, 16, 96>}, {pipeline_mode = #tpu.pipeline_mode<synchronous>, transform_indices = @transform_1, window_bounds = array<i64: 4, 16, 16>}, {pipeline_mode = #tpu.pipeline_mode<synchronous>, transform_indices = @transform_2, window_bounds = array<i64: 32, 32>}, {pipeline_mode = #tpu.pipeline_mode<synchronous>, transform_indices = @transform_3, window_bounds = array<i64: 1, 32>}, {transform_indices = @transform_4, window_bounds = array<i64: 1, 16, 32>}, {transform_indices = @transform_5, window_bounds = array<i64: 1, 16, 32>}]} {
    %c0 = arith.constant 0 : index
    %c0_0 = arith.constant 0 : index
    %c0_1 = arith.constant 0 : index
    %0 = vector.load %arg1[%c0, %c0_0, %c0_1] : memref<1x16x96xbf16, #tpu.memory_space<vmem>>, vector<1x16x96xbf16>
    %1 = vector.shape_cast %0 : vector<1x16x96xbf16> to vector<16x96xbf16>
    %2 = vector.extract_strided_slice %1 {offsets = [0, 0], sizes = [16, 32], strides = [1, 1]} : vector<16x96xbf16> to vector<16x32xbf16>
    %3 = vector.extract_strided_slice %1 {offsets = [0, 32], sizes = [16, 32], strides = [1, 1]} : vector<16x96xbf16> to vector<16x32xbf16>
    %4 = vector.extract_strided_slice %1 {offsets = [0, 64], sizes = [16, 32], strides = [1, 1]} : vector<16x96xbf16> to vector<16x32xbf16>
    %5 = arith.extf %3 : vector<16x32xbf16> to vector<16x32xf32>
    %6 = tpu.transpose %5, [1, 0] : vector<16x32xf32> -> vector<32x16xf32>
    %7 = arith.truncf %6 : vector<32x16xf32> to vector<32x16xbf16>
    %c0_2 = arith.constant 0 : index
    %c0_3 = arith.constant 0 : index
    %c0_4 = arith.constant 0 : index
    %8 = vector.load %arg2[%c0_2, %c0_3, %c0_4] : memref<4x16x16xf32, #tpu.memory_space<vmem>>, vector<4x16x16xf32>
    %9 = vector.extract_strided_slice %2 {offsets = [0, 0], sizes = [16, 8], strides = [1, 1]} : vector<16x32xbf16> to vector<16x8xbf16>
    %10 = vector.extract_strided_slice %7 {offsets = [0, 0], sizes = [8, 16], strides = [1, 1]} : vector<32x16xbf16> to vector<8x16xbf16>
    %cst = arith.constant dense<0.000000e+00> : vector<16x16xf32>
    %11 = tpu.matmul %9, %10, %cst {dimension_numbers = #tpu.dot_dimension_numbers<[1], [0], [0], [1], [0, 0, 1, 1], [], []>} : vector<16x8xbf16>, vector<8x16xbf16>, vector<16x16xf32> -> vector<16x16xf32>
    %cst_5 = arith.constant 0.353553385 : f32
    %12 = vector.broadcast %cst_5 : f32 to vector<16x16xf32>
    %13 = arith.mulf %11, %12 : vector<16x16xf32>
    %14 = vector.extract_strided_slice %8 {offsets = [0, 0, 0], sizes = [1, 16, 16], strides = [1, 1, 1]} : vector<4x16x16xf32> to vector<1x16x16xf32>
    %15 = vector.shape_cast %14 : vector<1x16x16xf32> to vector<16x16xf32>
    %16 = arith.addf %13, %15 : vector<16x16xf32>
    %17 = vector.extract_strided_slice %2 {offsets = [0, 8], sizes = [16, 8], strides = [1, 1]} : vector<16x32xbf16> to vector<16x8xbf16>
    %18 = vector.extract_strided_slice %7 {offsets = [8, 0], sizes = [8, 16], strides = [1, 1]} : vector<32x16xbf16> to vector<8x16xbf16>
    %cst_6 = arith.constant dense<0.000000e+00> : vector<16x16xf32>
    %19 = tpu.matmul %17, %18, %cst_6 {dimension_numbers = #tpu.dot_dimension_numbers<[1], [0], [0], [1], [0, 0, 1, 1], [], []>} : vector<16x8xbf16>, vector<8x16xbf16>, vector<16x16xf32> -> vector<16x16xf32>
    %cst_7 = arith.constant 0.353553385 : f32
    %20 = vector.broadcast %cst_7 : f32 to vector<16x16xf32>
    %21 = arith.mulf %19, %20 : vector<16x16xf32>
    %22 = vector.extract_strided_slice %8 {offsets = [1, 0, 0], sizes = [1, 16, 16], strides = [1, 1, 1]} : vector<4x16x16xf32> to vector<1x16x16xf32>
    %23 = vector.shape_cast %22 : vector<1x16x16xf32> to vector<16x16xf32>
    %24 = arith.addf %21, %23 : vector<16x16xf32>
    %25 = vector.extract_strided_slice %2 {offsets = [0, 16], sizes = [16, 8], strides = [1, 1]} : vector<16x32xbf16> to vector<16x8xbf16>
    %26 = vector.extract_strided_slice %7 {offsets = [16, 0], sizes = [8, 16], strides = [1, 1]} : vector<32x16xbf16> to vector<8x16xbf16>
    %cst_8 = arith.constant dense<0.000000e+00> : vector<16x16xf32>
    %27 = tpu.matmul %25, %26, %cst_8 {dimension_numbers = #tpu.dot_dimension_numbers<[1], [0], [0], [1], [0, 0, 1, 1], [], []>} : vector<16x8xbf16>, vector<8x16xbf16>, vector<16x16xf32> -> vector<16x16xf32>
    %cst_9 = arith.constant 0.353553385 : f32
    %28 = vector.broadcast %cst_9 : f32 to vector<16x16xf32>
    %29 = arith.mulf %27, %28 : vector<16x16xf32>
    %30 = vector.extract_strided_slice %8 {offsets = [2, 0, 0], sizes = [1, 16, 16], strides = [1, 1, 1]} : vector<4x16x16xf32> to vector<1x16x16xf32>
    %31 = vector.shape_cast %30 : vector<1x16x16xf32> to vector<16x16xf32>
    %32 = arith.addf %29, %31 : vector<16x16xf32>
    %33 = vector.extract_strided_slice %2 {offsets = [0, 24], sizes = [16, 8], strides = [1, 1]} : vector<16x32xbf16> to vector<16x8xbf16>
    %34 = vector.extract_strided_slice %7 {offsets = [24, 0], sizes = [8, 16], strides = [1, 1]} : vector<32x16xbf16> to vector<8x16xbf16>
    %cst_10 = arith.constant dense<0.000000e+00> : vector<16x16xf32>
    %35 = tpu.matmul %33, %34, %cst_10 {dimension_numbers = #tpu.dot_dimension_numbers<[1], [0], [0], [1], [0, 0, 1, 1], [], []>} : vector<16x8xbf16>, vector<8x16xbf16>, vector<16x16xf32> -> vector<16x16xf32>
    %cst_11 = arith.constant 0.353553385 : f32
    %36 = vector.broadcast %cst_11 : f32 to vector<16x16xf32>
    %37 = arith.mulf %35, %36 : vector<16x16xf32>
    %38 = vector.extract_strided_slice %8 {offsets = [3, 0, 0], sizes = [1, 16, 16], strides = [1, 1, 1]} : vector<4x16x16xf32> to vector<1x16x16xf32>
    %39 = vector.shape_cast %38 : vector<1x16x16xf32> to vector<16x16xf32>
    %40 = arith.addf %37, %39 : vector<16x16xf32>
    %41 = tpu.concatenate %16, %24, %32, %40 in 0 : vector<16x16xf32>, vector<16x16xf32>, vector<16x16xf32>, vector<16x16xf32> -> vector<64x16xf32>
    %cst_12 = arith.constant dense<0xFF800000> : vector<64xf32>
    %42 = vector.multi_reduction <maximumf>, %41, %cst_12 [1] : vector<64x16xf32> to vector<64xf32>
    %43 = vector.shape_cast %42 : vector<64xf32> to vector<64x1xf32>
    %44 = vector.broadcast %43 : vector<64x1xf32> to vector<64x16xf32>
    %45 = arith.subf %41, %44 : vector<64x16xf32>
    %46 = math.exp %45 : vector<64x16xf32>
    %cst_13 = arith.constant dense<0.000000e+00> : vector<64xf32>
    %47 = vector.multi_reduction <add>, %46, %cst_13 [1] : vector<64x16xf32> to vector<64xf32>
    %48 = vector.shape_cast %47 : vector<64xf32> to vector<64x1xf32>
    %49 = tpu.reciprocal %48 {approx = true} : vector<64x1xf32> -> vector<64x1xf32>
    %50 = vector.broadcast %49 : vector<64x1xf32> to vector<64x16xf32>
    %51 = arith.mulf %46, %50 : vector<64x16xf32>
    %52 = arith.truncf %51 : vector<64x16xf32> to vector<64x16xbf16>
    %53 = vector.extract_strided_slice %52 {offsets = [0, 0], sizes = [16, 16], strides = [1, 1]} : vector<64x16xbf16> to vector<16x16xbf16>
    %54 = vector.extract_strided_slice %4 {offsets = [0, 0], sizes = [16, 8], strides = [1, 1]} : vector<16x32xbf16> to vector<16x8xbf16>
    %cst_14 = arith.constant dense<0.000000e+00> : vector<16x8xf32>
    %55 = tpu.matmul %53, %54, %cst_14 {dimension_numbers = #tpu.dot_dimension_numbers<[1], [0], [0], [1], [0, 0, 1, 1], [], []>} : vector<16x16xbf16>, vector<16x8xbf16>, vector<16x8xf32> -> vector<16x8xf32>
    %56 = vector.extract_strided_slice %52 {offsets = [16, 0], sizes = [16, 16], strides = [1, 1]} : vector<64x16xbf16> to vector<16x16xbf16>
    %57 = vector.extract_strided_slice %4 {offsets = [0, 8], sizes = [16, 8], strides = [1, 1]} : vector<16x32xbf16> to vector<16x8xbf16>
    %cst_15 = arith.constant dense<0.000000e+00> : vector<16x8xf32>
    %58 = tpu.matmul %56, %57, %cst_15 {dimension_numbers = #tpu.dot_dimension_numbers<[1], [0], [0], [1], [0, 0, 1, 1], [], []>} : vector<16x16xbf16>, vector<16x8xbf16>, vector<16x8xf32> -> vector<16x8xf32>
    %59 = vector.extract_strided_slice %52 {offsets = [32, 0], sizes = [16, 16], strides = [1, 1]} : vector<64x16xbf16> to vector<16x16xbf16>
    %60 = vector.extract_strided_slice %4 {offsets = [0, 16], sizes = [16, 8], strides = [1, 1]} : vector<16x32xbf16> to vector<16x8xbf16>
    %cst_16 = arith.constant dense<0.000000e+00> : vector<16x8xf32>
    %61 = tpu.matmul %59, %60, %cst_16 {dimension_numbers = #tpu.dot_dimension_numbers<[1], [0], [0], [1], [0, 0, 1, 1], [], []>} : vector<16x16xbf16>, vector<16x8xbf16>, vector<16x8xf32> -> vector<16x8xf32>
    %62 = vector.extract_strided_slice %52 {offsets = [48, 0], sizes = [16, 16], strides = [1, 1]} : vector<64x16xbf16> to vector<16x16xbf16>
    %63 = vector.extract_strided_slice %4 {offsets = [0, 24], sizes = [16, 8], strides = [1, 1]} : vector<16x32xbf16> to vector<16x8xbf16>
    %cst_17 = arith.constant dense<0.000000e+00> : vector<16x8xf32>
    %64 = tpu.matmul %62, %63, %cst_17 {dimension_numbers = #tpu.dot_dimension_numbers<[1], [0], [0], [1], [0, 0, 1, 1], [], []>} : vector<16x16xbf16>, vector<16x8xbf16>, vector<16x8xf32> -> vector<16x8xf32>
    %65 = tpu.concatenate %55, %58, %61, %64 in 1 : vector<16x8xf32>, vector<16x8xf32>, vector<16x8xf32>, vector<16x8xf32> -> vector<16x32xf32>
    %66 = arith.truncf %65 : vector<16x32xf32> to vector<16x32xbf16>
    %c0_18 = arith.constant 0 : index
    %c0_19 = arith.constant 0 : index
    %67 = vector.load %arg3[%c0_18, %c0_19] : memref<32x32xbf16, #tpu.memory_space<vmem>>, vector<32x32xbf16>
    %cst_20 = arith.constant dense<0.000000e+00> : vector<16x32xf32>
    %68 = tpu.matmul %66, %67, %cst_20 {dimension_numbers = #tpu.dot_dimension_numbers<[1], [0], [0], [1], [0, 0, 1, 1], [], []>} : vector<16x32xbf16>, vector<32x32xbf16>, vector<16x32xf32> -> vector<16x32xf32>
    %c0_21 = arith.constant 0 : index
    %c0_22 = arith.constant 0 : index
    %69 = vector.load %arg4[%c0_21, %c0_22] : memref<1x32xf32, #tpu.memory_space<vmem>>, vector<1x32xf32>
    %70 = vector.broadcast %69 : vector<1x32xf32> to vector<16x32xf32>
    %71 = arith.addf %68, %70 : vector<16x32xf32>
    %c0_23 = arith.constant 0 : index
    %c0_24 = arith.constant 0 : index
    %c0_25 = arith.constant 0 : index
    %72 = vector.load %arg5[%c0_23, %c0_24, %c0_25] : memref<1x16x32xbf16, #tpu.memory_space<vmem>>, vector<1x16x32xbf16>
    %73 = vector.shape_cast %72 : vector<1x16x32xbf16> to vector<16x32xbf16>
    %74 = arith.extf %73 : vector<16x32xbf16> to vector<16x32xf32>
    %75 = arith.addf %71, %74 : vector<16x32xf32>
    %76 = arith.truncf %75 : vector<16x32xf32> to vector<16x32xbf16>
    %c0_26 = arith.constant 0 : index
    %c0_27 = arith.constant 0 : index
    %c0_28 = arith.constant 0 : index
    %77 = vector.load %arg6[%c0_26, %c0_27, %c0_28] : memref<1x16x32xbf16, #tpu.memory_space<vmem>>, vector<1x16x32xbf16>
    %78 = vector.shape_cast %77 : vector<1x16x32xbf16> to vector<16x32xbf16>
    %79 = vector.shape_cast %76 : vector<16x32xbf16> to vector<1x16x32xbf16>
    tpu.vector_store %arg6[%c0_26, %c0_27, %c0_28], %79 {strides = array<i32>} : memref<1x16x32xbf16, #tpu.memory_space<vmem>>, vector<1x16x32xbf16>,
    return
  }
  func.func @transform_0(%arg0: i32) -> (i32, i32, i32) {
    %c0_i32 = arith.constant 0 : i32
    %c0_i32_0 = arith.constant 0 : i32
    %c0_i32_1 = arith.constant 0 : i32
    return %arg0, %c0_i32, %c0_i32_0 : i32, i32, i32
  }
  func.func @transform_1(%arg0: i32) -> (i32, i32, i32) {
    %c0_i32 = arith.constant 0 : i32
    %c0_i32_0 = arith.constant 0 : i32
    %c0_i32_1 = arith.constant 0 : i32
    %c0_i32_2 = arith.constant 0 : i32
    return %c0_i32, %c0_i32_0, %c0_i32_1 : i32, i32, i32
  }
  func.func @transform_2(%arg0: i32) -> (i32, i32) {
    %c0_i32 = arith.constant 0 : i32
    %c0_i32_0 = arith.constant 0 : i32
    %c0_i32_1 = arith.constant 0 : i32
    return %c0_i32, %c0_i32_0 : i32, i32
  }
  func.func @transform_3(%arg0: i32) -> (i32, i32) {
    %c0_i32 = arith.constant 0 : i32
    %c0_i32_0 = arith.constant 0 : i32
    %c0_i32_1 = arith.constant 0 : i32
    return %c0_i32, %c0_i32_0 : i32, i32
  }
  func.func @transform_4(%arg0: i32) -> (i32, i32, i32) {
    %c0_i32 = arith.constant 0 : i32
    %c0_i32_0 = arith.constant 0 : i32
    %c0_i32_1 = arith.constant 0 : i32
    return %arg0, %c0_i32, %c0_i32_0 : i32, i32, i32
  }
  func.func @transform_5(%arg0: i32) -> (i32, i32, i32) {
    %c0_i32 = arith.constant 0 : i32
    %c0_i32_0 = arith.constant 0 : i32
    %c0_i32_1 = arith.constant 0 : i32
    return %arg0, %c0_i32, %c0_i32_0 : i32, i32, i32
  }
}

module attributes {stable_mosaic.version = 11 : i64} {
  func.func @_matmul_kernel(%arg0: i32, %arg1: i32, %arg2: i32, %arg3: memref<16x128xbf16, #tpu.memory_space<vmem>>, %arg4: memref<128x32xbf16, #tpu.memory_space<vmem>>, %arg5: memref<1x32xf32, #tpu.memory_space<vmem>>, %arg6: memref<16x32xbf16, #tpu.memory_space<vmem>>, %arg7: memref<16x32xbf16, #tpu.memory_space<vmem>>, %arg8: memref<16x32xf32, #tpu.memory_space<vmem>>) attributes {dimension_semantics = [#tpu.dimension_semantics<parallel>, #tpu.dimension_semantics<parallel>, #tpu.dimension_semantics<arbitrary>], iteration_bounds = array<i64: 2, 1, 1>, scalar_prefetch = 0 : i64, scratch_operands = 1 : i64, tpu.core_type = #tpu.core_type<tc>, window_params = [{transform_indices = @transform_0, window_bounds = array<i64: 16, 128>}, {transform_indices = @transform_1, window_bounds = array<i64: 128, 32>}, {transform_indices = @transform_2, window_bounds = array<i64: 1, 32>}, {transform_indices = @transform_3, window_bounds = array<i64: 16, 32>}, {transform_indices = @transform_4, window_bounds = array<i64: 16, 32>}]} {
    %c0_i32 = arith.constant 0 : i32
    %0 = arith.cmpi eq, %arg2, %c0_i32 : i32
    %1 = arith.extui %0 : i1 to i32
    %c0_i32_0 = arith.constant 0 : i32
    %2 = arith.cmpi ne, %1, %c0_i32_0 : i32
    scf.if %2 {
      %cst_10 = arith.constant 0.000000e+00 : f32
      %12 = vector.broadcast %cst_10 : f32 to vector<16x32xf32>
      %c0_11 = arith.constant 0 : index
      %c0_12 = arith.constant 0 : index
      %13 = vector.load %arg8[%c0_11, %c0_12] : memref<16x32xf32, #tpu.memory_space<vmem>>, vector<16x32xf32>
      tpu.vector_store %arg8[%c0_11, %c0_12], %12 {strides = array<i32>} : memref<16x32xf32, #tpu.memory_space<vmem>>, vector<16x32xf32>,
    } else {
    }
    %c0 = arith.constant 0 : index
    %c0_1 = arith.constant 0 : index
    %3 = vector.load %arg8[%c0, %c0_1] : memref<16x32xf32, #tpu.memory_space<vmem>>, vector<16x32xf32>
    %c0_2 = arith.constant 0 : index
    %c0_3 = arith.constant 0 : index
    %4 = vector.load %arg3[%c0_2, %c0_3] : memref<16x128xbf16, #tpu.memory_space<vmem>>, vector<16x128xbf16>
    %c0_4 = arith.constant 0 : index
    %c0_5 = arith.constant 0 : index
    %5 = vector.load %arg4[%c0_4, %c0_5] : memref<128x32xbf16, #tpu.memory_space<vmem>>, vector<128x32xbf16>
    %cst = arith.constant dense<0.000000e+00> : vector<16x32xf32>
    %6 = tpu.matmul %4, %5, %cst {dimension_numbers = #tpu.dot_dimension_numbers<[1], [0], [0], [1], [0, 0, 1, 1], [], []>} : vector<16x128xbf16>, vector<128x32xbf16>, vector<16x32xf32> -> vector<16x32xf32>
    %7 = arith.addf %3, %6 : vector<16x32xf32>
    %c0_6 = arith.constant 0 : index
    %c0_7 = arith.constant 0 : index
    %8 = vector.load %arg8[%c0_6, %c0_7] : memref<16x32xf32, #tpu.memory_space<vmem>>, vector<16x32xf32>
    tpu.vector_store %arg8[%c0_6, %c0_7], %7 {strides = array<i32>} : memref<16x32xf32, #tpu.memory_space<vmem>>, vector<16x32xf32>,
    %c0_i32_8 = arith.constant 0 : i32
    %9 = arith.cmpi eq, %arg2, %c0_i32_8 : i32
    %10 = arith.extui %9 : i1 to i32
    %c0_i32_9 = arith.constant 0 : i32
    %11 = arith.cmpi ne, %10, %c0_i32_9 : i32
    scf.if %11 {
      %c0_10 = arith.constant 0 : index
      %c0_11 = arith.constant 0 : index
      %12 = vector.load %arg8[%c0_10, %c0_11] : memref<16x32xf32, #tpu.memory_space<vmem>>, vector<16x32xf32>
      %c0_12 = arith.constant 0 : index
      %c0_13 = arith.constant 0 : index
      %13 = vector.load %arg5[%c0_12, %c0_13] : memref<1x32xf32, #tpu.memory_space<vmem>>, vector<1x32xf32>
      %14 = vector.broadcast %13 : vector<1x32xf32> to vector<16x32xf32>
      %15 = arith.addf %12, %14 : vector<16x32xf32>
      %c0_14 = arith.constant 0 : index
      %c0_15 = arith.constant 0 : index
      %16 = vector.load %arg6[%c0_14, %c0_15] : memref<16x32xbf16, #tpu.memory_space<vmem>>, vector<16x32xbf16>
      %17 = arith.extf %16 : vector<16x32xbf16> to vector<16x32xf32>
      %18 = arith.addf %15, %17 : vector<16x32xf32>
      %19 = arith.truncf %18 : vector<16x32xf32> to vector<16x32xbf16>
      %c0_16 = arith.constant 0 : index
      %c0_17 = arith.constant 0 : index
      %20 = vector.load %arg7[%c0_16, %c0_17] : memref<16x32xbf16, #tpu.memory_space<vmem>>, vector<16x32xbf16>
      tpu.vector_store %arg7[%c0_16, %c0_17], %19 {strides = array<i32>} : memref<16x32xbf16, #tpu.memory_space<vmem>>, vector<16x32xbf16>,
    } else {
    }
    return
  }
  func.func @transform_0(%arg0: i32, %arg1: i32, %arg2: i32) -> (i32, i32) {
    %c0_i32 = arith.constant 0 : i32
    return %arg0, %arg2 : i32, i32
  }
  func.func @transform_1(%arg0: i32, %arg1: i32, %arg2: i32) -> (i32, i32) {
    %c0_i32 = arith.constant 0 : i32
    return %arg2, %arg1 : i32, i32
  }
  func.func @transform_2(%arg0: i32, %arg1: i32, %arg2: i32) -> (i32, i32) {
    %c0_i32 = arith.constant 0 : i32
    %c0_i32_0 = arith.constant 0 : i32
    return %c0_i32, %arg1 : i32, i32
  }
  func.func @transform_3(%arg0: i32, %arg1: i32, %arg2: i32) -> (i32, i32) {
    %c0_i32 = arith.constant 0 : i32
    return %arg0, %arg1 : i32, i32
  }
  func.func @transform_4(%arg0: i32, %arg1: i32, %arg2: i32) -> (i32, i32) {
    %c0_i32 = arith.constant 0 : i32
    return %arg0, %arg1 : i32, i32
  }
}

module attributes {stable_mosaic.version = 11 : i64} {
  func.func @_ln_linear_kernel(%arg0: i32, %arg1: i32, %arg2: memref<8x64xbf16, #tpu.memory_space<vmem>>, %arg3: memref<1x64xf32, #tpu.memory_space<vmem>>, %arg4: memref<1x64xf32, #tpu.memory_space<vmem>>, %arg5: memref<64x192xbf16, #tpu.memory_space<vmem>>, %arg6: memref<1x192xf32, #tpu.memory_space<vmem>>, %arg7: memref<8x192xbf16, #tpu.memory_space<vmem>>, %arg8: memref<8x64xbf16, #tpu.memory_space<vmem>>) attributes {dimension_semantics = [#tpu.dimension_semantics<parallel>, #tpu.dimension_semantics<arbitrary>], iteration_bounds = array<i64: 1, 1>, scalar_prefetch = 0 : i64, scratch_operands = 1 : i64, tpu.core_type = #tpu.core_type<tc>, window_params = [{transform_indices = @transform_0, window_bounds = array<i64: 8, 64>}, {pipeline_mode = #tpu.pipeline_mode<synchronous>, transform_indices = @transform_1, window_bounds = array<i64: 1, 64>}, {pipeline_mode = #tpu.pipeline_mode<synchronous>, transform_indices = @transform_2, window_bounds = array<i64: 1, 64>}, {transform_indices = @transform_3, window_bounds = array<i64: 64, 192>}, {transform_indices = @transform_4, window_bounds = array<i64: 1, 192>}, {transform_indices = @transform_5, window_bounds = array<i64: 8, 192>}]} {
    %c0_i32 = arith.constant 0 : i32
    %0 = arith.cmpi eq, %arg1, %c0_i32 : i32
    %1 = arith.extui %0 : i1 to i32
    %c0_i32_0 = arith.constant 0 : i32
    %2 = arith.cmpi ne, %1, %c0_i32_0 : i32
    scf.if %2 {
      %c0_8 = arith.constant 0 : index
      %c0_9 = arith.constant 0 : index
      %11 = vector.load %arg2[%c0_8, %c0_9] : memref<8x64xbf16, #tpu.memory_space<vmem>>, vector<8x64xbf16>
      %12 = arith.extf %11 : vector<8x64xbf16> to vector<8x64xf32>
      %cst_10 = arith.constant dense<0.000000e+00> : vector<8xf32>
      %13 = vector.multi_reduction <add>, %12, %cst_10 [1] : vector<8x64xf32> to vector<8xf32>
      %14 = vector.shape_cast %13 : vector<8xf32> to vector<8x1xf32>
      %cst_11 = arith.constant 6.400000e+01 : f32
      %15 = vector.broadcast %cst_11 : f32 to vector<8x1xf32>
      %16 = arith.divf %14, %15 : vector<8x1xf32>
      %17 = vector.broadcast %16 : vector<8x1xf32> to vector<8x64xf32>
      %18 = arith.subf %12, %17 : vector<8x64xf32>
      %19 = arith.mulf %18, %18 : vector<8x64xf32>
      %cst_12 = arith.constant dense<0.000000e+00> : vector<8xf32>
      %20 = vector.multi_reduction <add>, %19, %cst_12 [1] : vector<8x64xf32> to vector<8xf32>
      %21 = vector.shape_cast %20 : vector<8xf32> to vector<8x1xf32>
      %cst_13 = arith.constant 6.400000e+01 : f32
      %22 = vector.broadcast %cst_13 : f32 to vector<8x1xf32>
      %23 = arith.divf %21, %22 : vector<8x1xf32>
      %cst_14 = arith.constant 9.99999974E-6 : f32
      %24 = vector.broadcast %cst_14 : f32 to vector<8x1xf32>
      %25 = arith.addf %23, %24 : vector<8x1xf32>
      %26 = math.rsqrt %25 : vector<8x1xf32>
      %27 = vector.broadcast %26 : vector<8x1xf32> to vector<8x64xf32>
      %28 = arith.mulf %18, %27 : vector<8x64xf32>
      %c0_15 = arith.constant 0 : index
      %c0_16 = arith.constant 0 : index
      %29 = vector.load %arg3[%c0_15, %c0_16] : memref<1x64xf32, #tpu.memory_space<vmem>>, vector<1x64xf32>
      %30 = vector.broadcast %29 : vector<1x64xf32> to vector<8x64xf32>
      %31 = arith.mulf %28, %30 : vector<8x64xf32>
      %c0_17 = arith.constant 0 : index
      %c0_18 = arith.constant 0 : index
      %32 = vector.load %arg4[%c0_17, %c0_18] : memref<1x64xf32, #tpu.memory_space<vmem>>, vector<1x64xf32>
      %33 = vector.broadcast %32 : vector<1x64xf32> to vector<8x64xf32>
      %34 = arith.addf %31, %33 : vector<8x64xf32>
      %35 = arith.truncf %34 : vector<8x64xf32> to vector<8x64xbf16>
      %c0_19 = arith.constant 0 : index
      %c0_20 = arith.constant 0 : index
      %36 = vector.load %arg8[%c0_19, %c0_20] : memref<8x64xbf16, #tpu.memory_space<vmem>>, vector<8x64xbf16>
      tpu.vector_store %arg8[%c0_19, %c0_20], %35 {strides = array<i32>} : memref<8x64xbf16, #tpu.memory_space<vmem>>, vector<8x64xbf16>,
    } else {
    }
    %c0 = arith.constant 0 : index
    %c0_1 = arith.constant 0 : index
    %3 = vector.load %arg8[%c0, %c0_1] : memref<8x64xbf16, #tpu.memory_space<vmem>>, vector<8x64xbf16>
    %c0_2 = arith.constant 0 : index
    %c0_3 = arith.constant 0 : index
    %4 = vector.load %arg5[%c0_2, %c0_3] : memref<64x192xbf16, #tpu.memory_space<vmem>>, vector<64x192xbf16>
    %cst = arith.constant dense<0.000000e+00> : vector<8x192xf32>
    %5 = tpu.matmul %3, %4, %cst {dimension_numbers = #tpu.dot_dimension_numbers<[1], [0], [0], [1], [0, 0, 1, 1], [], []>} : vector<8x64xbf16>, vector<64x192xbf16>, vector<8x192xf32> -> vector<8x192xf32>
    %c0_4 = arith.constant 0 : index
    %c0_5 = arith.constant 0 : index
    %6 = vector.load %arg6[%c0_4, %c0_5] : memref<1x192xf32, #tpu.memory_space<vmem>>, vector<1x192xf32>
    %7 = vector.broadcast %6 : vector<1x192xf32> to vector<8x192xf32>
    %8 = arith.addf %5, %7 : vector<8x192xf32>
    %9 = arith.truncf %8 : vector<8x192xf32> to vector<8x192xbf16>
    %c0_6 = arith.constant 0 : index
    %c0_7 = arith.constant 0 : index
    %10 = vector.load %arg7[%c0_6, %c0_7] : memref<8x192xbf16, #tpu.memory_space<vmem>>, vector<8x192xbf16>
    tpu.vector_store %arg7[%c0_6, %c0_7], %9 {strides = array<i32>} : memref<8x192xbf16, #tpu.memory_space<vmem>>, vector<8x192xbf16>,
    return
  }
  func.func @transform_0(%arg0: i32, %arg1: i32) -> (i32, i32) {
    %c0_i32 = arith.constant 0 : i32
    %c0_i32_0 = arith.constant 0 : i32
    return %arg0, %c0_i32 : i32, i32
  }
  func.func @transform_1(%arg0: i32, %arg1: i32) -> (i32, i32) {
    %c0_i32 = arith.constant 0 : i32
    %c0_i32_0 = arith.constant 0 : i32
    %c0_i32_1 = arith.constant 0 : i32
    return %c0_i32, %c0_i32_0 : i32, i32
  }
  func.func @transform_2(%arg0: i32, %arg1: i32) -> (i32, i32) {
    %c0_i32 = arith.constant 0 : i32
    %c0_i32_0 = arith.constant 0 : i32
    %c0_i32_1 = arith.constant 0 : i32
    return %c0_i32, %c0_i32_0 : i32, i32
  }
  func.func @transform_3(%arg0: i32, %arg1: i32) -> (i32, i32) {
    %c0_i32 = arith.constant 0 : i32
    %c0_i32_0 = arith.constant 0 : i32
    return %c0_i32, %arg1 : i32, i32
  }
  func.func @transform_4(%arg0: i32, %arg1: i32) -> (i32, i32) {
    %c0_i32 = arith.constant 0 : i32
    %c0_i32_0 = arith.constant 0 : i32
    return %c0_i32, %arg1 : i32, i32
  }
  func.func @transform_5(%arg0: i32, %arg1: i32) -> (i32, i32) {
    %c0_i32 = arith.constant 0 : i32
    return %arg0, %arg1 : i32, i32
  }
}

module attributes {stable_mosaic.version = 11 : i64} {
  func.func @_window_attn_kernel(%arg0: i32, %arg1: memref<1x4x192xbf16, #tpu.memory_space<vmem>>, %arg2: memref<8x4x4xf32, #tpu.memory_space<vmem>>, %arg3: memref<64x64xbf16, #tpu.memory_space<vmem>>, %arg4: memref<1x64xf32, #tpu.memory_space<vmem>>, %arg5: memref<1x4x64xbf16, #tpu.memory_space<vmem>>, %arg6: memref<1x4x64xbf16, #tpu.memory_space<vmem>>) attributes {dimension_semantics = [#tpu.dimension_semantics<parallel>], iteration_bounds = array<i64: 2>, scalar_prefetch = 0 : i64, scratch_operands = 0 : i64, tpu.core_type = #tpu.core_type<tc>, window_params = [{transform_indices = @transform_0, window_bounds = array<i64: 1, 4, 192>}, {pipeline_mode = #tpu.pipeline_mode<synchronous>, transform_indices = @transform_1, window_bounds = array<i64: 8, 4, 4>}, {pipeline_mode = #tpu.pipeline_mode<synchronous>, transform_indices = @transform_2, window_bounds = array<i64: 64, 64>}, {pipeline_mode = #tpu.pipeline_mode<synchronous>, transform_indices = @transform_3, window_bounds = array<i64: 1, 64>}, {transform_indices = @transform_4, window_bounds = array<i64: 1, 4, 64>}, {transform_indices = @transform_5, window_bounds = array<i64: 1, 4, 64>}]} {
    %c0 = arith.constant 0 : index
    %c0_0 = arith.constant 0 : index
    %c0_1 = arith.constant 0 : index
    %0 = vector.load %arg1[%c0, %c0_0, %c0_1] : memref<1x4x192xbf16, #tpu.memory_space<vmem>>, vector<1x4x192xbf16>
    %1 = vector.shape_cast %0 : vector<1x4x192xbf16> to vector<4x192xbf16>
    %2 = vector.extract_strided_slice %1 {offsets = [0, 0], sizes = [4, 64], strides = [1, 1]} : vector<4x192xbf16> to vector<4x64xbf16>
    %3 = vector.extract_strided_slice %1 {offsets = [0, 64], sizes = [4, 64], strides = [1, 1]} : vector<4x192xbf16> to vector<4x64xbf16>
    %4 = vector.extract_strided_slice %1 {offsets = [0, 128], sizes = [4, 64], strides = [1, 1]} : vector<4x192xbf16> to vector<4x64xbf16>
    %5 = arith.extf %3 : vector<4x64xbf16> to vector<4x64xf32>
    %6 = tpu.transpose %5, [1, 0] : vector<4x64xf32> -> vector<64x4xf32>
    %7 = arith.truncf %6 : vector<64x4xf32> to vector<64x4xbf16>
    %c0_2 = arith.constant 0 : index
    %c0_3 = arith.constant 0 : index
    %c0_4 = arith.constant 0 : index
    %8 = vector.load %arg2[%c0_2, %c0_3, %c0_4] : memref<8x4x4xf32, #tpu.memory_space<vmem>>, vector<8x4x4xf32>
    %9 = vector.extract_strided_slice %2 {offsets = [0, 0], sizes = [4, 8], strides = [1, 1]} : vector<4x64xbf16> to vector<4x8xbf16>
    %10 = vector.extract_strided_slice %7 {offsets = [0, 0], sizes = [8, 4], strides = [1, 1]} : vector<64x4xbf16> to vector<8x4xbf16>
    %cst = arith.constant dense<0.000000e+00> : vector<4x4xf32>
    %11 = tpu.matmul %9, %10, %cst {dimension_numbers = #tpu.dot_dimension_numbers<[1], [0], [0], [1], [0, 0, 1, 1], [], []>} : vector<4x8xbf16>, vector<8x4xbf16>, vector<4x4xf32> -> vector<4x4xf32>
    %cst_5 = arith.constant 0.353553385 : f32
    %12 = vector.broadcast %cst_5 : f32 to vector<4x4xf32>
    %13 = arith.mulf %11, %12 : vector<4x4xf32>
    %14 = vector.extract_strided_slice %8 {offsets = [0, 0, 0], sizes = [1, 4, 4], strides = [1, 1, 1]} : vector<8x4x4xf32> to vector<1x4x4xf32>
    %15 = vector.shape_cast %14 : vector<1x4x4xf32> to vector<4x4xf32>
    %16 = arith.addf %13, %15 : vector<4x4xf32>
    %17 = vector.extract_strided_slice %2 {offsets = [0, 8], sizes = [4, 8], strides = [1, 1]} : vector<4x64xbf16> to vector<4x8xbf16>
    %18 = vector.extract_strided_slice %7 {offsets = [8, 0], sizes = [8, 4], strides = [1, 1]} : vector<64x4xbf16> to vector<8x4xbf16>
    %cst_6 = arith.constant dense<0.000000e+00> : vector<4x4xf32>
    %19 = tpu.matmul %17, %18, %cst_6 {dimension_numbers = #tpu.dot_dimension_numbers<[1], [0], [0], [1], [0, 0, 1, 1], [], []>} : vector<4x8xbf16>, vector<8x4xbf16>, vector<4x4xf32> -> vector<4x4xf32>
    %cst_7 = arith.constant 0.353553385 : f32
    %20 = vector.broadcast %cst_7 : f32 to vector<4x4xf32>
    %21 = arith.mulf %19, %20 : vector<4x4xf32>
    %22 = vector.extract_strided_slice %8 {offsets = [1, 0, 0], sizes = [1, 4, 4], strides = [1, 1, 1]} : vector<8x4x4xf32> to vector<1x4x4xf32>
    %23 = vector.shape_cast %22 : vector<1x4x4xf32> to vector<4x4xf32>
    %24 = arith.addf %21, %23 : vector<4x4xf32>
    %25 = vector.extract_strided_slice %2 {offsets = [0, 16], sizes = [4, 8], strides = [1, 1]} : vector<4x64xbf16> to vector<4x8xbf16>
    %26 = vector.extract_strided_slice %7 {offsets = [16, 0], sizes = [8, 4], strides = [1, 1]} : vector<64x4xbf16> to vector<8x4xbf16>
    %cst_8 = arith.constant dense<0.000000e+00> : vector<4x4xf32>
    %27 = tpu.matmul %25, %26, %cst_8 {dimension_numbers = #tpu.dot_dimension_numbers<[1], [0], [0], [1], [0, 0, 1, 1], [], []>} : vector<4x8xbf16>, vector<8x4xbf16>, vector<4x4xf32> -> vector<4x4xf32>
    %cst_9 = arith.constant 0.353553385 : f32
    %28 = vector.broadcast %cst_9 : f32 to vector<4x4xf32>
    %29 = arith.mulf %27, %28 : vector<4x4xf32>
    %30 = vector.extract_strided_slice %8 {offsets = [2, 0, 0], sizes = [1, 4, 4], strides = [1, 1, 1]} : vector<8x4x4xf32> to vector<1x4x4xf32>
    %31 = vector.shape_cast %30 : vector<1x4x4xf32> to vector<4x4xf32>
    %32 = arith.addf %29, %31 : vector<4x4xf32>
    %33 = vector.extract_strided_slice %2 {offsets = [0, 24], sizes = [4, 8], strides = [1, 1]} : vector<4x64xbf16> to vector<4x8xbf16>
    %34 = vector.extract_strided_slice %7 {offsets = [24, 0], sizes = [8, 4], strides = [1, 1]} : vector<64x4xbf16> to vector<8x4xbf16>
    %cst_10 = arith.constant dense<0.000000e+00> : vector<4x4xf32>
    %35 = tpu.matmul %33, %34, %cst_10 {dimension_numbers = #tpu.dot_dimension_numbers<[1], [0], [0], [1], [0, 0, 1, 1], [], []>} : vector<4x8xbf16>, vector<8x4xbf16>, vector<4x4xf32> -> vector<4x4xf32>
    %cst_11 = arith.constant 0.353553385 : f32
    %36 = vector.broadcast %cst_11 : f32 to vector<4x4xf32>
    %37 = arith.mulf %35, %36 : vector<4x4xf32>
    %38 = vector.extract_strided_slice %8 {offsets = [3, 0, 0], sizes = [1, 4, 4], strides = [1, 1, 1]} : vector<8x4x4xf32> to vector<1x4x4xf32>
    %39 = vector.shape_cast %38 : vector<1x4x4xf32> to vector<4x4xf32>
    %40 = arith.addf %37, %39 : vector<4x4xf32>
    %41 = vector.extract_strided_slice %2 {offsets = [0, 32], sizes = [4, 8], strides = [1, 1]} : vector<4x64xbf16> to vector<4x8xbf16>
    %42 = vector.extract_strided_slice %7 {offsets = [32, 0], sizes = [8, 4], strides = [1, 1]} : vector<64x4xbf16> to vector<8x4xbf16>
    %cst_12 = arith.constant dense<0.000000e+00> : vector<4x4xf32>
    %43 = tpu.matmul %41, %42, %cst_12 {dimension_numbers = #tpu.dot_dimension_numbers<[1], [0], [0], [1], [0, 0, 1, 1], [], []>} : vector<4x8xbf16>, vector<8x4xbf16>, vector<4x4xf32> -> vector<4x4xf32>
    %cst_13 = arith.constant 0.353553385 : f32
    %44 = vector.broadcast %cst_13 : f32 to vector<4x4xf32>
    %45 = arith.mulf %43, %44 : vector<4x4xf32>
    %46 = vector.extract_strided_slice %8 {offsets = [4, 0, 0], sizes = [1, 4, 4], strides = [1, 1, 1]} : vector<8x4x4xf32> to vector<1x4x4xf32>
    %47 = vector.shape_cast %46 : vector<1x4x4xf32> to vector<4x4xf32>
    %48 = arith.addf %45, %47 : vector<4x4xf32>
    %49 = vector.extract_strided_slice %2 {offsets = [0, 40], sizes = [4, 8], strides = [1, 1]} : vector<4x64xbf16> to vector<4x8xbf16>
    %50 = vector.extract_strided_slice %7 {offsets = [40, 0], sizes = [8, 4], strides = [1, 1]} : vector<64x4xbf16> to vector<8x4xbf16>
    %cst_14 = arith.constant dense<0.000000e+00> : vector<4x4xf32>
    %51 = tpu.matmul %49, %50, %cst_14 {dimension_numbers = #tpu.dot_dimension_numbers<[1], [0], [0], [1], [0, 0, 1, 1], [], []>} : vector<4x8xbf16>, vector<8x4xbf16>, vector<4x4xf32> -> vector<4x4xf32>
    %cst_15 = arith.constant 0.353553385 : f32
    %52 = vector.broadcast %cst_15 : f32 to vector<4x4xf32>
    %53 = arith.mulf %51, %52 : vector<4x4xf32>
    %54 = vector.extract_strided_slice %8 {offsets = [5, 0, 0], sizes = [1, 4, 4], strides = [1, 1, 1]} : vector<8x4x4xf32> to vector<1x4x4xf32>
    %55 = vector.shape_cast %54 : vector<1x4x4xf32> to vector<4x4xf32>
    %56 = arith.addf %53, %55 : vector<4x4xf32>
    %57 = vector.extract_strided_slice %2 {offsets = [0, 48], sizes = [4, 8], strides = [1, 1]} : vector<4x64xbf16> to vector<4x8xbf16>
    %58 = vector.extract_strided_slice %7 {offsets = [48, 0], sizes = [8, 4], strides = [1, 1]} : vector<64x4xbf16> to vector<8x4xbf16>
    %cst_16 = arith.constant dense<0.000000e+00> : vector<4x4xf32>
    %59 = tpu.matmul %57, %58, %cst_16 {dimension_numbers = #tpu.dot_dimension_numbers<[1], [0], [0], [1], [0, 0, 1, 1], [], []>} : vector<4x8xbf16>, vector<8x4xbf16>, vector<4x4xf32> -> vector<4x4xf32>
    %cst_17 = arith.constant 0.353553385 : f32
    %60 = vector.broadcast %cst_17 : f32 to vector<4x4xf32>
    %61 = arith.mulf %59, %60 : vector<4x4xf32>
    %62 = vector.extract_strided_slice %8 {offsets = [6, 0, 0], sizes = [1, 4, 4], strides = [1, 1, 1]} : vector<8x4x4xf32> to vector<1x4x4xf32>
    %63 = vector.shape_cast %62 : vector<1x4x4xf32> to vector<4x4xf32>
    %64 = arith.addf %61, %63 : vector<4x4xf32>
    %65 = vector.extract_strided_slice %2 {offsets = [0, 56], sizes = [4, 8], strides = [1, 1]} : vector<4x64xbf16> to vector<4x8xbf16>
    %66 = vector.extract_strided_slice %7 {offsets = [56, 0], sizes = [8, 4], strides = [1, 1]} : vector<64x4xbf16> to vector<8x4xbf16>
    %cst_18 = arith.constant dense<0.000000e+00> : vector<4x4xf32>
    %67 = tpu.matmul %65, %66, %cst_18 {dimension_numbers = #tpu.dot_dimension_numbers<[1], [0], [0], [1], [0, 0, 1, 1], [], []>} : vector<4x8xbf16>, vector<8x4xbf16>, vector<4x4xf32> -> vector<4x4xf32>
    %cst_19 = arith.constant 0.353553385 : f32
    %68 = vector.broadcast %cst_19 : f32 to vector<4x4xf32>
    %69 = arith.mulf %67, %68 : vector<4x4xf32>
    %70 = vector.extract_strided_slice %8 {offsets = [7, 0, 0], sizes = [1, 4, 4], strides = [1, 1, 1]} : vector<8x4x4xf32> to vector<1x4x4xf32>
    %71 = vector.shape_cast %70 : vector<1x4x4xf32> to vector<4x4xf32>
    %72 = arith.addf %69, %71 : vector<4x4xf32>
    %73 = tpu.concatenate %16, %24, %32, %40, %48, %56, %64, %72 in 0 : vector<4x4xf32>, vector<4x4xf32>, vector<4x4xf32>, vector<4x4xf32>, vector<4x4xf32>, vector<4x4xf32>, vector<4x4xf32>, vector<4x4xf32> -> vector<32x4xf32>
    %cst_20 = arith.constant dense<0xFF800000> : vector<32xf32>
    %74 = vector.multi_reduction <maximumf>, %73, %cst_20 [1] : vector<32x4xf32> to vector<32xf32>
    %75 = vector.shape_cast %74 : vector<32xf32> to vector<32x1xf32>
    %76 = vector.broadcast %75 : vector<32x1xf32> to vector<32x4xf32>
    %77 = arith.subf %73, %76 : vector<32x4xf32>
    %78 = math.exp %77 : vector<32x4xf32>
    %cst_21 = arith.constant dense<0.000000e+00> : vector<32xf32>
    %79 = vector.multi_reduction <add>, %78, %cst_21 [1] : vector<32x4xf32> to vector<32xf32>
    %80 = vector.shape_cast %79 : vector<32xf32> to vector<32x1xf32>
    %81 = tpu.reciprocal %80 {approx = true} : vector<32x1xf32> -> vector<32x1xf32>
    %82 = vector.broadcast %81 : vector<32x1xf32> to vector<32x4xf32>
    %83 = arith.mulf %78, %82 : vector<32x4xf32>
    %84 = arith.truncf %83 : vector<32x4xf32> to vector<32x4xbf16>
    %85 = vector.extract_strided_slice %84 {offsets = [0, 0], sizes = [4, 4], strides = [1, 1]} : vector<32x4xbf16> to vector<4x4xbf16>
    %86 = vector.extract_strided_slice %4 {offsets = [0, 0], sizes = [4, 8], strides = [1, 1]} : vector<4x64xbf16> to vector<4x8xbf16>
    %cst_22 = arith.constant dense<0.000000e+00> : vector<4x8xf32>
    %87 = tpu.matmul %85, %86, %cst_22 {dimension_numbers = #tpu.dot_dimension_numbers<[1], [0], [0], [1], [0, 0, 1, 1], [], []>} : vector<4x4xbf16>, vector<4x8xbf16>, vector<4x8xf32> -> vector<4x8xf32>
    %88 = vector.extract_strided_slice %84 {offsets = [4, 0], sizes = [4, 4], strides = [1, 1]} : vector<32x4xbf16> to vector<4x4xbf16>
    %89 = vector.extract_strided_slice %4 {offsets = [0, 8], sizes = [4, 8], strides = [1, 1]} : vector<4x64xbf16> to vector<4x8xbf16>
    %cst_23 = arith.constant dense<0.000000e+00> : vector<4x8xf32>
    %90 = tpu.matmul %88, %89, %cst_23 {dimension_numbers = #tpu.dot_dimension_numbers<[1], [0], [0], [1], [0, 0, 1, 1], [], []>} : vector<4x4xbf16>, vector<4x8xbf16>, vector<4x8xf32> -> vector<4x8xf32>
    %91 = vector.extract_strided_slice %84 {offsets = [8, 0], sizes = [4, 4], strides = [1, 1]} : vector<32x4xbf16> to vector<4x4xbf16>
    %92 = vector.extract_strided_slice %4 {offsets = [0, 16], sizes = [4, 8], strides = [1, 1]} : vector<4x64xbf16> to vector<4x8xbf16>
    %cst_24 = arith.constant dense<0.000000e+00> : vector<4x8xf32>
    %93 = tpu.matmul %91, %92, %cst_24 {dimension_numbers = #tpu.dot_dimension_numbers<[1], [0], [0], [1], [0, 0, 1, 1], [], []>} : vector<4x4xbf16>, vector<4x8xbf16>, vector<4x8xf32> -> vector<4x8xf32>
    %94 = vector.extract_strided_slice %84 {offsets = [12, 0], sizes = [4, 4], strides = [1, 1]} : vector<32x4xbf16> to vector<4x4xbf16>
    %95 = vector.extract_strided_slice %4 {offsets = [0, 24], sizes = [4, 8], strides = [1, 1]} : vector<4x64xbf16> to vector<4x8xbf16>
    %cst_25 = arith.constant dense<0.000000e+00> : vector<4x8xf32>
    %96 = tpu.matmul %94, %95, %cst_25 {dimension_numbers = #tpu.dot_dimension_numbers<[1], [0], [0], [1], [0, 0, 1, 1], [], []>} : vector<4x4xbf16>, vector<4x8xbf16>, vector<4x8xf32> -> vector<4x8xf32>
    %97 = vector.extract_strided_slice %84 {offsets = [16, 0], sizes = [4, 4], strides = [1, 1]} : vector<32x4xbf16> to vector<4x4xbf16>
    %98 = vector.extract_strided_slice %4 {offsets = [0, 32], sizes = [4, 8], strides = [1, 1]} : vector<4x64xbf16> to vector<4x8xbf16>
    %cst_26 = arith.constant dense<0.000000e+00> : vector<4x8xf32>
    %99 = tpu.matmul %97, %98, %cst_26 {dimension_numbers = #tpu.dot_dimension_numbers<[1], [0], [0], [1], [0, 0, 1, 1], [], []>} : vector<4x4xbf16>, vector<4x8xbf16>, vector<4x8xf32> -> vector<4x8xf32>
    %100 = vector.extract_strided_slice %84 {offsets = [20, 0], sizes = [4, 4], strides = [1, 1]} : vector<32x4xbf16> to vector<4x4xbf16>
    %101 = vector.extract_strided_slice %4 {offsets = [0, 40], sizes = [4, 8], strides = [1, 1]} : vector<4x64xbf16> to vector<4x8xbf16>
    %cst_27 = arith.constant dense<0.000000e+00> : vector<4x8xf32>
    %102 = tpu.matmul %100, %101, %cst_27 {dimension_numbers = #tpu.dot_dimension_numbers<[1], [0], [0], [1], [0, 0, 1, 1], [], []>} : vector<4x4xbf16>, vector<4x8xbf16>, vector<4x8xf32> -> vector<4x8xf32>
    %103 = vector.extract_strided_slice %84 {offsets = [24, 0], sizes = [4, 4], strides = [1, 1]} : vector<32x4xbf16> to vector<4x4xbf16>
    %104 = vector.extract_strided_slice %4 {offsets = [0, 48], sizes = [4, 8], strides = [1, 1]} : vector<4x64xbf16> to vector<4x8xbf16>
    %cst_28 = arith.constant dense<0.000000e+00> : vector<4x8xf32>
    %105 = tpu.matmul %103, %104, %cst_28 {dimension_numbers = #tpu.dot_dimension_numbers<[1], [0], [0], [1], [0, 0, 1, 1], [], []>} : vector<4x4xbf16>, vector<4x8xbf16>, vector<4x8xf32> -> vector<4x8xf32>
    %106 = vector.extract_strided_slice %84 {offsets = [28, 0], sizes = [4, 4], strides = [1, 1]} : vector<32x4xbf16> to vector<4x4xbf16>
    %107 = vector.extract_strided_slice %4 {offsets = [0, 56], sizes = [4, 8], strides = [1, 1]} : vector<4x64xbf16> to vector<4x8xbf16>
    %cst_29 = arith.constant dense<0.000000e+00> : vector<4x8xf32>
    %108 = tpu.matmul %106, %107, %cst_29 {dimension_numbers = #tpu.dot_dimension_numbers<[1], [0], [0], [1], [0, 0, 1, 1], [], []>} : vector<4x4xbf16>, vector<4x8xbf16>, vector<4x8xf32> -> vector<4x8xf32>
    %109 = tpu.concatenate %87, %90, %93, %96, %99, %102, %105, %108 in 1 : vector<4x8xf32>, vector<4x8xf32>, vector<4x8xf32>, vector<4x8xf32>, vector<4x8xf32>, vector<4x8xf32>, vector<4x8xf32>, vector<4x8xf32> -> vector<4x64xf32>
    %110 = arith.truncf %109 : vector<4x64xf32> to vector<4x64xbf16>
    %c0_30 = arith.constant 0 : index
    %c0_31 = arith.constant 0 : index
    %111 = vector.load %arg3[%c0_30, %c0_31] : memref<64x64xbf16, #tpu.memory_space<vmem>>, vector<64x64xbf16>
    %cst_32 = arith.constant dense<0.000000e+00> : vector<4x64xf32>
    %112 = tpu.matmul %110, %111, %cst_32 {dimension_numbers = #tpu.dot_dimension_numbers<[1], [0], [0], [1], [0, 0, 1, 1], [], []>} : vector<4x64xbf16>, vector<64x64xbf16>, vector<4x64xf32> -> vector<4x64xf32>
    %c0_33 = arith.constant 0 : index
    %c0_34 = arith.constant 0 : index
    %113 = vector.load %arg4[%c0_33, %c0_34] : memref<1x64xf32, #tpu.memory_space<vmem>>, vector<1x64xf32>
    %114 = vector.broadcast %113 : vector<1x64xf32> to vector<4x64xf32>
    %115 = arith.addf %112, %114 : vector<4x64xf32>
    %c0_35 = arith.constant 0 : index
    %c0_36 = arith.constant 0 : index
    %c0_37 = arith.constant 0 : index
    %116 = vector.load %arg5[%c0_35, %c0_36, %c0_37] : memref<1x4x64xbf16, #tpu.memory_space<vmem>>, vector<1x4x64xbf16>
    %117 = vector.shape_cast %116 : vector<1x4x64xbf16> to vector<4x64xbf16>
    %118 = arith.extf %117 : vector<4x64xbf16> to vector<4x64xf32>
    %119 = arith.addf %115, %118 : vector<4x64xf32>
    %120 = arith.truncf %119 : vector<4x64xf32> to vector<4x64xbf16>
    %c0_38 = arith.constant 0 : index
    %c0_39 = arith.constant 0 : index
    %c0_40 = arith.constant 0 : index
    %121 = vector.load %arg6[%c0_38, %c0_39, %c0_40] : memref<1x4x64xbf16, #tpu.memory_space<vmem>>, vector<1x4x64xbf16>
    %122 = vector.shape_cast %121 : vector<1x4x64xbf16> to vector<4x64xbf16>
    %123 = vector.shape_cast %120 : vector<4x64xbf16> to vector<1x4x64xbf16>
    tpu.vector_store %arg6[%c0_38, %c0_39, %c0_40], %123 {strides = array<i32>} : memref<1x4x64xbf16, #tpu.memory_space<vmem>>, vector<1x4x64xbf16>,
    return
  }
  func.func @transform_0(%arg0: i32) -> (i32, i32, i32) {
    %c0_i32 = arith.constant 0 : i32
    %c0_i32_0 = arith.constant 0 : i32
    %c0_i32_1 = arith.constant 0 : i32
    return %arg0, %c0_i32, %c0_i32_0 : i32, i32, i32
  }
  func.func @transform_1(%arg0: i32) -> (i32, i32, i32) {
    %c0_i32 = arith.constant 0 : i32
    %c0_i32_0 = arith.constant 0 : i32
    %c0_i32_1 = arith.constant 0 : i32
    %c0_i32_2 = arith.constant 0 : i32
    return %c0_i32, %c0_i32_0, %c0_i32_1 : i32, i32, i32
  }
  func.func @transform_2(%arg0: i32) -> (i32, i32) {
    %c0_i32 = arith.constant 0 : i32
    %c0_i32_0 = arith.constant 0 : i32
    %c0_i32_1 = arith.constant 0 : i32
    return %c0_i32, %c0_i32_0 : i32, i32
  }
  func.func @transform_3(%arg0: i32) -> (i32, i32) {
    %c0_i32 = arith.constant 0 : i32
    %c0_i32_0 = arith.constant 0 : i32
    %c0_i32_1 = arith.constant 0 : i32
    return %c0_i32, %c0_i32_0 : i32, i32
  }
  func.func @transform_4(%arg0: i32) -> (i32, i32, i32) {
    %c0_i32 = arith.constant 0 : i32
    %c0_i32_0 = arith.constant 0 : i32
    %c0_i32_1 = arith.constant 0 : i32
    return %arg0, %c0_i32, %c0_i32_0 : i32, i32, i32
  }
  func.func @transform_5(%arg0: i32) -> (i32, i32, i32) {
    %c0_i32 = arith.constant 0 : i32
    %c0_i32_0 = arith.constant 0 : i32
    %c0_i32_1 = arith.constant 0 : i32
    return %arg0, %c0_i32, %c0_i32_0 : i32, i32, i32
  }
}

module attributes {stable_mosaic.version = 11 : i64} {
  func.func @_ln_linear_kernel(%arg0: i32, %arg1: i32, %arg2: memref<8x128xbf16, #tpu.memory_space<vmem>>, %arg3: memref<1x128xf32, #tpu.memory_space<vmem>>, %arg4: memref<1x128xf32, #tpu.memory_space<vmem>>, %arg5: memref<128x64xbf16, #tpu.memory_space<vmem>>, %arg6: memref<1x64xf32, #tpu.memory_space<vmem>>, %arg7: memref<8x64xbf16, #tpu.memory_space<vmem>>, %arg8: memref<8x128xbf16, #tpu.memory_space<vmem>>) attributes {dimension_semantics = [#tpu.dimension_semantics<parallel>, #tpu.dimension_semantics<arbitrary>], iteration_bounds = array<i64: 1, 1>, scalar_prefetch = 0 : i64, scratch_operands = 1 : i64, tpu.core_type = #tpu.core_type<tc>, window_params = [{transform_indices = @transform_0, window_bounds = array<i64: 8, 128>}, {pipeline_mode = #tpu.pipeline_mode<synchronous>, transform_indices = @transform_1, window_bounds = array<i64: 1, 128>}, {pipeline_mode = #tpu.pipeline_mode<synchronous>, transform_indices = @transform_2, window_bounds = array<i64: 1, 128>}, {transform_indices = @transform_3, window_bounds = array<i64: 128, 64>}, {transform_indices = @transform_4, window_bounds = array<i64: 1, 64>}, {transform_indices = @transform_5, window_bounds = array<i64: 8, 64>}]} {
    %c0_i32 = arith.constant 0 : i32
    %0 = arith.cmpi eq, %arg1, %c0_i32 : i32
    %1 = arith.extui %0 : i1 to i32
    %c0_i32_0 = arith.constant 0 : i32
    %2 = arith.cmpi ne, %1, %c0_i32_0 : i32
    scf.if %2 {
      %c0_8 = arith.constant 0 : index
      %c0_9 = arith.constant 0 : index
      %11 = vector.load %arg2[%c0_8, %c0_9] : memref<8x128xbf16, #tpu.memory_space<vmem>>, vector<8x128xbf16>
      %12 = arith.extf %11 : vector<8x128xbf16> to vector<8x128xf32>
      %cst_10 = arith.constant dense<0.000000e+00> : vector<8xf32>
      %13 = vector.multi_reduction <add>, %12, %cst_10 [1] : vector<8x128xf32> to vector<8xf32>
      %14 = vector.shape_cast %13 : vector<8xf32> to vector<8x1xf32>
      %cst_11 = arith.constant 1.280000e+02 : f32
      %15 = vector.broadcast %cst_11 : f32 to vector<8x1xf32>
      %16 = arith.divf %14, %15 : vector<8x1xf32>
      %17 = vector.broadcast %16 : vector<8x1xf32> to vector<8x128xf32>
      %18 = arith.subf %12, %17 : vector<8x128xf32>
      %19 = arith.mulf %18, %18 : vector<8x128xf32>
      %cst_12 = arith.constant dense<0.000000e+00> : vector<8xf32>
      %20 = vector.multi_reduction <add>, %19, %cst_12 [1] : vector<8x128xf32> to vector<8xf32>
      %21 = vector.shape_cast %20 : vector<8xf32> to vector<8x1xf32>
      %cst_13 = arith.constant 1.280000e+02 : f32
      %22 = vector.broadcast %cst_13 : f32 to vector<8x1xf32>
      %23 = arith.divf %21, %22 : vector<8x1xf32>
      %cst_14 = arith.constant 9.99999974E-6 : f32
      %24 = vector.broadcast %cst_14 : f32 to vector<8x1xf32>
      %25 = arith.addf %23, %24 : vector<8x1xf32>
      %26 = math.rsqrt %25 : vector<8x1xf32>
      %27 = vector.broadcast %26 : vector<8x1xf32> to vector<8x128xf32>
      %28 = arith.mulf %18, %27 : vector<8x128xf32>
      %c0_15 = arith.constant 0 : index
      %c0_16 = arith.constant 0 : index
      %29 = vector.load %arg3[%c0_15, %c0_16] : memref<1x128xf32, #tpu.memory_space<vmem>>, vector<1x128xf32>
      %30 = vector.broadcast %29 : vector<1x128xf32> to vector<8x128xf32>
      %31 = arith.mulf %28, %30 : vector<8x128xf32>
      %c0_17 = arith.constant 0 : index
      %c0_18 = arith.constant 0 : index
      %32 = vector.load %arg4[%c0_17, %c0_18] : memref<1x128xf32, #tpu.memory_space<vmem>>, vector<1x128xf32>
      %33 = vector.broadcast %32 : vector<1x128xf32> to vector<8x128xf32>
      %34 = arith.addf %31, %33 : vector<8x128xf32>
      %35 = arith.truncf %34 : vector<8x128xf32> to vector<8x128xbf16>
      %c0_19 = arith.constant 0 : index
      %c0_20 = arith.constant 0 : index
      %36 = vector.load %arg8[%c0_19, %c0_20] : memref<8x128xbf16, #tpu.memory_space<vmem>>, vector<8x128xbf16>
      tpu.vector_store %arg8[%c0_19, %c0_20], %35 {strides = array<i32>} : memref<8x128xbf16, #tpu.memory_space<vmem>>, vector<8x128xbf16>,
    } else {
    }
    %c0 = arith.constant 0 : index
    %c0_1 = arith.constant 0 : index
    %3 = vector.load %arg8[%c0, %c0_1] : memref<8x128xbf16, #tpu.memory_space<vmem>>, vector<8x128xbf16>
    %c0_2 = arith.constant 0 : index
    %c0_3 = arith.constant 0 : index
    %4 = vector.load %arg5[%c0_2, %c0_3] : memref<128x64xbf16, #tpu.memory_space<vmem>>, vector<128x64xbf16>
    %cst = arith.constant dense<0.000000e+00> : vector<8x64xf32>
    %5 = tpu.matmul %3, %4, %cst {dimension_numbers = #tpu.dot_dimension_numbers<[1], [0], [0], [1], [0, 0, 1, 1], [], []>} : vector<8x128xbf16>, vector<128x64xbf16>, vector<8x64xf32> -> vector<8x64xf32>
    %c0_4 = arith.constant 0 : index
    %c0_5 = arith.constant 0 : index
    %6 = vector.load %arg6[%c0_4, %c0_5] : memref<1x64xf32, #tpu.memory_space<vmem>>, vector<1x64xf32>
    %7 = vector.broadcast %6 : vector<1x64xf32> to vector<8x64xf32>
    %8 = arith.addf %5, %7 : vector<8x64xf32>
    %9 = arith.truncf %8 : vector<8x64xf32> to vector<8x64xbf16>
    %c0_6 = arith.constant 0 : index
    %c0_7 = arith.constant 0 : index
    %10 = vector.load %arg7[%c0_6, %c0_7] : memref<8x64xbf16, #tpu.memory_space<vmem>>, vector<8x64xbf16>
    tpu.vector_store %arg7[%c0_6, %c0_7], %9 {strides = array<i32>} : memref<8x64xbf16, #tpu.memory_space<vmem>>, vector<8x64xbf16>,
    return
  }
  func.func @transform_0(%arg0: i32, %arg1: i32) -> (i32, i32) {
    %c0_i32 = arith.constant 0 : i32
    %c0_i32_0 = arith.constant 0 : i32
    return %arg0, %c0_i32 : i32, i32
  }
  func.func @transform_1(%arg0: i32, %arg1: i32) -> (i32, i32) {
    %c0_i32 = arith.constant 0 : i32
    %c0_i32_0 = arith.constant 0 : i32
    %c0_i32_1 = arith.constant 0 : i32
    return %c0_i32, %c0_i32_0 : i32, i32
  }
  func.func @transform_2(%arg0: i32, %arg1: i32) -> (i32, i32) {
    %c0_i32 = arith.constant 0 : i32
    %c0_i32_0 = arith.constant 0 : i32
    %c0_i32_1 = arith.constant 0 : i32
    return %c0_i32, %c0_i32_0 : i32, i32
  }
  func.func @transform_3(%arg0: i32, %arg1: i32) -> (i32, i32) {
    %c0_i32 = arith.constant 0 : i32
    %c0_i32_0 = arith.constant 0 : i32
    return %c0_i32, %arg1 : i32, i32
  }
  func.func @transform_4(%arg0: i32, %arg1: i32) -> (i32, i32) {
    %c0_i32 = arith.constant 0 : i32
    %c0_i32_0 = arith.constant 0 : i32
    return %c0_i32, %arg1 : i32, i32
  }
  func.func @transform_5(%arg0: i32, %arg1: i32) -> (i32, i32) {
    %c0_i32 = arith.constant 0 : i32
    return %arg0, %arg1 : i32, i32
  }
}

module attributes {stable_mosaic.version = 11 : i64} {
  func.func @_ln_linear_kernel(%arg0: i32, %arg1: i32, %arg2: memref<8x64xbf16, #tpu.memory_space<vmem>>, %arg3: memref<1x64xf32, #tpu.memory_space<vmem>>, %arg4: memref<1x64xf32, #tpu.memory_space<vmem>>, %arg5: memref<64x256xbf16, #tpu.memory_space<vmem>>, %arg6: memref<1x256xf32, #tpu.memory_space<vmem>>, %arg7: memref<8x256xbf16, #tpu.memory_space<vmem>>, %arg8: memref<8x64xbf16, #tpu.memory_space<vmem>>) attributes {dimension_semantics = [#tpu.dimension_semantics<parallel>, #tpu.dimension_semantics<arbitrary>], iteration_bounds = array<i64: 1, 1>, scalar_prefetch = 0 : i64, scratch_operands = 1 : i64, tpu.core_type = #tpu.core_type<tc>, window_params = [{transform_indices = @transform_0, window_bounds = array<i64: 8, 64>}, {pipeline_mode = #tpu.pipeline_mode<synchronous>, transform_indices = @transform_1, window_bounds = array<i64: 1, 64>}, {pipeline_mode = #tpu.pipeline_mode<synchronous>, transform_indices = @transform_2, window_bounds = array<i64: 1, 64>}, {transform_indices = @transform_3, window_bounds = array<i64: 64, 256>}, {transform_indices = @transform_4, window_bounds = array<i64: 1, 256>}, {transform_indices = @transform_5, window_bounds = array<i64: 8, 256>}]} {
    %c0_i32 = arith.constant 0 : i32
    %0 = arith.cmpi eq, %arg1, %c0_i32 : i32
    %1 = arith.extui %0 : i1 to i32
    %c0_i32_0 = arith.constant 0 : i32
    %2 = arith.cmpi ne, %1, %c0_i32_0 : i32
    scf.if %2 {
      %c0_12 = arith.constant 0 : index
      %c0_13 = arith.constant 0 : index
      %24 = vector.load %arg2[%c0_12, %c0_13] : memref<8x64xbf16, #tpu.memory_space<vmem>>, vector<8x64xbf16>
      %25 = arith.extf %24 : vector<8x64xbf16> to vector<8x64xf32>
      %cst_14 = arith.constant dense<0.000000e+00> : vector<8xf32>
      %26 = vector.multi_reduction <add>, %25, %cst_14 [1] : vector<8x64xf32> to vector<8xf32>
      %27 = vector.shape_cast %26 : vector<8xf32> to vector<8x1xf32>
      %cst_15 = arith.constant 6.400000e+01 : f32
      %28 = vector.broadcast %cst_15 : f32 to vector<8x1xf32>
      %29 = arith.divf %27, %28 : vector<8x1xf32>
      %30 = vector.broadcast %29 : vector<8x1xf32> to vector<8x64xf32>
      %31 = arith.subf %25, %30 : vector<8x64xf32>
      %32 = arith.mulf %31, %31 : vector<8x64xf32>
      %cst_16 = arith.constant dense<0.000000e+00> : vector<8xf32>
      %33 = vector.multi_reduction <add>, %32, %cst_16 [1] : vector<8x64xf32> to vector<8xf32>
      %34 = vector.shape_cast %33 : vector<8xf32> to vector<8x1xf32>
      %cst_17 = arith.constant 6.400000e+01 : f32
      %35 = vector.broadcast %cst_17 : f32 to vector<8x1xf32>
      %36 = arith.divf %34, %35 : vector<8x1xf32>
      %cst_18 = arith.constant 9.99999974E-6 : f32
      %37 = vector.broadcast %cst_18 : f32 to vector<8x1xf32>
      %38 = arith.addf %36, %37 : vector<8x1xf32>
      %39 = math.rsqrt %38 : vector<8x1xf32>
      %40 = vector.broadcast %39 : vector<8x1xf32> to vector<8x64xf32>
      %41 = arith.mulf %31, %40 : vector<8x64xf32>
      %c0_19 = arith.constant 0 : index
      %c0_20 = arith.constant 0 : index
      %42 = vector.load %arg3[%c0_19, %c0_20] : memref<1x64xf32, #tpu.memory_space<vmem>>, vector<1x64xf32>
      %43 = vector.broadcast %42 : vector<1x64xf32> to vector<8x64xf32>
      %44 = arith.mulf %41, %43 : vector<8x64xf32>
      %c0_21 = arith.constant 0 : index
      %c0_22 = arith.constant 0 : index
      %45 = vector.load %arg4[%c0_21, %c0_22] : memref<1x64xf32, #tpu.memory_space<vmem>>, vector<1x64xf32>
      %46 = vector.broadcast %45 : vector<1x64xf32> to vector<8x64xf32>
      %47 = arith.addf %44, %46 : vector<8x64xf32>
      %48 = arith.truncf %47 : vector<8x64xf32> to vector<8x64xbf16>
      %c0_23 = arith.constant 0 : index
      %c0_24 = arith.constant 0 : index
      %49 = vector.load %arg8[%c0_23, %c0_24] : memref<8x64xbf16, #tpu.memory_space<vmem>>, vector<8x64xbf16>
      tpu.vector_store %arg8[%c0_23, %c0_24], %48 {strides = array<i32>} : memref<8x64xbf16, #tpu.memory_space<vmem>>, vector<8x64xbf16>,
    } else {
    }
    %c0 = arith.constant 0 : index
    %c0_1 = arith.constant 0 : index
    %3 = vector.load %arg8[%c0, %c0_1] : memref<8x64xbf16, #tpu.memory_space<vmem>>, vector<8x64xbf16>
    %c0_2 = arith.constant 0 : index
    %c0_3 = arith.constant 0 : index
    %4 = vector.load %arg5[%c0_2, %c0_3] : memref<64x256xbf16, #tpu.memory_space<vmem>>, vector<64x256xbf16>
    %cst = arith.constant dense<0.000000e+00> : vector<8x256xf32>
    %5 = tpu.matmul %3, %4, %cst {dimension_numbers = #tpu.dot_dimension_numbers<[1], [0], [0], [1], [0, 0, 1, 1], [], []>} : vector<8x64xbf16>, vector<64x256xbf16>, vector<8x256xf32> -> vector<8x256xf32>
    %c0_4 = arith.constant 0 : index
    %c0_5 = arith.constant 0 : index
    %6 = vector.load %arg6[%c0_4, %c0_5] : memref<1x256xf32, #tpu.memory_space<vmem>>, vector<1x256xf32>
    %7 = vector.broadcast %6 : vector<1x256xf32> to vector<8x256xf32>
    %8 = arith.addf %5, %7 : vector<8x256xf32>
    %cst_6 = arith.constant 5.000000e-01 : f32
    %9 = vector.broadcast %cst_6 : f32 to vector<8x256xf32>
    %10 = arith.mulf %9, %8 : vector<8x256xf32>
    %cst_7 = arith.constant 4.471500e-02 : f32
    %11 = vector.broadcast %cst_7 : f32 to vector<8x256xf32>
    %12 = arith.mulf %11, %8 : vector<8x256xf32>
    %13 = arith.mulf %12, %8 : vector<8x256xf32>
    %14 = arith.mulf %13, %8 : vector<8x256xf32>
    %15 = arith.addf %8, %14 : vector<8x256xf32>
    %cst_8 = arith.constant 0.797884583 : f32
    %16 = vector.broadcast %cst_8 : f32 to vector<8x256xf32>
    %17 = arith.mulf %16, %15 : vector<8x256xf32>
    %18 = math.tanh %17 : vector<8x256xf32>
    %cst_9 = arith.constant 1.000000e+00 : f32
    %19 = vector.broadcast %cst_9 : f32 to vector<8x256xf32>
    %20 = arith.addf %19, %18 : vector<8x256xf32>
    %21 = arith.mulf %10, %20 : vector<8x256xf32>
    %22 = arith.truncf %21 : vector<8x256xf32> to vector<8x256xbf16>
    %c0_10 = arith.constant 0 : index
    %c0_11 = arith.constant 0 : index
    %23 = vector.load %arg7[%c0_10, %c0_11] : memref<8x256xbf16, #tpu.memory_space<vmem>>, vector<8x256xbf16>
    tpu.vector_store %arg7[%c0_10, %c0_11], %22 {strides = array<i32>} : memref<8x256xbf16, #tpu.memory_space<vmem>>, vector<8x256xbf16>,
    return
  }
  func.func @transform_0(%arg0: i32, %arg1: i32) -> (i32, i32) {
    %c0_i32 = arith.constant 0 : i32
    %c0_i32_0 = arith.constant 0 : i32
    return %arg0, %c0_i32 : i32, i32
  }
  func.func @transform_1(%arg0: i32, %arg1: i32) -> (i32, i32) {
    %c0_i32 = arith.constant 0 : i32
    %c0_i32_0 = arith.constant 0 : i32
    %c0_i32_1 = arith.constant 0 : i32
    return %c0_i32, %c0_i32_0 : i32, i32
  }
  func.func @transform_2(%arg0: i32, %arg1: i32) -> (i32, i32) {
    %c0_i32 = arith.constant 0 : i32
    %c0_i32_0 = arith.constant 0 : i32
    %c0_i32_1 = arith.constant 0 : i32
    return %c0_i32, %c0_i32_0 : i32, i32
  }
  func.func @transform_3(%arg0: i32, %arg1: i32) -> (i32, i32) {
    %c0_i32 = arith.constant 0 : i32
    %c0_i32_0 = arith.constant 0 : i32
    return %c0_i32, %arg1 : i32, i32
  }
  func.func @transform_4(%arg0: i32, %arg1: i32) -> (i32, i32) {
    %c0_i32 = arith.constant 0 : i32
    %c0_i32_0 = arith.constant 0 : i32
    return %c0_i32, %arg1 : i32, i32
  }
  func.func @transform_5(%arg0: i32, %arg1: i32) -> (i32, i32) {
    %c0_i32 = arith.constant 0 : i32
    return %arg0, %arg1 : i32, i32
  }
}

module attributes {stable_mosaic.version = 11 : i64} {
  func.func @_matmul_kernel(%arg0: i32, %arg1: i32, %arg2: i32, %arg3: memref<8x256xbf16, #tpu.memory_space<vmem>>, %arg4: memref<256x64xbf16, #tpu.memory_space<vmem>>, %arg5: memref<1x64xf32, #tpu.memory_space<vmem>>, %arg6: memref<8x64xbf16, #tpu.memory_space<vmem>>, %arg7: memref<8x64xbf16, #tpu.memory_space<vmem>>, %arg8: memref<8x64xf32, #tpu.memory_space<vmem>>) attributes {dimension_semantics = [#tpu.dimension_semantics<parallel>, #tpu.dimension_semantics<parallel>, #tpu.dimension_semantics<arbitrary>], iteration_bounds = array<i64: 1, 1, 1>, scalar_prefetch = 0 : i64, scratch_operands = 1 : i64, tpu.core_type = #tpu.core_type<tc>, window_params = [{transform_indices = @transform_0, window_bounds = array<i64: 8, 256>}, {transform_indices = @transform_1, window_bounds = array<i64: 256, 64>}, {transform_indices = @transform_2, window_bounds = array<i64: 1, 64>}, {transform_indices = @transform_3, window_bounds = array<i64: 8, 64>}, {transform_indices = @transform_4, window_bounds = array<i64: 8, 64>}]} {
    %c0_i32 = arith.constant 0 : i32
    %0 = arith.cmpi eq, %arg2, %c0_i32 : i32
    %1 = arith.extui %0 : i1 to i32
    %c0_i32_0 = arith.constant 0 : i32
    %2 = arith.cmpi ne, %1, %c0_i32_0 : i32
    scf.if %2 {
      %cst_10 = arith.constant 0.000000e+00 : f32
      %12 = vector.broadcast %cst_10 : f32 to vector<8x64xf32>
      %c0_11 = arith.constant 0 : index
      %c0_12 = arith.constant 0 : index
      %13 = vector.load %arg8[%c0_11, %c0_12] : memref<8x64xf32, #tpu.memory_space<vmem>>, vector<8x64xf32>
      tpu.vector_store %arg8[%c0_11, %c0_12], %12 {strides = array<i32>} : memref<8x64xf32, #tpu.memory_space<vmem>>, vector<8x64xf32>,
    } else {
    }
    %c0 = arith.constant 0 : index
    %c0_1 = arith.constant 0 : index
    %3 = vector.load %arg8[%c0, %c0_1] : memref<8x64xf32, #tpu.memory_space<vmem>>, vector<8x64xf32>
    %c0_2 = arith.constant 0 : index
    %c0_3 = arith.constant 0 : index
    %4 = vector.load %arg3[%c0_2, %c0_3] : memref<8x256xbf16, #tpu.memory_space<vmem>>, vector<8x256xbf16>
    %c0_4 = arith.constant 0 : index
    %c0_5 = arith.constant 0 : index
    %5 = vector.load %arg4[%c0_4, %c0_5] : memref<256x64xbf16, #tpu.memory_space<vmem>>, vector<256x64xbf16>
    %cst = arith.constant dense<0.000000e+00> : vector<8x64xf32>
    %6 = tpu.matmul %4, %5, %cst {dimension_numbers = #tpu.dot_dimension_numbers<[1], [0], [0], [1], [0, 0, 1, 1], [], []>} : vector<8x256xbf16>, vector<256x64xbf16>, vector<8x64xf32> -> vector<8x64xf32>
    %7 = arith.addf %3, %6 : vector<8x64xf32>
    %c0_6 = arith.constant 0 : index
    %c0_7 = arith.constant 0 : index
    %8 = vector.load %arg8[%c0_6, %c0_7] : memref<8x64xf32, #tpu.memory_space<vmem>>, vector<8x64xf32>
    tpu.vector_store %arg8[%c0_6, %c0_7], %7 {strides = array<i32>} : memref<8x64xf32, #tpu.memory_space<vmem>>, vector<8x64xf32>,
    %c0_i32_8 = arith.constant 0 : i32
    %9 = arith.cmpi eq, %arg2, %c0_i32_8 : i32
    %10 = arith.extui %9 : i1 to i32
    %c0_i32_9 = arith.constant 0 : i32
    %11 = arith.cmpi ne, %10, %c0_i32_9 : i32
    scf.if %11 {
      %c0_10 = arith.constant 0 : index
      %c0_11 = arith.constant 0 : index
      %12 = vector.load %arg8[%c0_10, %c0_11] : memref<8x64xf32, #tpu.memory_space<vmem>>, vector<8x64xf32>
      %c0_12 = arith.constant 0 : index
      %c0_13 = arith.constant 0 : index
      %13 = vector.load %arg5[%c0_12, %c0_13] : memref<1x64xf32, #tpu.memory_space<vmem>>, vector<1x64xf32>
      %14 = vector.broadcast %13 : vector<1x64xf32> to vector<8x64xf32>
      %15 = arith.addf %12, %14 : vector<8x64xf32>
      %c0_14 = arith.constant 0 : index
      %c0_15 = arith.constant 0 : index
      %16 = vector.load %arg6[%c0_14, %c0_15] : memref<8x64xbf16, #tpu.memory_space<vmem>>, vector<8x64xbf16>
      %17 = arith.extf %16 : vector<8x64xbf16> to vector<8x64xf32>
      %18 = arith.addf %15, %17 : vector<8x64xf32>
      %19 = arith.truncf %18 : vector<8x64xf32> to vector<8x64xbf16>
      %c0_16 = arith.constant 0 : index
      %c0_17 = arith.constant 0 : index
      %20 = vector.load %arg7[%c0_16, %c0_17] : memref<8x64xbf16, #tpu.memory_space<vmem>>, vector<8x64xbf16>
      tpu.vector_store %arg7[%c0_16, %c0_17], %19 {strides = array<i32>} : memref<8x64xbf16, #tpu.memory_space<vmem>>, vector<8x64xbf16>,
    } else {
    }
    return
  }
  func.func @transform_0(%arg0: i32, %arg1: i32, %arg2: i32) -> (i32, i32) {
    %c0_i32 = arith.constant 0 : i32
    return %arg0, %arg2 : i32, i32
  }
  func.func @transform_1(%arg0: i32, %arg1: i32, %arg2: i32) -> (i32, i32) {
    %c0_i32 = arith.constant 0 : i32
    return %arg2, %arg1 : i32, i32
  }
  func.func @transform_2(%arg0: i32, %arg1: i32, %arg2: i32) -> (i32, i32) {
    %c0_i32 = arith.constant 0 : i32
    %c0_i32_0 = arith.constant 0 : i32
    return %c0_i32, %arg1 : i32, i32
  }
  func.func @transform_3(%arg0: i32, %arg1: i32, %arg2: i32) -> (i32, i32) {
    %c0_i32 = arith.constant 0 : i32
    return %arg0, %arg1 : i32, i32
  }
  func.func @transform_4(%arg0: i32, %arg1: i32, %arg2: i32) -> (i32, i32) {
    %c0_i32 = arith.constant 0 : i32
    return %arg0, %arg1 : i32, i32
  }
}

module attributes {stable_mosaic.version = 11 : i64} {
  func.func @_tail_kernel(%arg0: i32, %arg1: memref<1x4x64xbf16, #tpu.memory_space<vmem>>, %arg2: memref<1x64xf32, #tpu.memory_space<vmem>>, %arg3: memref<1x64xf32, #tpu.memory_space<vmem>>, %arg4: memref<64x128xbf16, #tpu.memory_space<vmem>>, %arg5: memref<1x128xf32, #tpu.memory_space<vmem>>, %arg6: memref<2x128xf32, #tpu.memory_space<vmem>>) attributes {dimension_semantics = [#tpu.dimension_semantics<arbitrary>], iteration_bounds = array<i64: 2>, scalar_prefetch = 0 : i64, scratch_operands = 0 : i64, tpu.core_type = #tpu.core_type<tc>, window_params = [{transform_indices = @transform_0, window_bounds = array<i64: 1, 4, 64>}, {pipeline_mode = #tpu.pipeline_mode<synchronous>, transform_indices = @transform_1, window_bounds = array<i64: 1, 64>}, {pipeline_mode = #tpu.pipeline_mode<synchronous>, transform_indices = @transform_2, window_bounds = array<i64: 1, 64>}, {pipeline_mode = #tpu.pipeline_mode<synchronous>, transform_indices = @transform_3, window_bounds = array<i64: 64, 128>}, {pipeline_mode = #tpu.pipeline_mode<synchronous>, transform_indices = @transform_4, window_bounds = array<i64: 1, 128>}, {pipeline_mode = #tpu.pipeline_mode<synchronous>, transform_indices = @transform_5, window_bounds = array<i64: 2, 128>}]} {
    %c0 = arith.constant 0 : index
    %c0_0 = arith.constant 0 : index
    %c0_1 = arith.constant 0 : index
    %0 = vector.load %arg1[%c0, %c0_0, %c0_1] : memref<1x4x64xbf16, #tpu.memory_space<vmem>>, vector<1x4x64xbf16>
    %1 = vector.shape_cast %0 : vector<1x4x64xbf16> to vector<4x64xbf16>
    %2 = arith.extf %1 : vector<4x64xbf16> to vector<4x64xf32>
    %cst = arith.constant dense<0.000000e+00> : vector<4xf32>
    %3 = vector.multi_reduction <add>, %2, %cst [1] : vector<4x64xf32> to vector<4xf32>
    %4 = vector.shape_cast %3 : vector<4xf32> to vector<4x1xf32>
    %cst_2 = arith.constant 6.400000e+01 : f32
    %5 = vector.broadcast %cst_2 : f32 to vector<4x1xf32>
    %6 = arith.divf %4, %5 : vector<4x1xf32>
    %7 = vector.broadcast %6 : vector<4x1xf32> to vector<4x64xf32>
    %8 = arith.subf %2, %7 : vector<4x64xf32>
    %9 = arith.mulf %8, %8 : vector<4x64xf32>
    %cst_3 = arith.constant dense<0.000000e+00> : vector<4xf32>
    %10 = vector.multi_reduction <add>, %9, %cst_3 [1] : vector<4x64xf32> to vector<4xf32>
    %11 = vector.shape_cast %10 : vector<4xf32> to vector<4x1xf32>
    %cst_4 = arith.constant 6.400000e+01 : f32
    %12 = vector.broadcast %cst_4 : f32 to vector<4x1xf32>
    %13 = arith.divf %11, %12 : vector<4x1xf32>
    %cst_5 = arith.constant 9.99999974E-6 : f32
    %14 = vector.broadcast %cst_5 : f32 to vector<4x1xf32>
    %15 = arith.addf %13, %14 : vector<4x1xf32>
    %16 = math.rsqrt %15 : vector<4x1xf32>
    %17 = vector.broadcast %16 : vector<4x1xf32> to vector<4x64xf32>
    %18 = arith.mulf %8, %17 : vector<4x64xf32>
    %c0_6 = arith.constant 0 : index
    %c0_7 = arith.constant 0 : index
    %19 = vector.load %arg2[%c0_6, %c0_7] : memref<1x64xf32, #tpu.memory_space<vmem>>, vector<1x64xf32>
    %20 = vector.broadcast %19 : vector<1x64xf32> to vector<4x64xf32>
    %21 = arith.mulf %18, %20 : vector<4x64xf32>
    %c0_8 = arith.constant 0 : index
    %c0_9 = arith.constant 0 : index
    %22 = vector.load %arg3[%c0_8, %c0_9] : memref<1x64xf32, #tpu.memory_space<vmem>>, vector<1x64xf32>
    %23 = vector.broadcast %22 : vector<1x64xf32> to vector<4x64xf32>
    %24 = arith.addf %21, %23 : vector<4x64xf32>
    %cst_10 = arith.constant dense<0.000000e+00> : vector<64xf32>
    %25 = vector.multi_reduction <add>, %24, %cst_10 [0] : vector<4x64xf32> to vector<64xf32>
    %26 = vector.shape_cast %25 : vector<64xf32> to vector<1x64xf32>
    %cst_11 = arith.constant 4.000000e+00 : f32
    %27 = vector.broadcast %cst_11 : f32 to vector<1x64xf32>
    %28 = arith.divf %26, %27 : vector<1x64xf32>
    %29 = arith.truncf %28 : vector<1x64xf32> to vector<1x64xbf16>
    %c0_12 = arith.constant 0 : index
    %c0_13 = arith.constant 0 : index
    %30 = vector.load %arg4[%c0_12, %c0_13] : memref<64x128xbf16, #tpu.memory_space<vmem>>, vector<64x128xbf16>
    %cst_14 = arith.constant dense<0.000000e+00> : vector<1x128xf32>
    %31 = tpu.matmul %29, %30, %cst_14 {dimension_numbers = #tpu.dot_dimension_numbers<[1], [0], [0], [1], [0, 0, 1, 1], [], []>} : vector<1x64xbf16>, vector<64x128xbf16>, vector<1x128xf32> -> vector<1x128xf32>
    %c0_15 = arith.constant 0 : index
    %c0_16 = arith.constant 0 : index
    %32 = vector.load %arg5[%c0_15, %c0_16] : memref<1x128xf32, #tpu.memory_space<vmem>>, vector<1x128xf32>
    %33 = arith.addf %31, %32 : vector<1x128xf32>
    %34 = arith.index_cast %arg0 : i32 to index
    %c0_17 = arith.constant 0 : index
    %35 = vector.load %arg6[%34, %c0_17] : memref<2x128xf32, #tpu.memory_space<vmem>>, vector<1x128xf32>
    tpu.vector_store %arg6[%34, %c0_17], %33 {strides = array<i32>} : memref<2x128xf32, #tpu.memory_space<vmem>>, vector<1x128xf32>,
    return
  }
  func.func @transform_0(%arg0: i32) -> (i32, i32, i32) {
    %c0_i32 = arith.constant 0 : i32
    %c0_i32_0 = arith.constant 0 : i32
    %c0_i32_1 = arith.constant 0 : i32
    return %arg0, %c0_i32, %c0_i32_0 : i32, i32, i32
  }
  func.func @transform_1(%arg0: i32) -> (i32, i32) {
    %c0_i32 = arith.constant 0 : i32
    %c0_i32_0 = arith.constant 0 : i32
    %c0_i32_1 = arith.constant 0 : i32
    return %c0_i32, %c0_i32_0 : i32, i32
  }
  func.func @transform_2(%arg0: i32) -> (i32, i32) {
    %c0_i32 = arith.constant 0 : i32
    %c0_i32_0 = arith.constant 0 : i32
    %c0_i32_1 = arith.constant 0 : i32
    return %c0_i32, %c0_i32_0 : i32, i32
  }
  func.func @transform_3(%arg0: i32) -> (i32, i32) {
    %c0_i32 = arith.constant 0 : i32
    %c0_i32_0 = arith.constant 0 : i32
    %c0_i32_1 = arith.constant 0 : i32
    return %c0_i32, %c0_i32_0 : i32, i32
  }
  func.func @transform_4(%arg0: i32) -> (i32, i32) {
    %c0_i32 = arith.constant 0 : i32
    %c0_i32_0 = arith.constant 0 : i32
    %c0_i32_1 = arith.constant 0 : i32
    return %c0_i32, %c0_i32_0 : i32, i32
  }
  func.func @transform_5(%arg0: i32) -> (i32, i32) {
    %c0_i32 = arith.constant 0 : i32
    %c0_i32_0 = arith.constant 0 : i32
    %c0_i32_1 = arith.constant 0 : i32
    return %c0_i32, %c0_i32_0 : i32, i32
  }
}

</mosaic_0001>

<llo_original>
// kernel: image_backbone_forward.20
$region0: #{image_backbone_forward.20}
  #allocation0 [shape = 'u32[]', space=smem, size = 0x4, offset = 0x4, fixed_abs, tag = 'smem constant byte address 0x4 - core index']
  #allocation1 [shape = 'u32[72,128]{1,0:T(1,128)}', space=vmem, size = 0x9000, scoped, tag = 'internal scratch']
  #allocation2 [shape = 'bf16[16,32]{1,0:T(8,128)(2,1)}', space=vmem, size = 0x1000, scoped, tag = 'scratch operand']
  %s0 = inlined_call_operand.vmem [shape: bf16[32,32], index: 0, kind: input, shape index: {}]
  %s1 = inlined_call_operand.vmem [shape: f32[1,32], index: 1, kind: input, shape index: {}]
  %s2 = inlined_call_operand.vmem [shape: f32[1,32], index: 2, kind: input, shape index: {}]
  %s3 = inlined_call_operand.vmem [shape: bf16[32,96], index: 3, kind: input, shape index: {}]
  %s4 = inlined_call_operand.vmem [shape: f32[1,96], index: 4, kind: input, shape index: {}]
  %s5 = inlined_call_operand.vmem [shape: bf16[32,96], index: 5, kind: output, shape index: {}]
  %s6 = sld [smem:[#allocation0]]
  $region57: #{image_backbone_forward.20} parent=0
    _
  %s8 = ssub.s32 1, %s6
  %s9 = scalar_select 0, %s8, %s6
  loop: start=0, step=1, limit=4
  $region2: #{image_backbone_forward.20} parent=0 // loop_pre_header
    _
  $region3: #{image_backbone_forward.20} parent=0 // loop_header
    %s11 = sphi 0, %s15
    %p12 = scmp.ge.s32.totalorder %s11, 4
    %s18 = sphi 0, %s30
    %s19 = sphi 0, %s26
    %s20 = sphi 0, %s18
    %s21 = sphi 0, %s19
    %s22 = sphi 0, %s20
    %s23 = sphi 0, %s21
    %s33 = sphi 0, %s35
    %s36 = sphi 0, %s33
    %s37 = sphi 0, %s36
    %s53 = sphi 0, %s37
    %s57 = sphi 0, %s57
    %s59 = sphi 0, %s57
    %s60 = sphi 0, %s59
    %s74 = sphi 0, %s60
    %s78 = sphi 0, %s78
    %s80 = sphi 0, %s78
    %s81 = sphi 0, %s80
    %s95 = sphi 0, %s81
    %s101 = sphi 0, %s103
    %s104 = sphi 0, %s101
    %s105 = sphi 0, %s104
    %s121 = sphi 0, %s105
    %s127 = sphi 0, %s129
    %s130 = sphi 0, %s127
    %s131 = sphi 0, %s130
    %s147 = sphi 0, %s131
    %s155 = sphi 0, %s157
    %s158 = sphi 0, %s155
    %s159 = sphi 0, %s158
    %s175 = sphi 0, %s159
  $region4: #{image_backbone_forward.20} parent=0 // loop_header_branch
    %14 = sbr.rel (%p12) target = $region8
  $region5: #{image_backbone_forward.20} parent=0 // loop_body
    %s16 = ssub.s32 %s11, 1
    %s17 = ssub.s32 %s11, 2
    %s24 = sadd.s32 1, %s19
    %p25 = scmp.ge.s32.totalorder %s24, 1
    %s26 = scalar_select %p25, 0, %s24
    %s27 = sadd.s32 1, %s18
    %s28 = scalar_select %p25, %s27, %s18
    %p29 = scmp.ge.s32.totalorder %s28, 2
    %s30 = scalar_select %p29, 0, %s28
    %s31 = ssub.s32 %s18, %s30
    %p32 = scmp.eq.s32.totalorder %s31, 0
    %s34 = sadd.s32 %s33, 1
    %s35 = scalar_select %p32, %s33, %s34
    %p38 = pneg %p32
    %p39 = scmp.eq.s32.totalorder %s11, 1
    %p40 = por %p38, %p39
    %p41 = scmp.ne.s32.totalorder %s33, %s36
    %p42 = scmp.eq.s32.totalorder %s11, 0
    %p43 = por %p41, %p42
    %p44 = scmp.ne.s32.totalorder %s33, %s36
    %p45 = scmp.eq.s32.totalorder %s16, 1
    %p46 = por %p44, %p45
    %p47 = scmp.ne.s32.totalorder %s36, %s37
    %p48 = scmp.eq.s32.totalorder %s16, 0
    %p49 = por %p47, %p48
    %p50 = scmp.ne.s32.totalorder %s36, %s37
    %p51 = scmp.eq.s32.totalorder %s17, 1
    %p52 = por %p50, %p51
    %p54 = scmp.ne.s32.totalorder %s37, %s53
    %p55 = scmp.eq.s32.totalorder %s17, 0
    %p56 = por %p54, %p55
    %s58 = sadd.s32 %s57, 1
    %p61 = scmp.eq.s32.totalorder %s11, 1
    %p62 = scmp.ne.s32.totalorder %s57, %s59
    %p63 = scmp.eq.s32.totalorder %s11, 0
    %p64 = por %p62, %p63
    %p65 = scmp.ne.s32.totalorder %s57, %s59
    %p66 = scmp.eq.s32.totalorder %s16, 1
    %p67 = por %p65, %p66
    %p68 = scmp.ne.s32.totalorder %s59, %s60
    %p69 = scmp.eq.s32.totalorder %s16, 0
    %p70 = por %p68, %p69
    %p71 = scmp.ne.s32.totalorder %s59, %s60
    %p72 = scmp.eq.s32.totalorder %s17, 1
    %p73 = por %p71, %p72
    %p75 = scmp.ne.s32.totalorder %s60, %s74
    %p76 = scmp.eq.s32.totalorder %s17, 0
    %p77 = por %p75, %p76
    %s79 = sadd.s32 %s78, 1
    %p82 = scmp.eq.s32.totalorder %s11, 1
    %p83 = scmp.ne.s32.totalorder %s78, %s80
    %p84 = scmp.eq.s32.totalorder %s11, 0
    %p85 = por %p83, %p84
    %p86 = scmp.ne.s32.totalorder %s78, %s80
    %p87 = scmp.eq.s32.totalorder %s16, 1
    %p88 = por %p86, %p87
    %p89 = scmp.ne.s32.totalorder %s80, %s81
    %p90 = scmp.eq.s32.totalorder %s16, 0
    %p91 = por %p89, %p90
    %p92 = scmp.ne.s32.totalorder %s80, %s81
    %p93 = scmp.eq.s32.totalorder %s17, 1
    %p94 = por %p92, %p93
    %p96 = scmp.ne.s32.totalorder %s81, %s95
    %p97 = scmp.eq.s32.totalorder %s17, 0
    %p98 = por %p96, %p97
    %s99 = ssub.s32 %s19, %s26
    %p100 = scmp.eq.s32.totalorder %s99, 0
    %s102 = sadd.s32 %s101, 1
    %s103 = scalar_select %p100, %s101, %s102
    %p106 = pneg %p100
    %p107 = scmp.eq.s32.totalorder %s11, 1
    %p108 = por %p106, %p107
    %p109 = scmp.ne.s32.totalorder %s101, %s104
    %p110 = scmp.eq.s32.totalorder %s11, 0
    %p111 = por %p109, %p110
    %p112 = scmp.ne.s32.totalorder %s101, %s104
    %p113 = scmp.eq.s32.totalorder %s16, 1
    %p114 = por %p112, %p113
    %p115 = scmp.ne.s32.totalorder %s104, %s105
    %p116 = scmp.eq.s32.totalorder %s16, 0
    %p117 = por %p115, %p116
    %p118 = scmp.ne.s32.totalorder %s104, %s105
    %p119 = scmp.eq.s32.totalorder %s17, 1
    %p120 = por %p118, %p119
    %p122 = scmp.ne.s32.totalorder %s105, %s121
    %p123 = scmp.eq.s32.totalorder %s17, 0
    %p124 = por %p122, %p123
    %s125 = ssub.s32 %s19, %s26
    %p126 = scmp.eq.s32.totalorder %s125, 0
    %s128 = sadd.s32 %s127, 1
    %s129 = scalar_select %p126, %s127, %s128
    %p132 = pneg %p126
    %p133 = scmp.eq.s32.totalorder %s11, 1
    %p134 = por %p132, %p133
    %p135 = scmp.ne.s32.totalorder %s127, %s130
    %p136 = scmp.eq.s32.totalorder %s11, 0
    %p137 = por %p135, %p136
    %p138 = scmp.ne.s32.totalorder %s127, %s130
    %p139 = scmp.eq.s32.totalorder %s16, 1
    %p140 = por %p138, %p139
    %p141 = scmp.ne.s32.totalorder %s130, %s131
    %p142 = scmp.eq.s32.totalorder %s16, 0
    %p143 = por %p141, %p142
    %p144 = scmp.ne.s32.totalorder %s130, %s131
    %p145 = scmp.eq.s32.totalorder %s17, 1
    %p146 = por %p144, %p145
    %p148 = scmp.ne.s32.totalorder %s131, %s147
    %p149 = scmp.eq.s32.totalorder %s17, 0
    %p150 = por %p148, %p149
    %s151 = ssub.s32 %s18, %s30
    %s152 = ssub.s32 %s19, %s26
    %s153 = sor.u32 %s151, %s152
    %p154 = scmp.eq.s32.totalorder %s153, 0
    %s156 = sadd.s32 %s155, 1
    %s157 = scalar_select %p154, %s155, %s156
    %p160 = pneg %p154
    %p161 = scmp.eq.s32.totalorder %s11, 1
    %p162 = por %p160, %p161
    %p163 = scmp.ne.s32.totalorder %s155, %s158
    %p164 = scmp.eq.s32.totalorder %s11, 0
    %p165 = por %p163, %p164
    %p166 = scmp.ne.s32.totalorder %s155, %s158
    %p167 = scmp.eq.s32.totalorder %s16, 1
    %p168 = por %p166, %p167
    %p169 = scmp.ne.s32.totalorder %s158, %s159
    %p170 = scmp.eq.s32.totalorder %s16, 0
    %p171 = por %p169, %p170
    %p172 = scmp.ne.s32.totalorder %s158, %s159
    %p173 = scmp.eq.s32.totalorder %s17, 1
    %p174 = por %p172, %p173
    %p176 = scmp.ne.s32.totalorder %s159, %s175
    %p177 = scmp.eq.s32.totalorder %s17, 0
    %p178 = por %p176, %p177
    %p179 = scmp.le.s32.totalorder 1, %s11
    %p180 = scmp.lt.s32.totalorder %s11, 3
    %p181 = pnand %p179, %p180
    %p182 = pneg %p181
    // Predicated region
    $region9: #{image_backbone_forward.20} parent=5 // pred_check
      _
    $region10: #{image_backbone_forward.20} parent=5 // pred_check_branch
      %184 = sbr.rel (%p181) target = $region12
    $region11: #{image_backbone_forward.20} parent=5 // pred_region
      %s185 = ssub.s32 %s11, 1
      // Predicated region
      $region13: #{image_backbone_forward.20} parent=11 // pred_check
        %p186 = pneg %p70
      $region14: #{image_backbone_forward.20} parent=11 // pred_check_branch
        %188 = sbr.rel (%p186) target = $region16
      $region15: #{image_backbone_forward.20} parent=11 // pred_region
        _
      $region16: #{image_backbone_forward.20} parent=11 // pred_fallthru
        _
      // Predicated region
      $region17: #{image_backbone_forward.20} parent=11 // pred_check
        %p189 = pneg %p91
      $region18: #{image_backbone_forward.20} parent=11 // pred_check_branch
        %191 = sbr.rel (%p189) target = $region20
      $region19: #{image_backbone_forward.20} parent=11 // pred_region
        _
      $region20: #{image_backbone_forward.20} parent=11 // pred_fallthru
        _
      // Predicated region
      $region21: #{image_backbone_forward.20} parent=11 // pred_check
        %p192 = pneg %p117
      $region22: #{image_backbone_forward.20} parent=11 // pred_check_branch
        %194 = sbr.rel (%p192) target = $region24
      $region23: #{image_backbone_forward.20} parent=11 // pred_region
        %p195 = scmp.lt.s32.totalorder %s21, 0
        %s196 = scalar_select %p195, %s21, 0
        %s197 = smul.addr %s196, 4
        %s198 = scalar_lea.vmem %s3, %s197
      $region24: #{image_backbone_forward.20} parent=11 // pred_fallthru
        _
      // Predicated region
      $region25: #{image_backbone_forward.20} parent=11 // pred_check
        %p199 = pneg %p143
      $region26: #{image_backbone_forward.20} parent=11 // pred_check_branch
        %201 = sbr.rel (%p199) target = $region28
      $region27: #{image_backbone_forward.20} parent=11 // pred_region
        %p202 = scmp.lt.s32.totalorder %s21, 0
        %s203 = scalar_select %p202, %s21, 0
        %s204 = scalar_lea.vmem %s4, %s203
      $region28: #{image_backbone_forward.20} parent=11 // pred_fallthru
        _
    $region12: #{image_backbone_forward.20} parent=5 // pred_fallthru
      _
    %p205 = scmp.lt.s32.totalorder %s11, 2
    // Predicated region
    $region29: #{image_backbone_forward.20} parent=5 // pred_check
      %p206 = pneg %p205
    $region30: #{image_backbone_forward.20} parent=5 // pred_check_branch
      %208 = sbr.rel (%p206) target = $region32
    $region31: #{image_backbone_forward.20} parent=5 // pred_region
      // Predicated region
      $region33: #{image_backbone_forward.20} parent=31 // pred_check
        %p209 = pneg %p43
      $region34: #{image_backbone_forward.20} parent=31 // pred_check_branch
        %211 = sbr.rel (%p209) target = $region36
      $region35: #{image_backbone_forward.20} parent=31 // pred_region
        %s212 = smul.u32 2, %s18
        %p213 = scmp.lt.s32.totalorder %s212, 3
        %s214 = scalar_select %p213, %s212, 3
        %s215 = smul.addr %s214, 4
        %s216 = scalar_lea.vmem %s0, %s215
        %s217 = smul.u32 2, %s18
      $region36: #{image_backbone_forward.20} parent=31 // pred_fallthru
        _
    $region32: #{image_backbone_forward.20} parent=5 // pred_fallthru
      _
    %p218 = scmp.le.s32.totalorder 1, %s11
    %p219 = scmp.lt.s32.totalorder %s11, 3
    %p220 = pnand %p218, %p219
    %p221 = pneg %p220
    // Predicated region
    $region37: #{image_backbone_forward.20} parent=5 // pred_check
      _
    $region38: #{image_backbone_forward.20} parent=5 // pred_check_branch
      %223 = sbr.rel (%p220) target = $region40
    $region39: #{image_backbone_forward.20} parent=5 // pred_region
      %s224 = ssub.s32 %s11, 1
      %s225 = smul.u32 2, %s20
      %p226 = scmp.lt.s32.totalorder %s225, 3
      %s227 = scalar_select %p226, %s225, 3
      %s228 = smul.addr %s227, 4
      %s229 = scalar_lea.vmem %s0, %s228
      %p230 = pneg %p49
      %p231 = pneg %p46
      %p232 = pneg %p70
      %p233 = pneg %p67
      %p234 = pneg %p91
      %p235 = pneg %p88
      %p236 = scmp.lt.s32.totalorder %s21, 0
      %s237 = scalar_select %p236, %s21, 0
      %s238 = smul.addr %s237, 4
      %s239 = scalar_lea.vmem %s3, %s238
      %p240 = pneg %p117
      %p241 = pneg %p114
      %p242 = scmp.lt.s32.totalorder %s21, 0
      %s243 = scalar_select %p242, %s21, 0
      %s244 = scalar_lea.vmem %s4, %s243
      %p245 = pneg %p143
      %p246 = pneg %p140
      %p247 = pneg %p171
      %p248 = pneg %p168
      %s249 = smul.u32 2, %s20
      %p250 = scmp.lt.s32.totalorder %s249, 3
      %s251 = scalar_select %p250, %s249, 3
      %p252 = scmp.lt.s32.totalorder %s21, 0
      %s253 = scalar_select %p252, %s21, 0
      %s254 = sadd.s32 %s253, %s251
      %s255 = smul.addr %s254, 4
      %s256 = scalar_lea.vmem %s5, %s255
      %s257 = smul.u32 2, %s20
      %p258 = scmp.lt.s32.totalorder %s257, 3
      %s259 = scalar_select %p258, %s257, 3
      %s260 = smul.addr %s259, 4
      %s261 = scalar_lea.vmem %s0, %s260
      %s262 = smul.u32 2, %s20
      %p263 = scmp.lt.s32.totalorder %s21, 0
      %s264 = scalar_select %p263, %s21, 0
      %s265 = smul.addr %s264, 4
      %s266 = scalar_lea.vmem %s3, %s265
      %p267 = scmp.lt.s32.totalorder %s21, 0
      %s268 = scalar_select %p267, %s21, 0
      %s269 = scalar_lea.vmem %s4, %s268
      %s270 = smul.u32 2, %s20
      %p271 = scmp.lt.s32.totalorder %s270, 3
      %s272 = scalar_select %p271, %s270, 3
      %p273 = scmp.lt.s32.totalorder %s21, 0
      %s274 = scalar_select %p273, %s21, 0
      %s275 = sadd.s32 %s274, %s272
      %s276 = smul.addr %s275, 4
      %s277 = scalar_lea.vmem %s5, %s276
      %s278 = smul.u32 2, %s20
      %p280 = scmp.eq.s32.totalorder %s21, 0
      // Predicated region
      $region41: #{image_backbone_forward.20} parent=39 // pred_check
        %p281 = pneg %p280
      $region42: #{image_backbone_forward.20} parent=39 // pred_check_branch
        %283 = sbr.rel (%p281) target = $region44
      $region43: #{image_backbone_forward.20} parent=39 // pred_region
        %v284 = vld [vmem:[%s261] sm:$0xf]
        %v285 = vld [vmem:[%s261 + $0x4] sm:$0xf]
        %v286 = vunpack.c.l.bf16 %v284
        %v287 = vunpack.c.l.bf16 %v285
        %vm288 = vcmask 261120
        %v289 = vsel %vm288, %v286, 0.0
        %290 = vadd.xlane.f32.xlu0 %v289
        %v291 = vpop.xlane.xlu0 %290
        %v292 = vsel %vm288, %v287, 0.0
        %293 = vadd.xlane.f32.xlu0 %v292
        %v294 = vpop.xlane.xlu0 %293
        %v295 = vrcp.pop 32.0
        %v296 = vmul.f32 32.0, %v295
        %v297 = vsub.f32 1.0, %v296
        %v298 = vmul.f32 %v295, %v297
        %v299 = vadd.f32 %v295, %v298
        %vm300 = vweird.f32 %v295
        %v301 = vsel %vm300, %v295, %v299
        %v302 = vmul.f32 %v291, %v301
        %v303 = vmul.f32 %v294, %v301
        %v304 = vsub.f32 %v286, %v302
        %v305 = vsub.f32 %v287, %v303
        %v306 = vmul.f32 %v304, %v304
        %v307 = vmul.f32 %v305, %v305
        %v308 = vsel %vm288, %v306, 0.0
        %309 = vadd.xlane.f32.xlu0 %v308
        %v310 = vpop.xlane.xlu0 %309
        %v311 = vsel %vm288, %v307, 0.0
        %312 = vadd.xlane.f32.xlu0 %v311
        %v313 = vpop.xlane.xlu0 %312
        %v314 = vmul.f32 %v310, %v301
        %v315 = vmul.f32 %v313, %v301
        %v316 = vadd.f32 %v314, 1e-05
        %v317 = vadd.f32 %v315, 1e-05
        %v318 = vrsqrt.pop %v316
        %v319 = vmul.f32 %v318, %v316
        %v320 = vmul.f32 %v319, %v318
        %v321 = vmul.f32 0.5, %v320
        %v322 = vsub.f32 1.5, %v321
        %v323 = vmul.f32 %v318, %v322
        %vm324 = vweird.f32 %v316
        %vm325 = vweird.f32 %v318
        %vm326 = vmor %vm324, %vm325
        %v327 = vsel %vm326, %v318, %v323
        %v328 = vrsqrt.pop %v317
        %v329 = vmul.f32 %v328, %v317
        %v330 = vmul.f32 %v329, %v328
        %v331 = vmul.f32 0.5, %v330
        %v332 = vsub.f32 1.5, %v331
        %v333 = vmul.f32 %v328, %v332
        %vm334 = vweird.f32 %v317
        %vm335 = vweird.f32 %v328
        %vm336 = vmor %vm334, %vm335
        %v337 = vsel %vm336, %v328, %v333
        %v338 = vmul.f32 %v304, %v327
        %v339 = vmul.f32 %v305, %v337
        %v340 = vld [vmem:[%s1] sm:$0x1]
        %v342 = vperm.slane %v340, 0
        %v344 = vmul.f32 %v338, %v342
        %v345 = vmul.f32 %v339, %v342
        %v346 = vld [vmem:[%s2] sm:$0x1]
        %v348 = vperm.slane %v346, 0
        %v350 = vadd.f32 %v344, %v348
        %v351 = vadd.f32 %v345, %v348
        %v352 = vpack.c.bf16 %v350, %v350
        %v353 = vpack.c.bf16 %v351, %v351
        %vm354 = vcmask 257024
        %355 = vst.msk [vmem:[#allocation2] sm:$0xf] %vm354, %v352
        %356 = vst.msk [vmem:[#allocation2 + $0x4] sm:$0xf] %vm354, %v353
      $region44: #{image_backbone_forward.20} parent=39 // pred_fallthru
        _
      %v357 = vld [vmem:[#allocation2] sm:$0xf]
      %v358 = vld [vmem:[#allocation2 + $0x4] sm:$0xf]
      %v359 = vld [vmem:[%s266] sm:$0xf]
      %v360 = vld [vmem:[%s266 + $0x4] sm:$0xf]
      %v361 = vld [vmem:[%s266 + $0x8] sm:$0xf]
      %v362 = vld [vmem:[%s266 + $0xc] sm:$0xf]
      %v363 = vld [vmem:[%s269] sm:$0x1]
      %v365 = vperm.slane %v363, 0
      %v369 = vunpack.c.l.b16 %v357
      %v370 = vunpack.c.l.b16 %v358
      %v371 = vpack.c.b16 %v370, %v369
      %v376 = vunpack.c.l.b16 %v359
      %v377 = vunpack.c.l.b16 %v360
      %v378 = vunpack.c.l.b16 %v361
      %v379 = vunpack.c.l.b16 %v362
      %v380 = vpack.c.b16 %v377, %v376
      %v381 = vpack.c.b16 %v379, %v378
      %vm384 = vcmask 261120
      %v386 = vsel %vm384, %v371, 0
      %388 = vmatpush.bf16.msra.mxu0 0
      %389 = vmatpush.bf16.msra.mxu0 0
      %390 = vmatpush.bf16.msra.mxu0 0
      %391 = vmatpush.bf16.msra.mxu0 0
      %392 = vmatpush.bf16.msra.mxu0 0
      %393 = vmatpush.bf16.msra.mxu0 0
      %394 = vmatpush.bf16.msra.mxu0 %v381
      %395 = vmatpush.bf16.msra.mxu0 %v380
      %396 = vmatmul.bf16.gmra.mxu0 %v386
      %v397 = vpop.f32.mrf.mxu0
      %v398 = vadd.f32 %v365, %v397
      %v399 = vpop.f32.mrf.mxu0
      %v400 = vadd.f32 %v365, %v399
      %401 = vdwg.mxu0
      %v402 = vpack.c.bf16 %v398, %v398
      %v403 = vpack.c.bf16 %v400, %v400
      %vm404 = vcmask 781312
      %405 = vst.msk [vmem:[%s277] sm:$0xf] %vm404, %v402
      %406 = vst.msk [vmem:[%s277 + $0x4] sm:$0xf] %vm404, %v403
      %s407 = smul.u32 2, %s20
      %p408 = scmp.lt.s32.totalorder %s407, 3
      %s409 = scalar_select %p408, %s407, 3
      %p410 = scmp.lt.s32.totalorder %s21, 0
      %s411 = scalar_select %p410, %s21, 0
      %s412 = sadd.s32 %s411, %s409
      %s413 = smul.addr %s412, 4
      %s414 = scalar_lea.vmem %s5, %s413
      // Predicated region
      $region45: #{image_backbone_forward.20} parent=39 // pred_check
        %p415 = pneg %p168
      $region46: #{image_backbone_forward.20} parent=39 // pred_check_branch
        %417 = sbr.rel (%p415) target = $region48
      $region47: #{image_backbone_forward.20} parent=39 // pred_region
        %s418 = smul.u32 2, %s20
      $region48: #{image_backbone_forward.20} parent=39 // pred_fallthru
        _
    $region40: #{image_backbone_forward.20} parent=5 // pred_fallthru
      _
    %p419 = scmp.le.s32.totalorder 2, %s11
    // Predicated region
    $region49: #{image_backbone_forward.20} parent=5 // pred_check
      %p420 = pneg %p419
    $region50: #{image_backbone_forward.20} parent=5 // pred_check_branch
      %422 = sbr.rel (%p420) target = $region52
    $region51: #{image_backbone_forward.20} parent=5 // pred_region
      %s423 = ssub.s32 %s11, 2
      // Predicated region
      $region53: #{image_backbone_forward.20} parent=51 // pred_check
        %p424 = pneg %p174
      $region54: #{image_backbone_forward.20} parent=51 // pred_check_branch
        %426 = sbr.rel (%p424) target = $region56
      $region55: #{image_backbone_forward.20} parent=51 // pred_region
        %s427 = smul.u32 2, %s22
        %p428 = scmp.lt.s32.totalorder %s427, 3
        %s429 = scalar_select %p428, %s427, 3
        %p430 = scmp.lt.s32.totalorder %s23, 0
        %s431 = scalar_select %p430, %s23, 0
        %s432 = sadd.s32 %s431, %s429
        %s433 = smul.addr %s432, 4
        %s434 = scalar_lea.vmem %s5, %s433
      $region56: #{image_backbone_forward.20} parent=51 // pred_fallthru
        _
    $region52: #{image_backbone_forward.20} parent=5 // pred_fallthru
      _
  $region6: #{image_backbone_forward.20} parent=0 // loop_footer
    %s15 = sadd.s32 1, %s11
  $region7: #{image_backbone_forward.20} parent=0 // loop_footer_branch
    %10 = sbr.rel target = $region3
  $region8: #{image_backbone_forward.20} parent=0 // loop_exit
    _

// kernel: image_backbone_forward.22
$region0: #{image_backbone_forward.22}
  #allocation0 [shape = 'u32[]', space=smem, size = 0x4, offset = 0x4, fixed_abs, tag = 'smem constant byte address 0x4 - core index']
  #allocation1 [shape = 'u32[72,128]{1,0:T(1,128)}', space=vmem, size = 0x9000, scoped, tag = 'internal scratch']
  #allocation2 [shape = 'bf16[16,32]{1,0:T(8,128)(2,1)}', space=vmem, size = 0x1000, scoped, tag = 'scratch operand']
  %s0 = inlined_call_operand.vmem [shape: bf16[32,32], index: 0, kind: input, shape index: {}]
  %s1 = inlined_call_operand.vmem [shape: f32[1,32], index: 1, kind: input, shape index: {}]
  %s2 = inlined_call_operand.vmem [shape: f32[1,32], index: 2, kind: input, shape index: {}]
  %s3 = inlined_call_operand.vmem [shape: bf16[32,128], index: 3, kind: input, shape index: {}]
  %s4 = inlined_call_operand.vmem [shape: f32[1,128], index: 4, kind: input, shape index: {}]
  %s5 = inlined_call_operand.vmem [shape: bf16[32,128], index: 5, kind: output, shape index: {}]
  %s6 = sld [smem:[#allocation0]]
  $region57: #{image_backbone_forward.22} parent=0
    _
  %s8 = ssub.s32 1, %s6
  %s9 = scalar_select 0, %s8, %s6
  loop: start=0, step=1, limit=4
  $region2: #{image_backbone_forward.22} parent=0 // loop_pre_header
    _
  $region3: #{image_backbone_forward.22} parent=0 // loop_header
    %s11 = sphi 0, %s15
    %p12 = scmp.ge.s32.totalorder %s11, 4
    %s18 = sphi 0, %s30
    %s19 = sphi 0, %s26
    %s20 = sphi 0, %s18
    %s21 = sphi 0, %s19
    %s22 = sphi 0, %s20
    %s23 = sphi 0, %s21
    %s33 = sphi 0, %s35
    %s36 = sphi 0, %s33
    %s37 = sphi 0, %s36
    %s53 = sphi 0, %s37
    %s57 = sphi 0, %s57
    %s59 = sphi 0, %s57
    %s60 = sphi 0, %s59
    %s74 = sphi 0, %s60
    %s78 = sphi 0, %s78
    %s80 = sphi 0, %s78
    %s81 = sphi 0, %s80
    %s95 = sphi 0, %s81
    %s101 = sphi 0, %s103
    %s104 = sphi 0, %s101
    %s105 = sphi 0, %s104
    %s121 = sphi 0, %s105
    %s127 = sphi 0, %s129
    %s130 = sphi 0, %s127
    %s131 = sphi 0, %s130
    %s147 = sphi 0, %s131
    %s155 = sphi 0, %s157
    %s158 = sphi 0, %s155
    %s159 = sphi 0, %s158
    %s175 = sphi 0, %s159
  $region4: #{image_backbone_forward.22} parent=0 // loop_header_branch
    %14 = sbr.rel (%p12) target = $region8
  $region5: #{image_backbone_forward.22} parent=0 // loop_body
    %s16 = ssub.s32 %s11, 1
    %s17 = ssub.s32 %s11, 2
    %s24 = sadd.s32 1, %s19
    %p25 = scmp.ge.s32.totalorder %s24, 1
    %s26 = scalar_select %p25, 0, %s24
    %s27 = sadd.s32 1, %s18
    %s28 = scalar_select %p25, %s27, %s18
    %p29 = scmp.ge.s32.totalorder %s28, 2
    %s30 = scalar_select %p29, 0, %s28
    %s31 = ssub.s32 %s18, %s30
    %p32 = scmp.eq.s32.totalorder %s31, 0
    %s34 = sadd.s32 %s33, 1
    %s35 = scalar_select %p32, %s33, %s34
    %p38 = pneg %p32
    %p39 = scmp.eq.s32.totalorder %s11, 1
    %p40 = por %p38, %p39
    %p41 = scmp.ne.s32.totalorder %s33, %s36
    %p42 = scmp.eq.s32.totalorder %s11, 0
    %p43 = por %p41, %p42
    %p44 = scmp.ne.s32.totalorder %s33, %s36
    %p45 = scmp.eq.s32.totalorder %s16, 1
    %p46 = por %p44, %p45
    %p47 = scmp.ne.s32.totalorder %s36, %s37
    %p48 = scmp.eq.s32.totalorder %s16, 0
    %p49 = por %p47, %p48
    %p50 = scmp.ne.s32.totalorder %s36, %s37
    %p51 = scmp.eq.s32.totalorder %s17, 1
    %p52 = por %p50, %p51
    %p54 = scmp.ne.s32.totalorder %s37, %s53
    %p55 = scmp.eq.s32.totalorder %s17, 0
    %p56 = por %p54, %p55
    %s58 = sadd.s32 %s57, 1
    %p61 = scmp.eq.s32.totalorder %s11, 1
    %p62 = scmp.ne.s32.totalorder %s57, %s59
    %p63 = scmp.eq.s32.totalorder %s11, 0
    %p64 = por %p62, %p63
    %p65 = scmp.ne.s32.totalorder %s57, %s59
    %p66 = scmp.eq.s32.totalorder %s16, 1
    %p67 = por %p65, %p66
    %p68 = scmp.ne.s32.totalorder %s59, %s60
    %p69 = scmp.eq.s32.totalorder %s16, 0
    %p70 = por %p68, %p69
    %p71 = scmp.ne.s32.totalorder %s59, %s60
    %p72 = scmp.eq.s32.totalorder %s17, 1
    %p73 = por %p71, %p72
    %p75 = scmp.ne.s32.totalorder %s60, %s74
    %p76 = scmp.eq.s32.totalorder %s17, 0
    %p77 = por %p75, %p76
    %s79 = sadd.s32 %s78, 1
    %p82 = scmp.eq.s32.totalorder %s11, 1
    %p83 = scmp.ne.s32.totalorder %s78, %s80
    %p84 = scmp.eq.s32.totalorder %s11, 0
    %p85 = por %p83, %p84
    %p86 = scmp.ne.s32.totalorder %s78, %s80
    %p87 = scmp.eq.s32.totalorder %s16, 1
    %p88 = por %p86, %p87
    %p89 = scmp.ne.s32.totalorder %s80, %s81
    %p90 = scmp.eq.s32.totalorder %s16, 0
    %p91 = por %p89, %p90
    %p92 = scmp.ne.s32.totalorder %s80, %s81
    %p93 = scmp.eq.s32.totalorder %s17, 1
    %p94 = por %p92, %p93
    %p96 = scmp.ne.s32.totalorder %s81, %s95
    %p97 = scmp.eq.s32.totalorder %s17, 0
    %p98 = por %p96, %p97
    %s99 = ssub.s32 %s19, %s26
    %p100 = scmp.eq.s32.totalorder %s99, 0
    %s102 = sadd.s32 %s101, 1
    %s103 = scalar_select %p100, %s101, %s102
    %p106 = pneg %p100
    %p107 = scmp.eq.s32.totalorder %s11, 1
    %p108 = por %p106, %p107
    %p109 = scmp.ne.s32.totalorder %s101, %s104
    %p110 = scmp.eq.s32.totalorder %s11, 0
    %p111 = por %p109, %p110
    %p112 = scmp.ne.s32.totalorder %s101, %s104
    %p113 = scmp.eq.s32.totalorder %s16, 1
    %p114 = por %p112, %p113
    %p115 = scmp.ne.s32.totalorder %s104, %s105
    %p116 = scmp.eq.s32.totalorder %s16, 0
    %p117 = por %p115, %p116
    %p118 = scmp.ne.s32.totalorder %s104, %s105
    %p119 = scmp.eq.s32.totalorder %s17, 1
    %p120 = por %p118, %p119
    %p122 = scmp.ne.s32.totalorder %s105, %s121
    %p123 = scmp.eq.s32.totalorder %s17, 0
    %p124 = por %p122, %p123
    %s125 = ssub.s32 %s19, %s26
    %p126 = scmp.eq.s32.totalorder %s125, 0
    %s128 = sadd.s32 %s127, 1
    %s129 = scalar_select %p126, %s127, %s128
    %p132 = pneg %p126
    %p133 = scmp.eq.s32.totalorder %s11, 1
    %p134 = por %p132, %p133
    %p135 = scmp.ne.s32.totalorder %s127, %s130
    %p136 = scmp.eq.s32.totalorder %s11, 0
    %p137 = por %p135, %p136
    %p138 = scmp.ne.s32.totalorder %s127, %s130
    %p139 = scmp.eq.s32.totalorder %s16, 1
    %p140 = por %p138, %p139
    %p141 = scmp.ne.s32.totalorder %s130, %s131
    %p142 = scmp.eq.s32.totalorder %s16, 0
    %p143 = por %p141, %p142
    %p144 = scmp.ne.s32.totalorder %s130, %s131
    %p145 = scmp.eq.s32.totalorder %s17, 1
    %p146 = por %p144, %p145
    %p148 = scmp.ne.s32.totalorder %s131, %s147
    %p149 = scmp.eq.s32.totalorder %s17, 0
    %p150 = por %p148, %p149
    %s151 = ssub.s32 %s18, %s30
    %s152 = ssub.s32 %s19, %s26
    %s153 = sor.u32 %s151, %s152
    %p154 = scmp.eq.s32.totalorder %s153, 0
    %s156 = sadd.s32 %s155, 1
    %s157 = scalar_select %p154, %s155, %s156
    %p160 = pneg %p154
    %p161 = scmp.eq.s32.totalorder %s11, 1
    %p162 = por %p160, %p161
    %p163 = scmp.ne.s32.totalorder %s155, %s158
    %p164 = scmp.eq.s32.totalorder %s11, 0
    %p165 = por %p163, %p164
    %p166 = scmp.ne.s32.totalorder %s155, %s158
    %p167 = scmp.eq.s32.totalorder %s16, 1
    %p168 = por %p166, %p167
    %p169 = scmp.ne.s32.totalorder %s158, %s159
    %p170 = scmp.eq.s32.totalorder %s16, 0
    %p171 = por %p169, %p170
    %p172 = scmp.ne.s32.totalorder %s158, %s159
    %p173 = scmp.eq.s32.totalorder %s17, 1
    %p174 = por %p172, %p173
    %p176 = scmp.ne.s32.totalorder %s159, %s175
    %p177 = scmp.eq.s32.totalorder %s17, 0
    %p178 = por %p176, %p177
    %p179 = scmp.le.s32.totalorder 1, %s11
    %p180 = scmp.lt.s32.totalorder %s11, 3
    %p181 = pnand %p179, %p180
    %p182 = pneg %p181
    // Predicated region
    $region9: #{image_backbone_forward.22} parent=5 // pred_check
      _
    $region10: #{image_backbone_forward.22} parent=5 // pred_check_branch
      %184 = sbr.rel (%p181) target = $region12
    $region11: #{image_backbone_forward.22} parent=5 // pred_region
      %s185 = ssub.s32 %s11, 1
      // Predicated region
      $region13: #{image_backbone_forward.22} parent=11 // pred_check
        %p186 = pneg %p70
      $region14: #{image_backbone_forward.22} parent=11 // pred_check_branch
        %188 = sbr.rel (%p186) target = $region16
      $region15: #{image_backbone_forward.22} parent=11 // pred_region
        _
      $region16: #{image_backbone_forward.22} parent=11 // pred_fallthru
        _
      // Predicated region
      $region17: #{image_backbone_forward.22} parent=11 // pred_check
        %p189 = pneg %p91
      $region18: #{image_backbone_forward.22} parent=11 // pred_check_branch
        %191 = sbr.rel (%p189) target = $region20
      $region19: #{image_backbone_forward.22} parent=11 // pred_region
        _
      $region20: #{image_backbone_forward.22} parent=11 // pred_fallthru
        _
      // Predicated region
      $region21: #{image_backbone_forward.22} parent=11 // pred_check
        %p192 = pneg %p117
      $region22: #{image_backbone_forward.22} parent=11 // pred_check_branch
        %194 = sbr.rel (%p192) target = $region24
      $region23: #{image_backbone_forward.22} parent=11 // pred_region
        %p195 = scmp.lt.s32.totalorder %s21, 0
        %s196 = scalar_select %p195, %s21, 0
        %s197 = smul.addr %s196, 4
        %s198 = scalar_lea.vmem %s3, %s197
      $region24: #{image_backbone_forward.22} parent=11 // pred_fallthru
        _
      // Predicated region
      $region25: #{image_backbone_forward.22} parent=11 // pred_check
        %p199 = pneg %p143
      $region26: #{image_backbone_forward.22} parent=11 // pred_check_branch
        %201 = sbr.rel (%p199) target = $region28
      $region27: #{image_backbone_forward.22} parent=11 // pred_region
        %p202 = scmp.lt.s32.totalorder %s21, 0
        %s203 = scalar_select %p202, %s21, 0
        %s204 = scalar_lea.vmem %s4, %s203
      $region28: #{image_backbone_forward.22} parent=11 // pred_fallthru
        _
    $region12: #{image_backbone_forward.22} parent=5 // pred_fallthru
      _
    %p205 = scmp.lt.s32.totalorder %s11, 2
    // Predicated region
    $region29: #{image_backbone_forward.22} parent=5 // pred_check
      %p206 = pneg %p205
    $region30: #{image_backbone_forward.22} parent=5 // pred_check_branch
      %208 = sbr.rel (%p206) target = $region32
    $region31: #{image_backbone_forward.22} parent=5 // pred_region
      // Predicated region
      $region33: #{image_backbone_forward.22} parent=31 // pred_check
        %p209 = pneg %p43
      $region34: #{image_backbone_forward.22} parent=31 // pred_check_branch
        %211 = sbr.rel (%p209) target = $region36
      $region35: #{image_backbone_forward.22} parent=31 // pred_region
        %s212 = smul.u32 2, %s18
        %p213 = scmp.lt.s32.totalorder %s212, 3
        %s214 = scalar_select %p213, %s212, 3
        %s215 = smul.addr %s214, 4
        %s216 = scalar_lea.vmem %s0, %s215
        %s217 = smul.u32 2, %s18
      $region36: #{image_backbone_forward.22} parent=31 // pred_fallthru
        _
    $region32: #{image_backbone_forward.22} parent=5 // pred_fallthru
      _
    %p218 = scmp.le.s32.totalorder 1, %s11
    %p219 = scmp.lt.s32.totalorder %s11, 3
    %p220 = pnand %p218, %p219
    %p221 = pneg %p220
    // Predicated region
    $region37: #{image_backbone_forward.22} parent=5 // pred_check
      _
    $region38: #{image_backbone_forward.22} parent=5 // pred_check_branch
      %223 = sbr.rel (%p220) target = $region40
    $region39: #{image_backbone_forward.22} parent=5 // pred_region
      %s224 = ssub.s32 %s11, 1
      %s225 = smul.u32 2, %s20
      %p226 = scmp.lt.s32.totalorder %s225, 3
      %s227 = scalar_select %p226, %s225, 3
      %s228 = smul.addr %s227, 4
      %s229 = scalar_lea.vmem %s0, %s228
      %p230 = pneg %p49
      %p231 = pneg %p46
      %p232 = pneg %p70
      %p233 = pneg %p67
      %p234 = pneg %p91
      %p235 = pneg %p88
      %p236 = scmp.lt.s32.totalorder %s21, 0
      %s237 = scalar_select %p236, %s21, 0
      %s238 = smul.addr %s237, 4
      %s239 = scalar_lea.vmem %s3, %s238
      %p240 = pneg %p117
      %p241 = pneg %p114
      %p242 = scmp.lt.s32.totalorder %s21, 0
      %s243 = scalar_select %p242, %s21, 0
      %s244 = scalar_lea.vmem %s4, %s243
      %p245 = pneg %p143
      %p246 = pneg %p140
      %p247 = pneg %p171
      %p248 = pneg %p168
      %s249 = smul.u32 2, %s20
      %p250 = scmp.lt.s32.totalorder %s249, 3
      %s251 = scalar_select %p250, %s249, 3
      %p252 = scmp.lt.s32.totalorder %s21, 0
      %s253 = scalar_select %p252, %s21, 0
      %s254 = sadd.s32 %s253, %s251
      %s255 = smul.addr %s254, 4
      %s256 = scalar_lea.vmem %s5, %s255
      %s257 = smul.u32 2, %s20
      %p258 = scmp.lt.s32.totalorder %s257, 3
      %s259 = scalar_select %p258, %s257, 3
      %s260 = smul.addr %s259, 4
      %s261 = scalar_lea.vmem %s0, %s260
      %s262 = smul.u32 2, %s20
      %p263 = scmp.lt.s32.totalorder %s21, 0
      %s264 = scalar_select %p263, %s21, 0
      %s265 = smul.addr %s264, 4
      %s266 = scalar_lea.vmem %s3, %s265
      %p267 = scmp.lt.s32.totalorder %s21, 0
      %s268 = scalar_select %p267, %s21, 0
      %s269 = scalar_lea.vmem %s4, %s268
      %s270 = smul.u32 2, %s20
      %p271 = scmp.lt.s32.totalorder %s270, 3
      %s272 = scalar_select %p271, %s270, 3
      %p273 = scmp.lt.s32.totalorder %s21, 0
      %s274 = scalar_select %p273, %s21, 0
      %s275 = sadd.s32 %s274, %s272
      %s276 = smul.addr %s275, 4
      %s277 = scalar_lea.vmem %s5, %s276
      %s278 = smul.u32 2, %s20
      %p280 = scmp.eq.s32.totalorder %s21, 0
      // Predicated region
      $region41: #{image_backbone_forward.22} parent=39 // pred_check
        %p281 = pneg %p280
      $region42: #{image_backbone_forward.22} parent=39 // pred_check_branch
        %283 = sbr.rel (%p281) target = $region44
      $region43: #{image_backbone_forward.22} parent=39 // pred_region
        %v284 = vld [vmem:[%s261] sm:$0xf]
        %v285 = vld [vmem:[%s261 + $0x4] sm:$0xf]
        %v286 = vunpack.c.l.bf16 %v284
        %v287 = vunpack.c.l.bf16 %v285
        %vm288 = vcmask 261120
        %v289 = vsel %vm288, %v286, 0.0
        %290 = vadd.xlane.f32.xlu0 %v289
        %v291 = vpop.xlane.xlu0 %290
        %v292 = vsel %vm288, %v287, 0.0
        %293 = vadd.xlane.f32.xlu0 %v292
        %v294 = vpop.xlane.xlu0 %293
        %v295 = vrcp.pop 32.0
        %v296 = vmul.f32 32.0, %v295
        %v297 = vsub.f32 1.0, %v296
        %v298 = vmul.f32 %v295, %v297
        %v299 = vadd.f32 %v295, %v298
        %vm300 = vweird.f32 %v295
        %v301 = vsel %vm300, %v295, %v299
        %v302 = vmul.f32 %v291, %v301
        %v303 = vmul.f32 %v294, %v301
        %v304 = vsub.f32 %v286, %v302
        %v305 = vsub.f32 %v287, %v303
        %v306 = vmul.f32 %v304, %v304
        %v307 = vmul.f32 %v305, %v305
        %v308 = vsel %vm288, %v306, 0.0
        %309 = vadd.xlane.f32.xlu0 %v308
        %v310 = vpop.xlane.xlu0 %309
        %v311 = vsel %vm288, %v307, 0.0
        %312 = vadd.xlane.f32.xlu0 %v311
        %v313 = vpop.xlane.xlu0 %312
        %v314 = vmul.f32 %v310, %v301
        %v315 = vmul.f32 %v313, %v301
        %v316 = vadd.f32 %v314, 1e-05
        %v317 = vadd.f32 %v315, 1e-05
        %v318 = vrsqrt.pop %v316
        %v319 = vmul.f32 %v318, %v316
        %v320 = vmul.f32 %v319, %v318
        %v321 = vmul.f32 0.5, %v320
        %v322 = vsub.f32 1.5, %v321
        %v323 = vmul.f32 %v318, %v322
        %vm324 = vweird.f32 %v316
        %vm325 = vweird.f32 %v318
        %vm326 = vmor %vm324, %vm325
        %v327 = vsel %vm326, %v318, %v323
        %v328 = vrsqrt.pop %v317
        %v329 = vmul.f32 %v328, %v317
        %v330 = vmul.f32 %v329, %v328
        %v331 = vmul.f32 0.5, %v330
        %v332 = vsub.f32 1.5, %v331
        %v333 = vmul.f32 %v328, %v332
        %vm334 = vweird.f32 %v317
        %vm335 = vweird.f32 %v328
        %vm336 = vmor %vm334, %vm335
        %v337 = vsel %vm336, %v328, %v333
        %v338 = vmul.f32 %v304, %v327
        %v339 = vmul.f32 %v305, %v337
        %v340 = vld [vmem:[%s1] sm:$0x1]
        %v342 = vperm.slane %v340, 0
        %v344 = vmul.f32 %v338, %v342
        %v345 = vmul.f32 %v339, %v342
        %v346 = vld [vmem:[%s2] sm:$0x1]
        %v348 = vperm.slane %v346, 0
        %v350 = vadd.f32 %v344, %v348
        %v351 = vadd.f32 %v345, %v348
        %v352 = vpack.c.bf16 %v350, %v350
        %v353 = vpack.c.bf16 %v351, %v351
        %vm354 = vcmask 257024
        %355 = vst.msk [vmem:[#allocation2] sm:$0xf] %vm354, %v352
        %356 = vst.msk [vmem:[#allocation2 + $0x4] sm:$0xf] %vm354, %v353
      $region44: #{image_backbone_forward.22} parent=39 // pred_fallthru
        _
      %v357 = vld [vmem:[#allocation2] sm:$0xf]
      %v358 = vld [vmem:[#allocation2 + $0x4] sm:$0xf]
      %v359 = vld [vmem:[%s266] sm:$0xf]
      %v360 = vld [vmem:[%s266 + $0x4] sm:$0xf]
      %v361 = vld [vmem:[%s266 + $0x8] sm:$0xf]
      %v362 = vld [vmem:[%s266 + $0xc] sm:$0xf]
      %v363 = vld [vmem:[%s269] sm:$0x1]
      %v365 = vperm.slane %v363, 0
      %v369 = vunpack.c.l.b16 %v357
      %v370 = vunpack.c.l.b16 %v358
      %v371 = vpack.c.b16 %v370, %v369
      %v376 = vunpack.c.l.b16 %v359
      %v377 = vunpack.c.l.b16 %v360
      %v378 = vunpack.c.l.b16 %v361
      %v379 = vunpack.c.l.b16 %v362
      %v380 = vpack.c.b16 %v377, %v376
      %v381 = vpack.c.b16 %v379, %v378
      %vm384 = vcmask 261120
      %v386 = vsel %vm384, %v371, 0
      %388 = vmatpush.bf16.msra.mxu0 0
      %389 = vmatpush.bf16.msra.mxu0 0
      %390 = vmatpush.bf16.msra.mxu0 0
      %391 = vmatpush.bf16.msra.mxu0 0
      %392 = vmatpush.bf16.msra.mxu0 0
      %393 = vmatpush.bf16.msra.mxu0 0
      %394 = vmatpush.bf16.msra.mxu0 %v381
      %395 = vmatpush.bf16.msra.mxu0 %v380
      %396 = vmatmul.bf16.gmra.mxu0 %v386
      %v397 = vpop.f32.mrf.mxu0
      %v398 = vadd.f32 %v365, %v397
      %v399 = vpop.f32.mrf.mxu0
      %v400 = vadd.f32 %v365, %v399
      %401 = vdwg.mxu0
      %v402 = vmul.f32 %v398, 0.5
      %v403 = vmul.f32 %v400, 0.5
      %v404 = vmul.f32 %v398, 0.044715
      %v405 = vmul.f32 %v400, 0.044715
      %v406 = vmul.f32 %v404, %v398
      %v407 = vmul.f32 %v405, %v400
      %v408 = vmul.f32 %v406, %v398
      %v409 = vmul.f32 %v407, %v400
      %v410 = vadd.f32 %v398, %v408
      %v411 = vadd.f32 %v400, %v409
      %v412 = vmul.f32 %v410, 0.7978846
      %v413 = vmul.f32 %v411, 0.7978846
      %v414 = vtanh.pop %v412
      %v415 = vtanh.pop %v413
      %v416 = vadd.f32 %v414, 1.0
      %v417 = vadd.f32 %v415, 1.0
      %v418 = vmul.f32 %v402, %v416
      %v419 = vmul.f32 %v403, %v417
      %v420 = vpack.c.bf16 %v418, %v418
      %v421 = vpack.c.bf16 %v419, %v419
      %422 = vst [vmem:[%s277] sm:$0xf] %v420
      %423 = vst [vmem:[%s277 + $0x4] sm:$0xf] %v421
      %s424 = smul.u32 2, %s20
      %p425 = scmp.lt.s32.totalorder %s424, 3
      %s426 = scalar_select %p425, %s424, 3
      %p427 = scmp.lt.s32.totalorder %s21, 0
      %s428 = scalar_select %p427, %s21, 0
      %s429 = sadd.s32 %s428, %s426
      %s430 = smul.addr %s429, 4
      %s431 = scalar_lea.vmem %s5, %s430
      // Predicated region
      $region45: #{image_backbone_forward.22} parent=39 // pred_check
        %p432 = pneg %p168
      $region46: #{image_backbone_forward.22} parent=39 // pred_check_branch
        %434 = sbr.rel (%p432) target = $region48
      $region47: #{image_backbone_forward.22} parent=39 // pred_region
        %s435 = smul.u32 2, %s20
      $region48: #{image_backbone_forward.22} parent=39 // pred_fallthru
        _
    $region40: #{image_backbone_forward.22} parent=5 // pred_fallthru
      _
    %p436 = scmp.le.s32.totalorder 2, %s11
    // Predicated region
    $region49: #{image_backbone_forward.22} parent=5 // pred_check
      %p437 = pneg %p436
    $region50: #{image_backbone_forward.22} parent=5 // pred_check_branch
      %439 = sbr.rel (%p437) target = $region52
    $region51: #{image_backbone_forward.22} parent=5 // pred_region
      %s440 = ssub.s32 %s11, 2
      // Predicated region
      $region53: #{image_backbone_forward.22} parent=51 // pred_check
        %p441 = pneg %p174
      $region54: #{image_backbone_forward.22} parent=51 // pred_check_branch
        %443 = sbr.rel (%p441) target = $region56
      $region55: #{image_backbone_forward.22} parent=51 // pred_region
        %s444 = smul.u32 2, %s22
        %p445 = scmp.lt.s32.totalorder %s444, 3
        %s446 = scalar_select %p445, %s444, 3
        %p447 = scmp.lt.s32.totalorder %s23, 0
        %s448 = scalar_select %p447, %s23, 0
        %s449 = sadd.s32 %s448, %s446
        %s450 = smul.addr %s449, 4
        %s451 = scalar_lea.vmem %s5, %s450
      $region56: #{image_backbone_forward.22} parent=51 // pred_fallthru
        _
    $region52: #{image_backbone_forward.22} parent=5 // pred_fallthru
      _
  $region6: #{image_backbone_forward.22} parent=0 // loop_footer
    %s15 = sadd.s32 1, %s11
  $region7: #{image_backbone_forward.22} parent=0 // loop_footer_branch
    %10 = sbr.rel target = $region3
  $region8: #{image_backbone_forward.22} parent=0 // loop_exit
    _

// kernel: image_backbone_forward.19
$region0: #{image_backbone_forward.19}
  #allocation0 [shape = 'u32[]', space=smem, size = 0x4, offset = 0x4, fixed_abs, tag = 'smem constant byte address 0x4 - core index']
  #allocation1 [shape = 'u32[72,128]{1,0:T(1,128)}', space=vmem, size = 0x9000, scoped, tag = 'internal scratch']
  #allocation2 [shape = 'f32[16,32]{1,0:T(8,128)}', space=vmem, size = 0x2000, scoped, tag = 'scratch operand']
  %s0 = inlined_call_operand.vmem [shape: bf16[32,48], index: 0, kind: input, shape index: {}]
  %s1 = inlined_call_operand.vmem [shape: bf16[48,32], index: 1, kind: input, shape index: {}]
  %s2 = inlined_call_operand.vmem [shape: f32[1,32], index: 2, kind: input, shape index: {}]
  %s3 = inlined_call_operand.vmem [shape: f32[1,32], index: 3, kind: input, shape index: {}]
  %s4 = inlined_call_operand.vmem [shape: f32[1,32], index: 4, kind: input, shape index: {}]
  %s5 = inlined_call_operand.vmem [shape: bf16[32,32], index: 5, kind: output, shape index: {}]
  %s6 = sld [smem:[#allocation0]]
  $region61: #{image_backbone_forward.19} parent=0
    _
  %s8 = ssub.s32 1, %s6
  %s9 = scalar_select 0, %s8, %s6
  loop: start=0, step=1, limit=4
  $region2: #{image_backbone_forward.19} parent=0 // loop_pre_header
    _
  $region3: #{image_backbone_forward.19} parent=0 // loop_header
    %s11 = sphi 0, %s15
    %p12 = scmp.ge.s32.totalorder %s11, 4
    %s18 = sphi 0, %s37
    %s19 = sphi 0, %s33
    %s20 = sphi 0, %s29
    %s21 = sphi 0, %s18
    %s22 = sphi 0, %s19
    %s23 = sphi 0, %s20
    %s24 = sphi 0, %s21
    %s25 = sphi 0, %s22
    %s26 = sphi 0, %s23
    %s42 = sphi 0, %s44
    %s45 = sphi 0, %s42
    %s46 = sphi 0, %s45
    %s62 = sphi 0, %s46
    %s70 = sphi 0, %s72
    %s73 = sphi 0, %s70
    %s74 = sphi 0, %s73
    %s90 = sphi 0, %s74
    %s96 = sphi 0, %s98
    %s99 = sphi 0, %s96
    %s100 = sphi 0, %s99
    %s116 = sphi 0, %s100
    %s122 = sphi 0, %s124
    %s125 = sphi 0, %s122
    %s126 = sphi 0, %s125
    %s142 = sphi 0, %s126
    %s148 = sphi 0, %s150
    %s151 = sphi 0, %s148
    %s152 = sphi 0, %s151
    %s168 = sphi 0, %s152
    %s176 = sphi 0, %s178
    %s179 = sphi 0, %s176
    %s180 = sphi 0, %s179
    %s196 = sphi 0, %s180
  $region4: #{image_backbone_forward.19} parent=0 // loop_header_branch
    %14 = sbr.rel (%p12) target = $region8
  $region5: #{image_backbone_forward.19} parent=0 // loop_body
    %s16 = ssub.s32 %s11, 1
    %s17 = ssub.s32 %s11, 2
    %s27 = sadd.s32 1, %s20
    %p28 = scmp.ge.s32.totalorder %s27, 1
    %s29 = scalar_select %p28, 0, %s27
    %s30 = sadd.s32 1, %s19
    %s31 = scalar_select %p28, %s30, %s19
    %p32 = scmp.ge.s32.totalorder %s31, 1
    %s33 = scalar_select %p32, 0, %s31
    %s34 = sadd.s32 1, %s18
    %s35 = scalar_select %p32, %s34, %s18
    %p36 = scmp.ge.s32.totalorder %s35, 2
    %s37 = scalar_select %p36, 0, %s35
    %s38 = ssub.s32 %s18, %s37
    %s39 = ssub.s32 %s20, %s29
    %s40 = sor.u32 %s38, %s39
    %p41 = scmp.eq.s32.totalorder %s40, 0
    %s43 = sadd.s32 %s42, 1
    %s44 = scalar_select %p41, %s42, %s43
    %p47 = pneg %p41
    %p48 = scmp.eq.s32.totalorder %s11, 1
    %p49 = por %p47, %p48
    %p50 = scmp.ne.s32.totalorder %s42, %s45
    %p51 = scmp.eq.s32.totalorder %s11, 0
    %p52 = por %p50, %p51
    %p53 = scmp.ne.s32.totalorder %s42, %s45
    %p54 = scmp.eq.s32.totalorder %s16, 1
    %p55 = por %p53, %p54
    %p56 = scmp.ne.s32.totalorder %s45, %s46
    %p57 = scmp.eq.s32.totalorder %s16, 0
    %p58 = por %p56, %p57
    %p59 = scmp.ne.s32.totalorder %s45, %s46
    %p60 = scmp.eq.s32.totalorder %s17, 1
    %p61 = por %p59, %p60
    %p63 = scmp.ne.s32.totalorder %s46, %s62
    %p64 = scmp.eq.s32.totalorder %s17, 0
    %p65 = por %p63, %p64
    %s66 = ssub.s32 %s20, %s29
    %s67 = ssub.s32 %s19, %s33
    %s68 = sor.u32 %s66, %s67
    %p69 = scmp.eq.s32.totalorder %s68, 0
    %s71 = sadd.s32 %s70, 1
    %s72 = scalar_select %p69, %s70, %s71
    %p75 = pneg %p69
    %p76 = scmp.eq.s32.totalorder %s11, 1
    %p77 = por %p75, %p76
    %p78 = scmp.ne.s32.totalorder %s70, %s73
    %p79 = scmp.eq.s32.totalorder %s11, 0
    %p80 = por %p78, %p79
    %p81 = scmp.ne.s32.totalorder %s70, %s73
    %p82 = scmp.eq.s32.totalorder %s16, 1
    %p83 = por %p81, %p82
    %p84 = scmp.ne.s32.totalorder %s73, %s74
    %p85 = scmp.eq.s32.totalorder %s16, 0
    %p86 = por %p84, %p85
    %p87 = scmp.ne.s32.totalorder %s73, %s74
    %p88 = scmp.eq.s32.totalorder %s17, 1
    %p89 = por %p87, %p88
    %p91 = scmp.ne.s32.totalorder %s74, %s90
    %p92 = scmp.eq.s32.totalorder %s17, 0
    %p93 = por %p91, %p92
    %s94 = ssub.s32 %s19, %s33
    %p95 = scmp.eq.s32.totalorder %s94, 0
    %s97 = sadd.s32 %s96, 1
    %s98 = scalar_select %p95, %s96, %s97
    %p101 = pneg %p95
    %p102 = scmp.eq.s32.totalorder %s11, 1
    %p103 = por %p101, %p102
    %p104 = scmp.ne.s32.totalorder %s96, %s99
    %p105 = scmp.eq.s32.totalorder %s11, 0
    %p106 = por %p104, %p105
    %p107 = scmp.ne.s32.totalorder %s96, %s99
    %p108 = scmp.eq.s32.totalorder %s16, 1
    %p109 = por %p107, %p108
    %p110 = scmp.ne.s32.totalorder %s99, %s100
    %p111 = scmp.eq.s32.totalorder %s16, 0
    %p112 = por %p110, %p111
    %p113 = scmp.ne.s32.totalorder %s99, %s100
    %p114 = scmp.eq.s32.totalorder %s17, 1
    %p115 = por %p113, %p114
    %p117 = scmp.ne.s32.totalorder %s100, %s116
    %p118 = scmp.eq.s32.totalorder %s17, 0
    %p119 = por %p117, %p118
    %s120 = ssub.s32 %s19, %s33
    %p121 = scmp.eq.s32.totalorder %s120, 0
    %s123 = sadd.s32 %s122, 1
    %s124 = scalar_select %p121, %s122, %s123
    %p127 = pneg %p121
    %p128 = scmp.eq.s32.totalorder %s11, 1
    %p129 = por %p127, %p128
    %p130 = scmp.ne.s32.totalorder %s122, %s125
    %p131 = scmp.eq.s32.totalorder %s11, 0
    %p132 = por %p130, %p131
    %p133 = scmp.ne.s32.totalorder %s122, %s125
    %p134 = scmp.eq.s32.totalorder %s16, 1
    %p135 = por %p133, %p134
    %p136 = scmp.ne.s32.totalorder %s125, %s126
    %p137 = scmp.eq.s32.totalorder %s16, 0
    %p138 = por %p136, %p137
    %p139 = scmp.ne.s32.totalorder %s125, %s126
    %p140 = scmp.eq.s32.totalorder %s17, 1
    %p141 = por %p139, %p140
    %p143 = scmp.ne.s32.totalorder %s126, %s142
    %p144 = scmp.eq.s32.totalorder %s17, 0
    %p145 = por %p143, %p144
    %s146 = ssub.s32 %s19, %s33
    %p147 = scmp.eq.s32.totalorder %s146, 0
    %s149 = sadd.s32 %s148, 1
    %s150 = scalar_select %p147, %s148, %s149
    %p153 = pneg %p147
    %p154 = scmp.eq.s32.totalorder %s11, 1
    %p155 = por %p153, %p154
    %p156 = scmp.ne.s32.totalorder %s148, %s151
    %p157 = scmp.eq.s32.totalorder %s11, 0
    %p158 = por %p156, %p157
    %p159 = scmp.ne.s32.totalorder %s148, %s151
    %p160 = scmp.eq.s32.totalorder %s16, 1
    %p161 = por %p159, %p160
    %p162 = scmp.ne.s32.totalorder %s151, %s152
    %p163 = scmp.eq.s32.totalorder %s16, 0
    %p164 = por %p162, %p163
    %p165 = scmp.ne.s32.totalorder %s151, %s152
    %p166 = scmp.eq.s32.totalorder %s17, 1
    %p167 = por %p165, %p166
    %p169 = scmp.ne.s32.totalorder %s152, %s168
    %p170 = scmp.eq.s32.totalorder %s17, 0
    %p171 = por %p169, %p170
    %s172 = ssub.s32 %s18, %s37
    %s173 = ssub.s32 %s19, %s33
    %s174 = sor.u32 %s172, %s173
    %p175 = scmp.eq.s32.totalorder %s174, 0
    %s177 = sadd.s32 %s176, 1
    %s178 = scalar_select %p175, %s176, %s177
    %p181 = pneg %p175
    %p182 = scmp.eq.s32.totalorder %s11, 1
    %p183 = por %p181, %p182
    %p184 = scmp.ne.s32.totalorder %s176, %s179
    %p185 = scmp.eq.s32.totalorder %s11, 0
    %p186 = por %p184, %p185
    %p187 = scmp.ne.s32.totalorder %s176, %s179
    %p188 = scmp.eq.s32.totalorder %s16, 1
    %p189 = por %p187, %p188
    %p190 = scmp.ne.s32.totalorder %s179, %s180
    %p191 = scmp.eq.s32.totalorder %s16, 0
    %p192 = por %p190, %p191
    %p193 = scmp.ne.s32.totalorder %s179, %s180
    %p194 = scmp.eq.s32.totalorder %s17, 1
    %p195 = por %p193, %p194
    %p197 = scmp.ne.s32.totalorder %s180, %s196
    %p198 = scmp.eq.s32.totalorder %s17, 0
    %p199 = por %p197, %p198
    %p200 = scmp.le.s32.totalorder 1, %s11
    %p201 = scmp.lt.s32.totalorder %s11, 3
    %p202 = pnand %p200, %p201
    %p203 = pneg %p202
    // Predicated region
    $region9: #{image_backbone_forward.19} parent=5 // pred_check
      _
    $region10: #{image_backbone_forward.19} parent=5 // pred_check_branch
      %205 = sbr.rel (%p202) target = $region12
    $region11: #{image_backbone_forward.19} parent=5 // pred_region
      %s206 = ssub.s32 %s11, 1
      // Predicated region
      $region13: #{image_backbone_forward.19} parent=11 // pred_check
        %p207 = pneg %p86
      $region14: #{image_backbone_forward.19} parent=11 // pred_check_branch
        %209 = sbr.rel (%p207) target = $region16
      $region15: #{image_backbone_forward.19} parent=11 // pred_region
        %s210 = smul.u32 6, %s23
        %p211 = scmp.lt.s32.totalorder %s210, 5
        %s212 = scalar_select %p211, %s210, 5
        %p213 = scmp.lt.s32.totalorder %s22, 0
        %s214 = scalar_select %p213, %s22, 0
        %s215 = sadd.s32 %s214, %s212
        %s216 = smul.addr %s215, 4
        %s217 = scalar_lea.vmem %s1, %s216
        %s218 = smul.u32 6, %s23
      $region16: #{image_backbone_forward.19} parent=11 // pred_fallthru
        _
      // Predicated region
      $region17: #{image_backbone_forward.19} parent=11 // pred_check
        %p219 = pneg %p112
      $region18: #{image_backbone_forward.19} parent=11 // pred_check_branch
        %221 = sbr.rel (%p219) target = $region20
      $region19: #{image_backbone_forward.19} parent=11 // pred_region
        %p222 = scmp.lt.s32.totalorder %s22, 0
        %s223 = scalar_select %p222, %s22, 0
        %s224 = scalar_lea.vmem %s2, %s223
      $region20: #{image_backbone_forward.19} parent=11 // pred_fallthru
        _
      // Predicated region
      $region21: #{image_backbone_forward.19} parent=11 // pred_check
        %p225 = pneg %p138
      $region22: #{image_backbone_forward.19} parent=11 // pred_check_branch
        %227 = sbr.rel (%p225) target = $region24
      $region23: #{image_backbone_forward.19} parent=11 // pred_region
        %p228 = scmp.lt.s32.totalorder %s22, 0
        %s229 = scalar_select %p228, %s22, 0
        %s230 = scalar_lea.vmem %s3, %s229
      $region24: #{image_backbone_forward.19} parent=11 // pred_fallthru
        _
      // Predicated region
      $region25: #{image_backbone_forward.19} parent=11 // pred_check
        %p231 = pneg %p164
      $region26: #{image_backbone_forward.19} parent=11 // pred_check_branch
        %233 = sbr.rel (%p231) target = $region28
      $region27: #{image_backbone_forward.19} parent=11 // pred_region
        %p234 = scmp.lt.s32.totalorder %s22, 0
        %s235 = scalar_select %p234, %s22, 0
        %s236 = scalar_lea.vmem %s4, %s235
      $region28: #{image_backbone_forward.19} parent=11 // pred_fallthru
        _
    $region12: #{image_backbone_forward.19} parent=5 // pred_fallthru
      _
    %p237 = scmp.lt.s32.totalorder %s11, 2
    // Predicated region
    $region29: #{image_backbone_forward.19} parent=5 // pred_check
      %p238 = pneg %p237
    $region30: #{image_backbone_forward.19} parent=5 // pred_check_branch
      %240 = sbr.rel (%p238) target = $region32
    $region31: #{image_backbone_forward.19} parent=5 // pred_region
      // Predicated region
      $region33: #{image_backbone_forward.19} parent=31 // pred_check
        %p241 = pneg %p52
      $region34: #{image_backbone_forward.19} parent=31 // pred_check_branch
        %243 = sbr.rel (%p241) target = $region36
      $region35: #{image_backbone_forward.19} parent=31 // pred_region
        %s244 = smul.u32 2, %s18
        %p245 = scmp.lt.s32.totalorder %s244, 3
        %s246 = scalar_select %p245, %s244, 3
        %p247 = scmp.lt.s32.totalorder %s20, 0
        %s248 = scalar_select %p247, %s20, 0
        %s249 = sadd.s32 %s248, %s246
        %s250 = smul.addr %s249, 4
        %s251 = scalar_lea.vmem %s0, %s250
        %s252 = smul.u32 2, %s18
      $region36: #{image_backbone_forward.19} parent=31 // pred_fallthru
        _
    $region32: #{image_backbone_forward.19} parent=5 // pred_fallthru
      _
    %p253 = scmp.le.s32.totalorder 1, %s11
    %p254 = scmp.lt.s32.totalorder %s11, 3
    %p255 = pnand %p253, %p254
    %p256 = pneg %p255
    // Predicated region
    $region37: #{image_backbone_forward.19} parent=5 // pred_check
      _
    $region38: #{image_backbone_forward.19} parent=5 // pred_check_branch
      %258 = sbr.rel (%p255) target = $region40
    $region39: #{image_backbone_forward.19} parent=5 // pred_region
      %s259 = ssub.s32 %s11, 1
      %s260 = smul.u32 2, %s21
      %p261 = scmp.lt.s32.totalorder %s260, 3
      %s262 = scalar_select %p261, %s260, 3
      %p263 = scmp.lt.s32.totalorder %s23, 0
      %s264 = scalar_select %p263, %s23, 0
      %s265 = sadd.s32 %s264, %s262
      %s266 = smul.addr %s265, 4
      %s267 = scalar_lea.vmem %s0, %s266
      %p268 = pneg %p58
      %p269 = pneg %p55
      %s270 = smul.u32 6, %s23
      %p271 = scmp.lt.s32.totalorder %s270, 5
      %s272 = scalar_select %p271, %s270, 5
      %p273 = scmp.lt.s32.totalorder %s22, 0
      %s274 = scalar_select %p273, %s22, 0
      %s275 = sadd.s32 %s274, %s272
      %s276 = smul.addr %s275, 4
      %s277 = scalar_lea.vmem %s1, %s276
      %p278 = pneg %p86
      %p279 = pneg %p83
      %p280 = scmp.lt.s32.totalorder %s22, 0
      %s281 = scalar_select %p280, %s22, 0
      %s282 = scalar_lea.vmem %s2, %s281
      %p283 = pneg %p112
      %p284 = pneg %p109
      %p285 = scmp.lt.s32.totalorder %s22, 0
      %s286 = scalar_select %p285, %s22, 0
      %s287 = scalar_lea.vmem %s3, %s286
      %p288 = pneg %p138
      %p289 = pneg %p135
      %p290 = scmp.lt.s32.totalorder %s22, 0
      %s291 = scalar_select %p290, %s22, 0
      %s292 = scalar_lea.vmem %s4, %s291
      %p293 = pneg %p164
      %p294 = pneg %p161
      %p295 = pneg %p192
      %p296 = pneg %p189
      %s297 = smul.u32 2, %s21
      %p298 = scmp.lt.s32.totalorder %s297, 3
      %s299 = scalar_select %p298, %s297, 3
      %p300 = scmp.lt.s32.totalorder %s22, 0
      %s301 = scalar_select %p300, %s22, 0
      %s302 = sadd.s32 %s301, %s299
      %s303 = smul.addr %s302, 4
      %s304 = scalar_lea.vmem %s5, %s303
      %s305 = smul.u32 2, %s21
      %p306 = scmp.lt.s32.totalorder %s305, 3
      %s307 = scalar_select %p306, %s305, 3
      %p308 = scmp.lt.s32.totalorder %s23, 0
      %s309 = scalar_select %p308, %s23, 0
      %s310 = sadd.s32 %s309, %s307
      %s311 = smul.addr %s310, 4
      %s312 = scalar_lea.vmem %s0, %s311
      %s313 = smul.u32 2, %s21
      %s314 = smul.u32 6, %s23
      %p315 = scmp.lt.s32.totalorder %s314, 5
      %s316 = scalar_select %p315, %s314, 5
      %p317 = scmp.lt.s32.totalorder %s22, 0
      %s318 = scalar_select %p317, %s22, 0
      %s319 = sadd.s32 %s318, %s316
      %s320 = smul.addr %s319, 4
      %s321 = scalar_lea.vmem %s1, %s320
      %s322 = smul.u32 6, %s23
      %p323 = scmp.lt.s32.totalorder %s22, 0
      %s324 = scalar_select %p323, %s22, 0
      %s325 = scalar_lea.vmem %s2, %s324
      %p326 = scmp.lt.s32.totalorder %s22, 0
      %s327 = scalar_select %p326, %s22, 0
      %s328 = scalar_lea.vmem %s3, %s327
      %p329 = scmp.lt.s32.totalorder %s22, 0
      %s330 = scalar_select %p329, %s22, 0
      %s331 = scalar_lea.vmem %s4, %s330
      %s332 = smul.u32 2, %s21
      %p333 = scmp.lt.s32.totalorder %s332, 3
      %s334 = scalar_select %p333, %s332, 3
      %p335 = scmp.lt.s32.totalorder %s22, 0
      %s336 = scalar_select %p335, %s22, 0
      %s337 = sadd.s32 %s336, %s334
      %s338 = smul.addr %s337, 4
      %s339 = scalar_lea.vmem %s5, %s338
      %s340 = smul.u32 2, %s21
      %p342 = scmp.eq.s32.totalorder %s23, 0
      // Predicated region
      $region41: #{image_backbone_forward.19} parent=39 // pred_check
        %p343 = pneg %p342
      $region42: #{image_backbone_forward.19} parent=39 // pred_check_branch
        %345 = sbr.rel (%p343) target = $region44
      $region43: #{image_backbone_forward.19} parent=39 // pred_region
        %vm346 = vcmask 261120
        %347 = vst.msk [vmem:[#allocation2] sm:$0xff] %vm346, 0.0
        %348 = vst.msk [vmem:[#allocation2 + $0x8] sm:$0xff] %vm346, 0.0
      $region44: #{image_backbone_forward.19} parent=39 // pred_fallthru
        _
      %v349 = vld [vmem:[#allocation2] sm:$0xff]
      %v350 = vld [vmem:[#allocation2 + $0x8] sm:$0xff]
      %v351 = vld [vmem:[%s312] sm:$0xf]
      %v352 = vld [vmem:[%s312 + $0x4] sm:$0xf]
      %v353 = vld [vmem:[%s321] sm:$0xf]
      %v354 = vld [vmem:[%s321 + $0x4] sm:$0xf]
      %v355 = vld [vmem:[%s321 + $0x8] sm:$0xf]
      %v356 = vld [vmem:[%s321 + $0xc] sm:$0xf]
      %v357 = vld [vmem:[%s321 + $0x10] sm:$0xf]
      %v358 = vld [vmem:[%s321 + $0x14] sm:$0xf]
      %v361 = vunpack.c.l.b16 %v351
      %v362 = vunpack.c.l.b16 %v352
      %v363 = vpack.c.b16 %v362, %v361
      %v370 = vunpack.c.l.b16 %v353
      %v371 = vunpack.c.l.b16 %v354
      %v372 = vunpack.c.l.b16 %v355
      %v373 = vunpack.c.l.b16 %v356
      %v374 = vunpack.c.l.b16 %v357
      %v375 = vunpack.c.l.b16 %v358
      %v376 = vpack.c.b16 %v371, %v370
      %v377 = vpack.c.b16 %v373, %v372
      %v378 = vpack.c.b16 %v375, %v374
      %vm382 = vcmask 392192
      %v384 = vsel %vm382, %v363, 0
      %386 = vmatpush.bf16.msra.mxu0 0
      %387 = vmatpush.bf16.msra.mxu0 0
      %388 = vmatpush.bf16.msra.mxu0 0
      %389 = vmatpush.bf16.msra.mxu0 0
      %390 = vmatpush.bf16.msra.mxu0 0
      %391 = vmatpush.bf16.msra.mxu0 %v378
      %392 = vmatpush.bf16.msra.mxu0 %v377
      %393 = vmatpush.bf16.msra.mxu0 %v376
      %394 = vmatmul.bf16.gmra.mxu0 %v384
      %v395 = vpop.f32.mrf.mxu0
      %v396 = vadd.f32 0.0, %v395
      %v397 = vpop.f32.mrf.mxu0
      %v398 = vadd.f32 0.0, %v397
      %399 = vdwg.mxu0
      %v400 = vadd.f32 %v349, %v396
      %v401 = vadd.f32 %v350, %v398
      %vm402 = vcmask 261120
      %403 = vst.msk [vmem:[#allocation2] sm:$0xff] %vm402, %v400
      %404 = vst.msk [vmem:[#allocation2 + $0x8] sm:$0xff] %vm402, %v401
      // Predicated region
      $region45: #{image_backbone_forward.19} parent=39 // pred_check
        %p405 = pneg %p342
      $region46: #{image_backbone_forward.19} parent=39 // pred_check_branch
        %407 = sbr.rel (%p405) target = $region48
      $region47: #{image_backbone_forward.19} parent=39 // pred_region
        %v408 = vld [vmem:[#allocation2] sm:$0xff]
        %v409 = vld [vmem:[#allocation2 + $0x8] sm:$0xff]
        %v410 = vld [vmem:[%s325] sm:$0x1]
        %v412 = vperm.slane %v410, 0
        %v414 = vadd.f32 %v408, %v412
        %v415 = vadd.f32 %v409, %v412
        %v416 = vsel %vm402, %v414, 0.0
        %417 = vadd.xlane.f32.xlu0 %v416
        %v418 = vpop.xlane.xlu0 %417
        %v419 = vsel %vm402, %v415, 0.0
        %420 = vadd.xlane.f32.xlu0 %v419
        %v421 = vpop.xlane.xlu0 %420
        %v422 = vrcp.pop 32.0
        %v423 = vmul.f32 32.0, %v422
        %v424 = vsub.f32 1.0, %v423
        %v425 = vmul.f32 %v422, %v424
        %v426 = vadd.f32 %v422, %v425
        %vm427 = vweird.f32 %v422
        %v428 = vsel %vm427, %v422, %v426
        %v429 = vmul.f32 %v418, %v428
        %v430 = vmul.f32 %v421, %v428
        %v431 = vsub.f32 %v414, %v429
        %v432 = vsub.f32 %v415, %v430
        %v433 = vmul.f32 %v431, %v431
        %v434 = vmul.f32 %v432, %v432
        %v435 = vsel %vm402, %v433, 0.0
        %436 = vadd.xlane.f32.xlu0 %v435
        %v437 = vpop.xlane.xlu0 %436
        %v438 = vsel %vm402, %v434, 0.0
        %439 = vadd.xlane.f32.xlu0 %v438
        %v440 = vpop.xlane.xlu0 %439
        %v441 = vmul.f32 %v437, %v428
        %v442 = vmul.f32 %v440, %v428
        %v443 = vadd.f32 %v441, 1e-05
        %v444 = vadd.f32 %v442, 1e-05
        %v445 = vrsqrt.pop %v443
        %v446 = vmul.f32 %v445, %v443
        %v447 = vmul.f32 %v446, %v445
        %v448 = vmul.f32 0.5, %v447
        %v449 = vsub.f32 1.5, %v448
        %v450 = vmul.f32 %v445, %v449
        %vm451 = vweird.f32 %v443
        %vm452 = vweird.f32 %v445
        %vm453 = vmor %vm451, %vm452
        %v454 = vsel %vm453, %v445, %v450
        %v455 = vrsqrt.pop %v444
        %v456 = vmul.f32 %v455, %v444
        %v457 = vmul.f32 %v456, %v455
        %v458 = vmul.f32 0.5, %v457
        %v459 = vsub.f32 1.5, %v458
        %v460 = vmul.f32 %v455, %v459
        %vm461 = vweird.f32 %v444
        %vm462 = vweird.f32 %v455
        %vm463 = vmor %vm461, %vm462
        %v464 = vsel %vm463, %v455, %v460
        %v465 = vmul.f32 %v431, %v454
        %v466 = vmul.f32 %v432, %v464
        %v467 = vld [vmem:[%s328] sm:$0x1]
        %v469 = vperm.slane %v467, 0
        %v471 = vmul.f32 %v465, %v469
        %v472 = vmul.f32 %v466, %v469
        %v473 = vld [vmem:[%s331] sm:$0x1]
        %v475 = vperm.slane %v473, 0
        %v477 = vadd.f32 %v471, %v475
        %v478 = vadd.f32 %v472, %v475
        %v479 = vpack.c.bf16 %v477, %v477
        %v480 = vpack.c.bf16 %v478, %v478
        %vm481 = vcmask 257024
        %482 = vst.msk [vmem:[%s339] sm:$0xf] %vm481, %v479
        %483 = vst.msk [vmem:[%s339 + $0x4] sm:$0xf] %vm481, %v480
      $region48: #{image_backbone_forward.19} parent=39 // pred_fallthru
        _
      %s484 = smul.u32 2, %s21
      %p485 = scmp.lt.s32.totalorder %s484, 3
      %s486 = scalar_select %p485, %s484, 3
      %p487 = scmp.lt.s32.totalorder %s22, 0
      %s488 = scalar_select %p487, %s22, 0
      %s489 = sadd.s32 %s488, %s486
      %s490 = smul.addr %s489, 4
      %s491 = scalar_lea.vmem %s5, %s490
      // Predicated region
      $region49: #{image_backbone_forward.19} parent=39 // pred_check
        %p492 = pneg %p189
      $region50: #{image_backbone_forward.19} parent=39 // pred_check_branch
        %494 = sbr.rel (%p492) target = $region52
      $region51: #{image_backbone_forward.19} parent=39 // pred_region
        %s495 = smul.u32 2, %s21
      $region52: #{image_backbone_forward.19} parent=39 // pred_fallthru
        _
    $region40: #{image_backbone_forward.19} parent=5 // pred_fallthru
      _
    %p496 = scmp.le.s32.totalorder 2, %s11
    // Predicated region
    $region53: #{image_backbone_forward.19} parent=5 // pred_check
      %p497 = pneg %p496
    $region54: #{image_backbone_forward.19} parent=5 // pred_check_branch
      %499 = sbr.rel (%p497) target = $region56
    $region55: #{image_backbone_forward.19} parent=5 // pred_region
      %s500 = ssub.s32 %s11, 2
      // Predicated region
      $region57: #{image_backbone_forward.19} parent=55 // pred_check
        %p501 = pneg %p195
      $region58: #{image_backbone_forward.19} parent=55 // pred_check_branch
        %503 = sbr.rel (%p501) target = $region60
      $region59: #{image_backbone_forward.19} parent=55 // pred_region
        %s504 = smul.u32 2, %s24
        %p505 = scmp.lt.s32.totalorder %s504, 3
        %s506 = scalar_select %p505, %s504, 3
        %p507 = scmp.lt.s32.totalorder %s25, 0
        %s508 = scalar_select %p507, %s25, 0
        %s509 = sadd.s32 %s508, %s506
        %s510 = smul.addr %s509, 4
        %s511 = scalar_lea.vmem %s5, %s510
      $region60: #{image_backbone_forward.19} parent=55 // pred_fallthru
        _
    $region56: #{image_backbone_forward.19} parent=5 // pred_fallthru
      _
  $region6: #{image_backbone_forward.19} parent=0 // loop_footer
    %s15 = sadd.s32 1, %s11
  $region7: #{image_backbone_forward.19} parent=0 // loop_footer_branch
    %10 = sbr.rel target = $region3
  $region8: #{image_backbone_forward.19} parent=0 // loop_exit
    _

// kernel: image_backbone_forward.21
$region0: #{image_backbone_forward.21}
  #allocation0 [shape = 'u32[]', space=smem, size = 0x4, offset = 0x4, fixed_abs, tag = 'smem constant byte address 0x4 - core index']
  #allocation1 [shape = 'u32[72,128]{1,0:T(1,128)}', space=vmem, size = 0x9000, scoped, tag = 'internal scratch']
  %s0 = inlined_call_operand.vmem [shape: bf16[2,16,96], index: 0, kind: input, shape index: {}]
  %s1 = inlined_call_operand.vmem [shape: f32[4,16,16], index: 1, kind: input, shape index: {}]
  %s2 = inlined_call_operand.vmem [shape: bf16[32,32], index: 2, kind: input, shape index: {}]
  %s3 = inlined_call_operand.vmem [shape: f32[1,32], index: 3, kind: input, shape index: {}]
  %s4 = inlined_call_operand.vmem [shape: bf16[2,16,32], index: 4, kind: input, shape index: {}]
  %s5 = inlined_call_operand.vmem [shape: bf16[2,16,32], index: 5, kind: output, shape index: {}]
  %s6 = sld [smem:[#allocation0]]
  $region53: #{image_backbone_forward.21} parent=0
    _
  %s8 = ssub.s32 1, %s6
  %s9 = scalar_select 0, %s8, %s6
  loop: start=0, step=1, limit=4
  $region2: #{image_backbone_forward.21} parent=0 // loop_pre_header
    _
  $region3: #{image_backbone_forward.21} parent=0 // loop_header
    %s11 = sphi 0, %s15
    %p12 = scmp.ge.s32.totalorder %s11, 4
    %s21 = sphi 0, %s23
    %s24 = sphi 0, %s21
    %s25 = sphi 0, %s24
    %s41 = sphi 0, %s25
    %s45 = sphi 0, %s45
    %s47 = sphi 0, %s45
    %s48 = sphi 0, %s47
    %s62 = sphi 0, %s48
    %s66 = sphi 0, %s66
    %s68 = sphi 0, %s66
    %s69 = sphi 0, %s68
    %s83 = sphi 0, %s69
    %s87 = sphi 0, %s87
    %s89 = sphi 0, %s87
    %s90 = sphi 0, %s89
    %s104 = sphi 0, %s90
    %s110 = sphi 0, %s112
    %s113 = sphi 0, %s110
    %s114 = sphi 0, %s113
    %s130 = sphi 0, %s114
    %s136 = sphi 0, %s138
    %s139 = sphi 0, %s136
    %s140 = sphi 0, %s139
    %s156 = sphi 0, %s140
  $region4: #{image_backbone_forward.21} parent=0 // loop_header_branch
    %14 = sbr.rel (%p12) target = $region8
  $region5: #{image_backbone_forward.21} parent=0 // loop_body
    %s16 = ssub.s32 %s11, 1
    %s17 = ssub.s32 %s11, 2
    %s18 = sadd.s32 %s11, 1
    %s19 = ssub.s32 %s11, %s18
    %p20 = scmp.eq.s32.totalorder %s19, 0
    %s22 = sadd.s32 %s21, 1
    %s23 = scalar_select %p20, %s21, %s22
    %p26 = pneg %p20
    %p27 = scmp.eq.s32.totalorder %s11, 1
    %p28 = por %p26, %p27
    %p29 = scmp.ne.s32.totalorder %s21, %s24
    %p30 = scmp.eq.s32.totalorder %s11, 0
    %p31 = por %p29, %p30
    %p32 = scmp.ne.s32.totalorder %s21, %s24
    %p33 = scmp.eq.s32.totalorder %s16, 1
    %p34 = por %p32, %p33
    %p35 = scmp.ne.s32.totalorder %s24, %s25
    %p36 = scmp.eq.s32.totalorder %s16, 0
    %p37 = por %p35, %p36
    %p38 = scmp.ne.s32.totalorder %s24, %s25
    %p39 = scmp.eq.s32.totalorder %s17, 1
    %p40 = por %p38, %p39
    %p42 = scmp.ne.s32.totalorder %s25, %s41
    %p43 = scmp.eq.s32.totalorder %s17, 0
    %p44 = por %p42, %p43
    %s46 = sadd.s32 %s45, 1
    %p49 = scmp.eq.s32.totalorder %s11, 1
    %p50 = scmp.ne.s32.totalorder %s45, %s47
    %p51 = scmp.eq.s32.totalorder %s11, 0
    %p52 = por %p50, %p51
    %p53 = scmp.ne.s32.totalorder %s45, %s47
    %p54 = scmp.eq.s32.totalorder %s16, 1
    %p55 = por %p53, %p54
    %p56 = scmp.ne.s32.totalorder %s47, %s48
    %p57 = scmp.eq.s32.totalorder %s16, 0
    %p58 = por %p56, %p57
    %p59 = scmp.ne.s32.totalorder %s47, %s48
    %p60 = scmp.eq.s32.totalorder %s17, 1
    %p61 = por %p59, %p60
    %p63 = scmp.ne.s32.totalorder %s48, %s62
    %p64 = scmp.eq.s32.totalorder %s17, 0
    %p65 = por %p63, %p64
    %s67 = sadd.s32 %s66, 1
    %p70 = scmp.eq.s32.totalorder %s11, 1
    %p71 = scmp.ne.s32.totalorder %s66, %s68
    %p72 = scmp.eq.s32.totalorder %s11, 0
    %p73 = por %p71, %p72
    %p74 = scmp.ne.s32.totalorder %s66, %s68
    %p75 = scmp.eq.s32.totalorder %s16, 1
    %p76 = por %p74, %p75
    %p77 = scmp.ne.s32.totalorder %s68, %s69
    %p78 = scmp.eq.s32.totalorder %s16, 0
    %p79 = por %p77, %p78
    %p80 = scmp.ne.s32.totalorder %s68, %s69
    %p81 = scmp.eq.s32.totalorder %s17, 1
    %p82 = por %p80, %p81
    %p84 = scmp.ne.s32.totalorder %s69, %s83
    %p85 = scmp.eq.s32.totalorder %s17, 0
    %p86 = por %p84, %p85
    %s88 = sadd.s32 %s87, 1
    %p91 = scmp.eq.s32.totalorder %s11, 1
    %p92 = scmp.ne.s32.totalorder %s87, %s89
    %p93 = scmp.eq.s32.totalorder %s11, 0
    %p94 = por %p92, %p93
    %p95 = scmp.ne.s32.totalorder %s87, %s89
    %p96 = scmp.eq.s32.totalorder %s16, 1
    %p97 = por %p95, %p96
    %p98 = scmp.ne.s32.totalorder %s89, %s90
    %p99 = scmp.eq.s32.totalorder %s16, 0
    %p100 = por %p98, %p99
    %p101 = scmp.ne.s32.totalorder %s89, %s90
    %p102 = scmp.eq.s32.totalorder %s17, 1
    %p103 = por %p101, %p102
    %p105 = scmp.ne.s32.totalorder %s90, %s104
    %p106 = scmp.eq.s32.totalorder %s17, 0
    %p107 = por %p105, %p106
    %s108 = ssub.s32 %s11, %s18
    %p109 = scmp.eq.s32.totalorder %s108, 0
    %s111 = sadd.s32 %s110, 1
    %s112 = scalar_select %p109, %s110, %s111
    %p115 = pneg %p109
    %p116 = scmp.eq.s32.totalorder %s11, 1
    %p117 = por %p115, %p116
    %p118 = scmp.ne.s32.totalorder %s110, %s113
    %p119 = scmp.eq.s32.totalorder %s11, 0
    %p120 = por %p118, %p119
    %p121 = scmp.ne.s32.totalorder %s110, %s113
    %p122 = scmp.eq.s32.totalorder %s16, 1
    %p123 = por %p121, %p122
    %p124 = scmp.ne.s32.totalorder %s113, %s114
    %p125 = scmp.eq.s32.totalorder %s16, 0
    %p126 = por %p124, %p125
    %p127 = scmp.ne.s32.totalorder %s113, %s114
    %p128 = scmp.eq.s32.totalorder %s17, 1
    %p129 = por %p127, %p128
    %p131 = scmp.ne.s32.totalorder %s114, %s130
    %p132 = scmp.eq.s32.totalorder %s17, 0
    %p133 = por %p131, %p132
    %s134 = ssub.s32 %s11, %s18
    %p135 = scmp.eq.s32.totalorder %s134, 0
    %s137 = sadd.s32 %s136, 1
    %s138 = scalar_select %p135, %s136, %s137
    %p141 = pneg %p135
    %p142 = scmp.eq.s32.totalorder %s11, 1
    %p143 = por %p141, %p142
    %p144 = scmp.ne.s32.totalorder %s136, %s139
    %p145 = scmp.eq.s32.totalorder %s11, 0
    %p146 = por %p144, %p145
    %p147 = scmp.ne.s32.totalorder %s136, %s139
    %p148 = scmp.eq.s32.totalorder %s16, 1
    %p149 = por %p147, %p148
    %p150 = scmp.ne.s32.totalorder %s139, %s140
    %p151 = scmp.eq.s32.totalorder %s16, 0
    %p152 = por %p150, %p151
    %p153 = scmp.ne.s32.totalorder %s139, %s140
    %p154 = scmp.eq.s32.totalorder %s17, 1
    %p155 = por %p153, %p154
    %p157 = scmp.ne.s32.totalorder %s140, %s156
    %p158 = scmp.eq.s32.totalorder %s17, 0
    %p159 = por %p157, %p158
    %p160 = scmp.le.s32.totalorder 1, %s11
    %p161 = scmp.lt.s32.totalorder %s11, 3
    %p162 = pnand %p160, %p161
    %p163 = pneg %p162
    // Predicated region
    $region9: #{image_backbone_forward.21} parent=5 // pred_check
      _
    $region10: #{image_backbone_forward.21} parent=5 // pred_check_branch
      %165 = sbr.rel (%p162) target = $region12
    $region11: #{image_backbone_forward.21} parent=5 // pred_region
      %s166 = ssub.s32 %s11, 1
      // Predicated region
      $region13: #{image_backbone_forward.21} parent=11 // pred_check
        %p167 = pneg %p58
      $region14: #{image_backbone_forward.21} parent=11 // pred_check_branch
        %169 = sbr.rel (%p167) target = $region16
      $region15: #{image_backbone_forward.21} parent=11 // pred_region
        _
      $region16: #{image_backbone_forward.21} parent=11 // pred_fallthru
        _
      // Predicated region
      $region17: #{image_backbone_forward.21} parent=11 // pred_check
        %p170 = pneg %p79
      $region18: #{image_backbone_forward.21} parent=11 // pred_check_branch
        %172 = sbr.rel (%p170) target = $region20
      $region19: #{image_backbone_forward.21} parent=11 // pred_region
        _
      $region20: #{image_backbone_forward.21} parent=11 // pred_fallthru
        _
      // Predicated region
      $region21: #{image_backbone_forward.21} parent=11 // pred_check
        %p173 = pneg %p100
      $region22: #{image_backbone_forward.21} parent=11 // pred_check_branch
        %175 = sbr.rel (%p173) target = $region24
      $region23: #{image_backbone_forward.21} parent=11 // pred_region
        _
      $region24: #{image_backbone_forward.21} parent=11 // pred_fallthru
        _
    $region12: #{image_backbone_forward.21} parent=5 // pred_fallthru
      _
    %p176 = scmp.lt.s32.totalorder %s11, 2
    // Predicated region
    $region25: #{image_backbone_forward.21} parent=5 // pred_check
      %p177 = pneg %p176
    $region26: #{image_backbone_forward.21} parent=5 // pred_check_branch
      %179 = sbr.rel (%p177) target = $region28
    $region27: #{image_backbone_forward.21} parent=5 // pred_region
      // Predicated region
      $region29: #{image_backbone_forward.21} parent=27 // pred_check
        %p180 = pneg %p31
      $region30: #{image_backbone_forward.21} parent=27 // pred_check_branch
        %182 = sbr.rel (%p180) target = $region32
      $region31: #{image_backbone_forward.21} parent=27 // pred_region
        %p183 = scmp.lt.s32.totalorder %s11, 1
        %s184 = scalar_select %p183, %s11, 1
        %s185 = smul.addr %s184, 2
        %s186 = smul.addr %s185, 4
        %s187 = scalar_lea.vmem %s0, %s186
      $region32: #{image_backbone_forward.21} parent=27 // pred_fallthru
        _
      // Predicated region
      $region33: #{image_backbone_forward.21} parent=27 // pred_check
        %p188 = pneg %p120
      $region34: #{image_backbone_forward.21} parent=27 // pred_check_branch
        %190 = sbr.rel (%p188) target = $region36
      $region35: #{image_backbone_forward.21} parent=27 // pred_region
        %p191 = scmp.lt.s32.totalorder %s11, 1
        %s192 = scalar_select %p191, %s11, 1
        %s193 = smul.addr %s192, 2
        %s194 = smul.addr %s193, 4
        %s195 = scalar_lea.vmem %s4, %s194
      $region36: #{image_backbone_forward.21} parent=27 // pred_fallthru
        _
    $region28: #{image_backbone_forward.21} parent=5 // pred_fallthru
      _
    %p196 = scmp.le.s32.totalorder 1, %s11
    %p197 = scmp.lt.s32.totalorder %s11, 3
    %p198 = pnand %p196, %p197
    %p199 = pneg %p198
    // Predicated region
    $region37: #{image_backbone_forward.21} parent=5 // pred_check
      _
    $region38: #{image_backbone_forward.21} parent=5 // pred_check_branch
      %201 = sbr.rel (%p198) target = $region40
    $region39: #{image_backbone_forward.21} parent=5 // pred_region
      %s202 = ssub.s32 %s11, 1
      %p203 = scmp.lt.s32.totalorder %s16, 1
      %s204 = scalar_select %p203, %s16, 1
      %s205 = smul.addr %s204, 2
      %s206 = smul.addr %s205, 4
      %s207 = scalar_lea.vmem %s0, %s206
      %p208 = pneg %p37
      %p209 = pneg %p34
      %p210 = pneg %p58
      %p211 = pneg %p55
      %p212 = pneg %p79
      %p213 = pneg %p76
      %p214 = pneg %p100
      %p215 = pneg %p97
      %p216 = scmp.lt.s32.totalorder %s16, 1
      %s217 = scalar_select %p216, %s16, 1
      %s218 = smul.addr %s217, 2
      %s219 = smul.addr %s218, 4
      %s220 = scalar_lea.vmem %s4, %s219
      %p221 = pneg %p126
      %p222 = pneg %p123
      %p223 = pneg %p152
      %p224 = pneg %p149
      %p225 = scmp.lt.s32.totalorder %s16, 1
      %s226 = scalar_select %p225, %s16, 1
      %s227 = smul.addr %s226, 2
      %s228 = smul.addr %s227, 4
      %s229 = scalar_lea.vmem %s5, %s228
      %p230 = scmp.lt.s32.totalorder %s16, 1
      %s231 = scalar_select %p230, %s16, 1
      %s232 = smul.addr %s231, 2
      %s233 = smul.addr %s232, 4
      %s234 = scalar_lea.vmem %s0, %s233
      %p235 = scmp.lt.s32.totalorder %s16, 1
      %s236 = scalar_select %p235, %s16, 1
      %s237 = smul.addr %s236, 2
      %s238 = smul.addr %s237, 4
      %s239 = scalar_lea.vmem %s4, %s238
      %p240 = scmp.lt.s32.totalorder %s16, 1
      %s241 = scalar_select %p240, %s16, 1
      %s242 = smul.addr %s241, 2
      %s243 = smul.addr %s242, 4
      %s244 = scalar_lea.vmem %s5, %s243
      %v246 = vld [vmem:[%s234] sm:$0xf]
      %v247 = vld [vmem:[%s234 + $0x4] sm:$0xf]
      %v248 = vunpack.c.l.bf16 %v246
      %v249 = vunpack.c.l.bf16 %v247
      %252 = vrot.lane.b32.xlu0 %v248, 96
      %v253 = vpop.permute.xlu0 %252
      %254 = vrot.lane.b32.xlu0 %v249, 96
      %v255 = vpop.permute.xlu0 %254
      %258 = vxpose.xlu0.b32.start [1/16] %v253, 128
      %259 = vxpose.xlu0.b32.cont [2/16] %v255, 128
      %260 = vxpose.xlu0.b32.cont [3/16] 0.0, 128
      %261 = vxpose.xlu0.b32.cont [4/16] 0.0, 128
      %262 = vxpose.xlu0.b32.cont [5/16] 0.0, 128
      %263 = vxpose.xlu0.b32.cont [6/16] 0.0, 128
      %264 = vxpose.xlu0.b32.cont [7/16] 0.0, 128
      %265 = vxpose.xlu0.b32.cont [8/16] 0.0, 128
      %266 = vxpose.xlu0.b32.cont [9/16] 0.0, 128
      %267 = vxpose.xlu0.b32.cont [10/16] 0.0, 128
      %268 = vxpose.xlu0.b32.cont [11/16] 0.0, 128
      %269 = vxpose.xlu0.b32.cont [12/16] 0.0, 128
      %270 = vxpose.xlu0.b32.cont [13/16] 0.0, 128
      %271 = vxpose.xlu0.b32.cont [14/16] 0.0, 128
      %272 = vxpose.xlu0.b32.cont [15/16] 0.0, 128
      %273 = vxpose.xlu0.b32.end [16/16] 0.0, 128
      %v274 = vpop.trf.xlu0
      %v275 = vpop.trf.xlu0
      %v276 = vpop.trf.xlu0
      %v277 = vpop.trf.xlu0
      %v278 = vpop.trf.xlu0
      %v279 = vpop.trf.xlu0
      %v280 = vpop.trf.xlu0
      %v281 = vpop.trf.xlu0
      %v282 = vpop.trf.xlu0
      %v283 = vpop.trf.xlu0
      %v284 = vpop.trf.xlu0
      %v285 = vpop.trf.xlu0
      %v286 = vpop.trf.xlu0
      %v287 = vpop.trf.xlu0
      %v288 = vpop.trf.xlu0
      %v289 = vpop.trf.xlu0
      %v290 = vpack.c.bf16 %v274, %v274
      %v291 = vpack.c.bf16 %v275, %v275
      %v292 = vpack.c.bf16 %v276, %v276
      %v293 = vpack.c.bf16 %v277, %v277
      %v294 = vld [vmem:[%s1] sm:$0xff]
      %v295 = vld [vmem:[%s1 + $0x8] sm:$0xff]
      %v296 = vld [vmem:[%s1 + $0x10] sm:$0xff]
      %v297 = vld [vmem:[%s1 + $0x18] sm:$0xff]
      %v298 = vld [vmem:[%s1 + $0x20] sm:$0xff]
      %v299 = vld [vmem:[%s1 + $0x28] sm:$0xff]
      %v300 = vld [vmem:[%s1 + $0x30] sm:$0xff]
      %v301 = vld [vmem:[%s1 + $0x38] sm:$0xff]
      %v304 = vunpack.c.l.b16 %v246
      %v305 = vunpack.c.l.b16 %v247
      %v306 = vpack.c.b16 %v305, %v304
      %vm307 = vcmask 64512
      %v309 = vsel %vm307, %v306, 0
      %vm311 = vcmask 1043456
      %v313 = vsel %vm311, %v290, 0
      %315 = vmatpush.bf16.msra.mxu0 0
      %316 = vmatpush.bf16.msra.mxu0 0
      %317 = vmatpush.bf16.msra.mxu0 0
      %318 = vmatpush.bf16.msra.mxu0 0
      %319 = vmatpush.bf16.msra.mxu0 0
      %320 = vmatpush.bf16.msra.mxu0 0
      %321 = vmatpush.bf16.msra.mxu0 0
      %322 = vmatpush.bf16.msra.mxu0 %v313
      %323 = vmatmul.bf16.gmra.mxu0 %v309
      %v324 = vpop.f32.mrf.mxu0
      %v325 = vadd.f32 0.0, %v324
      %v326 = vpop.f32.mrf.mxu0
      %v327 = vadd.f32 0.0, %v326
      %328 = vdwg.mxu0
      %v329 = vmul.f32 %v325, 0.35355338
      %v330 = vmul.f32 %v327, 0.35355338
      %v331 = vadd.f32 %v329, %v294
      %v332 = vadd.f32 %v330, %v295
      %333 = vrot.lane.b32.xlu0 %v306, 120
      %v334 = vpop.permute.xlu0 %333
      %v336 = vsel %vm307, %v334, 0
      %v339 = vsel %vm311, %v291, 0
      %341 = vmatpush.bf16.msra.mxu0 0
      %342 = vmatpush.bf16.msra.mxu0 0
      %343 = vmatpush.bf16.msra.mxu0 0
      %344 = vmatpush.bf16.msra.mxu0 0
      %345 = vmatpush.bf16.msra.mxu0 0
      %346 = vmatpush.bf16.msra.mxu0 0
      %347 = vmatpush.bf16.msra.mxu0 0
      %348 = vmatpush.bf16.msra.mxu0 %v339
      %349 = vmatmul.bf16.gmra.mxu0 %v336
      %v350 = vpop.f32.mrf.mxu0
      %v351 = vadd.f32 0.0, %v350
      %v352 = vpop.f32.mrf.mxu0
      %v353 = vadd.f32 0.0, %v352
      %354 = vdwg.mxu0
      %v355 = vmul.f32 %v351, 0.35355338
      %v356 = vmul.f32 %v353, 0.35355338
      %v357 = vadd.f32 %v355, %v296
      %v358 = vadd.f32 %v356, %v297
      %359 = vrot.lane.b32.xlu0 %v306, 112
      %v360 = vpop.permute.xlu0 %359
      %v362 = vsel %vm307, %v360, 0
      %v365 = vsel %vm311, %v292, 0
      %367 = vmatpush.bf16.msra.mxu0 0
      %368 = vmatpush.bf16.msra.mxu0 0
      %369 = vmatpush.bf16.msra.mxu0 0
      %370 = vmatpush.bf16.msra.mxu0 0
      %371 = vmatpush.bf16.msra.mxu0 0
      %372 = vmatpush.bf16.msra.mxu0 0
      %373 = vmatpush.bf16.msra.mxu0 0
      %374 = vmatpush.bf16.msra.mxu0 %v365
      %375 = vmatmul.bf16.gmra.mxu0 %v362
      %v376 = vpop.f32.mrf.mxu0
      %v377 = vadd.f32 0.0, %v376
      %v378 = vpop.f32.mrf.mxu0
      %v379 = vadd.f32 0.0, %v378
      %380 = vdwg.mxu0
      %v381 = vmul.f32 %v377, 0.35355338
      %v382 = vmul.f32 %v379, 0.35355338
      %v383 = vadd.f32 %v381, %v298
      %v384 = vadd.f32 %v382, %v299
      %385 = vrot.lane.b32.xlu0 %v306, 104
      %v386 = vpop.permute.xlu0 %385
      %v388 = vsel %vm307, %v386, 0
      %v391 = vsel %vm311, %v293, 0
      %393 = vmatpush.bf16.msra.mxu0 0
      %394 = vmatpush.bf16.msra.mxu0 0
      %395 = vmatpush.bf16.msra.mxu0 0
      %396 = vmatpush.bf16.msra.mxu0 0
      %397 = vmatpush.bf16.msra.mxu0 0
      %398 = vmatpush.bf16.msra.mxu0 0
      %399 = vmatpush.bf16.msra.mxu0 0
      %400 = vmatpush.bf16.msra.mxu0 %v391
      %401 = vmatmul.bf16.gmra.mxu0 %v388
      %v402 = vpop.f32.mrf.mxu0
      %v403 = vadd.f32 0.0, %v402
      %v404 = vpop.f32.mrf.mxu0
      %v405 = vadd.f32 0.0, %v404
      %406 = vdwg.mxu0
      %v407 = vmul.f32 %v403, 0.35355338
      %v408 = vmul.f32 %v405, 0.35355338
      %v409 = vadd.f32 %v407, %v300
      %v410 = vadd.f32 %v408, %v301
      %vm411 = vcmask 130048
      %v412 = vsel %vm411, %v331, -inf
      %413 = vmax.xlane.f32.xlu0 %v412
      %v414 = vpop.xlane.xlu0 %413
      %v415 = vsel %vm411, %v332, -inf
      %416 = vmax.xlane.f32.xlu0 %v415
      %v417 = vpop.xlane.xlu0 %416
      %v418 = vsel %vm411, %v357, -inf
      %419 = vmax.xlane.f32.xlu0 %v418
      %v420 = vpop.xlane.xlu0 %419
      %v421 = vsel %vm411, %v358, -inf
      %422 = vmax.xlane.f32.xlu0 %v421
      %v423 = vpop.xlane.xlu0 %422
      %v424 = vsel %vm411, %v383, -inf
      %425 = vmax.xlane.f32.xlu0 %v424
      %v426 = vpop.xlane.xlu0 %425
      %v427 = vsel %vm411, %v384, -inf
      %428 = vmax.xlane.f32.xlu0 %v427
      %v429 = vpop.xlane.xlu0 %428
      %v430 = vsel %vm411, %v409, -inf
      %431 = vmax.xlane.f32.xlu0 %v430
      %v432 = vpop.xlane.xlu0 %431
      %v433 = vsel %vm411, %v410, -inf
      %434 = vmax.xlane.f32.xlu0 %v433
      %v435 = vpop.xlane.xlu0 %434
      %v436 = vsub.f32 %v331, %v414
      %v437 = vsub.f32 %v332, %v417
      %v438 = vsub.f32 %v357, %v420
      %v439 = vsub.f32 %v358, %v423
      %v440 = vsub.f32 %v383, %v426
      %v441 = vsub.f32 %v384, %v429
      %v442 = vsub.f32 %v409, %v432
      %v443 = vsub.f32 %v410, %v435
      %v444 = vmul.f32 %v436, 1.442695
      %v445 = vpow.pop %v444
      %v446 = vmul.f32 %v437, 1.442695
      %v447 = vpow.pop %v446
      %v448 = vmul.f32 %v438, 1.442695
      %v449 = vpow.pop %v448
      %v450 = vmul.f32 %v439, 1.442695
      %v451 = vpow.pop %v450
      %v452 = vmul.f32 %v440, 1.442695
      %v453 = vpow.pop %v452
      %v454 = vmul.f32 %v441, 1.442695
      %v455 = vpow.pop %v454
      %v456 = vmul.f32 %v442, 1.442695
      %v457 = vpow.pop %v456
      %v458 = vmul.f32 %v443, 1.442695
      %v459 = vpow.pop %v458
      %v460 = vsel %vm411, %v445, 0.0
      %461 = vadd.xlane.f32.xlu0 %v460
      %v462 = vpop.xlane.xlu0 %461
      %v463 = vsel %vm411, %v447, 0.0
      %464 = vadd.xlane.f32.xlu0 %v463
      %v465 = vpop.xlane.xlu0 %464
      %v466 = vsel %vm411, %v449, 0.0
      %467 = vadd.xlane.f32.xlu0 %v466
      %v468 = vpop.xlane.xlu0 %467
      %v469 = vsel %vm411, %v451, 0.0
      %470 = vadd.xlane.f32.xlu0 %v469
      %v471 = vpop.xlane.xlu0 %470
      %v472 = vsel %vm411, %v453, 0.0
      %473 = vadd.xlane.f32.xlu0 %v472
      %v474 = vpop.xlane.xlu0 %473
      %v475 = vsel %vm411, %v455, 0.0
      %476 = vadd.xlane.f32.xlu0 %v475
      %v477 = vpop.xlane.xlu0 %476
      %v478 = vsel %vm411, %v457, 0.0
      %479 = vadd.xlane.f32.xlu0 %v478
      %v480 = vpop.xlane.xlu0 %479
      %v481 = vsel %vm411, %v459, 0.0
      %482 = vadd.xlane.f32.xlu0 %v481
      %v483 = vpop.xlane.xlu0 %482
      %v484 = vrcp.pop %v462
      %v485 = vrcp.pop %v465
      %v486 = vrcp.pop %v468
      %v487 = vrcp.pop %v471
      %v488 = vrcp.pop %v474
      %v489 = vrcp.pop %v477
      %v490 = vrcp.pop %v480
      %v491 = vrcp.pop %v483
      %v492 = vmul.f32 %v445, %v484
      %v493 = vmul.f32 %v447, %v485
      %v494 = vmul.f32 %v449, %v486
      %v495 = vmul.f32 %v451, %v487
      %v496 = vmul.f32 %v453, %v488
      %v497 = vmul.f32 %v455, %v489
      %v498 = vmul.f32 %v457, %v490
      %v499 = vmul.f32 %v459, %v491
      %v500 = vpack.c.bf16 %v492, %v492
      %v501 = vpack.c.bf16 %v493, %v493
      %v502 = vpack.c.bf16 %v494, %v494
      %v503 = vpack.c.bf16 %v495, %v495
      %v504 = vpack.c.bf16 %v496, %v496
      %v505 = vpack.c.bf16 %v497, %v497
      %v506 = vpack.c.bf16 %v498, %v498
      %v507 = vpack.c.bf16 %v499, %v499
      %v510 = vunpack.c.l.b16 %v500
      %v511 = vunpack.c.l.b16 %v501
      %v512 = vpack.c.b16 %v511, %v510
      %513 = vrot.lane.b32.xlu0 %v306, 64
      %v514 = vpop.permute.xlu0 %513
      %v517 = vsel %vm411, %v512, 0
      %519 = vmatpush.bf16.msra.mxu0 0
      %520 = vmatpush.bf16.msra.mxu0 0
      %521 = vmatpush.bf16.msra.mxu0 0
      %522 = vmatpush.bf16.msra.mxu0 0
      %523 = vmatpush.bf16.msra.mxu0 0
      %524 = vmatpush.bf16.msra.mxu0 0
      %525 = vmatpush.bf16.msra.mxu0 0
      %526 = vmatpush.bf16.msra.mxu0 %v514
      %527 = vmatmul.bf16.gmra.mxu0 %v517
      %v528 = vpop.f32.mrf.mxu0
      %v529 = vadd.f32 0.0, %v528
      %v530 = vpop.f32.mrf.mxu0
      %v531 = vadd.f32 0.0, %v530
      %532 = vdwg.mxu0
      %v535 = vunpack.c.l.b16 %v502
      %v536 = vunpack.c.l.b16 %v503
      %v537 = vpack.c.b16 %v536, %v535
      %538 = vrot.lane.b32.xlu0 %v306, 56
      %v539 = vpop.permute.xlu0 %538
      %v542 = vsel %vm411, %v537, 0
      %544 = vmatpush.bf16.msra.mxu0 0
      %545 = vmatpush.bf16.msra.mxu0 0
      %546 = vmatpush.bf16.msra.mxu0 0
      %547 = vmatpush.bf16.msra.mxu0 0
      %548 = vmatpush.bf16.msra.mxu0 0
      %549 = vmatpush.bf16.msra.mxu0 0
      %550 = vmatpush.bf16.msra.mxu0 0
      %551 = vmatpush.bf16.msra.mxu0 %v539
      %552 = vmatmul.bf16.gmra.mxu0 %v542
      %v553 = vpop.f32.mrf.mxu0
      %v554 = vadd.f32 0.0, %v553
      %v555 = vpop.f32.mrf.mxu0
      %v556 = vadd.f32 0.0, %v555
      %557 = vdwg.mxu0
      %v560 = vunpack.c.l.b16 %v504
      %v561 = vunpack.c.l.b16 %v505
      %v562 = vpack.c.b16 %v561, %v560
      %563 = vrot.lane.b32.xlu0 %v306, 48
      %v564 = vpop.permute.xlu0 %563
      %v567 = vsel %vm411, %v562, 0
      %569 = vmatpush.bf16.msra.mxu0 0
      %570 = vmatpush.bf16.msra.mxu0 0
      %571 = vmatpush.bf16.msra.mxu0 0
      %572 = vmatpush.bf16.msra.mxu0 0
      %573 = vmatpush.bf16.msra.mxu0 0
      %574 = vmatpush.bf16.msra.mxu0 0
      %575 = vmatpush.bf16.msra.mxu0 0
      %576 = vmatpush.bf16.msra.mxu0 %v564
      %577 = vmatmul.bf16.gmra.mxu0 %v567
      %v578 = vpop.f32.mrf.mxu0
      %v579 = vadd.f32 0.0, %v578
      %v580 = vpop.f32.mrf.mxu0
      %v581 = vadd.f32 0.0, %v580
      %582 = vdwg.mxu0
      %v585 = vunpack.c.l.b16 %v506
      %v586 = vunpack.c.l.b16 %v507
      %v587 = vpack.c.b16 %v586, %v585
      %588 = vrot.lane.b32.xlu0 %v306, 40
      %v589 = vpop.permute.xlu0 %588
      %v592 = vsel %vm411, %v587, 0
      %594 = vmatpush.bf16.msra.mxu0 0
      %595 = vmatpush.bf16.msra.mxu0 0
      %596 = vmatpush.bf16.msra.mxu0 0
      %597 = vmatpush.bf16.msra.mxu0 0
      %598 = vmatpush.bf16.msra.mxu0 0
      %599 = vmatpush.bf16.msra.mxu0 0
      %600 = vmatpush.bf16.msra.mxu0 0
      %601 = vmatpush.bf16.msra.mxu0 %v589
      %602 = vmatmul.bf16.gmra.mxu0 %v592
      %v603 = vpop.f32.mrf.mxu0
      %v604 = vadd.f32 0.0, %v603
      %v605 = vpop.f32.mrf.mxu0
      %v606 = vadd.f32 0.0, %v605
      %607 = vdwg.mxu0
      %610 = vrot.lane.b32.xlu0 %v554, 8
      %v611 = vpop.permute.xlu0 %610
      %612 = vrot.lane.b32.xlu0 %v556, 8
      %v613 = vpop.permute.xlu0 %612
      %618 = vrot.lane.b32.xlu0 %v579, 16
      %v619 = vpop.permute.xlu0 %618
      %620 = vrot.lane.b32.xlu0 %v581, 16
      %v621 = vpop.permute.xlu0 %620
      %626 = vrot.lane.b32.xlu0 %v604, 24
      %v627 = vpop.permute.xlu0 %626
      %628 = vrot.lane.b32.xlu0 %v606, 24
      %v629 = vpop.permute.xlu0 %628
      %v632 = vsel %vm307, %v529, %v611
      %v633 = vsel %vm307, %v531, %v613
      %v634 = vsel %vm411, %v632, %v619
      %v635 = vsel %vm411, %v633, %v621
      %vm636 = vcmask 195584
      %v637 = vsel %vm636, %v634, %v627
      %v638 = vsel %vm636, %v635, %v629
      %v639 = vpack.c.bf16 %v638, %v637
      %v640 = vld [vmem:[%s2] sm:$0xf]
      %v641 = vld [vmem:[%s2 + $0x4] sm:$0xf]
      %v642 = vld [vmem:[%s2 + $0x8] sm:$0xf]
      %v643 = vld [vmem:[%s2 + $0xc] sm:$0xf]
      %v644 = vld [vmem:[%s3] sm:$0x1]
      %v646 = vperm.slane %v644, 0
      %v652 = vunpack.c.l.b16 %v640
      %v653 = vunpack.c.l.b16 %v641
      %v654 = vunpack.c.l.b16 %v642
      %v655 = vunpack.c.l.b16 %v643
      %v656 = vpack.c.b16 %v653, %v652
      %v657 = vpack.c.b16 %v655, %v654
      %vm660 = vcmask 261120
      %v662 = vsel %vm660, %v639, 0
      %664 = vmatpush.bf16.msra.mxu0 0
      %665 = vmatpush.bf16.msra.mxu0 0
      %666 = vmatpush.bf16.msra.mxu0 0
      %667 = vmatpush.bf16.msra.mxu0 0
      %668 = vmatpush.bf16.msra.mxu0 0
      %669 = vmatpush.bf16.msra.mxu0 0
      %670 = vmatpush.bf16.msra.mxu0 %v657
      %671 = vmatpush.bf16.msra.mxu0 %v656
      %672 = vmatmul.bf16.gmra.mxu0 %v662
      %v673 = vpop.f32.mrf.mxu0
      %v674 = vadd.f32 %v646, %v673
      %v675 = vpop.f32.mrf.mxu0
      %v676 = vadd.f32 %v646, %v675
      %677 = vdwg.mxu0
      %v678 = vld [vmem:[%s239] sm:$0xf]
      %v679 = vld [vmem:[%s239 + $0x4] sm:$0xf]
      %v680 = vunpack.c.l.bf16 %v678
      %v681 = vunpack.c.l.bf16 %v679
      %v682 = vadd.f32 %v674, %v680
      %v683 = vadd.f32 %v676, %v681
      %v684 = vpack.c.bf16 %v682, %v682
      %v685 = vpack.c.bf16 %v683, %v683
      %vm686 = vcmask 257024
      %687 = vst.msk [vmem:[%s244] sm:$0xf] %vm686, %v684
      %688 = vst.msk [vmem:[%s244 + $0x4] sm:$0xf] %vm686, %v685
      %p689 = scmp.lt.s32.totalorder %s16, 1
      %s690 = scalar_select %p689, %s16, 1
      %s691 = smul.addr %s690, 2
      %s692 = smul.addr %s691, 4
      %s693 = scalar_lea.vmem %s5, %s692
      // Predicated region
      $region41: #{image_backbone_forward.21} parent=39 // pred_check
        %p694 = pneg %p149
      $region42: #{image_backbone_forward.21} parent=39 // pred_check_branch
        %696 = sbr.rel (%p694) target = $region44
      $region43: #{image_backbone_forward.21} parent=39 // pred_region
        _
      $region44: #{image_backbone_forward.21} parent=39 // pred_fallthru
        _
    $region40: #{image_backbone_forward.21} parent=5 // pred_fallthru
      _
    %p697 = scmp.le.s32.totalorder 2, %s11
    // Predicated region
    $region45: #{image_backbone_forward.21} parent=5 // pred_check
      %p698 = pneg %p697
    $region46: #{image_backbone_forward.21} parent=5 // pred_check_branch
      %700 = sbr.rel (%p698) target = $region48
    $region47: #{image_backbone_forward.21} parent=5 // pred_region
      %s701 = ssub.s32 %s11, 2
      // Predicated region
      $region49: #{image_backbone_forward.21} parent=47 // pred_check
        %p702 = pneg %p155
      $region50: #{image_backbone_forward.21} parent=47 // pred_check_branch
        %704 = sbr.rel (%p702) target = $region52
      $region51: #{image_backbone_forward.21} parent=47 // pred_region
        %p705 = scmp.lt.s32.totalorder %s17, 1
        %s706 = scalar_select %p705, %s17, 1
        %s707 = smul.addr %s706, 2
        %s708 = smul.addr %s707, 4
        %s709 = scalar_lea.vmem %s5, %s708
      $region52: #{image_backbone_forward.21} parent=47 // pred_fallthru
        _
    $region48: #{image_backbone_forward.21} parent=5 // pred_fallthru
      _
  $region6: #{image_backbone_forward.21} parent=0 // loop_footer
    %s15 = sadd.s32 1, %s11
  $region7: #{image_backbone_forward.21} parent=0 // loop_footer_branch
    %10 = sbr.rel target = $region3
  $region8: #{image_backbone_forward.21} parent=0 // loop_exit
    _

// kernel: image_backbone_forward.23
$region0: #{image_backbone_forward.23}
  #allocation0 [shape = 'u32[]', space=smem, size = 0x4, offset = 0x4, fixed_abs, tag = 'smem constant byte address 0x4 - core index']
  #allocation1 [shape = 'u32[72,128]{1,0:T(1,128)}', space=vmem, size = 0x9000, scoped, tag = 'internal scratch']
  #allocation2 [shape = 'f32[16,32]{1,0:T(8,128)}', space=vmem, size = 0x2000, scoped, tag = 'scratch operand']
  %s0 = inlined_call_operand.vmem [shape: bf16[32,128], index: 0, kind: input, shape index: {}]
  %s1 = inlined_call_operand.vmem [shape: bf16[128,32], index: 1, kind: input, shape index: {}]
  %s2 = inlined_call_operand.vmem [shape: f32[1,32], index: 2, kind: input, shape index: {}]
  %s3 = inlined_call_operand.vmem [shape: bf16[32,32], index: 3, kind: input, shape index: {}]
  %s4 = inlined_call_operand.vmem [shape: bf16[32,32], index: 4, kind: output, shape index: {}]
  %s5 = sld [smem:[#allocation0]]
  $region57: #{image_backbone_forward.23} parent=0
    _
  %s7 = ssub.s32 1, %s5
  %s8 = scalar_select 0, %s7, %s5
  loop: start=0, step=1, limit=4
  $region2: #{image_backbone_forward.23} parent=0 // loop_pre_header
    _
  $region3: #{image_backbone_forward.23} parent=0 // loop_header
    %s10 = sphi 0, %s14
    %p11 = scmp.ge.s32.totalorder %s10, 4
    %s17 = sphi 0, %s36
    %s18 = sphi 0, %s32
    %s19 = sphi 0, %s28
    %s20 = sphi 0, %s17
    %s21 = sphi 0, %s18
    %s22 = sphi 0, %s19
    %s23 = sphi 0, %s20
    %s24 = sphi 0, %s21
    %s25 = sphi 0, %s22
    %s41 = sphi 0, %s43
    %s44 = sphi 0, %s41
    %s45 = sphi 0, %s44
    %s61 = sphi 0, %s45
    %s69 = sphi 0, %s71
    %s72 = sphi 0, %s69
    %s73 = sphi 0, %s72
    %s89 = sphi 0, %s73
    %s95 = sphi 0, %s97
    %s98 = sphi 0, %s95
    %s99 = sphi 0, %s98
    %s115 = sphi 0, %s99
    %s123 = sphi 0, %s125
    %s126 = sphi 0, %s123
    %s127 = sphi 0, %s126
    %s143 = sphi 0, %s127
    %s151 = sphi 0, %s153
    %s154 = sphi 0, %s151
    %s155 = sphi 0, %s154
    %s171 = sphi 0, %s155
  $region4: #{image_backbone_forward.23} parent=0 // loop_header_branch
    %13 = sbr.rel (%p11) target = $region8
  $region5: #{image_backbone_forward.23} parent=0 // loop_body
    %s15 = ssub.s32 %s10, 1
    %s16 = ssub.s32 %s10, 2
    %s26 = sadd.s32 1, %s19
    %p27 = scmp.ge.s32.totalorder %s26, 1
    %s28 = scalar_select %p27, 0, %s26
    %s29 = sadd.s32 1, %s18
    %s30 = scalar_select %p27, %s29, %s18
    %p31 = scmp.ge.s32.totalorder %s30, 1
    %s32 = scalar_select %p31, 0, %s30
    %s33 = sadd.s32 1, %s17
    %s34 = scalar_select %p31, %s33, %s17
    %p35 = scmp.ge.s32.totalorder %s34, 2
    %s36 = scalar_select %p35, 0, %s34
    %s37 = ssub.s32 %s17, %s36
    %s38 = ssub.s32 %s19, %s28
    %s39 = sor.u32 %s37, %s38
    %p40 = scmp.eq.s32.totalorder %s39, 0
    %s42 = sadd.s32 %s41, 1
    %s43 = scalar_select %p40, %s41, %s42
    %p46 = pneg %p40
    %p47 = scmp.eq.s32.totalorder %s10, 1
    %p48 = por %p46, %p47
    %p49 = scmp.ne.s32.totalorder %s41, %s44
    %p50 = scmp.eq.s32.totalorder %s10, 0
    %p51 = por %p49, %p50
    %p52 = scmp.ne.s32.totalorder %s41, %s44
    %p53 = scmp.eq.s32.totalorder %s15, 1
    %p54 = por %p52, %p53
    %p55 = scmp.ne.s32.totalorder %s44, %s45
    %p56 = scmp.eq.s32.totalorder %s15, 0
    %p57 = por %p55, %p56
    %p58 = scmp.ne.s32.totalorder %s44, %s45
    %p59 = scmp.eq.s32.totalorder %s16, 1
    %p60 = por %p58, %p59
    %p62 = scmp.ne.s32.totalorder %s45, %s61
    %p63 = scmp.eq.s32.totalorder %s16, 0
    %p64 = por %p62, %p63
    %s65 = ssub.s32 %s19, %s28
    %s66 = ssub.s32 %s18, %s32
    %s67 = sor.u32 %s65, %s66
    %p68 = scmp.eq.s32.totalorder %s67, 0
    %s70 = sadd.s32 %s69, 1
    %s71 = scalar_select %p68, %s69, %s70
    %p74 = pneg %p68
    %p75 = scmp.eq.s32.totalorder %s10, 1
    %p76 = por %p74, %p75
    %p77 = scmp.ne.s32.totalorder %s69, %s72
    %p78 = scmp.eq.s32.totalorder %s10, 0
    %p79 = por %p77, %p78
    %p80 = scmp.ne.s32.totalorder %s69, %s72
    %p81 = scmp.eq.s32.totalorder %s15, 1
    %p82 = por %p80, %p81
    %p83 = scmp.ne.s32.totalorder %s72, %s73
    %p84 = scmp.eq.s32.totalorder %s15, 0
    %p85 = por %p83, %p84
    %p86 = scmp.ne.s32.totalorder %s72, %s73
    %p87 = scmp.eq.s32.totalorder %s16, 1
    %p88 = por %p86, %p87
    %p90 = scmp.ne.s32.totalorder %s73, %s89
    %p91 = scmp.eq.s32.totalorder %s16, 0
    %p92 = por %p90, %p91
    %s93 = ssub.s32 %s18, %s32
    %p94 = scmp.eq.s32.totalorder %s93, 0
    %s96 = sadd.s32 %s95, 1
    %s97 = scalar_select %p94, %s95, %s96
    %p100 = pneg %p94
    %p101 = scmp.eq.s32.totalorder %s10, 1
    %p102 = por %p100, %p101
    %p103 = scmp.ne.s32.totalorder %s95, %s98
    %p104 = scmp.eq.s32.totalorder %s10, 0
    %p105 = por %p103, %p104
    %p106 = scmp.ne.s32.totalorder %s95, %s98
    %p107 = scmp.eq.s32.totalorder %s15, 1
    %p108 = por %p106, %p107
    %p109 = scmp.ne.s32.totalorder %s98, %s99
    %p110 = scmp.eq.s32.totalorder %s15, 0
    %p111 = por %p109, %p110
    %p112 = scmp.ne.s32.totalorder %s98, %s99
    %p113 = scmp.eq.s32.totalorder %s16, 1
    %p114 = por %p112, %p113
    %p116 = scmp.ne.s32.totalorder %s99, %s115
    %p117 = scmp.eq.s32.totalorder %s16, 0
    %p118 = por %p116, %p117
    %s119 = ssub.s32 %s17, %s36
    %s120 = ssub.s32 %s18, %s32
    %s121 = sor.u32 %s119, %s120
    %p122 = scmp.eq.s32.totalorder %s121, 0
    %s124 = sadd.s32 %s123, 1
    %s125 = scalar_select %p122, %s123, %s124
    %p128 = pneg %p122
    %p129 = scmp.eq.s32.totalorder %s10, 1
    %p130 = por %p128, %p129
    %p131 = scmp.ne.s32.totalorder %s123, %s126
    %p132 = scmp.eq.s32.totalorder %s10, 0
    %p133 = por %p131, %p132
    %p134 = scmp.ne.s32.totalorder %s123, %s126
    %p135 = scmp.eq.s32.totalorder %s15, 1
    %p136 = por %p134, %p135
    %p137 = scmp.ne.s32.totalorder %s126, %s127
    %p138 = scmp.eq.s32.totalorder %s15, 0
    %p139 = por %p137, %p138
    %p140 = scmp.ne.s32.totalorder %s126, %s127
    %p141 = scmp.eq.s32.totalorder %s16, 1
    %p142 = por %p140, %p141
    %p144 = scmp.ne.s32.totalorder %s127, %s143
    %p145 = scmp.eq.s32.totalorder %s16, 0
    %p146 = por %p144, %p145
    %s147 = ssub.s32 %s17, %s36
    %s148 = ssub.s32 %s18, %s32
    %s149 = sor.u32 %s147, %s148
    %p150 = scmp.eq.s32.totalorder %s149, 0
    %s152 = sadd.s32 %s151, 1
    %s153 = scalar_select %p150, %s151, %s152
    %p156 = pneg %p150
    %p157 = scmp.eq.s32.totalorder %s10, 1
    %p158 = por %p156, %p157
    %p159 = scmp.ne.s32.totalorder %s151, %s154
    %p160 = scmp.eq.s32.totalorder %s10, 0
    %p161 = por %p159, %p160
    %p162 = scmp.ne.s32.totalorder %s151, %s154
    %p163 = scmp.eq.s32.totalorder %s15, 1
    %p164 = por %p162, %p163
    %p165 = scmp.ne.s32.totalorder %s154, %s155
    %p166 = scmp.eq.s32.totalorder %s15, 0
    %p167 = por %p165, %p166
    %p168 = scmp.ne.s32.totalorder %s154, %s155
    %p169 = scmp.eq.s32.totalorder %s16, 1
    %p170 = por %p168, %p169
    %p172 = scmp.ne.s32.totalorder %s155, %s171
    %p173 = scmp.eq.s32.totalorder %s16, 0
    %p174 = por %p172, %p173
    %p175 = scmp.le.s32.totalorder 1, %s10
    %p176 = scmp.lt.s32.totalorder %s10, 3
    %p177 = pnand %p175, %p176
    %p178 = pneg %p177
    // Predicated region
    $region9: #{image_backbone_forward.23} parent=5 // pred_check
      _
    $region10: #{image_backbone_forward.23} parent=5 // pred_check_branch
      %180 = sbr.rel (%p177) target = $region12
    $region11: #{image_backbone_forward.23} parent=5 // pred_region
      %s181 = ssub.s32 %s10, 1
      // Predicated region
      $region13: #{image_backbone_forward.23} parent=11 // pred_check
        %p182 = pneg %p85
      $region14: #{image_backbone_forward.23} parent=11 // pred_check_branch
        %184 = sbr.rel (%p182) target = $region16
      $region15: #{image_backbone_forward.23} parent=11 // pred_region
        %s185 = smul.u32 16, %s22
        %p186 = scmp.lt.s32.totalorder %s185, 15
        %s187 = scalar_select %p186, %s185, 15
        %p188 = scmp.lt.s32.totalorder %s21, 0
        %s189 = scalar_select %p188, %s21, 0
        %s190 = sadd.s32 %s189, %s187
        %s191 = smul.addr %s190, 4
        %s192 = scalar_lea.vmem %s1, %s191
        %s193 = smul.u32 16, %s22
      $region16: #{image_backbone_forward.23} parent=11 // pred_fallthru
        _
      // Predicated region
      $region17: #{image_backbone_forward.23} parent=11 // pred_check
        %p194 = pneg %p111
      $region18: #{image_backbone_forward.23} parent=11 // pred_check_branch
        %196 = sbr.rel (%p194) target = $region20
      $region19: #{image_backbone_forward.23} parent=11 // pred_region
        %p197 = scmp.lt.s32.totalorder %s21, 0
        %s198 = scalar_select %p197, %s21, 0
        %s199 = scalar_lea.vmem %s2, %s198
      $region20: #{image_backbone_forward.23} parent=11 // pred_fallthru
        _
    $region12: #{image_backbone_forward.23} parent=5 // pred_fallthru
      _
    %p200 = scmp.lt.s32.totalorder %s10, 2
    // Predicated region
    $region21: #{image_backbone_forward.23} parent=5 // pred_check
      %p201 = pneg %p200
    $region22: #{image_backbone_forward.23} parent=5 // pred_check_branch
      %203 = sbr.rel (%p201) target = $region24
    $region23: #{image_backbone_forward.23} parent=5 // pred_region
      // Predicated region
      $region25: #{image_backbone_forward.23} parent=23 // pred_check
        %p204 = pneg %p51
      $region26: #{image_backbone_forward.23} parent=23 // pred_check_branch
        %206 = sbr.rel (%p204) target = $region28
      $region27: #{image_backbone_forward.23} parent=23 // pred_region
        %s207 = smul.u32 2, %s17
        %p208 = scmp.lt.s32.totalorder %s207, 3
        %s209 = scalar_select %p208, %s207, 3
        %p210 = scmp.lt.s32.totalorder %s19, 0
        %s211 = scalar_select %p210, %s19, 0
        %s212 = sadd.s32 %s211, %s209
        %s213 = smul.addr %s212, 4
        %s214 = scalar_lea.vmem %s0, %s213
        %s215 = smul.u32 2, %s17
      $region28: #{image_backbone_forward.23} parent=23 // pred_fallthru
        _
      // Predicated region
      $region29: #{image_backbone_forward.23} parent=23 // pred_check
        %p216 = pneg %p133
      $region30: #{image_backbone_forward.23} parent=23 // pred_check_branch
        %218 = sbr.rel (%p216) target = $region32
      $region31: #{image_backbone_forward.23} parent=23 // pred_region
        %s219 = smul.u32 2, %s17
        %p220 = scmp.lt.s32.totalorder %s219, 3
        %s221 = scalar_select %p220, %s219, 3
        %p222 = scmp.lt.s32.totalorder %s18, 0
        %s223 = scalar_select %p222, %s18, 0
        %s224 = sadd.s32 %s223, %s221
        %s225 = smul.addr %s224, 4
        %s226 = scalar_lea.vmem %s3, %s225
        %s227 = smul.u32 2, %s17
      $region32: #{image_backbone_forward.23} parent=23 // pred_fallthru
        _
    $region24: #{image_backbone_forward.23} parent=5 // pred_fallthru
      _
    %p228 = scmp.le.s32.totalorder 1, %s10
    %p229 = scmp.lt.s32.totalorder %s10, 3
    %p230 = pnand %p228, %p229
    %p231 = pneg %p230
    // Predicated region
    $region33: #{image_backbone_forward.23} parent=5 // pred_check
      _
    $region34: #{image_backbone_forward.23} parent=5 // pred_check_branch
      %233 = sbr.rel (%p230) target = $region36
    $region35: #{image_backbone_forward.23} parent=5 // pred_region
      %s234 = ssub.s32 %s10, 1
      %s235 = smul.u32 2, %s20
      %p236 = scmp.lt.s32.totalorder %s235, 3
      %s237 = scalar_select %p236, %s235, 3
      %p238 = scmp.lt.s32.totalorder %s22, 0
      %s239 = scalar_select %p238, %s22, 0
      %s240 = sadd.s32 %s239, %s237
      %s241 = smul.addr %s240, 4
      %s242 = scalar_lea.vmem %s0, %s241
      %p243 = pneg %p57
      %p244 = pneg %p54
      %s245 = smul.u32 16, %s22
      %p246 = scmp.lt.s32.totalorder %s245, 15
      %s247 = scalar_select %p246, %s245, 15
      %p248 = scmp.lt.s32.totalorder %s21, 0
      %s249 = scalar_select %p248, %s21, 0
      %s250 = sadd.s32 %s249, %s247
      %s251 = smul.addr %s250, 4
      %s252 = scalar_lea.vmem %s1, %s251
      %p253 = pneg %p85
      %p254 = pneg %p82
      %p255 = scmp.lt.s32.totalorder %s21, 0
      %s256 = scalar_select %p255, %s21, 0
      %s257 = scalar_lea.vmem %s2, %s256
      %p258 = pneg %p111
      %p259 = pneg %p108
      %s260 = smul.u32 2, %s20
      %p261 = scmp.lt.s32.totalorder %s260, 3
      %s262 = scalar_select %p261, %s260, 3
      %p263 = scmp.lt.s32.totalorder %s21, 0
      %s264 = scalar_select %p263, %s21, 0
      %s265 = sadd.s32 %s264, %s262
      %s266 = smul.addr %s265, 4
      %s267 = scalar_lea.vmem %s3, %s266
      %p268 = pneg %p139
      %p269 = pneg %p136
      %p270 = pneg %p167
      %p271 = pneg %p164
      %s272 = smul.u32 2, %s20
      %p273 = scmp.lt.s32.totalorder %s272, 3
      %s274 = scalar_select %p273, %s272, 3
      %p275 = scmp.lt.s32.totalorder %s21, 0
      %s276 = scalar_select %p275, %s21, 0
      %s277 = sadd.s32 %s276, %s274
      %s278 = smul.addr %s277, 4
      %s279 = scalar_lea.vmem %s4, %s278
      %s280 = smul.u32 2, %s20
      %p281 = scmp.lt.s32.totalorder %s280, 3
      %s282 = scalar_select %p281, %s280, 3
      %p283 = scmp.lt.s32.totalorder %s22, 0
      %s284 = scalar_select %p283, %s22, 0
      %s285 = sadd.s32 %s284, %s282
      %s286 = smul.addr %s285, 4
      %s287 = scalar_lea.vmem %s0, %s286
      %s288 = smul.u32 2, %s20
      %s289 = smul.u32 16, %s22
      %p290 = scmp.lt.s32.totalorder %s289, 15
      %s291 = scalar_select %p290, %s289, 15
      %p292 = scmp.lt.s32.totalorder %s21, 0
      %s293 = scalar_select %p292, %s21, 0
      %s294 = sadd.s32 %s293, %s291
      %s295 = smul.addr %s294, 4
      %s296 = scalar_lea.vmem %s1, %s295
      %s297 = smul.u32 16, %s22
      %p298 = scmp.lt.s32.totalorder %s21, 0
      %s299 = scalar_select %p298, %s21, 0
      %s300 = scalar_lea.vmem %s2, %s299
      %s301 = smul.u32 2, %s20
      %p302 = scmp.lt.s32.totalorder %s301, 3
      %s303 = scalar_select %p302, %s301, 3
      %p304 = scmp.lt.s32.totalorder %s21, 0
      %s305 = scalar_select %p304, %s21, 0
      %s306 = sadd.s32 %s305, %s303
      %s307 = smul.addr %s306, 4
      %s308 = scalar_lea.vmem %s3, %s307
      %s309 = smul.u32 2, %s20
      %s310 = smul.u32 2, %s20
      %p311 = scmp.lt.s32.totalorder %s310, 3
      %s312 = scalar_select %p311, %s310, 3
      %p313 = scmp.lt.s32.totalorder %s21, 0
      %s314 = scalar_select %p313, %s21, 0
      %s315 = sadd.s32 %s314, %s312
      %s316 = smul.addr %s315, 4
      %s317 = scalar_lea.vmem %s4, %s316
      %s318 = smul.u32 2, %s20
      %p319 = scmp.eq.s32.totalorder %s22, 0
      // Predicated region
      $region37: #{image_backbone_forward.23} parent=35 // pred_check
        %p320 = pneg %p319
      $region38: #{image_backbone_forward.23} parent=35 // pred_check_branch
        %322 = sbr.rel (%p320) target = $region40
      $region39: #{image_backbone_forward.23} parent=35 // pred_region
        %vm323 = vcmask 261120
        %324 = vst.msk [vmem:[#allocation2] sm:$0xff] %vm323, 0.0
        %325 = vst.msk [vmem:[#allocation2 + $0x8] sm:$0xff] %vm323, 0.0
      $region40: #{image_backbone_forward.23} parent=35 // pred_fallthru
        _
      %v326 = vld [vmem:[#allocation2] sm:$0xff]
      %v327 = vld [vmem:[#allocation2 + $0x8] sm:$0xff]
      %v328 = vld [vmem:[%s287] sm:$0xf]
      %v329 = vld [vmem:[%s287 + $0x4] sm:$0xf]
      %v330 = vld [vmem:[%s296] sm:$0xf]
      %v331 = vld [vmem:[%s296 + $0x4] sm:$0xf]
      %v332 = vld [vmem:[%s296 + $0x8] sm:$0xf]
      %v333 = vld [vmem:[%s296 + $0xc] sm:$0xf]
      %v334 = vld [vmem:[%s296 + $0x10] sm:$0xf]
      %v335 = vld [vmem:[%s296 + $0x14] sm:$0xf]
      %v336 = vld [vmem:[%s296 + $0x18] sm:$0xf]
      %v337 = vld [vmem:[%s296 + $0x1c] sm:$0xf]
      %v338 = vld [vmem:[%s296 + $0x20] sm:$0xf]
      %v339 = vld [vmem:[%s296 + $0x24] sm:$0xf]
      %v340 = vld [vmem:[%s296 + $0x28] sm:$0xf]
      %v341 = vld [vmem:[%s296 + $0x2c] sm:$0xf]
      %v342 = vld [vmem:[%s296 + $0x30] sm:$0xf]
      %v343 = vld [vmem:[%s296 + $0x34] sm:$0xf]
      %v344 = vld [vmem:[%s296 + $0x38] sm:$0xf]
      %v345 = vld [vmem:[%s296 + $0x3c] sm:$0xf]
      %v348 = vunpack.c.l.b16 %v328
      %v349 = vunpack.c.l.b16 %v329
      %v350 = vpack.c.b16 %v349, %v348
      %v368 = vunpack.c.l.b16 %v330
      %v369 = vunpack.c.l.b16 %v331
      %v370 = vunpack.c.l.b16 %v332
      %v371 = vunpack.c.l.b16 %v333
      %v372 = vunpack.c.l.b16 %v334
      %v373 = vunpack.c.l.b16 %v335
      %v374 = vunpack.c.l.b16 %v336
      %v375 = vunpack.c.l.b16 %v337
      %v376 = vunpack.c.l.b16 %v338
      %v377 = vunpack.c.l.b16 %v339
      %v378 = vunpack.c.l.b16 %v340
      %v379 = vunpack.c.l.b16 %v341
      %v380 = vunpack.c.l.b16 %v342
      %v381 = vunpack.c.l.b16 %v343
      %v382 = vunpack.c.l.b16 %v344
      %v383 = vunpack.c.l.b16 %v345
      %v384 = vpack.c.b16 %v369, %v368
      %v385 = vpack.c.b16 %v371, %v370
      %v386 = vpack.c.b16 %v373, %v372
      %v387 = vpack.c.b16 %v375, %v374
      %v388 = vpack.c.b16 %v377, %v376
      %v389 = vpack.c.b16 %v379, %v378
      %v390 = vpack.c.b16 %v381, %v380
      %v391 = vpack.c.b16 %v383, %v382
      %400 = vmatpush.bf16.msra.mxu0 %v391
      %401 = vmatpush.bf16.msra.mxu0 %v390
      %402 = vmatpush.bf16.msra.mxu0 %v389
      %403 = vmatpush.bf16.msra.mxu0 %v388
      %404 = vmatpush.bf16.msra.mxu0 %v387
      %405 = vmatpush.bf16.msra.mxu0 %v386
      %406 = vmatpush.bf16.msra.mxu0 %v385
      %407 = vmatpush.bf16.msra.mxu0 %v384
      %408 = vmatmul.bf16.gmra.mxu0 %v350
      %v409 = vpop.f32.mrf.mxu0
      %v410 = vadd.f32 0.0, %v409
      %v411 = vpop.f32.mrf.mxu0
      %v412 = vadd.f32 0.0, %v411
      %413 = vdwg.mxu0
      %v414 = vadd.f32 %v326, %v410
      %v415 = vadd.f32 %v327, %v412
      %vm416 = vcmask 261120
      %417 = vst.msk [vmem:[#allocation2] sm:$0xff] %vm416, %v414
      %418 = vst.msk [vmem:[#allocation2 + $0x8] sm:$0xff] %vm416, %v415
      // Predicated region
      $region41: #{image_backbone_forward.23} parent=35 // pred_check
        %p419 = pneg %p319
      $region42: #{image_backbone_forward.23} parent=35 // pred_check_branch
        %421 = sbr.rel (%p419) target = $region44
      $region43: #{image_backbone_forward.23} parent=35 // pred_region
        %v422 = vld [vmem:[#allocation2] sm:$0xff]
        %v423 = vld [vmem:[#allocation2 + $0x8] sm:$0xff]
        %v424 = vld [vmem:[%s300] sm:$0x1]
        %v426 = vperm.slane %v424, 0
        %v428 = vadd.f32 %v422, %v426
        %v429 = vadd.f32 %v423, %v426
        %v430 = vld [vmem:[%s308] sm:$0xf]
        %v431 = vld [vmem:[%s308 + $0x4] sm:$0xf]
        %v432 = vunpack.c.l.bf16 %v430
        %v433 = vunpack.c.l.bf16 %v431
        %v434 = vadd.f32 %v428, %v432
        %v435 = vadd.f32 %v429, %v433
        %v436 = vpack.c.bf16 %v434, %v434
        %v437 = vpack.c.bf16 %v435, %v435
        %vm438 = vcmask 257024
        %439 = vst.msk [vmem:[%s317] sm:$0xf] %vm438, %v436
        %440 = vst.msk [vmem:[%s317 + $0x4] sm:$0xf] %vm438, %v437
      $region44: #{image_backbone_forward.23} parent=35 // pred_fallthru
        _
      %s441 = smul.u32 2, %s20
      %p442 = scmp.lt.s32.totalorder %s441, 3
      %s443 = scalar_select %p442, %s441, 3
      %p444 = scmp.lt.s32.totalorder %s21, 0
      %s445 = scalar_select %p444, %s21, 0
      %s446 = sadd.s32 %s445, %s443
      %s447 = smul.addr %s446, 4
      %s448 = scalar_lea.vmem %s4, %s447
      // Predicated region
      $region45: #{image_backbone_forward.23} parent=35 // pred_check
        %p449 = pneg %p164
      $region46: #{image_backbone_forward.23} parent=35 // pred_check_branch
        %451 = sbr.rel (%p449) target = $region48
      $region47: #{image_backbone_forward.23} parent=35 // pred_region
        %s452 = smul.u32 2, %s20
      $region48: #{image_backbone_forward.23} parent=35 // pred_fallthru
        _
    $region36: #{image_backbone_forward.23} parent=5 // pred_fallthru
      _
    %p453 = scmp.le.s32.totalorder 2, %s10
    // Predicated region
    $region49: #{image_backbone_forward.23} parent=5 // pred_check
      %p454 = pneg %p453
    $region50: #{image_backbone_forward.23} parent=5 // pred_check_branch
      %456 = sbr.rel (%p454) target = $region52
    $region51: #{image_backbone_forward.23} parent=5 // pred_region
      %s457 = ssub.s32 %s10, 2
      // Predicated region
      $region53: #{image_backbone_forward.23} parent=51 // pred_check
        %p458 = pneg %p170
      $region54: #{image_backbone_forward.23} parent=51 // pred_check_branch
        %460 = sbr.rel (%p458) target = $region56
      $region55: #{image_backbone_forward.23} parent=51 // pred_region
        %s461 = smul.u32 2, %s23
        %p462 = scmp.lt.s32.totalorder %s461, 3
        %s463 = scalar_select %p462, %s461, 3
        %p464 = scmp.lt.s32.totalorder %s24, 0
        %s465 = scalar_select %p464, %s24, 0
        %s466 = sadd.s32 %s465, %s463
        %s467 = smul.addr %s466, 4
        %s468 = scalar_lea.vmem %s4, %s467
      $region56: #{image_backbone_forward.23} parent=51 // pred_fallthru
        _
    $region52: #{image_backbone_forward.23} parent=5 // pred_fallthru
      _
  $region6: #{image_backbone_forward.23} parent=0 // loop_footer
    %s14 = sadd.s32 1, %s10
  $region7: #{image_backbone_forward.23} parent=0 // loop_footer_branch
    %9 = sbr.rel target = $region3
  $region8: #{image_backbone_forward.23} parent=0 // loop_exit
    _

// kernel: image_backbone_forward.29
$region0: #{image_backbone_forward.29}
  #allocation0 [shape = 'u32[]', space=smem, size = 0x4, offset = 0x4, fixed_abs, tag = 'smem constant byte address 0x4 - core index']
  #allocation1 [shape = 'u32[72,128]{1,0:T(1,128)}', space=vmem, size = 0x9000, scoped, tag = 'internal scratch']
  #allocation2 [shape = 'bf16[8,64]{1,0:T(8,128)(2,1)}', space=vmem, size = 0x800, scoped, tag = 'scratch operand']
  %s0 = inlined_call_operand.vmem [shape: bf16[8,64], index: 0, kind: input, shape index: {}]
  %s1 = inlined_call_operand.vmem [shape: f32[1,64], index: 1, kind: input, shape index: {}]
  %s2 = inlined_call_operand.vmem [shape: f32[1,64], index: 2, kind: input, shape index: {}]
  %s3 = inlined_call_operand.vmem [shape: bf16[64,192], index: 3, kind: input, shape index: {}]
  %s4 = inlined_call_operand.vmem [shape: f32[1,192], index: 4, kind: input, shape index: {}]
  %s5 = inlined_call_operand.vmem [shape: bf16[8,192], index: 5, kind: output, shape index: {}]
  %s6 = sld [smem:[#allocation0]]
  $region34: #{image_backbone_forward.29} parent=0
    _
  %s8 = ssub.s32 1, %s6
  %s9 = scalar_select 0, %s8, %s6
  // Predicated region
  $region2: #{image_backbone_forward.29} parent=0 // pred_check
    _
  $region3: #{image_backbone_forward.29} parent=0 // pred_check_branch
    %11 = sbr.rel (0) target = $region5
  $region4: #{image_backbone_forward.29} parent=0 // pred_region
    _
  $region5: #{image_backbone_forward.29} parent=0 // pred_fallthru
    _
  // Predicated region
  $region6: #{image_backbone_forward.29} parent=0 // pred_check
    _
  $region7: #{image_backbone_forward.29} parent=0 // pred_check_branch
    %13 = sbr.rel (0) target = $region9
  $region8: #{image_backbone_forward.29} parent=0 // pred_region
    _
  $region9: #{image_backbone_forward.29} parent=0 // pred_fallthru
    _
  // Predicated region
  $region10: #{image_backbone_forward.29} parent=0 // pred_check
    _
  $region11: #{image_backbone_forward.29} parent=0 // pred_check_branch
    %15 = sbr.rel (0) target = $region13
  $region12: #{image_backbone_forward.29} parent=0 // pred_region
    _
  $region13: #{image_backbone_forward.29} parent=0 // pred_fallthru
    _
  // Predicated region
  $region14: #{image_backbone_forward.29} parent=0 // pred_check
    _
  $region15: #{image_backbone_forward.29} parent=0 // pred_check_branch
    %17 = sbr.rel (0) target = $region17
  $region16: #{image_backbone_forward.29} parent=0 // pred_region
    _
  $region17: #{image_backbone_forward.29} parent=0 // pred_fallthru
    _
  // Predicated region
  $region18: #{image_backbone_forward.29} parent=0 // pred_check
    _
  $region19: #{image_backbone_forward.29} parent=0 // pred_check_branch
    %19 = sbr.rel (0) target = $region21
  $region20: #{image_backbone_forward.29} parent=0 // pred_region
    _
  $region21: #{image_backbone_forward.29} parent=0 // pred_fallthru
    _
  %p21 = scmp.eq.s32.totalorder 0, 0
  // Predicated region
  $region22: #{image_backbone_forward.29} parent=0 // pred_check
    %p22 = pneg %p21
  $region23: #{image_backbone_forward.29} parent=0 // pred_check_branch
    %24 = sbr.rel (%p22) target = $region25
  $region24: #{image_backbone_forward.29} parent=0 // pred_region
    %v25 = vld [vmem:[%s0] sm:$0xf]
    %v26 = vunpack.c.l.bf16 %v25
    %vm27 = vcmask 523264
    %v28 = vsel %vm27, %v26, 0.0
    %29 = vadd.xlane.f32.xlu0 %v28
    %v30 = vpop.xlane.xlu0 %29
    %v31 = vrcp.pop 64.0
    %v32 = vmul.f32 64.0, %v31
    %v33 = vsub.f32 1.0, %v32
    %v34 = vmul.f32 %v31, %v33
    %v35 = vadd.f32 %v31, %v34
    %vm36 = vweird.f32 %v31
    %v37 = vsel %vm36, %v31, %v35
    %v38 = vmul.f32 %v30, %v37
    %v39 = vsub.f32 %v26, %v38
    %v40 = vmul.f32 %v39, %v39
    %v41 = vsel %vm27, %v40, 0.0
    %42 = vadd.xlane.f32.xlu0 %v41
    %v43 = vpop.xlane.xlu0 %42
    %v44 = vmul.f32 %v43, %v37
    %v45 = vadd.f32 %v44, 1e-05
    %v46 = vrsqrt.pop %v45
    %v47 = vmul.f32 %v46, %v45
    %v48 = vmul.f32 %v47, %v46
    %v49 = vmul.f32 0.5, %v48
    %v50 = vsub.f32 1.5, %v49
    %v51 = vmul.f32 %v46, %v50
    %vm52 = vweird.f32 %v45
    %vm53 = vweird.f32 %v46
    %vm54 = vmor %vm52, %vm53
    %v55 = vsel %vm54, %v46, %v51
    %v56 = vmul.f32 %v39, %v55
    %v57 = vld [vmem:[%s1] sm:$0x1]
    %v59 = vperm.slane %v57, 0
    %v61 = vmul.f32 %v56, %v59
    %v62 = vld [vmem:[%s2] sm:$0x1]
    %v64 = vperm.slane %v62, 0
    %v66 = vadd.f32 %v61, %v64
    %v67 = vpack.c.bf16 %v66, %v66
    %vm68 = vcmask 519168
    %69 = vst.msk [vmem:[#allocation2] sm:$0xf] %vm68, %v67
  $region25: #{image_backbone_forward.29} parent=0 // pred_fallthru
    _
  %v70 = vld [vmem:[#allocation2] sm:$0xf]
  %v71 = vld [vmem:[%s3] sm:$0xff]
  %v72 = vld [vmem:[%s3 + $0x8] sm:$0xff]
  %v73 = vld [vmem:[%s3 + $0x10] sm:$0xff]
  %v74 = vld [vmem:[%s3 + $0x18] sm:$0xff]
  %v75 = vld [vmem:[%s3 + $0x20] sm:$0xff]
  %v76 = vld [vmem:[%s3 + $0x28] sm:$0xff]
  %v77 = vld [vmem:[%s3 + $0x30] sm:$0xff]
  %v78 = vld [vmem:[%s3 + $0x38] sm:$0xff]
  %v79 = vld [vmem:[%s4] sm:$0x3]
  %v81 = vperm.slane %v79, 0
  %v82 = vperm.slane %v79, 1
  %v93 = vunpack.c.l.b16 %v71
  %v94 = vunpack.c.h.b16 %v71
  %v95 = vunpack.c.l.b16 %v72
  %v96 = vunpack.c.h.b16 %v72
  %v97 = vunpack.c.l.b16 %v73
  %v98 = vunpack.c.h.b16 %v73
  %v99 = vunpack.c.l.b16 %v74
  %v100 = vunpack.c.h.b16 %v74
  %v101 = vunpack.c.l.b16 %v75
  %v102 = vunpack.c.h.b16 %v75
  %v103 = vunpack.c.l.b16 %v76
  %v104 = vunpack.c.h.b16 %v76
  %v105 = vunpack.c.l.b16 %v77
  %v106 = vunpack.c.h.b16 %v77
  %v107 = vunpack.c.l.b16 %v78
  %v108 = vunpack.c.h.b16 %v78
  %v109 = vpack.c.b16 %v95, %v93
  %v110 = vpack.c.b16 %v96, %v94
  %v111 = vpack.c.b16 %v99, %v97
  %v112 = vpack.c.b16 %v100, %v98
  %v113 = vpack.c.b16 %v103, %v101
  %v114 = vpack.c.b16 %v104, %v102
  %v115 = vpack.c.b16 %v107, %v105
  %v116 = vpack.c.b16 %v108, %v106
  %vm125 = vcmask 523264
  %v127 = vsel %vm125, %v70, 0
  %129 = vmatpush.bf16.msra.mxu0 0
  %130 = vmatpush.bf16.msra.mxu0 0
  %131 = vmatpush.bf16.msra.mxu0 0
  %132 = vmatpush.bf16.msra.mxu0 0
  %133 = vmatpush.bf16.msra.mxu0 %v115
  %134 = vmatpush.bf16.msra.mxu0 %v113
  %135 = vmatpush.bf16.msra.mxu0 %v111
  %136 = vmatpush.bf16.msra.mxu0 %v109
  %137 = vmatmul.bf16.gmra.mxu0 %v127
  %v138 = vpop.f32.mrf.mxu0
  %v139 = vadd.f32 %v81, %v138
  %v140 = vpop.f32.mrf.mxu0
  %141 = vdwg.mxu0
  %142 = vmatpush.bf16.msra.mxu0 0
  %143 = vmatpush.bf16.msra.mxu0 0
  %144 = vmatpush.bf16.msra.mxu0 0
  %145 = vmatpush.bf16.msra.mxu0 0
  %146 = vmatpush.bf16.msra.mxu0 %v116
  %147 = vmatpush.bf16.msra.mxu0 %v114
  %148 = vmatpush.bf16.msra.mxu0 %v112
  %149 = vmatpush.bf16.msra.mxu0 %v110
  %150 = vmatmul.bf16.gmra.mxu0 %v127
  %v151 = vpop.f32.mrf.mxu0
  %v152 = vadd.f32 %v82, %v151
  %v153 = vpop.f32.mrf.mxu0
  %154 = vdwg.mxu0
  %v155 = vpack.c.bf16 %v152, %v139
  %vm156 = vcmask 1043456
  %vm157 = vcmask 523268
  %vm158 = vmor %vm157, %vm156
  %159 = vst.msk [vmem:[%s5] sm:$0xff] %vm158, %v155
  // Predicated region
  $region26: #{image_backbone_forward.29} parent=0 // pred_check
    _
  $region27: #{image_backbone_forward.29} parent=0 // pred_check_branch
    %161 = sbr.rel (0) target = $region29
  $region28: #{image_backbone_forward.29} parent=0 // pred_region
    _
  $region29: #{image_backbone_forward.29} parent=0 // pred_fallthru
    _
  // Predicated region
  $region30: #{image_backbone_forward.29} parent=0 // pred_check
    _
  $region31: #{image_backbone_forward.29} parent=0 // pred_check_branch
    %163 = sbr.rel (0) target = $region33
  $region32: #{image_backbone_forward.29} parent=0 // pred_region
    _
  $region33: #{image_backbone_forward.29} parent=0 // pred_fallthru
    _

// kernel: image_backbone_forward.28
$region0: #{image_backbone_forward.28}
  #allocation0 [shape = 'u32[]', space=smem, size = 0x4, offset = 0x4, fixed_abs, tag = 'smem constant byte address 0x4 - core index']
  #allocation1 [shape = 'u32[72,128]{1,0:T(1,128)}', space=vmem, size = 0x9000, scoped, tag = 'internal scratch']
  #allocation2 [shape = 'bf16[8,128]{1,0:T(8,128)(2,1)}', space=vmem, size = 0x800, scoped, tag = 'scratch operand']
  %s0 = inlined_call_operand.vmem [shape: bf16[8,128], index: 0, kind: input, shape index: {}]
  %s1 = inlined_call_operand.vmem [shape: f32[1,128], index: 1, kind: input, shape index: {}]
  %s2 = inlined_call_operand.vmem [shape: f32[1,128], index: 2, kind: input, shape index: {}]
  %s3 = inlined_call_operand.vmem [shape: bf16[128,64], index: 3, kind: input, shape index: {}]
  %s4 = inlined_call_operand.vmem [shape: f32[1,64], index: 4, kind: input, shape index: {}]
  %s5 = inlined_call_operand.vmem [shape: bf16[8,64], index: 5, kind: output, shape index: {}]
  %s6 = sld [smem:[#allocation0]]
  $region34: #{image_backbone_forward.28} parent=0
    _
  %s8 = ssub.s32 1, %s6
  %s9 = scalar_select 0, %s8, %s6
  // Predicated region
  $region2: #{image_backbone_forward.28} parent=0 // pred_check
    _
  $region3: #{image_backbone_forward.28} parent=0 // pred_check_branch
    %11 = sbr.rel (0) target = $region5
  $region4: #{image_backbone_forward.28} parent=0 // pred_region
    _
  $region5: #{image_backbone_forward.28} parent=0 // pred_fallthru
    _
  // Predicated region
  $region6: #{image_backbone_forward.28} parent=0 // pred_check
    _
  $region7: #{image_backbone_forward.28} parent=0 // pred_check_branch
    %13 = sbr.rel (0) target = $region9
  $region8: #{image_backbone_forward.28} parent=0 // pred_region
    _
  $region9: #{image_backbone_forward.28} parent=0 // pred_fallthru
    _
  // Predicated region
  $region10: #{image_backbone_forward.28} parent=0 // pred_check
    _
  $region11: #{image_backbone_forward.28} parent=0 // pred_check_branch
    %15 = sbr.rel (0) target = $region13
  $region12: #{image_backbone_forward.28} parent=0 // pred_region
    _
  $region13: #{image_backbone_forward.28} parent=0 // pred_fallthru
    _
  // Predicated region
  $region14: #{image_backbone_forward.28} parent=0 // pred_check
    _
  $region15: #{image_backbone_forward.28} parent=0 // pred_check_branch
    %17 = sbr.rel (0) target = $region17
  $region16: #{image_backbone_forward.28} parent=0 // pred_region
    _
  $region17: #{image_backbone_forward.28} parent=0 // pred_fallthru
    _
  // Predicated region
  $region18: #{image_backbone_forward.28} parent=0 // pred_check
    _
  $region19: #{image_backbone_forward.28} parent=0 // pred_check_branch
    %19 = sbr.rel (0) target = $region21
  $region20: #{image_backbone_forward.28} parent=0 // pred_region
    _
  $region21: #{image_backbone_forward.28} parent=0 // pred_fallthru
    _
  %p20 = scmp.eq.s32.totalorder 0, 0
  // Predicated region
  $region22: #{image_backbone_forward.28} parent=0 // pred_check
    %p21 = pneg %p20
  $region23: #{image_backbone_forward.28} parent=0 // pred_check_branch
    %23 = sbr.rel (%p21) target = $region25
  $region24: #{image_backbone_forward.28} parent=0 // pred_region
    %v24 = vld [vmem:[%s0] sm:$0xf]
    %v25 = vunpack.c.l.bf16 %v24
    %26 = vadd.xlane.f32.xlu0 %v25
    %v27 = vpop.xlane.xlu0 %26
    %v28 = vrcp.pop 128.0
    %v29 = vmul.f32 128.0, %v28
    %v30 = vsub.f32 1.0, %v29
    %v31 = vmul.f32 %v28, %v30
    %v32 = vadd.f32 %v28, %v31
    %vm33 = vweird.f32 %v28
    %v34 = vsel %vm33, %v28, %v32
    %v35 = vmul.f32 %v27, %v34
    %v36 = vsub.f32 %v25, %v35
    %v37 = vmul.f32 %v36, %v36
    %38 = vadd.xlane.f32.xlu0 %v37
    %v39 = vpop.xlane.xlu0 %38
    %v40 = vmul.f32 %v39, %v34
    %v41 = vadd.f32 %v40, 1e-05
    %v42 = vrsqrt.pop %v41
    %v43 = vmul.f32 %v42, %v41
    %v44 = vmul.f32 %v43, %v42
    %v45 = vmul.f32 0.5, %v44
    %v46 = vsub.f32 1.5, %v45
    %v47 = vmul.f32 %v42, %v46
    %vm48 = vweird.f32 %v41
    %vm49 = vweird.f32 %v42
    %vm50 = vmor %vm48, %vm49
    %v51 = vsel %vm50, %v42, %v47
    %v52 = vmul.f32 %v36, %v51
    %v53 = vld [vmem:[%s1] sm:$0x1]
    %v55 = vperm.slane %v53, 0
    %v57 = vmul.f32 %v52, %v55
    %v58 = vld [vmem:[%s2] sm:$0x1]
    %v60 = vperm.slane %v58, 0
    %v62 = vadd.f32 %v57, %v60
    %v63 = vpack.c.bf16 %v62, %v62
    %64 = vst [vmem:[#allocation2] sm:$0xf] %v63
  $region25: #{image_backbone_forward.28} parent=0 // pred_fallthru
    _
  %v65 = vld [vmem:[#allocation2] sm:$0xf]
  %v66 = vld [vmem:[%s3] sm:$0xf]
  %v67 = vld [vmem:[%s3 + $0x4] sm:$0xf]
  %v68 = vld [vmem:[%s3 + $0x8] sm:$0xf]
  %v69 = vld [vmem:[%s3 + $0xc] sm:$0xf]
  %v70 = vld [vmem:[%s3 + $0x10] sm:$0xf]
  %v71 = vld [vmem:[%s3 + $0x14] sm:$0xf]
  %v72 = vld [vmem:[%s3 + $0x18] sm:$0xf]
  %v73 = vld [vmem:[%s3 + $0x1c] sm:$0xf]
  %v74 = vld [vmem:[%s3 + $0x20] sm:$0xf]
  %v75 = vld [vmem:[%s3 + $0x24] sm:$0xf]
  %v76 = vld [vmem:[%s3 + $0x28] sm:$0xf]
  %v77 = vld [vmem:[%s3 + $0x2c] sm:$0xf]
  %v78 = vld [vmem:[%s3 + $0x30] sm:$0xf]
  %v79 = vld [vmem:[%s3 + $0x34] sm:$0xf]
  %v80 = vld [vmem:[%s3 + $0x38] sm:$0xf]
  %v81 = vld [vmem:[%s3 + $0x3c] sm:$0xf]
  %v82 = vld [vmem:[%s4] sm:$0x1]
  %v84 = vperm.slane %v82, 0
  %v102 = vunpack.c.l.b16 %v66
  %v103 = vunpack.c.l.b16 %v67
  %v104 = vunpack.c.l.b16 %v68
  %v105 = vunpack.c.l.b16 %v69
  %v106 = vunpack.c.l.b16 %v70
  %v107 = vunpack.c.l.b16 %v71
  %v108 = vunpack.c.l.b16 %v72
  %v109 = vunpack.c.l.b16 %v73
  %v110 = vunpack.c.l.b16 %v74
  %v111 = vunpack.c.l.b16 %v75
  %v112 = vunpack.c.l.b16 %v76
  %v113 = vunpack.c.l.b16 %v77
  %v114 = vunpack.c.l.b16 %v78
  %v115 = vunpack.c.l.b16 %v79
  %v116 = vunpack.c.l.b16 %v80
  %v117 = vunpack.c.l.b16 %v81
  %v118 = vpack.c.b16 %v103, %v102
  %v119 = vpack.c.b16 %v105, %v104
  %v120 = vpack.c.b16 %v107, %v106
  %v121 = vpack.c.b16 %v109, %v108
  %v122 = vpack.c.b16 %v111, %v110
  %v123 = vpack.c.b16 %v113, %v112
  %v124 = vpack.c.b16 %v115, %v114
  %v125 = vpack.c.b16 %v117, %v116
  %134 = vmatpush.bf16.msra.mxu0 %v125
  %135 = vmatpush.bf16.msra.mxu0 %v124
  %136 = vmatpush.bf16.msra.mxu0 %v123
  %137 = vmatpush.bf16.msra.mxu0 %v122
  %138 = vmatpush.bf16.msra.mxu0 %v121
  %139 = vmatpush.bf16.msra.mxu0 %v120
  %140 = vmatpush.bf16.msra.mxu0 %v119
  %141 = vmatpush.bf16.msra.mxu0 %v118
  %142 = vmatmul.bf16.gmra.mxu0 %v65
  %v143 = vpop.f32.mrf.mxu0
  %v144 = vadd.f32 %v84, %v143
  %v145 = vpop.f32.mrf.mxu0
  %146 = vdwg.mxu0
  %v147 = vpack.c.bf16 %v144, %v144
  %vm148 = vcmask 519168
  %149 = vst.msk [vmem:[%s5] sm:$0xf] %vm148, %v147
  // Predicated region
  $region26: #{image_backbone_forward.28} parent=0 // pred_check
    _
  $region27: #{image_backbone_forward.28} parent=0 // pred_check_branch
    %151 = sbr.rel (0) target = $region29
  $region28: #{image_backbone_forward.28} parent=0 // pred_region
    _
  $region29: #{image_backbone_forward.28} parent=0 // pred_fallthru
    _
  // Predicated region
  $region30: #{image_backbone_forward.28} parent=0 // pred_check
    _
  $region31: #{image_backbone_forward.28} parent=0 // pred_check_branch
    %153 = sbr.rel (0) target = $region33
  $region32: #{image_backbone_forward.28} parent=0 // pred_region
    _
  $region33: #{image_backbone_forward.28} parent=0 // pred_fallthru
    _

// kernel: image_backbone_forward.31
$region0: #{image_backbone_forward.31}
  #allocation0 [shape = 'u32[]', space=smem, size = 0x4, offset = 0x4, fixed_abs, tag = 'smem constant byte address 0x4 - core index']
  #allocation1 [shape = 'u32[72,128]{1,0:T(1,128)}', space=vmem, size = 0x9000, scoped, tag = 'internal scratch']
  #allocation2 [shape = 'bf16[8,64]{1,0:T(8,128)(2,1)}', space=vmem, size = 0x800, scoped, tag = 'scratch operand']
  %s0 = inlined_call_operand.vmem [shape: bf16[8,64], index: 0, kind: input, shape index: {}]
  %s1 = inlined_call_operand.vmem [shape: f32[1,64], index: 1, kind: input, shape index: {}]
  %s2 = inlined_call_operand.vmem [shape: f32[1,64], index: 2, kind: input, shape index: {}]
  %s3 = inlined_call_operand.vmem [shape: bf16[64,256], index: 3, kind: input, shape index: {}]
  %s4 = inlined_call_operand.vmem [shape: f32[1,256], index: 4, kind: input, shape index: {}]
  %s5 = inlined_call_operand.vmem [shape: bf16[8,256], index: 5, kind: output, shape index: {}]
  %s6 = sld [smem:[#allocation0]]
  $region34: #{image_backbone_forward.31} parent=0
    _
  %s8 = ssub.s32 1, %s6
  %s9 = scalar_select 0, %s8, %s6
  // Predicated region
  $region2: #{image_backbone_forward.31} parent=0 // pred_check
    _
  $region3: #{image_backbone_forward.31} parent=0 // pred_check_branch
    %11 = sbr.rel (0) target = $region5
  $region4: #{image_backbone_forward.31} parent=0 // pred_region
    _
  $region5: #{image_backbone_forward.31} parent=0 // pred_fallthru
    _
  // Predicated region
  $region6: #{image_backbone_forward.31} parent=0 // pred_check
    _
  $region7: #{image_backbone_forward.31} parent=0 // pred_check_branch
    %13 = sbr.rel (0) target = $region9
  $region8: #{image_backbone_forward.31} parent=0 // pred_region
    _
  $region9: #{image_backbone_forward.31} parent=0 // pred_fallthru
    _
  // Predicated region
  $region10: #{image_backbone_forward.31} parent=0 // pred_check
    _
  $region11: #{image_backbone_forward.31} parent=0 // pred_check_branch
    %15 = sbr.rel (0) target = $region13
  $region12: #{image_backbone_forward.31} parent=0 // pred_region
    _
  $region13: #{image_backbone_forward.31} parent=0 // pred_fallthru
    _
  // Predicated region
  $region14: #{image_backbone_forward.31} parent=0 // pred_check
    _
  $region15: #{image_backbone_forward.31} parent=0 // pred_check_branch
    %17 = sbr.rel (0) target = $region17
  $region16: #{image_backbone_forward.31} parent=0 // pred_region
    _
  $region17: #{image_backbone_forward.31} parent=0 // pred_fallthru
    _
  // Predicated region
  $region18: #{image_backbone_forward.31} parent=0 // pred_check
    _
  $region19: #{image_backbone_forward.31} parent=0 // pred_check_branch
    %19 = sbr.rel (0) target = $region21
  $region20: #{image_backbone_forward.31} parent=0 // pred_region
    _
  $region21: #{image_backbone_forward.31} parent=0 // pred_fallthru
    _
  %p21 = scmp.eq.s32.totalorder 0, 0
  // Predicated region
  $region22: #{image_backbone_forward.31} parent=0 // pred_check
    %p22 = pneg %p21
  $region23: #{image_backbone_forward.31} parent=0 // pred_check_branch
    %24 = sbr.rel (%p22) target = $region25
  $region24: #{image_backbone_forward.31} parent=0 // pred_region
    %v25 = vld [vmem:[%s0] sm:$0xf]
    %v26 = vunpack.c.l.bf16 %v25
    %vm27 = vcmask 523264
    %v28 = vsel %vm27, %v26, 0.0
    %29 = vadd.xlane.f32.xlu0 %v28
    %v30 = vpop.xlane.xlu0 %29
    %v31 = vrcp.pop 64.0
    %v32 = vmul.f32 64.0, %v31
    %v33 = vsub.f32 1.0, %v32
    %v34 = vmul.f32 %v31, %v33
    %v35 = vadd.f32 %v31, %v34
    %vm36 = vweird.f32 %v31
    %v37 = vsel %vm36, %v31, %v35
    %v38 = vmul.f32 %v30, %v37
    %v39 = vsub.f32 %v26, %v38
    %v40 = vmul.f32 %v39, %v39
    %v41 = vsel %vm27, %v40, 0.0
    %42 = vadd.xlane.f32.xlu0 %v41
    %v43 = vpop.xlane.xlu0 %42
    %v44 = vmul.f32 %v43, %v37
    %v45 = vadd.f32 %v44, 1e-05
    %v46 = vrsqrt.pop %v45
    %v47 = vmul.f32 %v46, %v45
    %v48 = vmul.f32 %v47, %v46
    %v49 = vmul.f32 0.5, %v48
    %v50 = vsub.f32 1.5, %v49
    %v51 = vmul.f32 %v46, %v50
    %vm52 = vweird.f32 %v45
    %vm53 = vweird.f32 %v46
    %vm54 = vmor %vm52, %vm53
    %v55 = vsel %vm54, %v46, %v51
    %v56 = vmul.f32 %v39, %v55
    %v57 = vld [vmem:[%s1] sm:$0x1]
    %v59 = vperm.slane %v57, 0
    %v61 = vmul.f32 %v56, %v59
    %v62 = vld [vmem:[%s2] sm:$0x1]
    %v64 = vperm.slane %v62, 0
    %v66 = vadd.f32 %v61, %v64
    %v67 = vpack.c.bf16 %v66, %v66
    %vm68 = vcmask 519168
    %69 = vst.msk [vmem:[#allocation2] sm:$0xf] %vm68, %v67
  $region25: #{image_backbone_forward.31} parent=0 // pred_fallthru
    _
  %v70 = vld [vmem:[#allocation2] sm:$0xf]
  %v71 = vld [vmem:[%s3] sm:$0xff]
  %v72 = vld [vmem:[%s3 + $0x8] sm:$0xff]
  %v73 = vld [vmem:[%s3 + $0x10] sm:$0xff]
  %v74 = vld [vmem:[%s3 + $0x18] sm:$0xff]
  %v75 = vld [vmem:[%s3 + $0x20] sm:$0xff]
  %v76 = vld [vmem:[%s3 + $0x28] sm:$0xff]
  %v77 = vld [vmem:[%s3 + $0x30] sm:$0xff]
  %v78 = vld [vmem:[%s3 + $0x38] sm:$0xff]
  %v79 = vld [vmem:[%s4] sm:$0x3]
  %v81 = vperm.slane %v79, 0
  %v82 = vperm.slane %v79, 1
  %v93 = vunpack.c.l.b16 %v71
  %v94 = vunpack.c.h.b16 %v71
  %v95 = vunpack.c.l.b16 %v72
  %v96 = vunpack.c.h.b16 %v72
  %v97 = vunpack.c.l.b16 %v73
  %v98 = vunpack.c.h.b16 %v73
  %v99 = vunpack.c.l.b16 %v74
  %v100 = vunpack.c.h.b16 %v74
  %v101 = vunpack.c.l.b16 %v75
  %v102 = vunpack.c.h.b16 %v75
  %v103 = vunpack.c.l.b16 %v76
  %v104 = vunpack.c.h.b16 %v76
  %v105 = vunpack.c.l.b16 %v77
  %v106 = vunpack.c.h.b16 %v77
  %v107 = vunpack.c.l.b16 %v78
  %v108 = vunpack.c.h.b16 %v78
  %v109 = vpack.c.b16 %v95, %v93
  %v110 = vpack.c.b16 %v96, %v94
  %v111 = vpack.c.b16 %v99, %v97
  %v112 = vpack.c.b16 %v100, %v98
  %v113 = vpack.c.b16 %v103, %v101
  %v114 = vpack.c.b16 %v104, %v102
  %v115 = vpack.c.b16 %v107, %v105
  %v116 = vpack.c.b16 %v108, %v106
  %vm125 = vcmask 523264
  %v127 = vsel %vm125, %v70, 0
  %129 = vmatpush.bf16.msra.mxu0 0
  %130 = vmatpush.bf16.msra.mxu0 0
  %131 = vmatpush.bf16.msra.mxu0 0
  %132 = vmatpush.bf16.msra.mxu0 0
  %133 = vmatpush.bf16.msra.mxu0 %v115
  %134 = vmatpush.bf16.msra.mxu0 %v113
  %135 = vmatpush.bf16.msra.mxu0 %v111
  %136 = vmatpush.bf16.msra.mxu0 %v109
  %137 = vmatmul.bf16.gmra.mxu0 %v127
  %v138 = vpop.f32.mrf.mxu0
  %v139 = vadd.f32 %v81, %v138
  %v140 = vpop.f32.mrf.mxu0
  %141 = vdwg.mxu0
  %142 = vmatpush.bf16.msra.mxu0 0
  %143 = vmatpush.bf16.msra.mxu0 0
  %144 = vmatpush.bf16.msra.mxu0 0
  %145 = vmatpush.bf16.msra.mxu0 0
  %146 = vmatpush.bf16.msra.mxu0 %v116
  %147 = vmatpush.bf16.msra.mxu0 %v114
  %148 = vmatpush.bf16.msra.mxu0 %v112
  %149 = vmatpush.bf16.msra.mxu0 %v110
  %150 = vmatmul.bf16.gmra.mxu0 %v127
  %v151 = vpop.f32.mrf.mxu0
  %v152 = vadd.f32 %v82, %v151
  %v153 = vpop.f32.mrf.mxu0
  %154 = vdwg.mxu0
  %v155 = vmul.f32 %v139, 0.5
  %v156 = vmul.f32 %v152, 0.5
  %v157 = vmul.f32 %v139, 0.044715
  %v158 = vmul.f32 %v152, 0.044715
  %v159 = vmul.f32 %v157, %v139
  %v160 = vmul.f32 %v158, %v152
  %v161 = vmul.f32 %v159, %v139
  %v162 = vmul.f32 %v160, %v152
  %v163 = vadd.f32 %v139, %v161
  %v164 = vadd.f32 %v152, %v162
  %v165 = vmul.f32 %v163, 0.7978846
  %v166 = vmul.f32 %v164, 0.7978846
  %v167 = vtanh.pop %v165
  %v168 = vtanh.pop %v166
  %v169 = vadd.f32 %v167, 1.0
  %v170 = vadd.f32 %v168, 1.0
  %v171 = vmul.f32 %v155, %v169
  %v172 = vmul.f32 %v156, %v170
  %v173 = vpack.c.bf16 %v172, %v171
  %174 = vst [vmem:[%s5] sm:$0xff] %v173
  // Predicated region
  $region26: #{image_backbone_forward.31} parent=0 // pred_check
    _
  $region27: #{image_backbone_forward.31} parent=0 // pred_check_branch
    %176 = sbr.rel (0) target = $region29
  $region28: #{image_backbone_forward.31} parent=0 // pred_region
    _
  $region29: #{image_backbone_forward.31} parent=0 // pred_fallthru
    _
  // Predicated region
  $region30: #{image_backbone_forward.31} parent=0 // pred_check
    _
  $region31: #{image_backbone_forward.31} parent=0 // pred_check_branch
    %178 = sbr.rel (0) target = $region33
  $region32: #{image_backbone_forward.31} parent=0 // pred_region
    _
  $region33: #{image_backbone_forward.31} parent=0 // pred_fallthru
    _

// kernel: image_backbone_forward.30
$region0: #{image_backbone_forward.30}
  #allocation0 [shape = 'u32[]', space=smem, size = 0x4, offset = 0x4, fixed_abs, tag = 'smem constant byte address 0x4 - core index']
  #allocation1 [shape = 'u32[72,128]{1,0:T(1,128)}', space=vmem, size = 0x9000, scoped, tag = 'internal scratch']
  %s0 = inlined_call_operand.vmem [shape: bf16[2,4,192], index: 0, kind: input, shape index: {}]
  %s1 = inlined_call_operand.vmem [shape: f32[8,4,4], index: 1, kind: input, shape index: {}]
  %s2 = inlined_call_operand.vmem [shape: bf16[64,64], index: 2, kind: input, shape index: {}]
  %s3 = inlined_call_operand.vmem [shape: f32[1,64], index: 3, kind: input, shape index: {}]
  %s4 = inlined_call_operand.vmem [shape: bf16[2,4,64], index: 4, kind: input, shape index: {}]
  %s5 = inlined_call_operand.vmem [shape: bf16[2,4,64], index: 5, kind: output, shape index: {}]
  %s6 = sld [smem:[#allocation0]]
  $region53: #{image_backbone_forward.30} parent=0
    _
  %s8 = ssub.s32 1, %s6
  %s9 = scalar_select 0, %s8, %s6
  loop: start=0, step=1, limit=4
  $region2: #{image_backbone_forward.30} parent=0 // loop_pre_header
    _
  $region3: #{image_backbone_forward.30} parent=0 // loop_header
    %s11 = sphi 0, %s15
    %p12 = scmp.ge.s32.totalorder %s11, 4
    %s21 = sphi 0, %s23
    %s24 = sphi 0, %s21
    %s25 = sphi 0, %s24
    %s41 = sphi 0, %s25
    %s45 = sphi 0, %s45
    %s47 = sphi 0, %s45
    %s48 = sphi 0, %s47
    %s62 = sphi 0, %s48
    %s66 = sphi 0, %s66
    %s68 = sphi 0, %s66
    %s69 = sphi 0, %s68
    %s83 = sphi 0, %s69
    %s87 = sphi 0, %s87
    %s89 = sphi 0, %s87
    %s90 = sphi 0, %s89
    %s104 = sphi 0, %s90
    %s110 = sphi 0, %s112
    %s113 = sphi 0, %s110
    %s114 = sphi 0, %s113
    %s130 = sphi 0, %s114
    %s136 = sphi 0, %s138
    %s139 = sphi 0, %s136
    %s140 = sphi 0, %s139
    %s156 = sphi 0, %s140
  $region4: #{image_backbone_forward.30} parent=0 // loop_header_branch
    %14 = sbr.rel (%p12) target = $region8
  $region5: #{image_backbone_forward.30} parent=0 // loop_body
    %s16 = ssub.s32 %s11, 1
    %s17 = ssub.s32 %s11, 2
    %s18 = sadd.s32 %s11, 1
    %s19 = ssub.s32 %s11, %s18
    %p20 = scmp.eq.s32.totalorder %s19, 0
    %s22 = sadd.s32 %s21, 1
    %s23 = scalar_select %p20, %s21, %s22
    %p26 = pneg %p20
    %p27 = scmp.eq.s32.totalorder %s11, 1
    %p28 = por %p26, %p27
    %p29 = scmp.ne.s32.totalorder %s21, %s24
    %p30 = scmp.eq.s32.totalorder %s11, 0
    %p31 = por %p29, %p30
    %p32 = scmp.ne.s32.totalorder %s21, %s24
    %p33 = scmp.eq.s32.totalorder %s16, 1
    %p34 = por %p32, %p33
    %p35 = scmp.ne.s32.totalorder %s24, %s25
    %p36 = scmp.eq.s32.totalorder %s16, 0
    %p37 = por %p35, %p36
    %p38 = scmp.ne.s32.totalorder %s24, %s25
    %p39 = scmp.eq.s32.totalorder %s17, 1
    %p40 = por %p38, %p39
    %p42 = scmp.ne.s32.totalorder %s25, %s41
    %p43 = scmp.eq.s32.totalorder %s17, 0
    %p44 = por %p42, %p43
    %s46 = sadd.s32 %s45, 1
    %p49 = scmp.eq.s32.totalorder %s11, 1
    %p50 = scmp.ne.s32.totalorder %s45, %s47
    %p51 = scmp.eq.s32.totalorder %s11, 0
    %p52 = por %p50, %p51
    %p53 = scmp.ne.s32.totalorder %s45, %s47
    %p54 = scmp.eq.s32.totalorder %s16, 1
    %p55 = por %p53, %p54
    %p56 = scmp.ne.s32.totalorder %s47, %s48
    %p57 = scmp.eq.s32.totalorder %s16, 0
    %p58 = por %p56, %p57
    %p59 = scmp.ne.s32.totalorder %s47, %s48
    %p60 = scmp.eq.s32.totalorder %s17, 1
    %p61 = por %p59, %p60
    %p63 = scmp.ne.s32.totalorder %s48, %s62
    %p64 = scmp.eq.s32.totalorder %s17, 0
    %p65 = por %p63, %p64
    %s67 = sadd.s32 %s66, 1
    %p70 = scmp.eq.s32.totalorder %s11, 1
    %p71 = scmp.ne.s32.totalorder %s66, %s68
    %p72 = scmp.eq.s32.totalorder %s11, 0
    %p73 = por %p71, %p72
    %p74 = scmp.ne.s32.totalorder %s66, %s68
    %p75 = scmp.eq.s32.totalorder %s16, 1
    %p76 = por %p74, %p75
    %p77 = scmp.ne.s32.totalorder %s68, %s69
    %p78 = scmp.eq.s32.totalorder %s16, 0
    %p79 = por %p77, %p78
    %p80 = scmp.ne.s32.totalorder %s68, %s69
    %p81 = scmp.eq.s32.totalorder %s17, 1
    %p82 = por %p80, %p81
    %p84 = scmp.ne.s32.totalorder %s69, %s83
    %p85 = scmp.eq.s32.totalorder %s17, 0
    %p86 = por %p84, %p85
    %s88 = sadd.s32 %s87, 1
    %p91 = scmp.eq.s32.totalorder %s11, 1
    %p92 = scmp.ne.s32.totalorder %s87, %s89
    %p93 = scmp.eq.s32.totalorder %s11, 0
    %p94 = por %p92, %p93
    %p95 = scmp.ne.s32.totalorder %s87, %s89
    %p96 = scmp.eq.s32.totalorder %s16, 1
    %p97 = por %p95, %p96
    %p98 = scmp.ne.s32.totalorder %s89, %s90
    %p99 = scmp.eq.s32.totalorder %s16, 0
    %p100 = por %p98, %p99
    %p101 = scmp.ne.s32.totalorder %s89, %s90
    %p102 = scmp.eq.s32.totalorder %s17, 1
    %p103 = por %p101, %p102
    %p105 = scmp.ne.s32.totalorder %s90, %s104
    %p106 = scmp.eq.s32.totalorder %s17, 0
    %p107 = por %p105, %p106
    %s108 = ssub.s32 %s11, %s18
    %p109 = scmp.eq.s32.totalorder %s108, 0
    %s111 = sadd.s32 %s110, 1
    %s112 = scalar_select %p109, %s110, %s111
    %p115 = pneg %p109
    %p116 = scmp.eq.s32.totalorder %s11, 1
    %p117 = por %p115, %p116
    %p118 = scmp.ne.s32.totalorder %s110, %s113
    %p119 = scmp.eq.s32.totalorder %s11, 0
    %p120 = por %p118, %p119
    %p121 = scmp.ne.s32.totalorder %s110, %s113
    %p122 = scmp.eq.s32.totalorder %s16, 1
    %p123 = por %p121, %p122
    %p124 = scmp.ne.s32.totalorder %s113, %s114
    %p125 = scmp.eq.s32.totalorder %s16, 0
    %p126 = por %p124, %p125
    %p127 = scmp.ne.s32.totalorder %s113, %s114
    %p128 = scmp.eq.s32.totalorder %s17, 1
    %p129 = por %p127, %p128
    %p131 = scmp.ne.s32.totalorder %s114, %s130
    %p132 = scmp.eq.s32.totalorder %s17, 0
    %p133 = por %p131, %p132
    %s134 = ssub.s32 %s11, %s18
    %p135 = scmp.eq.s32.totalorder %s134, 0
    %s137 = sadd.s32 %s136, 1
    %s138 = scalar_select %p135, %s136, %s137
    %p141 = pneg %p135
    %p142 = scmp.eq.s32.totalorder %s11, 1
    %p143 = por %p141, %p142
    %p144 = scmp.ne.s32.totalorder %s136, %s139
    %p145 = scmp.eq.s32.totalorder %s11, 0
    %p146 = por %p144, %p145
    %p147 = scmp.ne.s32.totalorder %s136, %s139
    %p148 = scmp.eq.s32.totalorder %s16, 1
    %p149 = por %p147, %p148
    %p150 = scmp.ne.s32.totalorder %s139, %s140
    %p151 = scmp.eq.s32.totalorder %s16, 0
    %p152 = por %p150, %p151
    %p153 = scmp.ne.s32.totalorder %s139, %s140
    %p154 = scmp.eq.s32.totalorder %s17, 1
    %p155 = por %p153, %p154
    %p157 = scmp.ne.s32.totalorder %s140, %s156
    %p158 = scmp.eq.s32.totalorder %s17, 0
    %p159 = por %p157, %p158
    %p160 = scmp.le.s32.totalorder 1, %s11
    %p161 = scmp.lt.s32.totalorder %s11, 3
    %p162 = pnand %p160, %p161
    %p163 = pneg %p162
    // Predicated region
    $region9: #{image_backbone_forward.30} parent=5 // pred_check
      _
    $region10: #{image_backbone_forward.30} parent=5 // pred_check_branch
      %165 = sbr.rel (%p162) target = $region12
    $region11: #{image_backbone_forward.30} parent=5 // pred_region
      %s166 = ssub.s32 %s11, 1
      // Predicated region
      $region13: #{image_backbone_forward.30} parent=11 // pred_check
        %p167 = pneg %p58
      $region14: #{image_backbone_forward.30} parent=11 // pred_check_branch
        %169 = sbr.rel (%p167) target = $region16
      $region15: #{image_backbone_forward.30} parent=11 // pred_region
        _
      $region16: #{image_backbone_forward.30} parent=11 // pred_fallthru
        _
      // Predicated region
      $region17: #{image_backbone_forward.30} parent=11 // pred_check
        %p170 = pneg %p79
      $region18: #{image_backbone_forward.30} parent=11 // pred_check_branch
        %172 = sbr.rel (%p170) target = $region20
      $region19: #{image_backbone_forward.30} parent=11 // pred_region
        _
      $region20: #{image_backbone_forward.30} parent=11 // pred_fallthru
        _
      // Predicated region
      $region21: #{image_backbone_forward.30} parent=11 // pred_check
        %p173 = pneg %p100
      $region22: #{image_backbone_forward.30} parent=11 // pred_check_branch
        %175 = sbr.rel (%p173) target = $region24
      $region23: #{image_backbone_forward.30} parent=11 // pred_region
        _
      $region24: #{image_backbone_forward.30} parent=11 // pred_fallthru
        _
    $region12: #{image_backbone_forward.30} parent=5 // pred_fallthru
      _
    %p176 = scmp.lt.s32.totalorder %s11, 2
    // Predicated region
    $region25: #{image_backbone_forward.30} parent=5 // pred_check
      %p177 = pneg %p176
    $region26: #{image_backbone_forward.30} parent=5 // pred_check_branch
      %179 = sbr.rel (%p177) target = $region28
    $region27: #{image_backbone_forward.30} parent=5 // pred_region
      // Predicated region
      $region29: #{image_backbone_forward.30} parent=27 // pred_check
        %p180 = pneg %p31
      $region30: #{image_backbone_forward.30} parent=27 // pred_check_branch
        %182 = sbr.rel (%p180) target = $region32
      $region31: #{image_backbone_forward.30} parent=27 // pred_region
        %p183 = scmp.lt.s32.totalorder %s11, 1
        %s184 = scalar_select %p183, %s11, 1
        %s185 = smul.addr %s184, 2
        %s186 = smul.addr %s185, 2
        %s187 = scalar_lea.vmem %s0, %s186
      $region32: #{image_backbone_forward.30} parent=27 // pred_fallthru
        _
      // Predicated region
      $region33: #{image_backbone_forward.30} parent=27 // pred_check
        %p188 = pneg %p120
      $region34: #{image_backbone_forward.30} parent=27 // pred_check_branch
        %190 = sbr.rel (%p188) target = $region36
      $region35: #{image_backbone_forward.30} parent=27 // pred_region
        %p191 = scmp.lt.s32.totalorder %s11, 1
        %s192 = scalar_select %p191, %s11, 1
        %s193 = smul.addr %s192, 2
        %s194 = scalar_lea.vmem %s4, %s193
      $region36: #{image_backbone_forward.30} parent=27 // pred_fallthru
        _
    $region28: #{image_backbone_forward.30} parent=5 // pred_fallthru
      _
    %p195 = scmp.le.s32.totalorder 1, %s11
    %p196 = scmp.lt.s32.totalorder %s11, 3
    %p197 = pnand %p195, %p196
    %p198 = pneg %p197
    // Predicated region
    $region37: #{image_backbone_forward.30} parent=5 // pred_check
      _
    $region38: #{image_backbone_forward.30} parent=5 // pred_check_branch
      %200 = sbr.rel (%p197) target = $region40
    $region39: #{image_backbone_forward.30} parent=5 // pred_region
      %s201 = ssub.s32 %s11, 1
      %p202 = scmp.lt.s32.totalorder %s16, 1
      %s203 = scalar_select %p202, %s16, 1
      %s204 = smul.addr %s203, 2
      %s205 = smul.addr %s204, 2
      %s206 = scalar_lea.vmem %s0, %s205
      %p207 = pneg %p37
      %p208 = pneg %p34
      %p209 = pneg %p58
      %p210 = pneg %p55
      %p211 = pneg %p79
      %p212 = pneg %p76
      %p213 = pneg %p100
      %p214 = pneg %p97
      %p215 = scmp.lt.s32.totalorder %s16, 1
      %s216 = scalar_select %p215, %s16, 1
      %s217 = smul.addr %s216, 2
      %s218 = scalar_lea.vmem %s4, %s217
      %p219 = pneg %p126
      %p220 = pneg %p123
      %p221 = pneg %p152
      %p222 = pneg %p149
      %p223 = scmp.lt.s32.totalorder %s16, 1
      %s224 = scalar_select %p223, %s16, 1
      %s225 = smul.addr %s224, 2
      %s226 = scalar_lea.vmem %s5, %s225
      %p227 = scmp.lt.s32.totalorder %s16, 1
      %s228 = scalar_select %p227, %s16, 1
      %s229 = smul.addr %s228, 2
      %s230 = smul.addr %s229, 2
      %s231 = scalar_lea.vmem %s0, %s230
      %p232 = scmp.lt.s32.totalorder %s16, 1
      %s233 = scalar_select %p232, %s16, 1
      %s234 = smul.addr %s233, 2
      %s235 = scalar_lea.vmem %s4, %s234
      %p236 = scmp.lt.s32.totalorder %s16, 1
      %s237 = scalar_select %p236, %s16, 1
      %s238 = smul.addr %s237, 2
      %s239 = scalar_lea.vmem %s5, %s238
      %v241 = vld [vmem:[%s231] sm:$0xf]
      %v242 = vunpack.c.l.bf16 %v241
      %244 = vst [vmem:[#allocation1] ss:$2 sm:$0xff] %v242
      %v245 = vld.sshfl [vmem:[#allocation1] sm:$0xff pattern:$0x75316420]
      %246 = vrot.lane.b32.xlu0 %v245, 64
      %v247 = vpop.permute.xlu0 %246
      %249 = vxpose.xlu0.b32.start [1/16] %v247, 128
      %250 = vxpose.xlu0.b32.cont [2/16] 0.0, 128
      %251 = vxpose.xlu0.b32.cont [3/16] 0.0, 128
      %252 = vxpose.xlu0.b32.cont [4/16] 0.0, 128
      %253 = vxpose.xlu0.b32.cont [5/16] 0.0, 128
      %254 = vxpose.xlu0.b32.cont [6/16] 0.0, 128
      %255 = vxpose.xlu0.b32.cont [7/16] 0.0, 128
      %256 = vxpose.xlu0.b32.cont [8/16] 0.0, 128
      %257 = vxpose.xlu0.b32.cont [9/16] 0.0, 128
      %258 = vxpose.xlu0.b32.cont [10/16] 0.0, 128
      %259 = vxpose.xlu0.b32.cont [11/16] 0.0, 128
      %260 = vxpose.xlu0.b32.cont [12/16] 0.0, 128
      %261 = vxpose.xlu0.b32.cont [13/16] 0.0, 128
      %262 = vxpose.xlu0.b32.cont [14/16] 0.0, 128
      %263 = vxpose.xlu0.b32.cont [15/16] 0.0, 128
      %264 = vxpose.xlu0.b32.end [16/16] 0.0, 128
      %v265 = vpop.trf.xlu0
      %v266 = vpop.trf.xlu0
      %v267 = vpop.trf.xlu0
      %v268 = vpop.trf.xlu0
      %v269 = vpop.trf.xlu0
      %v270 = vpop.trf.xlu0
      %v271 = vpop.trf.xlu0
      %v272 = vpop.trf.xlu0
      %v273 = vpop.trf.xlu0
      %v274 = vpop.trf.xlu0
      %v275 = vpop.trf.xlu0
      %v276 = vpop.trf.xlu0
      %v277 = vpop.trf.xlu0
      %v278 = vpop.trf.xlu0
      %v279 = vpop.trf.xlu0
      %v280 = vpop.trf.xlu0
      %v281 = vpack.c.bf16 %v265, %v265
      %v282 = vpack.c.bf16 %v266, %v266
      %v283 = vpack.c.bf16 %v267, %v267
      %v284 = vpack.c.bf16 %v268, %v268
      %v285 = vpack.c.bf16 %v269, %v269
      %v286 = vpack.c.bf16 %v270, %v270
      %v287 = vpack.c.bf16 %v271, %v271
      %v288 = vpack.c.bf16 %v272, %v272
      %v289 = vld [vmem:[%s1] sm:$0xf]
      %v290 = vld [vmem:[%s1 + $0x4] sm:$0xf]
      %v291 = vld [vmem:[%s1 + $0x8] sm:$0xf]
      %v292 = vld [vmem:[%s1 + $0xc] sm:$0xf]
      %v293 = vld [vmem:[%s1 + $0x10] sm:$0xf]
      %v294 = vld [vmem:[%s1 + $0x14] sm:$0xf]
      %v295 = vld [vmem:[%s1 + $0x18] sm:$0xf]
      %v296 = vld [vmem:[%s1 + $0x1c] sm:$0xf]
      %vm297 = vcmask 64512
      %v299 = vsel %vm297, %v241, 0
      %vm301 = vcmask 1043456
      %v303 = vsel %vm301, %v281, 0
      %305 = vmatpush.bf16.msra.mxu0 0
      %306 = vmatpush.bf16.msra.mxu0 0
      %307 = vmatpush.bf16.msra.mxu0 0
      %308 = vmatpush.bf16.msra.mxu0 0
      %309 = vmatpush.bf16.msra.mxu0 0
      %310 = vmatpush.bf16.msra.mxu0 0
      %311 = vmatpush.bf16.msra.mxu0 0
      %312 = vmatpush.bf16.msra.mxu0 %v303
      %313 = vmatmul.bf16.gmra.mxu0 %v299
      %v314 = vpop.f32.mrf.mxu0
      %v315 = vadd.f32 0.0, %v314
      %v316 = vpop.f32.mrf.mxu0
      %317 = vdwg.mxu0
      %v318 = vmul.f32 %v315, 0.35355338
      %v319 = vadd.f32 %v318, %v289
      %320 = vst [vmem:[#allocation1] ss:$4 sm:$0xff] %v241
      %v321 = vld.sshfl [vmem:[#allocation1] sm:$0xff pattern:$0x73625140]
      %323 = vrot.lane.b32.xlu0 %v321, 120
      %v324 = vpop.permute.xlu0 %323
      %v326 = vsel %vm297, %v324, 0
      %v329 = vsel %vm301, %v282, 0
      %331 = vmatpush.bf16.msra.mxu0 0
      %332 = vmatpush.bf16.msra.mxu0 0
      %333 = vmatpush.bf16.msra.mxu0 0
      %334 = vmatpush.bf16.msra.mxu0 0
      %335 = vmatpush.bf16.msra.mxu0 0
      %336 = vmatpush.bf16.msra.mxu0 0
      %337 = vmatpush.bf16.msra.mxu0 0
      %338 = vmatpush.bf16.msra.mxu0 %v329
      %339 = vmatmul.bf16.gmra.mxu0 %v326
      %v340 = vpop.f32.mrf.mxu0
      %v341 = vadd.f32 0.0, %v340
      %v342 = vpop.f32.mrf.mxu0
      %343 = vdwg.mxu0
      %v344 = vmul.f32 %v341, 0.35355338
      %v345 = vadd.f32 %v344, %v290
      %346 = vst [vmem:[#allocation1] ss:$4 sm:$0xff] %v241
      %v347 = vld.sshfl [vmem:[#allocation1] sm:$0xff pattern:$0x73625140]
      %349 = vrot.lane.b32.xlu0 %v347, 112
      %v350 = vpop.permute.xlu0 %349
      %v352 = vsel %vm297, %v350, 0
      %v355 = vsel %vm301, %v283, 0
      %357 = vmatpush.bf16.msra.mxu0 0
      %358 = vmatpush.bf16.msra.mxu0 0
      %359 = vmatpush.bf16.msra.mxu0 0
      %360 = vmatpush.bf16.msra.mxu0 0
      %361 = vmatpush.bf16.msra.mxu0 0
      %362 = vmatpush.bf16.msra.mxu0 0
      %363 = vmatpush.bf16.msra.mxu0 0
      %364 = vmatpush.bf16.msra.mxu0 %v355
      %365 = vmatmul.bf16.gmra.mxu0 %v352
      %v366 = vpop.f32.mrf.mxu0
      %v367 = vadd.f32 0.0, %v366
      %v368 = vpop.f32.mrf.mxu0
      %369 = vdwg.mxu0
      %v370 = vmul.f32 %v367, 0.35355338
      %v371 = vadd.f32 %v370, %v291
      %372 = vst [vmem:[#allocation1] ss:$4 sm:$0xff] %v241
      %v373 = vld.sshfl [vmem:[#allocation1] sm:$0xff pattern:$0x73625140]
      %375 = vrot.lane.b32.xlu0 %v373, 104
      %v376 = vpop.permute.xlu0 %375
      %v378 = vsel %vm297, %v376, 0
      %v381 = vsel %vm301, %v284, 0
      %383 = vmatpush.bf16.msra.mxu0 0
      %384 = vmatpush.bf16.msra.mxu0 0
      %385 = vmatpush.bf16.msra.mxu0 0
      %386 = vmatpush.bf16.msra.mxu0 0
      %387 = vmatpush.bf16.msra.mxu0 0
      %388 = vmatpush.bf16.msra.mxu0 0
      %389 = vmatpush.bf16.msra.mxu0 0
      %390 = vmatpush.bf16.msra.mxu0 %v381
      %391 = vmatmul.bf16.gmra.mxu0 %v378
      %v392 = vpop.f32.mrf.mxu0
      %v393 = vadd.f32 0.0, %v392
      %v394 = vpop.f32.mrf.mxu0
      %395 = vdwg.mxu0
      %v396 = vmul.f32 %v393, 0.35355338
      %v397 = vadd.f32 %v396, %v292
      %398 = vst [vmem:[#allocation1] ss:$4 sm:$0xff] %v241
      %v399 = vld.sshfl [vmem:[#allocation1] sm:$0xff pattern:$0x73625140]
      %401 = vrot.lane.b32.xlu0 %v399, 96
      %v402 = vpop.permute.xlu0 %401
      %v404 = vsel %vm297, %v402, 0
      %v407 = vsel %vm301, %v285, 0
      %409 = vmatpush.bf16.msra.mxu0 0
      %410 = vmatpush.bf16.msra.mxu0 0
      %411 = vmatpush.bf16.msra.mxu0 0
      %412 = vmatpush.bf16.msra.mxu0 0
      %413 = vmatpush.bf16.msra.mxu0 0
      %414 = vmatpush.bf16.msra.mxu0 0
      %415 = vmatpush.bf16.msra.mxu0 0
      %416 = vmatpush.bf16.msra.mxu0 %v407
      %417 = vmatmul.bf16.gmra.mxu0 %v404
      %v418 = vpop.f32.mrf.mxu0
      %v419 = vadd.f32 0.0, %v418
      %v420 = vpop.f32.mrf.mxu0
      %421 = vdwg.mxu0
      %v422 = vmul.f32 %v419, 0.35355338
      %v423 = vadd.f32 %v422, %v293
      %424 = vst [vmem:[#allocation1] ss:$4 sm:$0xff] %v241
      %v425 = vld.sshfl [vmem:[#allocation1] sm:$0xff pattern:$0x73625140]
      %427 = vrot.lane.b32.xlu0 %v425, 88
      %v428 = vpop.permute.xlu0 %427
      %v430 = vsel %vm297, %v428, 0
      %v433 = vsel %vm301, %v286, 0
      %435 = vmatpush.bf16.msra.mxu0 0
      %436 = vmatpush.bf16.msra.mxu0 0
      %437 = vmatpush.bf16.msra.mxu0 0
      %438 = vmatpush.bf16.msra.mxu0 0
      %439 = vmatpush.bf16.msra.mxu0 0
      %440 = vmatpush.bf16.msra.mxu0 0
      %441 = vmatpush.bf16.msra.mxu0 0
      %442 = vmatpush.bf16.msra.mxu0 %v433
      %443 = vmatmul.bf16.gmra.mxu0 %v430
      %v444 = vpop.f32.mrf.mxu0
      %v445 = vadd.f32 0.0, %v444
      %v446 = vpop.f32.mrf.mxu0
      %447 = vdwg.mxu0
      %v448 = vmul.f32 %v445, 0.35355338
      %v449 = vadd.f32 %v448, %v294
      %450 = vst [vmem:[#allocation1] ss:$4 sm:$0xff] %v241
      %v451 = vld.sshfl [vmem:[#allocation1] sm:$0xff pattern:$0x73625140]
      %453 = vrot.lane.b32.xlu0 %v451, 80
      %v454 = vpop.permute.xlu0 %453
      %v456 = vsel %vm297, %v454, 0
      %v459 = vsel %vm301, %v287, 0
      %461 = vmatpush.bf16.msra.mxu0 0
      %462 = vmatpush.bf16.msra.mxu0 0
      %463 = vmatpush.bf16.msra.mxu0 0
      %464 = vmatpush.bf16.msra.mxu0 0
      %465 = vmatpush.bf16.msra.mxu0 0
      %466 = vmatpush.bf16.msra.mxu0 0
      %467 = vmatpush.bf16.msra.mxu0 0
      %468 = vmatpush.bf16.msra.mxu0 %v459
      %469 = vmatmul.bf16.gmra.mxu0 %v456
      %v470 = vpop.f32.mrf.mxu0
      %v471 = vadd.f32 0.0, %v470
      %v472 = vpop.f32.mrf.mxu0
      %473 = vdwg.mxu0
      %v474 = vmul.f32 %v471, 0.35355338
      %v475 = vadd.f32 %v474, %v295
      %476 = vst [vmem:[#allocation1] ss:$4 sm:$0xff] %v241
      %v477 = vld.sshfl [vmem:[#allocation1] sm:$0xff pattern:$0x73625140]
      %479 = vrot.lane.b32.xlu0 %v477, 72
      %v480 = vpop.permute.xlu0 %479
      %v482 = vsel %vm297, %v480, 0
      %v485 = vsel %vm301, %v288, 0
      %487 = vmatpush.bf16.msra.mxu0 0
      %488 = vmatpush.bf16.msra.mxu0 0
      %489 = vmatpush.bf16.msra.mxu0 0
      %490 = vmatpush.bf16.msra.mxu0 0
      %491 = vmatpush.bf16.msra.mxu0 0
      %492 = vmatpush.bf16.msra.mxu0 0
      %493 = vmatpush.bf16.msra.mxu0 0
      %494 = vmatpush.bf16.msra.mxu0 %v485
      %495 = vmatmul.bf16.gmra.mxu0 %v482
      %v496 = vpop.f32.mrf.mxu0
      %v497 = vadd.f32 0.0, %v496
      %v498 = vpop.f32.mrf.mxu0
      %499 = vdwg.mxu0
      %v500 = vmul.f32 %v497, 0.35355338
      %v501 = vadd.f32 %v500, %v296
      %v503 = vrot.slane %v345, 4
      %v506 = vrot.slane %v397, 4
      %v509 = vrot.slane %v449, 4
      %v512 = vrot.slane %v501, 4
      %v514 = vsel %vm301, %v319, %v503
      %v515 = vsel %vm301, %v371, %v506
      %v516 = vsel %vm301, %v423, %v509
      %v517 = vsel %vm301, %v475, %v512
      %vm518 = vcmask 31744
      %v519 = vsel %vm518, %v514, -inf
      %520 = vmax.xlane.f32.xlu0 %v519
      %v521 = vpop.xlane.xlu0 %520
      %v522 = vsel %vm518, %v515, -inf
      %523 = vmax.xlane.f32.xlu0 %v522
      %v524 = vpop.xlane.xlu0 %523
      %v525 = vsel %vm518, %v516, -inf
      %526 = vmax.xlane.f32.xlu0 %v525
      %v527 = vpop.xlane.xlu0 %526
      %v528 = vsel %vm518, %v517, -inf
      %529 = vmax.xlane.f32.xlu0 %v528
      %v530 = vpop.xlane.xlu0 %529
      %v531 = vsub.f32 %v514, %v521
      %v532 = vsub.f32 %v515, %v524
      %v533 = vsub.f32 %v516, %v527
      %v534 = vsub.f32 %v517, %v530
      %v535 = vmul.f32 %v531, 1.442695
      %v536 = vpow.pop %v535
      %v537 = vmul.f32 %v532, 1.442695
      %v538 = vpow.pop %v537
      %v539 = vmul.f32 %v533, 1.442695
      %v540 = vpow.pop %v539
      %v541 = vmul.f32 %v534, 1.442695
      %v542 = vpow.pop %v541
      %v543 = vsel %vm518, %v536, 0.0
      %544 = vadd.xlane.f32.xlu0 %v543
      %v545 = vpop.xlane.xlu0 %544
      %v546 = vsel %vm518, %v538, 0.0
      %547 = vadd.xlane.f32.xlu0 %v546
      %v548 = vpop.xlane.xlu0 %547
      %v549 = vsel %vm518, %v540, 0.0
      %550 = vadd.xlane.f32.xlu0 %v549
      %v551 = vpop.xlane.xlu0 %550
      %v552 = vsel %vm518, %v542, 0.0
      %553 = vadd.xlane.f32.xlu0 %v552
      %v554 = vpop.xlane.xlu0 %553
      %v555 = vrcp.pop %v545
      %v556 = vrcp.pop %v548
      %v557 = vrcp.pop %v551
      %v558 = vrcp.pop %v554
      %v559 = vmul.f32 %v536, %v555
      %v560 = vmul.f32 %v538, %v556
      %v561 = vmul.f32 %v540, %v557
      %v562 = vmul.f32 %v542, %v558
      %v563 = vpack.c.bf16 %v559, %v559
      %v564 = vpack.c.bf16 %v560, %v560
      %v565 = vpack.c.bf16 %v561, %v561
      %v566 = vpack.c.bf16 %v562, %v562
      %567 = vst [vmem:[#allocation1] ss:$4 sm:$0xff] %v241
      %v568 = vld.sshfl [vmem:[#allocation1 + $0x8] sm:$0xff pattern:$0x73625140]
      %v570 = vsel %vm518, %v563, 0
      %vm572 = vcmask 1041408
      %v573 = vsel %vm572, %v568, 0
      %575 = vmatpush.bf16.msra.mxu0 0
      %576 = vmatpush.bf16.msra.mxu0 0
      %577 = vmatpush.bf16.msra.mxu0 0
      %578 = vmatpush.bf16.msra.mxu0 0
      %579 = vmatpush.bf16.msra.mxu0 0
      %580 = vmatpush.bf16.msra.mxu0 0
      %581 = vmatpush.bf16.msra.mxu0 0
      %582 = vmatpush.bf16.msra.mxu0 %v573
      %583 = vmatmul.bf16.gmra.mxu0 %v570
      %v584 = vpop.f32.mrf.mxu0
      %v585 = vadd.f32 0.0, %v584
      %v586 = vpop.f32.mrf.mxu0
      %587 = vdwg.mxu0
      %v589 = vunpack.c.l.b16 %v563
      %v590 = vpack.c.b16 %v589, %v589
      %v591 = vrot.slane %v590, 2
      %592 = vst [vmem:[#allocation1] ss:$4 sm:$0xff] %v241
      %v593 = vld.sshfl [vmem:[#allocation1 + $0x8] sm:$0xff pattern:$0x73625140]
      %595 = vrot.lane.b32.xlu0 %v593, 120
      %v596 = vpop.permute.xlu0 %595
      %v598 = vsel %vm518, %v591, 0
      %v601 = vsel %vm572, %v596, 0
      %603 = vmatpush.bf16.msra.mxu0 0
      %604 = vmatpush.bf16.msra.mxu0 0
      %605 = vmatpush.bf16.msra.mxu0 0
      %606 = vmatpush.bf16.msra.mxu0 0
      %607 = vmatpush.bf16.msra.mxu0 0
      %608 = vmatpush.bf16.msra.mxu0 0
      %609 = vmatpush.bf16.msra.mxu0 0
      %610 = vmatpush.bf16.msra.mxu0 %v601
      %611 = vmatmul.bf16.gmra.mxu0 %v598
      %v612 = vpop.f32.mrf.mxu0
      %v613 = vadd.f32 0.0, %v612
      %v614 = vpop.f32.mrf.mxu0
      %615 = vdwg.mxu0
      %616 = vst [vmem:[#allocation1] ss:$4 sm:$0xff] %v241
      %v617 = vld.sshfl [vmem:[#allocation1 + $0x8] sm:$0xff pattern:$0x73625140]
      %619 = vrot.lane.b32.xlu0 %v617, 112
      %v620 = vpop.permute.xlu0 %619
      %v622 = vsel %vm518, %v564, 0
      %v625 = vsel %vm572, %v620, 0
      %627 = vmatpush.bf16.msra.mxu0 0
      %628 = vmatpush.bf16.msra.mxu0 0
      %629 = vmatpush.bf16.msra.mxu0 0
      %630 = vmatpush.bf16.msra.mxu0 0
      %631 = vmatpush.bf16.msra.mxu0 0
      %632 = vmatpush.bf16.msra.mxu0 0
      %633 = vmatpush.bf16.msra.mxu0 0
      %634 = vmatpush.bf16.msra.mxu0 %v625
      %635 = vmatmul.bf16.gmra.mxu0 %v622
      %v636 = vpop.f32.mrf.mxu0
      %v637 = vadd.f32 0.0, %v636
      %v638 = vpop.f32.mrf.mxu0
      %639 = vdwg.mxu0
      %v641 = vunpack.c.l.b16 %v564
      %v642 = vpack.c.b16 %v641, %v641
      %v643 = vrot.slane %v642, 2
      %644 = vst [vmem:[#allocation1] ss:$4 sm:$0xff] %v241
      %v645 = vld.sshfl [vmem:[#allocation1 + $0x8] sm:$0xff pattern:$0x73625140]
      %647 = vrot.lane.b32.xlu0 %v645, 104
      %v648 = vpop.permute.xlu0 %647
      %v650 = vsel %vm518, %v643, 0
      %v653 = vsel %vm572, %v648, 0
      %655 = vmatpush.bf16.msra.mxu0 0
      %656 = vmatpush.bf16.msra.mxu0 0
      %657 = vmatpush.bf16.msra.mxu0 0
      %658 = vmatpush.bf16.msra.mxu0 0
      %659 = vmatpush.bf16.msra.mxu0 0
      %660 = vmatpush.bf16.msra.mxu0 0
      %661 = vmatpush.bf16.msra.mxu0 0
      %662 = vmatpush.bf16.msra.mxu0 %v653
      %663 = vmatmul.bf16.gmra.mxu0 %v650
      %v664 = vpop.f32.mrf.mxu0
      %v665 = vadd.f32 0.0, %v664
      %v666 = vpop.f32.mrf.mxu0
      %667 = vdwg.mxu0
      %668 = vst [vmem:[#allocation1] ss:$4 sm:$0xff] %v241
      %v669 = vld.sshfl [vmem:[#allocation1 + $0x8] sm:$0xff pattern:$0x73625140]
      %671 = vrot.lane.b32.xlu0 %v669, 96
      %v672 = vpop.permute.xlu0 %671
      %v674 = vsel %vm518, %v565, 0
      %v677 = vsel %vm572, %v672, 0
      %679 = vmatpush.bf16.msra.mxu0 0
      %680 = vmatpush.bf16.msra.mxu0 0
      %681 = vmatpush.bf16.msra.mxu0 0
      %682 = vmatpush.bf16.msra.mxu0 0
      %683 = vmatpush.bf16.msra.mxu0 0
      %684 = vmatpush.bf16.msra.mxu0 0
      %685 = vmatpush.bf16.msra.mxu0 0
      %686 = vmatpush.bf16.msra.mxu0 %v677
      %687 = vmatmul.bf16.gmra.mxu0 %v674
      %v688 = vpop.f32.mrf.mxu0
      %v689 = vadd.f32 0.0, %v688
      %v690 = vpop.f32.mrf.mxu0
      %691 = vdwg.mxu0
      %v693 = vunpack.c.l.b16 %v565
      %v694 = vpack.c.b16 %v693, %v693
      %v695 = vrot.slane %v694, 2
      %696 = vst [vmem:[#allocation1] ss:$4 sm:$0xff] %v241
      %v697 = vld.sshfl [vmem:[#allocation1 + $0x8] sm:$0xff pattern:$0x73625140]
      %699 = vrot.lane.b32.xlu0 %v697, 88
      %v700 = vpop.permute.xlu0 %699
      %v702 = vsel %vm518, %v695, 0
      %v705 = vsel %vm572, %v700, 0
      %707 = vmatpush.bf16.msra.mxu0 0
      %708 = vmatpush.bf16.msra.mxu0 0
      %709 = vmatpush.bf16.msra.mxu0 0
      %710 = vmatpush.bf16.msra.mxu0 0
      %711 = vmatpush.bf16.msra.mxu0 0
      %712 = vmatpush.bf16.msra.mxu0 0
      %713 = vmatpush.bf16.msra.mxu0 0
      %714 = vmatpush.bf16.msra.mxu0 %v705
      %715 = vmatmul.bf16.gmra.mxu0 %v702
      %v716 = vpop.f32.mrf.mxu0
      %v717 = vadd.f32 0.0, %v716
      %v718 = vpop.f32.mrf.mxu0
      %719 = vdwg.mxu0
      %720 = vst [vmem:[#allocation1] ss:$4 sm:$0xff] %v241
      %v721 = vld.sshfl [vmem:[#allocation1 + $0x8] sm:$0xff pattern:$0x73625140]
      %723 = vrot.lane.b32.xlu0 %v721, 80
      %v724 = vpop.permute.xlu0 %723
      %v726 = vsel %vm518, %v566, 0
      %v729 = vsel %vm572, %v724, 0
      %731 = vmatpush.bf16.msra.mxu0 0
      %732 = vmatpush.bf16.msra.mxu0 0
      %733 = vmatpush.bf16.msra.mxu0 0
      %734 = vmatpush.bf16.msra.mxu0 0
      %735 = vmatpush.bf16.msra.mxu0 0
      %736 = vmatpush.bf16.msra.mxu0 0
      %737 = vmatpush.bf16.msra.mxu0 0
      %738 = vmatpush.bf16.msra.mxu0 %v729
      %739 = vmatmul.bf16.gmra.mxu0 %v726
      %v740 = vpop.f32.mrf.mxu0
      %v741 = vadd.f32 0.0, %v740
      %v742 = vpop.f32.mrf.mxu0
      %743 = vdwg.mxu0
      %v745 = vunpack.c.l.b16 %v566
      %v746 = vpack.c.b16 %v745, %v745
      %v747 = vrot.slane %v746, 2
      %748 = vst [vmem:[#allocation1] ss:$4 sm:$0xff] %v241
      %v749 = vld.sshfl [vmem:[#allocation1 + $0x8] sm:$0xff pattern:$0x73625140]
      %751 = vrot.lane.b32.xlu0 %v749, 72
      %v752 = vpop.permute.xlu0 %751
      %v754 = vsel %vm518, %v747, 0
      %v757 = vsel %vm572, %v752, 0
      %759 = vmatpush.bf16.msra.mxu0 0
      %760 = vmatpush.bf16.msra.mxu0 0
      %761 = vmatpush.bf16.msra.mxu0 0
      %762 = vmatpush.bf16.msra.mxu0 0
      %763 = vmatpush.bf16.msra.mxu0 0
      %764 = vmatpush.bf16.msra.mxu0 0
      %765 = vmatpush.bf16.msra.mxu0 0
      %766 = vmatpush.bf16.msra.mxu0 %v757
      %767 = vmatmul.bf16.gmra.mxu0 %v754
      %v768 = vpop.f32.mrf.mxu0
      %v769 = vadd.f32 0.0, %v768
      %v770 = vpop.f32.mrf.mxu0
      %771 = vdwg.mxu0
      %773 = vrot.lane.b32.xlu0 %v613, 8
      %v774 = vpop.permute.xlu0 %773
      %777 = vrot.lane.b32.xlu0 %v637, 16
      %v778 = vpop.permute.xlu0 %777
      %781 = vrot.lane.b32.xlu0 %v665, 24
      %v782 = vpop.permute.xlu0 %781
      %785 = vrot.lane.b32.xlu0 %v689, 32
      %v786 = vpop.permute.xlu0 %785
      %789 = vrot.lane.b32.xlu0 %v717, 40
      %v790 = vpop.permute.xlu0 %789
      %793 = vrot.lane.b32.xlu0 %v741, 48
      %v794 = vpop.permute.xlu0 %793
      %797 = vrot.lane.b32.xlu0 %v769, 56
      %v798 = vpop.permute.xlu0 %797
      %v800 = vsel %vm297, %v585, %v774
      %vm801 = vcmask 130048
      %v802 = vsel %vm801, %v800, %v778
      %vm803 = vcmask 195584
      %v804 = vsel %vm803, %v802, %v782
      %vm805 = vcmask 261120
      %v806 = vsel %vm805, %v804, %v786
      %vm807 = vcmask 326656
      %v808 = vsel %vm807, %v806, %v790
      %vm809 = vcmask 392192
      %v810 = vsel %vm809, %v808, %v794
      %vm811 = vcmask 457728
      %v812 = vsel %vm811, %v810, %v798
      %v813 = vpack.c.bf16 %v812, %v812
      %v814 = vld [vmem:[%s2] sm:$0xf]
      %v815 = vld [vmem:[%s2 + $0x4] sm:$0xf]
      %v816 = vld [vmem:[%s2 + $0x8] sm:$0xf]
      %v817 = vld [vmem:[%s2 + $0xc] sm:$0xf]
      %v818 = vld [vmem:[%s2 + $0x10] sm:$0xf]
      %v819 = vld [vmem:[%s2 + $0x14] sm:$0xf]
      %v820 = vld [vmem:[%s2 + $0x18] sm:$0xf]
      %v821 = vld [vmem:[%s2 + $0x1c] sm:$0xf]
      %v822 = vld [vmem:[%s3] sm:$0x1]
      %v824 = vperm.slane %v822, 0
      %v834 = vunpack.c.l.b16 %v814
      %v835 = vunpack.c.l.b16 %v815
      %v836 = vunpack.c.l.b16 %v816
      %v837 = vunpack.c.l.b16 %v817
      %v838 = vunpack.c.l.b16 %v818
      %v839 = vunpack.c.l.b16 %v819
      %v840 = vunpack.c.l.b16 %v820
      %v841 = vunpack.c.l.b16 %v821
      %v842 = vpack.c.b16 %v835, %v834
      %v843 = vpack.c.b16 %v837, %v836
      %v844 = vpack.c.b16 %v839, %v838
      %v845 = vpack.c.b16 %v841, %v840
      %vm850 = vcmask 523264
      %v852 = vsel %vm850, %v813, 0
      %854 = vmatpush.bf16.msra.mxu0 0
      %855 = vmatpush.bf16.msra.mxu0 0
      %856 = vmatpush.bf16.msra.mxu0 0
      %857 = vmatpush.bf16.msra.mxu0 0
      %858 = vmatpush.bf16.msra.mxu0 %v845
      %859 = vmatpush.bf16.msra.mxu0 %v844
      %860 = vmatpush.bf16.msra.mxu0 %v843
      %861 = vmatpush.bf16.msra.mxu0 %v842
      %862 = vmatmul.bf16.gmra.mxu0 %v852
      %v863 = vpop.f32.mrf.mxu0
      %v864 = vadd.f32 %v824, %v863
      %v865 = vpop.f32.mrf.mxu0
      %866 = vdwg.mxu0
      %v867 = vld [vmem:[%s235] sm:$0x3]
      %v868 = vunpack.c.l.bf16 %v867
      %v869 = vadd.f32 %v864, %v868
      %v870 = vpack.c.bf16 %v869, %v869
      %vm871 = vcmask 517120
      %872 = vst.msk [vmem:[%s239] sm:$0x3] %vm871, %v870
      %p873 = scmp.lt.s32.totalorder %s16, 1
      %s874 = scalar_select %p873, %s16, 1
      %s875 = smul.addr %s874, 2
      %s876 = scalar_lea.vmem %s5, %s875
      // Predicated region
      $region41: #{image_backbone_forward.30} parent=39 // pred_check
        %p877 = pneg %p149
      $region42: #{image_backbone_forward.30} parent=39 // pred_check_branch
        %879 = sbr.rel (%p877) target = $region44
      $region43: #{image_backbone_forward.30} parent=39 // pred_region
        _
      $region44: #{image_backbone_forward.30} parent=39 // pred_fallthru
        _
    $region40: #{image_backbone_forward.30} parent=5 // pred_fallthru
      _
    %p880 = scmp.le.s32.totalorder 2, %s11
    // Predicated region
    $region45: #{image_backbone_forward.30} parent=5 // pred_check
      %p881 = pneg %p880
    $region46: #{image_backbone_forward.30} parent=5 // pred_check_branch
      %883 = sbr.rel (%p881) target = $region48
    $region47: #{image_backbone_forward.30} parent=5 // pred_region
      %s884 = ssub.s32 %s11, 2
      // Predicated region
      $region49: #{image_backbone_forward.30} parent=47 // pred_check
        %p885 = pneg %p155
      $region50: #{image_backbone_forward.30} parent=47 // pred_check_branch
        %887 = sbr.rel (%p885) target = $region52
      $region51: #{image_backbone_forward.30} parent=47 // pred_region
        %p888 = scmp.lt.s32.totalorder %s17, 1
        %s889 = scalar_select %p888, %s17, 1
        %s890 = smul.addr %s889, 2
        %s891 = scalar_lea.vmem %s5, %s890
      $region52: #{image_backbone_forward.30} parent=47 // pred_fallthru
        _
    $region48: #{image_backbone_forward.30} parent=5 // pred_fallthru
      _
  $region6: #{image_backbone_forward.30} parent=0 // loop_footer
    %s15 = sadd.s32 1, %s11
  $region7: #{image_backbone_forward.30} parent=0 // loop_footer_branch
    %10 = sbr.rel target = $region3
  $region8: #{image_backbone_forward.30} parent=0 // loop_exit
    _

// kernel: image_backbone_forward.32
$region0: #{image_backbone_forward.32}
  #allocation0 [shape = 'u32[]', space=smem, size = 0x4, offset = 0x4, fixed_abs, tag = 'smem constant byte address 0x4 - core index']
  #allocation1 [shape = 'u32[72,128]{1,0:T(1,128)}', space=vmem, size = 0x9000, scoped, tag = 'internal scratch']
  #allocation2 [shape = 'f32[8,64]{1,0:T(8,128)}', space=vmem, size = 0x1000, scoped, tag = 'scratch operand']
  %s0 = inlined_call_operand.vmem [shape: bf16[8,256], index: 0, kind: input, shape index: {}]
  %s1 = inlined_call_operand.vmem [shape: bf16[256,64], index: 1, kind: input, shape index: {}]
  %s2 = inlined_call_operand.vmem [shape: f32[1,64], index: 2, kind: input, shape index: {}]
  %s3 = inlined_call_operand.vmem [shape: bf16[8,64], index: 3, kind: input, shape index: {}]
  %s4 = inlined_call_operand.vmem [shape: bf16[8,64], index: 4, kind: output, shape index: {}]
  %s5 = sld [smem:[#allocation0]]
  $region34: #{image_backbone_forward.32} parent=0
    _
  %s7 = ssub.s32 1, %s5
  %s8 = scalar_select 0, %s7, %s5
  // Predicated region
  $region2: #{image_backbone_forward.32} parent=0 // pred_check
    _
  $region3: #{image_backbone_forward.32} parent=0 // pred_check_branch
    %10 = sbr.rel (0) target = $region5
  $region4: #{image_backbone_forward.32} parent=0 // pred_region
    _
  $region5: #{image_backbone_forward.32} parent=0 // pred_fallthru
    _
  // Predicated region
  $region6: #{image_backbone_forward.32} parent=0 // pred_check
    _
  $region7: #{image_backbone_forward.32} parent=0 // pred_check_branch
    %12 = sbr.rel (0) target = $region9
  $region8: #{image_backbone_forward.32} parent=0 // pred_region
    _
  $region9: #{image_backbone_forward.32} parent=0 // pred_fallthru
    _
  // Predicated region
  $region10: #{image_backbone_forward.32} parent=0 // pred_check
    _
  $region11: #{image_backbone_forward.32} parent=0 // pred_check_branch
    %14 = sbr.rel (0) target = $region13
  $region12: #{image_backbone_forward.32} parent=0 // pred_region
    _
  $region13: #{image_backbone_forward.32} parent=0 // pred_fallthru
    _
  // Predicated region
  $region14: #{image_backbone_forward.32} parent=0 // pred_check
    _
  $region15: #{image_backbone_forward.32} parent=0 // pred_check_branch
    %16 = sbr.rel (0) target = $region17
  $region16: #{image_backbone_forward.32} parent=0 // pred_region
    _
  $region17: #{image_backbone_forward.32} parent=0 // pred_fallthru
    _
  %p17 = scmp.eq.s32.totalorder 0, 0
  // Predicated region
  $region18: #{image_backbone_forward.32} parent=0 // pred_check
    %p18 = pneg %p17
  $region19: #{image_backbone_forward.32} parent=0 // pred_check_branch
    %20 = sbr.rel (%p18) target = $region21
  $region20: #{image_backbone_forward.32} parent=0 // pred_region
    %vm21 = vcmask 523264
    %22 = vst.msk [vmem:[#allocation2] sm:$0xff] %vm21, 0.0
  $region21: #{image_backbone_forward.32} parent=0 // pred_fallthru
    _
  %v23 = vld [vmem:[#allocation2] sm:$0xff]
  %v24 = vld [vmem:[%s0] sm:$0xff]
  %v25 = vld [vmem:[%s1] sm:$0xf]
  %v26 = vld [vmem:[%s1 + $0x4] sm:$0xf]
  %v27 = vld [vmem:[%s1 + $0x8] sm:$0xf]
  %v28 = vld [vmem:[%s1 + $0xc] sm:$0xf]
  %v29 = vld [vmem:[%s1 + $0x10] sm:$0xf]
  %v30 = vld [vmem:[%s1 + $0x14] sm:$0xf]
  %v31 = vld [vmem:[%s1 + $0x18] sm:$0xf]
  %v32 = vld [vmem:[%s1 + $0x1c] sm:$0xf]
  %v33 = vld [vmem:[%s1 + $0x20] sm:$0xf]
  %v34 = vld [vmem:[%s1 + $0x24] sm:$0xf]
  %v35 = vld [vmem:[%s1 + $0x28] sm:$0xf]
  %v36 = vld [vmem:[%s1 + $0x2c] sm:$0xf]
  %v37 = vld [vmem:[%s1 + $0x30] sm:$0xf]
  %v38 = vld [vmem:[%s1 + $0x34] sm:$0xf]
  %v39 = vld [vmem:[%s1 + $0x38] sm:$0xf]
  %v40 = vld [vmem:[%s1 + $0x3c] sm:$0xf]
  %v41 = vld [vmem:[%s1 + $0x40] sm:$0xf]
  %v42 = vld [vmem:[%s1 + $0x44] sm:$0xf]
  %v43 = vld [vmem:[%s1 + $0x48] sm:$0xf]
  %v44 = vld [vmem:[%s1 + $0x4c] sm:$0xf]
  %v45 = vld [vmem:[%s1 + $0x50] sm:$0xf]
  %v46 = vld [vmem:[%s1 + $0x54] sm:$0xf]
  %v47 = vld [vmem:[%s1 + $0x58] sm:$0xf]
  %v48 = vld [vmem:[%s1 + $0x5c] sm:$0xf]
  %v49 = vld [vmem:[%s1 + $0x60] sm:$0xf]
  %v50 = vld [vmem:[%s1 + $0x64] sm:$0xf]
  %v51 = vld [vmem:[%s1 + $0x68] sm:$0xf]
  %v52 = vld [vmem:[%s1 + $0x6c] sm:$0xf]
  %v53 = vld [vmem:[%s1 + $0x70] sm:$0xf]
  %v54 = vld [vmem:[%s1 + $0x74] sm:$0xf]
  %v55 = vld [vmem:[%s1 + $0x78] sm:$0xf]
  %v56 = vld [vmem:[%s1 + $0x7c] sm:$0xf]
  %v58 = vunpack.c.l.b16 %v24
  %v59 = vunpack.c.h.b16 %v24
  %v60 = vpack.c.b16 %v58, %v58
  %v61 = vpack.c.b16 %v59, %v59
  %v96 = vunpack.c.l.b16 %v25
  %v97 = vunpack.c.l.b16 %v26
  %v98 = vunpack.c.l.b16 %v27
  %v99 = vunpack.c.l.b16 %v28
  %v100 = vunpack.c.l.b16 %v29
  %v101 = vunpack.c.l.b16 %v30
  %v102 = vunpack.c.l.b16 %v31
  %v103 = vunpack.c.l.b16 %v32
  %v104 = vunpack.c.l.b16 %v33
  %v105 = vunpack.c.l.b16 %v34
  %v106 = vunpack.c.l.b16 %v35
  %v107 = vunpack.c.l.b16 %v36
  %v108 = vunpack.c.l.b16 %v37
  %v109 = vunpack.c.l.b16 %v38
  %v110 = vunpack.c.l.b16 %v39
  %v111 = vunpack.c.l.b16 %v40
  %v112 = vunpack.c.l.b16 %v41
  %v113 = vunpack.c.l.b16 %v42
  %v114 = vunpack.c.l.b16 %v43
  %v115 = vunpack.c.l.b16 %v44
  %v116 = vunpack.c.l.b16 %v45
  %v117 = vunpack.c.l.b16 %v46
  %v118 = vunpack.c.l.b16 %v47
  %v119 = vunpack.c.l.b16 %v48
  %v120 = vunpack.c.l.b16 %v49
  %v121 = vunpack.c.l.b16 %v50
  %v122 = vunpack.c.l.b16 %v51
  %v123 = vunpack.c.l.b16 %v52
  %v124 = vunpack.c.l.b16 %v53
  %v125 = vunpack.c.l.b16 %v54
  %v126 = vunpack.c.l.b16 %v55
  %v127 = vunpack.c.l.b16 %v56
  %v128 = vpack.c.b16 %v97, %v96
  %v129 = vpack.c.b16 %v99, %v98
  %v130 = vpack.c.b16 %v101, %v100
  %v131 = vpack.c.b16 %v103, %v102
  %v132 = vpack.c.b16 %v105, %v104
  %v133 = vpack.c.b16 %v107, %v106
  %v134 = vpack.c.b16 %v109, %v108
  %v135 = vpack.c.b16 %v111, %v110
  %v136 = vpack.c.b16 %v113, %v112
  %v137 = vpack.c.b16 %v115, %v114
  %v138 = vpack.c.b16 %v117, %v116
  %v139 = vpack.c.b16 %v119, %v118
  %v140 = vpack.c.b16 %v121, %v120
  %v141 = vpack.c.b16 %v123, %v122
  %v142 = vpack.c.b16 %v125, %v124
  %v143 = vpack.c.b16 %v127, %v126
  %160 = vmatpush.bf16.msra.mxu0 %v135
  %161 = vmatpush.bf16.msra.mxu0 %v134
  %162 = vmatpush.bf16.msra.mxu0 %v133
  %163 = vmatpush.bf16.msra.mxu0 %v132
  %164 = vmatpush.bf16.msra.mxu0 %v131
  %165 = vmatpush.bf16.msra.mxu0 %v130
  %166 = vmatpush.bf16.msra.mxu0 %v129
  %167 = vmatpush.bf16.msra.mxu0 %v128
  %168 = vmatmul.bf16.gmra.mxu0 %v60
  %v169 = vpop.f32.mrf.mxu0
  %v170 = vadd.f32 0.0, %v169
  %v171 = vpop.f32.mrf.mxu0
  %172 = vdwg.mxu0
  %173 = vmatpush.bf16.msra.mxu0 %v143
  %174 = vmatpush.bf16.msra.mxu0 %v142
  %175 = vmatpush.bf16.msra.mxu0 %v141
  %176 = vmatpush.bf16.msra.mxu0 %v140
  %177 = vmatpush.bf16.msra.mxu0 %v139
  %178 = vmatpush.bf16.msra.mxu0 %v138
  %179 = vmatpush.bf16.msra.mxu0 %v137
  %180 = vmatpush.bf16.msra.mxu0 %v136
  %181 = vmatmul.bf16.gmra.mxu0 %v61
  %v182 = vpop.f32.mrf.mxu0
  %v183 = vadd.f32 %v170, %v182
  %v184 = vpop.f32.mrf.mxu0
  %185 = vdwg.mxu0
  %v186 = vadd.f32 %v23, %v183
  %vm187 = vcmask 523264
  %188 = vst.msk [vmem:[#allocation2] sm:$0xff] %vm187, %v186
  // Predicated region
  $region22: #{image_backbone_forward.32} parent=0 // pred_check
    %p189 = pneg %p17
  $region23: #{image_backbone_forward.32} parent=0 // pred_check_branch
    %191 = sbr.rel (%p189) target = $region25
  $region24: #{image_backbone_forward.32} parent=0 // pred_region
    %v192 = vld [vmem:[#allocation2] sm:$0xff]
    %v193 = vld [vmem:[%s2] sm:$0x1]
    %v195 = vperm.slane %v193, 0
    %v197 = vadd.f32 %v192, %v195
    %v198 = vld [vmem:[%s3] sm:$0xf]
    %v199 = vunpack.c.l.bf16 %v198
    %v200 = vadd.f32 %v197, %v199
    %v201 = vpack.c.bf16 %v200, %v200
    %vm202 = vcmask 519168
    %203 = vst.msk [vmem:[%s4] sm:$0xf] %vm202, %v201
  $region25: #{image_backbone_forward.32} parent=0 // pred_fallthru
    _
  // Predicated region
  $region26: #{image_backbone_forward.32} parent=0 // pred_check
    _
  $region27: #{image_backbone_forward.32} parent=0 // pred_check_branch
    %205 = sbr.rel (0) target = $region29
  $region28: #{image_backbone_forward.32} parent=0 // pred_region
    _
  $region29: #{image_backbone_forward.32} parent=0 // pred_fallthru
    _
  // Predicated region
  $region30: #{image_backbone_forward.32} parent=0 // pred_check
    _
  $region31: #{image_backbone_forward.32} parent=0 // pred_check_branch
    %207 = sbr.rel (0) target = $region33
  $region32: #{image_backbone_forward.32} parent=0 // pred_region
    _
  $region33: #{image_backbone_forward.32} parent=0 // pred_fallthru
    _

// kernel: image_backbone_forward.37
$region0: #{image_backbone_forward.37}
  #allocation0 [shape = 'u32[]', space=smem, size = 0x4, offset = 0x4, fixed_abs, tag = 'smem constant byte address 0x4 - core index']
  #allocation1 [shape = 'u32[72,128]{1,0:T(1,128)}', space=vmem, size = 0x9000, scoped, tag = 'internal scratch']
  %s0 = inlined_call_operand.vmem [shape: bf16[2,4,64], index: 0, kind: input, shape index: {}]
  %s1 = inlined_call_operand.vmem [shape: f32[1,64], index: 1, kind: input, shape index: {}]
  %s2 = inlined_call_operand.vmem [shape: f32[1,64], index: 2, kind: input, shape index: {}]
  %s3 = inlined_call_operand.vmem [shape: bf16[64,128], index: 3, kind: input, shape index: {}]
  %s4 = inlined_call_operand.vmem [shape: f32[1,128], index: 4, kind: input, shape index: {}]
  %s5 = inlined_call_operand.hbm [shape: f32[2,128], index: 5, kind: output, shape index: {}]
  %s6 = sld [smem:[#allocation0]]
  $region53: #{image_backbone_forward.37} parent=0
    _
  %s8 = ssub.s32 1, %s6
  %s9 = scalar_select 0, %s8, %s6
  $region1: #{image_backbone_forward.37} parent=0
    #allocation2 [shape = 'u8[1024]{0}', space=vmem, size = 0x400, scoped, tag = 'output window, operand 0, single buffered']
    #allocation3 [shape = 's32[2]{0}', space=sflag, size = 0x8, scoped, tag = 'scoped memory for image_backbone_forward.37']
    %10 = vsyncpa [#allocation3], 0
    loop: start=0, step=1, limit=4
    $region2: #{image_backbone_forward.37} parent=1 // loop_pre_header
      _
    $region3: #{image_backbone_forward.37} parent=1 // loop_header
      %s12 = sphi 0, %s16
      %p13 = scmp.ge.s32.totalorder %s12, 4
      %s22 = sphi 0, %s24
      %s25 = sphi 0, %s22
      %s26 = sphi 0, %s25
      %s42 = sphi 0, %s26
      %s46 = sphi 0, %s46
      %s48 = sphi 0, %s46
      %s49 = sphi 0, %s48
      %s63 = sphi 0, %s49
      %s67 = sphi 0, %s67
      %s69 = sphi 0, %s67
      %s70 = sphi 0, %s69
      %s84 = sphi 0, %s70
      %s88 = sphi 0, %s88
      %s90 = sphi 0, %s88
      %s91 = sphi 0, %s90
      %s105 = sphi 0, %s91
      %s109 = sphi 0, %s109
      %s111 = sphi 0, %s109
      %s112 = sphi 0, %s111
      %s126 = sphi 0, %s112
      %s130 = sphi 0, %s130
      %s132 = sphi 0, %s130
      %s133 = sphi 0, %s132
      %s147 = sphi 0, %s133
    $region4: #{image_backbone_forward.37} parent=1 // loop_header_branch
      %15 = sbr.rel (%p13) target = $region8
    $region5: #{image_backbone_forward.37} parent=1 // loop_body
      %s17 = ssub.s32 %s12, 1
      %s18 = ssub.s32 %s12, 2
      %s19 = sadd.s32 %s12, 1
      %s20 = ssub.s32 %s12, %s19
      %p21 = scmp.eq.s32.totalorder %s20, 0
      %s23 = sadd.s32 %s22, 1
      %s24 = scalar_select %p21, %s22, %s23
      %p27 = pneg %p21
      %p28 = scmp.eq.s32.totalorder %s12, 1
      %p29 = por %p27, %p28
      %p30 = scmp.ne.s32.totalorder %s22, %s25
      %p31 = scmp.eq.s32.totalorder %s12, 0
      %p32 = por %p30, %p31
      %p33 = scmp.ne.s32.totalorder %s22, %s25
      %p34 = scmp.eq.s32.totalorder %s17, 1
      %p35 = por %p33, %p34
      %p36 = scmp.ne.s32.totalorder %s25, %s26
      %p37 = scmp.eq.s32.totalorder %s17, 0
      %p38 = por %p36, %p37
      %p39 = scmp.ne.s32.totalorder %s25, %s26
      %p40 = scmp.eq.s32.totalorder %s18, 1
      %p41 = por %p39, %p40
      %p43 = scmp.ne.s32.totalorder %s26, %s42
      %p44 = scmp.eq.s32.totalorder %s18, 0
      %p45 = por %p43, %p44
      %s47 = sadd.s32 %s46, 1
      %p50 = scmp.eq.s32.totalorder %s12, 1
      %p51 = scmp.ne.s32.totalorder %s46, %s48
      %p52 = scmp.eq.s32.totalorder %s12, 0
      %p53 = por %p51, %p52
      %p54 = scmp.ne.s32.totalorder %s46, %s48
      %p55 = scmp.eq.s32.totalorder %s17, 1
      %p56 = por %p54, %p55
      %p57 = scmp.ne.s32.totalorder %s48, %s49
      %p58 = scmp.eq.s32.totalorder %s17, 0
      %p59 = por %p57, %p58
      %p60 = scmp.ne.s32.totalorder %s48, %s49
      %p61 = scmp.eq.s32.totalorder %s18, 1
      %p62 = por %p60, %p61
      %p64 = scmp.ne.s32.totalorder %s49, %s63
      %p65 = scmp.eq.s32.totalorder %s18, 0
      %p66 = por %p64, %p65
      %s68 = sadd.s32 %s67, 1
      %p71 = scmp.eq.s32.totalorder %s12, 1
      %p72 = scmp.ne.s32.totalorder %s67, %s69
      %p73 = scmp.eq.s32.totalorder %s12, 0
      %p74 = por %p72, %p73
      %p75 = scmp.ne.s32.totalorder %s67, %s69
      %p76 = scmp.eq.s32.totalorder %s17, 1
      %p77 = por %p75, %p76
      %p78 = scmp.ne.s32.totalorder %s69, %s70
      %p79 = scmp.eq.s32.totalorder %s17, 0
      %p80 = por %p78, %p79
      %p81 = scmp.ne.s32.totalorder %s69, %s70
      %p82 = scmp.eq.s32.totalorder %s18, 1
      %p83 = por %p81, %p82
      %p85 = scmp.ne.s32.totalorder %s70, %s84
      %p86 = scmp.eq.s32.totalorder %s18, 0
      %p87 = por %p85, %p86
      %s89 = sadd.s32 %s88, 1
      %p92 = scmp.eq.s32.totalorder %s12, 1
      %p93 = scmp.ne.s32.totalorder %s88, %s90
      %p94 = scmp.eq.s32.totalorder %s12, 0
      %p95 = por %p93, %p94
      %p96 = scmp.ne.s32.totalorder %s88, %s90
      %p97 = scmp.eq.s32.totalorder %s17, 1
      %p98 = por %p96, %p97
      %p99 = scmp.ne.s32.totalorder %s90, %s91
      %p100 = scmp.eq.s32.totalorder %s17, 0
      %p101 = por %p99, %p100
      %p102 = scmp.ne.s32.totalorder %s90, %s91
      %p103 = scmp.eq.s32.totalorder %s18, 1
      %p104 = por %p102, %p103
      %p106 = scmp.ne.s32.totalorder %s91, %s105
      %p107 = scmp.eq.s32.totalorder %s18, 0
      %p108 = por %p106, %p107
      %s110 = sadd.s32 %s109, 1
      %p113 = scmp.eq.s32.totalorder %s12, 1
      %p114 = scmp.ne.s32.totalorder %s109, %s111
      %p115 = scmp.eq.s32.totalorder %s12, 0
      %p116 = por %p114, %p115
      %p117 = scmp.ne.s32.totalorder %s109, %s111
      %p118 = scmp.eq.s32.totalorder %s17, 1
      %p119 = por %p117, %p118
      %p120 = scmp.ne.s32.totalorder %s111, %s112
      %p121 = scmp.eq.s32.totalorder %s17, 0
      %p122 = por %p120, %p121
      %p123 = scmp.ne.s32.totalorder %s111, %s112
      %p124 = scmp.eq.s32.totalorder %s18, 1
      %p125 = por %p123, %p124
      %p127 = scmp.ne.s32.totalorder %s112, %s126
      %p128 = scmp.eq.s32.totalorder %s18, 0
      %p129 = por %p127, %p128
      %s131 = sadd.s32 %s130, 1
      %p134 = scmp.eq.s32.totalorder %s12, 1
      %p135 = scmp.ne.s32.totalorder %s130, %s132
      %p136 = scmp.eq.s32.totalorder %s12, 0
      %p137 = por %p135, %p136
      %p138 = scmp.ne.s32.totalorder %s130, %s132
      %p139 = scmp.eq.s32.totalorder %s17, 1
      %p140 = por %p138, %p139
      %p141 = scmp.ne.s32.totalorder %s132, %s133
      %p142 = scmp.eq.s32.totalorder %s17, 0
      %p143 = por %p141, %p142
      %p144 = scmp.ne.s32.totalorder %s132, %s133
      %p145 = scmp.eq.s32.totalorder %s18, 1
      %p146 = por %p144, %p145
      %p148 = scmp.ne.s32.totalorder %s133, %s147
      %p149 = scmp.eq.s32.totalorder %s18, 0
      %p150 = por %p148, %p149
      %p151 = scmp.le.s32.totalorder 1, %s12
      %p152 = scmp.lt.s32.totalorder %s12, 3
      %p153 = pnand %p151, %p152
      %p154 = pneg %p153
      // Predicated region
      $region9: #{image_backbone_forward.37} parent=5 // pred_check
        _
      $region10: #{image_backbone_forward.37} parent=5 // pred_check_branch
        %156 = sbr.rel (%p153) target = $region12
      $region11: #{image_backbone_forward.37} parent=5 // pred_region
        %s157 = ssub.s32 %s12, 1
        // Predicated region
        $region13: #{image_backbone_forward.37} parent=11 // pred_check
          %p158 = pneg %p59
        $region14: #{image_backbone_forward.37} parent=11 // pred_check_branch
          %160 = sbr.rel (%p158) target = $region16
        $region15: #{image_backbone_forward.37} parent=11 // pred_region
          _
        $region16: #{image_backbone_forward.37} parent=11 // pred_fallthru
          _
        // Predicated region
        $region17: #{image_backbone_forward.37} parent=11 // pred_check
          %p161 = pneg %p80
        $region18: #{image_backbone_forward.37} parent=11 // pred_check_branch
          %163 = sbr.rel (%p161) target = $region20
        $region19: #{image_backbone_forward.37} parent=11 // pred_region
          _
        $region20: #{image_backbone_forward.37} parent=11 // pred_fallthru
          _
        // Predicated region
        $region21: #{image_backbone_forward.37} parent=11 // pred_check
          %p164 = pneg %p101
        $region22: #{image_backbone_forward.37} parent=11 // pred_check_branch
          %166 = sbr.rel (%p164) target = $region24
        $region23: #{image_backbone_forward.37} parent=11 // pred_region
          _
        $region24: #{image_backbone_forward.37} parent=11 // pred_fallthru
          _
        // Predicated region
        $region25: #{image_backbone_forward.37} parent=11 // pred_check
          %p167 = pneg %p122
        $region26: #{image_backbone_forward.37} parent=11 // pred_check_branch
          %169 = sbr.rel (%p167) target = $region28
        $region27: #{image_backbone_forward.37} parent=11 // pred_region
          _
        $region28: #{image_backbone_forward.37} parent=11 // pred_fallthru
          _
      $region12: #{image_backbone_forward.37} parent=5 // pred_fallthru
        _
      %p170 = scmp.lt.s32.totalorder %s12, 2
      // Predicated region
      $region29: #{image_backbone_forward.37} parent=5 // pred_check
        %p171 = pneg %p170
      $region30: #{image_backbone_forward.37} parent=5 // pred_check_branch
        %173 = sbr.rel (%p171) target = $region32
      $region31: #{image_backbone_forward.37} parent=5 // pred_region
        // Predicated region
        $region33: #{image_backbone_forward.37} parent=31 // pred_check
          %p174 = pneg %p32
        $region34: #{image_backbone_forward.37} parent=31 // pred_check_branch
          %176 = sbr.rel (%p174) target = $region36
        $region35: #{image_backbone_forward.37} parent=31 // pred_region
          %p177 = scmp.lt.s32.totalorder %s12, 1
          %s178 = scalar_select %p177, %s12, 1
          %s179 = smul.addr %s178, 2
          %s180 = scalar_lea.vmem %s0, %s179
        $region36: #{image_backbone_forward.37} parent=31 // pred_fallthru
          _
      $region32: #{image_backbone_forward.37} parent=5 // pred_fallthru
        _
      %p181 = scmp.le.s32.totalorder 1, %s12
      %p182 = scmp.lt.s32.totalorder %s12, 3
      %p183 = pnand %p181, %p182
      %p184 = pneg %p183
      // Predicated region
      $region37: #{image_backbone_forward.37} parent=5 // pred_check
        _
      $region38: #{image_backbone_forward.37} parent=5 // pred_check_branch
        %186 = sbr.rel (%p183) target = $region40
      $region39: #{image_backbone_forward.37} parent=5 // pred_region
        %s187 = ssub.s32 %s12, 1
        %p188 = scmp.lt.s32.totalorder %s17, 1
        %s189 = scalar_select %p188, %s17, 1
        %s190 = smul.addr %s189, 2
        %s191 = scalar_lea.vmem %s0, %s190
        %p192 = pneg %p38
        %p193 = pneg %p35
        %p194 = pneg %p59
        %p195 = pneg %p56
        %p196 = pneg %p80
        %p197 = pneg %p77
        %p198 = pneg %p101
        %p199 = pneg %p98
        %p200 = pneg %p122
        %p201 = pneg %p119
        %p202 = pneg %p143
        %p203 = pneg %p140
        %p204 = scmp.lt.s32.totalorder %s17, 1
        %s205 = scalar_select %p204, %s17, 1
        %s206 = smul.addr %s205, 2
        %s207 = scalar_lea.vmem %s0, %s206
        %v209 = vld [vmem:[%s207] sm:$0x3]
        %v210 = vunpack.c.l.bf16 %v209
        %vm211 = vcmask 519168
        %v212 = vsel %vm211, %v210, 0.0
        %213 = vadd.xlane.f32.xlu0 %v212
        %v214 = vpop.xlane.xlu0 %213
        %v215 = vrcp.pop 64.0
        %v216 = vmul.f32 64.0, %v215
        %v217 = vsub.f32 1.0, %v216
        %v218 = vmul.f32 %v215, %v217
        %v219 = vadd.f32 %v215, %v218
        %vm220 = vweird.f32 %v215
        %v221 = vsel %vm220, %v215, %v219
        %v222 = vmul.f32 %v214, %v221
        %v223 = vsub.f32 %v210, %v222
        %v224 = vmul.f32 %v223, %v223
        %v225 = vsel %vm211, %v224, 0.0
        %226 = vadd.xlane.f32.xlu0 %v225
        %v227 = vpop.xlane.xlu0 %226
        %v228 = vmul.f32 %v227, %v221
        %v229 = vadd.f32 %v228, 1e-05
        %v230 = vrsqrt.pop %v229
        %v231 = vmul.f32 %v230, %v229
        %v232 = vmul.f32 %v231, %v230
        %v233 = vmul.f32 0.5, %v232
        %v234 = vsub.f32 1.5, %v233
        %v235 = vmul.f32 %v230, %v234
        %vm236 = vweird.f32 %v229
        %vm237 = vweird.f32 %v230
        %vm238 = vmor %vm236, %vm237
        %v239 = vsel %vm238, %v230, %v235
        %v240 = vmul.f32 %v223, %v239
        %v241 = vld [vmem:[%s1] sm:$0x1]
        %v243 = vperm.slane %v241, 0
        %v245 = vmul.f32 %v240, %v243
        %v246 = vld [vmem:[%s2] sm:$0x1]
        %v248 = vperm.slane %v246, 0
        %v250 = vadd.f32 %v245, %v248
        %v251 = vsel %vm211, %v250, 0.0
        %v252 = vrot.slane %v251, 4
        %v253 = vadd.f32 %v251, %v252
        %v254 = vrot.slane %v253, 2
        %v255 = vadd.f32 %v253, %v254
        %v256 = vrot.slane %v255, 1
        %v257 = vadd.f32 %v255, %v256
        %v258 = vrcp.pop 4.0
        %v259 = vmul.f32 4.0, %v258
        %v260 = vsub.f32 1.0, %v259
        %v261 = vmul.f32 %v258, %v260
        %v262 = vadd.f32 %v258, %v261
        %vm263 = vweird.f32 %v258
        %v264 = vsel %vm263, %v258, %v262
        %v265 = vmul.f32 %v257, %v264
        %v266 = vpack.c.bf16 %v265, %v265
        %v267 = vld [vmem:[%s3] sm:$0xf]
        %v268 = vld [vmem:[%s3 + $0x4] sm:$0xf]
        %v269 = vld [vmem:[%s3 + $0x8] sm:$0xf]
        %v270 = vld [vmem:[%s3 + $0xc] sm:$0xf]
        %v271 = vld [vmem:[%s3 + $0x10] sm:$0xf]
        %v272 = vld [vmem:[%s3 + $0x14] sm:$0xf]
        %v273 = vld [vmem:[%s3 + $0x18] sm:$0xf]
        %v274 = vld [vmem:[%s3 + $0x1c] sm:$0xf]
        %v275 = vld [vmem:[%s4] sm:$0x1]
        %v284 = vunpack.c.l.b16 %v267
        %v285 = vunpack.c.l.b16 %v268
        %v286 = vunpack.c.l.b16 %v269
        %v287 = vunpack.c.l.b16 %v270
        %v288 = vunpack.c.l.b16 %v271
        %v289 = vunpack.c.l.b16 %v272
        %v290 = vunpack.c.l.b16 %v273
        %v291 = vunpack.c.l.b16 %v274
        %v292 = vpack.c.b16 %v285, %v284
        %v293 = vpack.c.b16 %v287, %v286
        %v294 = vpack.c.b16 %v289, %v288
        %v295 = vpack.c.b16 %v291, %v290
        %vm300 = vcmask 523264
        %v302 = vsel %vm300, %v266, 0
        %304 = vmatpush.bf16.msra.mxu0 0
        %305 = vmatpush.bf16.msra.mxu0 0
        %306 = vmatpush.bf16.msra.mxu0 0
        %307 = vmatpush.bf16.msra.mxu0 0
        %308 = vmatpush.bf16.msra.mxu0 %v295
        %309 = vmatpush.bf16.msra.mxu0 %v294
        %310 = vmatpush.bf16.msra.mxu0 %v293
        %311 = vmatpush.bf16.msra.mxu0 %v292
        %312 = vmatmul.bf16.gmra.mxu0 %v302
        %v313 = vpop.f32.mrf.mxu0
        %v314 = vadd.f32 %v275, %v313
        %v315 = vpop.f32.mrf.mxu0
        %316 = vdwg.mxu0
        %s317 = scalar_lea.vmem [#allocation2], %s17
        %318 = vst [vmem:[%s317] sm:$0x1] %v314
        // Predicated region
        $region41: #{image_backbone_forward.37} parent=39 // pred_check
          %p319 = pneg %p140
        $region42: #{image_backbone_forward.37} parent=39 // pred_check_branch
          %321 = sbr.rel (%p319) target = $region44
        $region43: #{image_backbone_forward.37} parent=39 // pred_region
          %323 = vsyncadd [#allocation3], 0
          %s325 = sshll.u32 [#allocation2], 4
          %s326 = int_to_ptr.vmem [resolvable:$true] %s325
          %s327 = sshll.u32 %s5, 4
          %s328 = int_to_ptr.hbm [resolvable:$true] %s327
          %330 = dma.vmem_to_hbm [thread:$0]  %s326, 32, %s328, [#allocation3]
        $region44: #{image_backbone_forward.37} parent=39 // pred_fallthru
          _
        // Predicated region
        $region45: #{image_backbone_forward.37} parent=39 // pred_check
          %p331 = pneg %p140
        $region46: #{image_backbone_forward.37} parent=39 // pred_check_branch
          %333 = sbr.rel (%p331) target = $region48
        $region47: #{image_backbone_forward.37} parent=39 // pred_region
          %335 = dma.done [#allocation3], 32
        $region48: #{image_backbone_forward.37} parent=39 // pred_fallthru
          _
      $region40: #{image_backbone_forward.37} parent=5 // pred_fallthru
        _
      %p336 = scmp.le.s32.totalorder 2, %s12
      // Predicated region
      $region49: #{image_backbone_forward.37} parent=5 // pred_check
        %p337 = pneg %p336
      $region50: #{image_backbone_forward.37} parent=5 // pred_check_branch
        %339 = sbr.rel (%p337) target = $region52
      $region51: #{image_backbone_forward.37} parent=5 // pred_region
        %s340 = ssub.s32 %s12, 2
      $region52: #{image_backbone_forward.37} parent=5 // pred_fallthru
        _
    $region6: #{image_backbone_forward.37} parent=1 // loop_footer
      %s16 = sadd.s32 1, %s12
    $region7: #{image_backbone_forward.37} parent=1 // loop_footer_branch
      %11 = sbr.rel target = $region3
    $region8: #{image_backbone_forward.37} parent=1 // loop_exit
      _
    %341 = vsyncpa [#allocation3], 1
    %s342 = scalar_lea.sflag [#allocation3], 1
    %343 = vsyncpa %s342, 1

</llo_original>
